<compile_context>
chip_gen: v7x
topology: tpu7x:2x2x1
jax: 0.10.0
libtpu: 0.0.40
codegen_flags: <defaults>
</compile_context>

<pallas_src>
import jax
import jax.numpy as jnp
from jax import lax
from jax.experimental import pallas as pl
from jax.experimental.pallas import tpu as pltpu


def _round_up(x, m):
    return -(-x // m) * m


# ---------------------------------------------------------------------------
# Exact GELU (erf via Abramowitz-Stegun 7.1.26; max |erf err| ~1.5e-7).
# ---------------------------------------------------------------------------
_ERF_P = 0.3275911
_ERF_A1 = 0.254829592
_ERF_A2 = -0.284496736
_ERF_A3 = 1.421413741
_ERF_A4 = -1.453152027
_ERF_A5 = 1.061405429
_INV_SQRT2 = 0.7071067811865476


def _erf(x):
    ax = jnp.abs(x)
    # Full-precision divide kept: an approximate EUP reciprocal would add ~1e-3
    # relative error to erf and threaten the output tolerance.
    t = 1.0 / (1.0 + _ERF_P * ax)
    poly = ((((_ERF_A5 * t + _ERF_A4) * t + _ERF_A3) * t + _ERF_A2) * t
            + _ERF_A1) * t
    y = 1.0 - poly * jnp.exp(-ax * ax)
    return jnp.where(x < 0.0, -y, y)


def _gelu(x):
    # matches torch.nn.functional.gelu default (exact / erf) to ~1e-6 abs
    return 0.5 * x * (1.0 + _erf(x * _INV_SQRT2))


# ---------------------------------------------------------------------------
# Kernel 1: Conv1d stack (channels-last), one batch element per grid step.
# ---------------------------------------------------------------------------
_CIN_PAD = 8          # 3 input channels zero-padded to one sublane group
_C = 32               # conv channel width (conv2..conv9)
_KW = 9 * _C          # im2col width for the widest (k=9) layers


def _conv_stack(x_nlc, w_pack, b_pack, w9t, b9col, n_valid):
    """Conv1d stack, channels-last, grid=(B_pad,) marked "parallel".

    x_nlc:  (B_pad, L, 8)   input, channels zero-padded 3->8
    w_pack: (8, 288, 32)    im2col weights for conv1..conv8 (zero-padded rows)
    b_pack: (8, 32)         biases for conv1..conv8 (conv1 bias zero-padded)
    w9t:    (32, 256)       conv9 im2col weight, pre-transposed (Cout, K*Cin)
    b9col:  (32, 1)         conv9 bias as a column
    n_valid: number of real batch rows (rows >= n_valid get zeros, no compute)

    Returns (B_pad, 32, L//16): conv9 output already channels-major, so the
    PyTorch x.view(-1, point_size*2) flatten is a free trailing-dim collapse.
    """
    B_pad, L, _ = x_nlc.shape
    L16 = L // 16

    def kernel(x_ref, w_ref, b_ref, w9t_ref, b9_ref, o_ref, pad_ref, col_ref):

        def mm(a, w):
            return jnp.dot(a, w, preferred_element_type=jnp.float32)

        def conv_k9(h, idx, length):
            # Conv1d(k=9, s=1, p=4): scatter h into the im2col scratch at the 9
            # tap shifts (halo rows pre-zeroed), then one (len,288)@(288,32).
            col_ref[0:4, :] = jnp.zeros((4, _KW), jnp.float32)
            col_ref[length - 4:length, :] = jnp.zeros((4, _KW), jnp.float32)
            for k in range(9):
                d = k - 4
                lo = k * _C
                hi = lo + _C
                if d <= 0:
                    col_ref[-d:length, lo:hi] = h[0:length + d, :]
                else:
                    col_ref[0:length - d, lo:hi] = h[d:length, :]
            return _gelu(mm(col_ref[0:length, :], w_ref[idx]) + b_ref[idx])

        def fill_col_s2(h, length):
            # Conv1d(k=8, s=2, p=3) im2col: padded activation buffer with
            # halo-only zeroing, then 8 sublane-strided tap reads.
            lout = length // 2
            pad_ref[0:3, :] = jnp.zeros((3, _C), jnp.float32)
            pad_ref[3:3 + length, :] = h
            pad_ref[3 + length:6 + length, :] = jnp.zeros((3, _C), jnp.float32)
            # TODO(synk): a one-time even/odd de-interleave (XLU) would turn the
            # 8 strided reads into dense reads; kept strided for simplicity.
            for k in range(8):
                col_ref[0:lout, k * _C:(k + 1) * _C] = (
                    pad_ref[pl.ds(k, lout, stride=2), :])
            return lout

        def conv_k8s2(h, idx, length):
            lout = fill_col_s2(h, length)
            return _gelu(mm(col_ref[0:lout, 0:8 * _C], w_ref[idx, 0:8 * _C, :])
                         + b_ref[idx])

        def compute():
            x = x_ref[0]                                           # (L, 8)
            h = _gelu(mm(x, w_ref[0, 0:_CIN_PAD, :]) + b_ref[0])   # conv1
            h = _gelu(mm(h, w_ref[1, 0:_C, :]) + b_ref[1])         # conv2
            h = conv_k9(h, 2, L)                                   # conv3
            h = conv_k9(h, 3, L)                                   # conv4
            h = conv_k9(h, 4, L)                                   # conv5
            h = conv_k8s2(h, 5, L)                                 # conv6
            h = conv_k8s2(h, 6, L // 2)                            # conv7
            h = conv_k8s2(h, 7, L // 4)                            # conv8
            # conv9: emit pre-transposed (32, L16) via an A @ B^T contraction so
            # the downstream channel-major flatten is a free reshape.
            lout = fill_col_s2(h, L // 8)
            st = lax.dot_general(
                w9t_ref[...], col_ref[0:lout, 0:8 * _C],
                dimension_numbers=(((1,), (1,)), ((), ())),
                preferred_element_type=jnp.float32)                # (32, L16)
            o_ref[0] = _gelu(st + b9_ref[...]).astype(o_ref.dtype)

        if n_valid == B_pad:
            compute()
        else:
            b = pl.program_id(0)

            @pl.when(b < n_valid)
            def _():
                compute()

            @pl.when(b >= n_valid)
            def _():
                o_ref[...] = jnp.zeros_like(o_ref)

    # advisory cost estimate
    flops = 2 * n_valid * L * (_CIN_PAD * _C + _C * _C + 3 * _KW * _C)
    trans = n_valid * _C * (5 * L)
    l = L
    for _ in range(4):
        l //= 2
        flops += 2 * n_valid * l * 8 * _C * _C
        trans += n_valid * _C * l
    bytes_accessed = 4 * (int(x_nlc.size) + int(w_pack.size) + int(b_pack.size)
                          + int(w9t.size) + int(b9col.size) + B_pad * _C * L16)

    return pl.pallas_call(
        kernel,
        out_shape=jax.ShapeDtypeStruct((B_pad, _C, L16), jnp.float32),
        grid_spec=pltpu.PrefetchScalarGridSpec(
            num_scalar_prefetch=0,
            grid=(B_pad,),
            in_specs=[
                pl.BlockSpec((1, L, _CIN_PAD), lambda b: (b, 0, 0)),
                pl.BlockSpec(w_pack.shape, lambda b: (0, 0, 0)),
                pl.BlockSpec(b_pack.shape, lambda b: (0, 0)),
                pl.BlockSpec(w9t.shape, lambda b: (0, 0)),
                pl.BlockSpec(b9col.shape, lambda b: (0, 0)),
            ],
            out_specs=pl.BlockSpec((1, _C, L16), lambda b: (b, 0, 0)),
            scratch_shapes=[
                pltpu.VMEM((L + 8, _C), jnp.float32),   # padded activations
                pltpu.VMEM((L, _KW), jnp.float32),      # im2col scratch
            ],
        ),
        compiler_params=pltpu.CompilerParams(
            dimension_semantics=("parallel",),
        ),
        cost_estimate=pl.CostEstimate(
            flops=int(flops), transcendentals=int(trans),
            bytes_accessed=int(bytes_accessed)),
    )(x_nlc, w_pack, b_pack, w9t, b9col)


# ---------------------------------------------------------------------------
# Kernel 2: linear head (lin1 K-reduction streamed over the grid, resident acc).
# ---------------------------------------------------------------------------
def _mlp_head_kernel(f_ref, w1_ref, b1_ref, w2_ref, b2_ref, w3_ref, b3_ref,
                     o_ref, acc_ref):
    k = pl.program_id(0)

    @pl.when(k == 0)
    def _():
        acc_ref[...] = jnp.zeros_like(acc_ref)

    acc_ref[...] += jnp.dot(f_ref[...], w1_ref[...],
                            preferred_element_type=jnp.float32)

    @pl.when(k == pl.num_programs(0) - 1)
    def _():
        h = _gelu(acc_ref[...] + b1_ref[...])
        h = _gelu(jnp.dot(h, w2_ref[...], preferred_element_type=jnp.float32)
                  + b2_ref[...])
        o_ref[...] = (jnp.dot(h, w3_ref[...], preferred_element_type=jnp.float32)
                      + b3_ref[...]).astype(o_ref.dtype)


def _mlp_head(feat, w1, b1, w2, b2, w3, b3, *, lin1_dtype=jnp.float32,
              k_tile=512):
    m, k_dim = feat.shape
    n1 = w1.shape[1]
    latent = w3.shape[1]

    # lin1's reduction dim is ALWAYS tiled (weight streamed through VMEM); feat
    # columns / w1 rows are zero-padded to a tile multiple so the tiling never
    # degenerates into a monolithic block (a ~61 MiB f32 w1 at point_size~7500
    # would bust v7x's 64 MiB VMEM and every default scoped-VMEM limit).
    tk = min(k_tile, _round_up(k_dim, 128))
    k_pad = _round_up(k_dim, tk)
    if k_pad != k_dim:
        feat = jnp.pad(feat, ((0, 0), (0, k_pad - k_dim)))
        w1 = jnp.pad(w1, ((0, k_pad - k_dim), (0, 0)))
    if lin1_dtype != jnp.float32:
        # Optional bandwidth optimization: stream lin1 in bf16, accumulate f32.
        feat = feat.astype(lin1_dtype)
        w1 = w1.astype(lin1_dtype)

    grid = (k_pad // tk,)

    return pl.pallas_call(
        _mlp_head_kernel,
        out_shape=jax.ShapeDtypeStruct((m, latent), jnp.float32),
        grid_spec=pltpu.PrefetchScalarGridSpec(
            num_scalar_prefetch=0,
            grid=grid,
            in_specs=[
                pl.BlockSpec((m, tk), lambda k: (0, k)),
                pl.BlockSpec((tk, n1), lambda k: (k, 0)),
                pl.BlockSpec(b1.shape, lambda k: (0, 0)),
                pl.BlockSpec(w2.shape, lambda k: (0, 0)),
                pl.BlockSpec(b2.shape, lambda k: (0, 0)),
                pl.BlockSpec(w3.shape, lambda k: (0, 0)),
                pl.BlockSpec(b3.shape, lambda k: (0, 0)),
            ],
            out_specs=pl.BlockSpec((m, latent), lambda k: (0, 0)),
            scratch_shapes=[pltpu.VMEM((m, n1), jnp.float32)],
        ),
        compiler_params=pltpu.CompilerParams(
            dimension_semantics=("arbitrary",),
        ),
        cost_estimate=pl.CostEstimate(
            flops=int(2 * m * (k_pad * n1 + w2.size + w3.size)),
            transcendentals=int(m * (n1 + w2.shape[1])),
            bytes_accessed=int(feat.dtype.itemsize * (int(feat.size) + int(w1.size))
                               + 4 * (int(w2.size) + int(w3.size) + int(b1.size)
                                      + int(b2.size) + int(b3.size)
                                      + m * latent))),
    )(feat, w1, b1, w2, b2, w3, b3)


# ---------------------------------------------------------------------------
# Parameter packing + full forward (PyTorch-equivalent semantics).
# ---------------------------------------------------------------------------
def _pack_conv_params(conv_ws, conv_bs):
    """conv1..conv8 -> packed im2col weights/biases; conv9 -> pre-transposed."""
    w_pack = jnp.zeros((8, _KW, _C), jnp.float32)
    b_pack = jnp.zeros((8, _C), jnp.float32)
    for i in range(8):
        w = conv_ws[i]                                  # (Cout, Cin, K) torch
        cout, cin, ksz = w.shape
        w_kic = jnp.transpose(w, (2, 1, 0))             # (K, Cin, Cout)
        if i == 0:
            w_kic = jnp.pad(w_kic, ((0, 0), (0, _CIN_PAD - cin), (0, 0)))
            cin = _CIN_PAD
        wm = w_kic.reshape(ksz * cin, cout)             # im2col weight matrix
        w_pack = w_pack.at[i, :ksz * cin, :cout].set(wm)
        b_pack = b_pack.at[i, :cout].set(conv_bs[i])
    # conv9 pre-transposed: w9t[o, k*32 + i] = w9[o, i, k]
    w9 = conv_ws[8]                                     # (32, 32, 8)
    w9t = jnp.transpose(w9, (0, 2, 1)).reshape(_C, 8 * _C)
    b9col = conv_bs[8].reshape(_C, 1)
    return w_pack, b_pack, w9t, b9col


def conv_encoder_7500t(x, params, point_size, latent_size, *,
                       lin1_dtype=jnp.float32):
    """x: (B, 3, point_size) f32 -> (B, latent_size) f32."""
    conv_ws, conv_bs, lin_ws, lin_bs = params
    B, cin, L = x.shape
    assert cin == 3 and L == point_size and point_size % 16 == 0
    L16 = L // 16
    feat_dim = _C * L16                                 # == point_size * 2

    # Pad batch to a full sublane group so both kernels run on dense rows.
    B_pad = max(8, _round_up(B, 8))

    # NCL -> NLC, channels 3->8 and batch B->B_pad zero pad (tiny input-side op).
    x_nlc = jnp.transpose(x, (0, 2, 1))
    x_nlc = jnp.pad(x_nlc, ((0, B_pad - B), (0, 0), (0, _CIN_PAD - cin)))

    w_pack, b_pack, w9t, b9col = _pack_conv_params(conv_ws, conv_bs)

    conv_out = _conv_stack(x_nlc, w_pack, b_pack, w9t, b9col, n_valid=B)
    # Channel-major flatten (PyTorch x.view(-1, point_size*2)): the conv kernel
    # already emitted (B_pad, 32, L16), so this is a free trailing-dim collapse.
    feat = conv_out.reshape(B_pad, feat_dim)

    lb = [b.reshape(1, -1) for b in lin_bs]
    out = _mlp_head(feat, lin_ws[0], lb[0], lin_ws[1], lb[1], lin_ws[2], lb[2],
                    lin1_dtype=lin1_dtype)
    return out[:B]


# ---------------------------------------------------------------------------
# Deterministic nn.Conv1d / nn.Linear style init and a pure-JAX reference.
# ---------------------------------------------------------------------------
def init_params(key, point_size, latent_size):
    conv_cfg = [
        (3, 16, 1), (16, 32, 1),
        (32, 32, 9), (32, 32, 9), (32, 32, 9),
        (32, 32, 8), (32, 32, 8), (32, 32, 8), (32, 32, 8),
    ]
    conv_ws, conv_bs = [], []
    for cin, cout, ksz in conv_cfg:
        key, kw, kb = jax.random.split(key, 3)
        bound = 1.0 / (cin * ksz) ** 0.5
        conv_ws.append(jax.random.uniform(kw, (cout, cin, ksz), jnp.float32,
                                          -bound, bound))
        conv_bs.append(jax.random.uniform(kb, (cout,), jnp.float32,
                                          -bound, bound))

    lin_cfg = [(point_size * 2, 1024), (1024, 768), (768, latent_size)]
    lin_ws, lin_bs = [], []
    for fan_in, fan_out in lin_cfg:
        key, kw, kb = jax.random.split(key, 3)
        bound = 1.0 / fan_in ** 0.5
        lin_ws.append(jax.random.uniform(kw, (fan_in, fan_out), jnp.float32,
                                         -bound, bound))
        lin_bs.append(jax.random.uniform(kb, (fan_out,), jnp.float32,
                                         -bound, bound))
    return conv_ws, conv_bs, lin_ws, lin_bs


def reference(x, params, point_size):
    conv_ws, conv_bs, lin_ws, lin_bs = params
    hi = jax.lax.Precision.HIGHEST
    g = lambda t: jax.nn.gelu(t, approximate=False)
    cfg = [(1, 0), (1, 0), (1, 4), (1, 4), (1, 4), (2, 3), (2, 3), (2, 3), (2, 3)]
    h = x
    for w, b, (stride, pad) in zip(conv_ws, conv_bs, cfg):
        h = jax.lax.conv_general_dilated(
            h, w, window_strides=(stride,), padding=[(pad, pad)],
            dimension_numbers=("NCH", "OIH", "NCH"), precision=hi)
        h = g(h + b[None, :, None])
    h = h.reshape(-1, point_size * 2)
    h = g(jnp.dot(h, lin_ws[0], precision=hi) + lin_bs[0])
    h = g(jnp.dot(h, lin_ws[1], precision=hi) + lin_bs[1])
    return jnp.dot(h, lin_ws[2], precision=hi) + lin_bs[2]


if __name__ == "__main__":
    batch = 2
    point_size = 128          # must be a multiple of 16 (four stride-2 convs)
    latent_size = 32

    key = jax.random.PRNGKey(0)
    key, kx = jax.random.split(key)
    x = jax.random.normal(kx, (batch, 3, point_size), jnp.float32)
    params = init_params(key, point_size, latent_size)

    y = conv_encoder_7500t(x, params, point_size, latent_size)
    y = jax.block_until_ready(y)
    assert y.shape == (batch, latent_size), y.shape

    y_ref = reference(x, params, point_size)
    max_err = float(jnp.max(jnp.abs(y - y_ref)))
    assert jnp.allclose(y, y_ref, atol=1e-3, rtol=1e-3), max_err

    print("KERNEL_OK")
</pallas_src>

<mosaic_0001>
module attributes {stable_mosaic.version = 11 : i64} {
  func.func @kernel(%arg0: i32, %arg1: memref<1x128x8xf32, #tpu.memory_space<vmem>>, %arg2: memref<8x288x32xf32, #tpu.memory_space<vmem>>, %arg3: memref<8x32xf32, #tpu.memory_space<vmem>>, %arg4: memref<32x256xf32, #tpu.memory_space<vmem>>, %arg5: memref<32x1xf32, #tpu.memory_space<vmem>>, %arg6: memref<1x32x8xf32, #tpu.memory_space<vmem>>, %arg7: memref<136x32xf32, #tpu.memory_space<vmem>>, %arg8: memref<128x288xf32, #tpu.memory_space<vmem>>) attributes {dimension_semantics = [#tpu.dimension_semantics<parallel>], iteration_bounds = array<i64: 8>, scalar_prefetch = 0 : i64, scratch_operands = 2 : i64, tpu.core_type = #tpu.core_type<tc>, window_params = [{transform_indices = @transform_0, window_bounds = array<i64: 1, 128, 8>}, {pipeline_mode = #tpu.pipeline_mode<synchronous>, transform_indices = @transform_1, window_bounds = array<i64: 8, 288, 32>}, {pipeline_mode = #tpu.pipeline_mode<synchronous>, transform_indices = @transform_2, window_bounds = array<i64: 8, 32>}, {pipeline_mode = #tpu.pipeline_mode<synchronous>, transform_indices = @transform_3, window_bounds = array<i64: 32, 256>}, {pipeline_mode = #tpu.pipeline_mode<synchronous>, transform_indices = @transform_4, window_bounds = array<i64: 32, 1>}, {transform_indices = @transform_5, window_bounds = array<i64: 1, 32, 8>}]} {
    %c2_i32 = arith.constant 2 : i32
    %0 = arith.cmpi slt, %arg0, %c2_i32 : i32
    %1 = arith.extui %0 : i1 to i32
    %c0_i32 = arith.constant 0 : i32
    %2 = arith.cmpi ne, %1, %c0_i32 : i32
    scf.if %2 {
      %c0 = arith.constant 0 : index
      %c0_2 = arith.constant 0 : index
      %c0_3 = arith.constant 0 : index
      %6 = vector.load %arg1[%c0, %c0_2, %c0_3] : memref<1x128x8xf32, #tpu.memory_space<vmem>>, vector<1x128x8xf32>
      %7 = vector.shape_cast %6 : vector<1x128x8xf32> to vector<128x8xf32>
      %c0_4 = arith.constant 0 : index
      %c0_5 = arith.constant 0 : index
      %c0_6 = arith.constant 0 : index
      %8 = vector.load %arg2[%c0_4, %c0_5, %c0_6] : memref<8x288x32xf32, #tpu.memory_space<vmem>>, vector<1x8x32xf32>
      %9 = vector.shape_cast %8 : vector<1x8x32xf32> to vector<8x32xf32>
      %cst = arith.constant dense<0.000000e+00> : vector<128x32xf32>
      %10 = tpu.matmul %7, %9, %cst {dimension_numbers = #tpu.dot_dimension_numbers<[1], [0], [0], [1], [0, 0, 1, 1], [], []>} : vector<128x8xf32>, vector<8x32xf32>, vector<128x32xf32> -> vector<128x32xf32>
      %c0_7 = arith.constant 0 : index
      %c0_8 = arith.constant 0 : index
      %11 = vector.load %arg3[%c0_7, %c0_8] : memref<8x32xf32, #tpu.memory_space<vmem>>, vector<1x32xf32>
      %12 = vector.shape_cast %11 : vector<1x32xf32> to vector<32xf32>
      %13 = vector.shape_cast %12 : vector<32xf32> to vector<1x32xf32>
      %14 = vector.broadcast %13 : vector<1x32xf32> to vector<128x32xf32>
      %15 = arith.addf %10, %14 : vector<128x32xf32>
      %cst_9 = arith.constant 5.000000e-01 : f32
      %16 = vector.broadcast %cst_9 : f32 to vector<128x32xf32>
      %17 = arith.mulf %16, %15 : vector<128x32xf32>
      %cst_10 = arith.constant 0.707106769 : f32
      %18 = vector.broadcast %cst_10 : f32 to vector<128x32xf32>
      %19 = arith.mulf %15, %18 : vector<128x32xf32>
      %20 = math.absf %19 : vector<128x32xf32>
      %cst_11 = arith.constant 0.327591091 : f32
      %21 = vector.broadcast %cst_11 : f32 to vector<128x32xf32>
      %22 = arith.mulf %21, %20 : vector<128x32xf32>
      %cst_12 = arith.constant 1.000000e+00 : f32
      %23 = vector.broadcast %cst_12 : f32 to vector<128x32xf32>
      %24 = arith.addf %23, %22 : vector<128x32xf32>
      %cst_13 = arith.constant 1.000000e+00 : f32
      %25 = vector.broadcast %cst_13 : f32 to vector<128x32xf32>
      %26 = arith.divf %25, %24 : vector<128x32xf32>
      %cst_14 = arith.constant 1.06140542 : f32
      %27 = vector.broadcast %cst_14 : f32 to vector<128x32xf32>
      %28 = arith.mulf %27, %26 : vector<128x32xf32>
      %cst_15 = arith.constant -1.45315206 : f32
      %29 = vector.broadcast %cst_15 : f32 to vector<128x32xf32>
      %30 = arith.addf %28, %29 : vector<128x32xf32>
      %31 = arith.mulf %30, %26 : vector<128x32xf32>
      %cst_16 = arith.constant 1.42141378 : f32
      %32 = vector.broadcast %cst_16 : f32 to vector<128x32xf32>
      %33 = arith.addf %31, %32 : vector<128x32xf32>
      %34 = arith.mulf %33, %26 : vector<128x32xf32>
      %cst_17 = arith.constant -0.284496725 : f32
      %35 = vector.broadcast %cst_17 : f32 to vector<128x32xf32>
      %36 = arith.addf %34, %35 : vector<128x32xf32>
      %37 = arith.mulf %36, %26 : vector<128x32xf32>
      %cst_18 = arith.constant 0.254829586 : f32
      %38 = vector.broadcast %cst_18 : f32 to vector<128x32xf32>
      %39 = arith.addf %37, %38 : vector<128x32xf32>
      %40 = arith.mulf %39, %26 : vector<128x32xf32>
      %cst_19 = arith.constant 0.000000e+00 : f32
      %41 = vector.broadcast %cst_19 : f32 to vector<128x32xf32>
      %42 = arith.subf %41, %20 : vector<128x32xf32>
      %43 = arith.mulf %42, %20 : vector<128x32xf32>
      %44 = math.exp %43 : vector<128x32xf32>
      %45 = arith.mulf %40, %44 : vector<128x32xf32>
      %cst_20 = arith.constant 1.000000e+00 : f32
      %46 = vector.broadcast %cst_20 : f32 to vector<128x32xf32>
      %47 = arith.subf %46, %45 : vector<128x32xf32>
      %cst_21 = arith.constant 0.000000e+00 : f32
      %48 = vector.broadcast %cst_21 : f32 to vector<128x32xf32>
      %49 = arith.cmpf olt, %19, %48 : vector<128x32xf32>
      %cst_22 = arith.constant 0.000000e+00 : f32
      %50 = vector.broadcast %cst_22 : f32 to vector<128x32xf32>
      %51 = arith.subf %50, %47 : vector<128x32xf32>
      %52 = arith.select %49, %51, %47 : vector<128x32xi1>, vector<128x32xf32>
      %cst_23 = arith.constant 1.000000e+00 : f32
      %53 = vector.broadcast %cst_23 : f32 to vector<128x32xf32>
      %54 = arith.addf %53, %52 : vector<128x32xf32>
      %55 = arith.mulf %17, %54 : vector<128x32xf32>
      %c1 = arith.constant 1 : index
      %c0_24 = arith.constant 0 : index
      %c0_25 = arith.constant 0 : index
      %56 = vector.load %arg2[%c1, %c0_24, %c0_25] : memref<8x288x32xf32, #tpu.memory_space<vmem>>, vector<1x32x32xf32>
      %57 = vector.shape_cast %56 : vector<1x32x32xf32> to vector<32x32xf32>
      %cst_26 = arith.constant dense<0.000000e+00> : vector<128x32xf32>
      %58 = tpu.matmul %55, %57, %cst_26 {dimension_numbers = #tpu.dot_dimension_numbers<[1], [0], [0], [1], [0, 0, 1, 1], [], []>} : vector<128x32xf32>, vector<32x32xf32>, vector<128x32xf32> -> vector<128x32xf32>
      %c1_27 = arith.constant 1 : index
      %c0_28 = arith.constant 0 : index
      %59 = vector.load %arg3[%c1_27, %c0_28] : memref<8x32xf32, #tpu.memory_space<vmem>>, vector<1x32xf32>
      %60 = vector.shape_cast %59 : vector<1x32xf32> to vector<32xf32>
      %61 = vector.shape_cast %60 : vector<32xf32> to vector<1x32xf32>
      %62 = vector.broadcast %61 : vector<1x32xf32> to vector<128x32xf32>
      %63 = arith.addf %58, %62 : vector<128x32xf32>
      %cst_29 = arith.constant 5.000000e-01 : f32
      %64 = vector.broadcast %cst_29 : f32 to vector<128x32xf32>
      %65 = arith.mulf %64, %63 : vector<128x32xf32>
      %cst_30 = arith.constant 0.707106769 : f32
      %66 = vector.broadcast %cst_30 : f32 to vector<128x32xf32>
      %67 = arith.mulf %63, %66 : vector<128x32xf32>
      %68 = math.absf %67 : vector<128x32xf32>
      %cst_31 = arith.constant 0.327591091 : f32
      %69 = vector.broadcast %cst_31 : f32 to vector<128x32xf32>
      %70 = arith.mulf %69, %68 : vector<128x32xf32>
      %cst_32 = arith.constant 1.000000e+00 : f32
      %71 = vector.broadcast %cst_32 : f32 to vector<128x32xf32>
      %72 = arith.addf %71, %70 : vector<128x32xf32>
      %cst_33 = arith.constant 1.000000e+00 : f32
      %73 = vector.broadcast %cst_33 : f32 to vector<128x32xf32>
      %74 = arith.divf %73, %72 : vector<128x32xf32>
      %cst_34 = arith.constant 1.06140542 : f32
      %75 = vector.broadcast %cst_34 : f32 to vector<128x32xf32>
      %76 = arith.mulf %75, %74 : vector<128x32xf32>
      %cst_35 = arith.constant -1.45315206 : f32
      %77 = vector.broadcast %cst_35 : f32 to vector<128x32xf32>
      %78 = arith.addf %76, %77 : vector<128x32xf32>
      %79 = arith.mulf %78, %74 : vector<128x32xf32>
      %cst_36 = arith.constant 1.42141378 : f32
      %80 = vector.broadcast %cst_36 : f32 to vector<128x32xf32>
      %81 = arith.addf %79, %80 : vector<128x32xf32>
      %82 = arith.mulf %81, %74 : vector<128x32xf32>
      %cst_37 = arith.constant -0.284496725 : f32
      %83 = vector.broadcast %cst_37 : f32 to vector<128x32xf32>
      %84 = arith.addf %82, %83 : vector<128x32xf32>
      %85 = arith.mulf %84, %74 : vector<128x32xf32>
      %cst_38 = arith.constant 0.254829586 : f32
      %86 = vector.broadcast %cst_38 : f32 to vector<128x32xf32>
      %87 = arith.addf %85, %86 : vector<128x32xf32>
      %88 = arith.mulf %87, %74 : vector<128x32xf32>
      %cst_39 = arith.constant 0.000000e+00 : f32
      %89 = vector.broadcast %cst_39 : f32 to vector<128x32xf32>
      %90 = arith.subf %89, %68 : vector<128x32xf32>
      %91 = arith.mulf %90, %68 : vector<128x32xf32>
      %92 = math.exp %91 : vector<128x32xf32>
      %93 = arith.mulf %88, %92 : vector<128x32xf32>
      %cst_40 = arith.constant 1.000000e+00 : f32
      %94 = vector.broadcast %cst_40 : f32 to vector<128x32xf32>
      %95 = arith.subf %94, %93 : vector<128x32xf32>
      %cst_41 = arith.constant 0.000000e+00 : f32
      %96 = vector.broadcast %cst_41 : f32 to vector<128x32xf32>
      %97 = arith.cmpf olt, %67, %96 : vector<128x32xf32>
      %cst_42 = arith.constant 0.000000e+00 : f32
      %98 = vector.broadcast %cst_42 : f32 to vector<128x32xf32>
      %99 = arith.subf %98, %95 : vector<128x32xf32>
      %100 = arith.select %97, %99, %95 : vector<128x32xi1>, vector<128x32xf32>
      %cst_43 = arith.constant 1.000000e+00 : f32
      %101 = vector.broadcast %cst_43 : f32 to vector<128x32xf32>
      %102 = arith.addf %101, %100 : vector<128x32xf32>
      %103 = arith.mulf %65, %102 : vector<128x32xf32>
      %cst_44 = arith.constant 0.000000e+00 : f32
      %104 = vector.broadcast %cst_44 : f32 to vector<4x288xf32>
      %c0_45 = arith.constant 0 : index
      %c0_46 = arith.constant 0 : index
      %105 = vector.load %arg8[%c0_45, %c0_46] : memref<128x288xf32, #tpu.memory_space<vmem>>, vector<4x288xf32>
      tpu.vector_store %arg8[%c0_45, %c0_46], %104 {strides = array<i32>} : memref<128x288xf32, #tpu.memory_space<vmem>>, vector<4x288xf32>,
      %cst_47 = arith.constant 0.000000e+00 : f32
      %106 = vector.broadcast %cst_47 : f32 to vector<4x288xf32>
      %c124 = arith.constant 124 : index
      %c0_48 = arith.constant 0 : index
      %107 = vector.load %arg8[%c124, %c0_48] : memref<128x288xf32, #tpu.memory_space<vmem>>, vector<4x288xf32>
      tpu.vector_store %arg8[%c124, %c0_48], %106 {strides = array<i32>} : memref<128x288xf32, #tpu.memory_space<vmem>>, vector<4x288xf32>,
      %108 = vector.extract_strided_slice %103 {offsets = [0, 0], sizes = [124, 32], strides = [1, 1]} : vector<128x32xf32> to vector<124x32xf32>
      %c4 = arith.constant 4 : index
      %c0_49 = arith.constant 0 : index
      %109 = vector.load %arg8[%c4, %c0_49] : memref<128x288xf32, #tpu.memory_space<vmem>>, vector<124x32xf32>
      tpu.vector_store %arg8[%c4, %c0_49], %108 {strides = array<i32>} : memref<128x288xf32, #tpu.memory_space<vmem>>, vector<124x32xf32>,
      %110 = vector.extract_strided_slice %103 {offsets = [0, 0], sizes = [125, 32], strides = [1, 1]} : vector<128x32xf32> to vector<125x32xf32>
      %c3 = arith.constant 3 : index
      %c32 = arith.constant 32 : index
      %111 = vector.load %arg8[%c3, %c32] : memref<128x288xf32, #tpu.memory_space<vmem>>, vector<125x32xf32>
      tpu.vector_store %arg8[%c3, %c32], %110 {strides = array<i32>} : memref<128x288xf32, #tpu.memory_space<vmem>>, vector<125x32xf32>,
      %112 = vector.extract_strided_slice %103 {offsets = [0, 0], sizes = [126, 32], strides = [1, 1]} : vector<128x32xf32> to vector<126x32xf32>
      %c2 = arith.constant 2 : index
      %c64 = arith.constant 64 : index
      %113 = vector.load %arg8[%c2, %c64] : memref<128x288xf32, #tpu.memory_space<vmem>>, vector<126x32xf32>
      tpu.vector_store %arg8[%c2, %c64], %112 {strides = array<i32>} : memref<128x288xf32, #tpu.memory_space<vmem>>, vector<126x32xf32>,
      %114 = vector.extract_strided_slice %103 {offsets = [0, 0], sizes = [127, 32], strides = [1, 1]} : vector<128x32xf32> to vector<127x32xf32>
      %c1_50 = arith.constant 1 : index
      %c96 = arith.constant 96 : index
      %115 = vector.load %arg8[%c1_50, %c96] : memref<128x288xf32, #tpu.memory_space<vmem>>, vector<127x32xf32>
      tpu.vector_store %arg8[%c1_50, %c96], %114 {strides = array<i32>} : memref<128x288xf32, #tpu.memory_space<vmem>>, vector<127x32xf32>,
      %c0_51 = arith.constant 0 : index
      %c128 = arith.constant 128 : index
      %116 = vector.load %arg8[%c0_51, %c128] : memref<128x288xf32, #tpu.memory_space<vmem>>, vector<128x32xf32>
      tpu.vector_store %arg8[%c0_51, %c128], %103 {strides = array<i32>} : memref<128x288xf32, #tpu.memory_space<vmem>>, vector<128x32xf32>,
      %117 = vector.extract_strided_slice %103 {offsets = [1, 0], sizes = [127, 32], strides = [1, 1]} : vector<128x32xf32> to vector<127x32xf32>
      %c0_52 = arith.constant 0 : index
      %c160 = arith.constant 160 : index
      %118 = vector.load %arg8[%c0_52, %c160] : memref<128x288xf32, #tpu.memory_space<vmem>>, vector<127x32xf32>
      tpu.vector_store %arg8[%c0_52, %c160], %117 {strides = array<i32>} : memref<128x288xf32, #tpu.memory_space<vmem>>, vector<127x32xf32>,
      %119 = vector.extract_strided_slice %103 {offsets = [2, 0], sizes = [126, 32], strides = [1, 1]} : vector<128x32xf32> to vector<126x32xf32>
      %c0_53 = arith.constant 0 : index
      %c192 = arith.constant 192 : index
      %120 = vector.load %arg8[%c0_53, %c192] : memref<128x288xf32, #tpu.memory_space<vmem>>, vector<126x32xf32>
      tpu.vector_store %arg8[%c0_53, %c192], %119 {strides = array<i32>} : memref<128x288xf32, #tpu.memory_space<vmem>>, vector<126x32xf32>,
      %121 = vector.extract_strided_slice %103 {offsets = [3, 0], sizes = [125, 32], strides = [1, 1]} : vector<128x32xf32> to vector<125x32xf32>
      %c0_54 = arith.constant 0 : index
      %c224 = arith.constant 224 : index
      %122 = vector.load %arg8[%c0_54, %c224] : memref<128x288xf32, #tpu.memory_space<vmem>>, vector<125x32xf32>
      tpu.vector_store %arg8[%c0_54, %c224], %121 {strides = array<i32>} : memref<128x288xf32, #tpu.memory_space<vmem>>, vector<125x32xf32>,
      %123 = vector.extract_strided_slice %103 {offsets = [4, 0], sizes = [124, 32], strides = [1, 1]} : vector<128x32xf32> to vector<124x32xf32>
      %c0_55 = arith.constant 0 : index
      %c256 = arith.constant 256 : index
      %124 = vector.load %arg8[%c0_55, %c256] : memref<128x288xf32, #tpu.memory_space<vmem>>, vector<124x32xf32>
      tpu.vector_store %arg8[%c0_55, %c256], %123 {strides = array<i32>} : memref<128x288xf32, #tpu.memory_space<vmem>>, vector<124x32xf32>,
      %c0_56 = arith.constant 0 : index
      %c0_57 = arith.constant 0 : index
      %125 = vector.load %arg8[%c0_56, %c0_57] : memref<128x288xf32, #tpu.memory_space<vmem>>, vector<128x288xf32>
      %c2_58 = arith.constant 2 : index
      %c0_59 = arith.constant 0 : index
      %c0_60 = arith.constant 0 : index
      %126 = vector.load %arg2[%c2_58, %c0_59, %c0_60] : memref<8x288x32xf32, #tpu.memory_space<vmem>>, vector<1x288x32xf32>
      %127 = vector.shape_cast %126 : vector<1x288x32xf32> to vector<288x32xf32>
      %cst_61 = arith.constant dense<0.000000e+00> : vector<128x32xf32>
      %128 = tpu.matmul %125, %127, %cst_61 {dimension_numbers = #tpu.dot_dimension_numbers<[1], [0], [0], [1], [0, 0, 1, 1], [], []>} : vector<128x288xf32>, vector<288x32xf32>, vector<128x32xf32> -> vector<128x32xf32>
      %c2_62 = arith.constant 2 : index
      %c0_63 = arith.constant 0 : index
      %129 = vector.load %arg3[%c2_62, %c0_63] : memref<8x32xf32, #tpu.memory_space<vmem>>, vector<1x32xf32>
      %130 = vector.shape_cast %129 : vector<1x32xf32> to vector<32xf32>
      %131 = vector.shape_cast %130 : vector<32xf32> to vector<1x32xf32>
      %132 = vector.broadcast %131 : vector<1x32xf32> to vector<128x32xf32>
      %133 = arith.addf %128, %132 : vector<128x32xf32>
      %cst_64 = arith.constant 5.000000e-01 : f32
      %134 = vector.broadcast %cst_64 : f32 to vector<128x32xf32>
      %135 = arith.mulf %134, %133 : vector<128x32xf32>
      %cst_65 = arith.constant 0.707106769 : f32
      %136 = vector.broadcast %cst_65 : f32 to vector<128x32xf32>
      %137 = arith.mulf %133, %136 : vector<128x32xf32>
      %138 = math.absf %137 : vector<128x32xf32>
      %cst_66 = arith.constant 0.327591091 : f32
      %139 = vector.broadcast %cst_66 : f32 to vector<128x32xf32>
      %140 = arith.mulf %139, %138 : vector<128x32xf32>
      %cst_67 = arith.constant 1.000000e+00 : f32
      %141 = vector.broadcast %cst_67 : f32 to vector<128x32xf32>
      %142 = arith.addf %141, %140 : vector<128x32xf32>
      %cst_68 = arith.constant 1.000000e+00 : f32
      %143 = vector.broadcast %cst_68 : f32 to vector<128x32xf32>
      %144 = arith.divf %143, %142 : vector<128x32xf32>
      %cst_69 = arith.constant 1.06140542 : f32
      %145 = vector.broadcast %cst_69 : f32 to vector<128x32xf32>
      %146 = arith.mulf %145, %144 : vector<128x32xf32>
      %cst_70 = arith.constant -1.45315206 : f32
      %147 = vector.broadcast %cst_70 : f32 to vector<128x32xf32>
      %148 = arith.addf %146, %147 : vector<128x32xf32>
      %149 = arith.mulf %148, %144 : vector<128x32xf32>
      %cst_71 = arith.constant 1.42141378 : f32
      %150 = vector.broadcast %cst_71 : f32 to vector<128x32xf32>
      %151 = arith.addf %149, %150 : vector<128x32xf32>
      %152 = arith.mulf %151, %144 : vector<128x32xf32>
      %cst_72 = arith.constant -0.284496725 : f32
      %153 = vector.broadcast %cst_72 : f32 to vector<128x32xf32>
      %154 = arith.addf %152, %153 : vector<128x32xf32>
      %155 = arith.mulf %154, %144 : vector<128x32xf32>
      %cst_73 = arith.constant 0.254829586 : f32
      %156 = vector.broadcast %cst_73 : f32 to vector<128x32xf32>
      %157 = arith.addf %155, %156 : vector<128x32xf32>
      %158 = arith.mulf %157, %144 : vector<128x32xf32>
      %cst_74 = arith.constant 0.000000e+00 : f32
      %159 = vector.broadcast %cst_74 : f32 to vector<128x32xf32>
      %160 = arith.subf %159, %138 : vector<128x32xf32>
      %161 = arith.mulf %160, %138 : vector<128x32xf32>
      %162 = math.exp %161 : vector<128x32xf32>
      %163 = arith.mulf %158, %162 : vector<128x32xf32>
      %cst_75 = arith.constant 1.000000e+00 : f32
      %164 = vector.broadcast %cst_75 : f32 to vector<128x32xf32>
      %165 = arith.subf %164, %163 : vector<128x32xf32>
      %cst_76 = arith.constant 0.000000e+00 : f32
      %166 = vector.broadcast %cst_76 : f32 to vector<128x32xf32>
      %167 = arith.cmpf olt, %137, %166 : vector<128x32xf32>
      %cst_77 = arith.constant 0.000000e+00 : f32
      %168 = vector.broadcast %cst_77 : f32 to vector<128x32xf32>
      %169 = arith.subf %168, %165 : vector<128x32xf32>
      %170 = arith.select %167, %169, %165 : vector<128x32xi1>, vector<128x32xf32>
      %cst_78 = arith.constant 1.000000e+00 : f32
      %171 = vector.broadcast %cst_78 : f32 to vector<128x32xf32>
      %172 = arith.addf %171, %170 : vector<128x32xf32>
      %173 = arith.mulf %135, %172 : vector<128x32xf32>
      %cst_79 = arith.constant 0.000000e+00 : f32
      %174 = vector.broadcast %cst_79 : f32 to vector<4x288xf32>
      %c0_80 = arith.constant 0 : index
      %c0_81 = arith.constant 0 : index
      %175 = vector.load %arg8[%c0_80, %c0_81] : memref<128x288xf32, #tpu.memory_space<vmem>>, vector<4x288xf32>
      tpu.vector_store %arg8[%c0_80, %c0_81], %174 {strides = array<i32>} : memref<128x288xf32, #tpu.memory_space<vmem>>, vector<4x288xf32>,
      %cst_82 = arith.constant 0.000000e+00 : f32
      %176 = vector.broadcast %cst_82 : f32 to vector<4x288xf32>
      %c124_83 = arith.constant 124 : index
      %c0_84 = arith.constant 0 : index
      %177 = vector.load %arg8[%c124_83, %c0_84] : memref<128x288xf32, #tpu.memory_space<vmem>>, vector<4x288xf32>
      tpu.vector_store %arg8[%c124_83, %c0_84], %176 {strides = array<i32>} : memref<128x288xf32, #tpu.memory_space<vmem>>, vector<4x288xf32>,
      %178 = vector.extract_strided_slice %173 {offsets = [0, 0], sizes = [124, 32], strides = [1, 1]} : vector<128x32xf32> to vector<124x32xf32>
      %c4_85 = arith.constant 4 : index
      %c0_86 = arith.constant 0 : index
      %179 = vector.load %arg8[%c4_85, %c0_86] : memref<128x288xf32, #tpu.memory_space<vmem>>, vector<124x32xf32>
      tpu.vector_store %arg8[%c4_85, %c0_86], %178 {strides = array<i32>} : memref<128x288xf32, #tpu.memory_space<vmem>>, vector<124x32xf32>,
      %180 = vector.extract_strided_slice %173 {offsets = [0, 0], sizes = [125, 32], strides = [1, 1]} : vector<128x32xf32> to vector<125x32xf32>
      %c3_87 = arith.constant 3 : index
      %c32_88 = arith.constant 32 : index
      %181 = vector.load %arg8[%c3_87, %c32_88] : memref<128x288xf32, #tpu.memory_space<vmem>>, vector<125x32xf32>
      tpu.vector_store %arg8[%c3_87, %c32_88], %180 {strides = array<i32>} : memref<128x288xf32, #tpu.memory_space<vmem>>, vector<125x32xf32>,
      %182 = vector.extract_strided_slice %173 {offsets = [0, 0], sizes = [126, 32], strides = [1, 1]} : vector<128x32xf32> to vector<126x32xf32>
      %c2_89 = arith.constant 2 : index
      %c64_90 = arith.constant 64 : index
      %183 = vector.load %arg8[%c2_89, %c64_90] : memref<128x288xf32, #tpu.memory_space<vmem>>, vector<126x32xf32>
      tpu.vector_store %arg8[%c2_89, %c64_90], %182 {strides = array<i32>} : memref<128x288xf32, #tpu.memory_space<vmem>>, vector<126x32xf32>,
      %184 = vector.extract_strided_slice %173 {offsets = [0, 0], sizes = [127, 32], strides = [1, 1]} : vector<128x32xf32> to vector<127x32xf32>
      %c1_91 = arith.constant 1 : index
      %c96_92 = arith.constant 96 : index
      %185 = vector.load %arg8[%c1_91, %c96_92] : memref<128x288xf32, #tpu.memory_space<vmem>>, vector<127x32xf32>
      tpu.vector_store %arg8[%c1_91, %c96_92], %184 {strides = array<i32>} : memref<128x288xf32, #tpu.memory_space<vmem>>, vector<127x32xf32>,
      %c0_93 = arith.constant 0 : index
      %c128_94 = arith.constant 128 : index
      %186 = vector.load %arg8[%c0_93, %c128_94] : memref<128x288xf32, #tpu.memory_space<vmem>>, vector<128x32xf32>
      tpu.vector_store %arg8[%c0_93, %c128_94], %173 {strides = array<i32>} : memref<128x288xf32, #tpu.memory_space<vmem>>, vector<128x32xf32>,
      %187 = vector.extract_strided_slice %173 {offsets = [1, 0], sizes = [127, 32], strides = [1, 1]} : vector<128x32xf32> to vector<127x32xf32>
      %c0_95 = arith.constant 0 : index
      %c160_96 = arith.constant 160 : index
      %188 = vector.load %arg8[%c0_95, %c160_96] : memref<128x288xf32, #tpu.memory_space<vmem>>, vector<127x32xf32>
      tpu.vector_store %arg8[%c0_95, %c160_96], %187 {strides = array<i32>} : memref<128x288xf32, #tpu.memory_space<vmem>>, vector<127x32xf32>,
      %189 = vector.extract_strided_slice %173 {offsets = [2, 0], sizes = [126, 32], strides = [1, 1]} : vector<128x32xf32> to vector<126x32xf32>
      %c0_97 = arith.constant 0 : index
      %c192_98 = arith.constant 192 : index
      %190 = vector.load %arg8[%c0_97, %c192_98] : memref<128x288xf32, #tpu.memory_space<vmem>>, vector<126x32xf32>
      tpu.vector_store %arg8[%c0_97, %c192_98], %189 {strides = array<i32>} : memref<128x288xf32, #tpu.memory_space<vmem>>, vector<126x32xf32>,
      %191 = vector.extract_strided_slice %173 {offsets = [3, 0], sizes = [125, 32], strides = [1, 1]} : vector<128x32xf32> to vector<125x32xf32>
      %c0_99 = arith.constant 0 : index
      %c224_100 = arith.constant 224 : index
      %192 = vector.load %arg8[%c0_99, %c224_100] : memref<128x288xf32, #tpu.memory_space<vmem>>, vector<125x32xf32>
      tpu.vector_store %arg8[%c0_99, %c224_100], %191 {strides = array<i32>} : memref<128x288xf32, #tpu.memory_space<vmem>>, vector<125x32xf32>,
      %193 = vector.extract_strided_slice %173 {offsets = [4, 0], sizes = [124, 32], strides = [1, 1]} : vector<128x32xf32> to vector<124x32xf32>
      %c0_101 = arith.constant 0 : index
      %c256_102 = arith.constant 256 : index
      %194 = vector.load %arg8[%c0_101, %c256_102] : memref<128x288xf32, #tpu.memory_space<vmem>>, vector<124x32xf32>
      tpu.vector_store %arg8[%c0_101, %c256_102], %193 {strides = array<i32>} : memref<128x288xf32, #tpu.memory_space<vmem>>, vector<124x32xf32>,
      %c0_103 = arith.constant 0 : index
      %c0_104 = arith.constant 0 : index
      %195 = vector.load %arg8[%c0_103, %c0_104] : memref<128x288xf32, #tpu.memory_space<vmem>>, vector<128x288xf32>
      %c3_105 = arith.constant 3 : index
      %c0_106 = arith.constant 0 : index
      %c0_107 = arith.constant 0 : index
      %196 = vector.load %arg2[%c3_105, %c0_106, %c0_107] : memref<8x288x32xf32, #tpu.memory_space<vmem>>, vector<1x288x32xf32>
      %197 = vector.shape_cast %196 : vector<1x288x32xf32> to vector<288x32xf32>
      %cst_108 = arith.constant dense<0.000000e+00> : vector<128x32xf32>
      %198 = tpu.matmul %195, %197, %cst_108 {dimension_numbers = #tpu.dot_dimension_numbers<[1], [0], [0], [1], [0, 0, 1, 1], [], []>} : vector<128x288xf32>, vector<288x32xf32>, vector<128x32xf32> -> vector<128x32xf32>
      %c3_109 = arith.constant 3 : index
      %c0_110 = arith.constant 0 : index
      %199 = vector.load %arg3[%c3_109, %c0_110] : memref<8x32xf32, #tpu.memory_space<vmem>>, vector<1x32xf32>
      %200 = vector.shape_cast %199 : vector<1x32xf32> to vector<32xf32>
      %201 = vector.shape_cast %200 : vector<32xf32> to vector<1x32xf32>
      %202 = vector.broadcast %201 : vector<1x32xf32> to vector<128x32xf32>
      %203 = arith.addf %198, %202 : vector<128x32xf32>
      %cst_111 = arith.constant 5.000000e-01 : f32
      %204 = vector.broadcast %cst_111 : f32 to vector<128x32xf32>
      %205 = arith.mulf %204, %203 : vector<128x32xf32>
      %cst_112 = arith.constant 0.707106769 : f32
      %206 = vector.broadcast %cst_112 : f32 to vector<128x32xf32>
      %207 = arith.mulf %203, %206 : vector<128x32xf32>
      %208 = math.absf %207 : vector<128x32xf32>
      %cst_113 = arith.constant 0.327591091 : f32
      %209 = vector.broadcast %cst_113 : f32 to vector<128x32xf32>
      %210 = arith.mulf %209, %208 : vector<128x32xf32>
      %cst_114 = arith.constant 1.000000e+00 : f32
      %211 = vector.broadcast %cst_114 : f32 to vector<128x32xf32>
      %212 = arith.addf %211, %210 : vector<128x32xf32>
      %cst_115 = arith.constant 1.000000e+00 : f32
      %213 = vector.broadcast %cst_115 : f32 to vector<128x32xf32>
      %214 = arith.divf %213, %212 : vector<128x32xf32>
      %cst_116 = arith.constant 1.06140542 : f32
      %215 = vector.broadcast %cst_116 : f32 to vector<128x32xf32>
      %216 = arith.mulf %215, %214 : vector<128x32xf32>
      %cst_117 = arith.constant -1.45315206 : f32
      %217 = vector.broadcast %cst_117 : f32 to vector<128x32xf32>
      %218 = arith.addf %216, %217 : vector<128x32xf32>
      %219 = arith.mulf %218, %214 : vector<128x32xf32>
      %cst_118 = arith.constant 1.42141378 : f32
      %220 = vector.broadcast %cst_118 : f32 to vector<128x32xf32>
      %221 = arith.addf %219, %220 : vector<128x32xf32>
      %222 = arith.mulf %221, %214 : vector<128x32xf32>
      %cst_119 = arith.constant -0.284496725 : f32
      %223 = vector.broadcast %cst_119 : f32 to vector<128x32xf32>
      %224 = arith.addf %222, %223 : vector<128x32xf32>
      %225 = arith.mulf %224, %214 : vector<128x32xf32>
      %cst_120 = arith.constant 0.254829586 : f32
      %226 = vector.broadcast %cst_120 : f32 to vector<128x32xf32>
      %227 = arith.addf %225, %226 : vector<128x32xf32>
      %228 = arith.mulf %227, %214 : vector<128x32xf32>
      %cst_121 = arith.constant 0.000000e+00 : f32
      %229 = vector.broadcast %cst_121 : f32 to vector<128x32xf32>
      %230 = arith.subf %229, %208 : vector<128x32xf32>
      %231 = arith.mulf %230, %208 : vector<128x32xf32>
      %232 = math.exp %231 : vector<128x32xf32>
      %233 = arith.mulf %228, %232 : vector<128x32xf32>
      %cst_122 = arith.constant 1.000000e+00 : f32
      %234 = vector.broadcast %cst_122 : f32 to vector<128x32xf32>
      %235 = arith.subf %234, %233 : vector<128x32xf32>
      %cst_123 = arith.constant 0.000000e+00 : f32
      %236 = vector.broadcast %cst_123 : f32 to vector<128x32xf32>
      %237 = arith.cmpf olt, %207, %236 : vector<128x32xf32>
      %cst_124 = arith.constant 0.000000e+00 : f32
      %238 = vector.broadcast %cst_124 : f32 to vector<128x32xf32>
      %239 = arith.subf %238, %235 : vector<128x32xf32>
      %240 = arith.select %237, %239, %235 : vector<128x32xi1>, vector<128x32xf32>
      %cst_125 = arith.constant 1.000000e+00 : f32
      %241 = vector.broadcast %cst_125 : f32 to vector<128x32xf32>
      %242 = arith.addf %241, %240 : vector<128x32xf32>
      %243 = arith.mulf %205, %242 : vector<128x32xf32>
      %cst_126 = arith.constant 0.000000e+00 : f32
      %244 = vector.broadcast %cst_126 : f32 to vector<4x288xf32>
      %c0_127 = arith.constant 0 : index
      %c0_128 = arith.constant 0 : index
      %245 = vector.load %arg8[%c0_127, %c0_128] : memref<128x288xf32, #tpu.memory_space<vmem>>, vector<4x288xf32>
      tpu.vector_store %arg8[%c0_127, %c0_128], %244 {strides = array<i32>} : memref<128x288xf32, #tpu.memory_space<vmem>>, vector<4x288xf32>,
      %cst_129 = arith.constant 0.000000e+00 : f32
      %246 = vector.broadcast %cst_129 : f32 to vector<4x288xf32>
      %c124_130 = arith.constant 124 : index
      %c0_131 = arith.constant 0 : index
      %247 = vector.load %arg8[%c124_130, %c0_131] : memref<128x288xf32, #tpu.memory_space<vmem>>, vector<4x288xf32>
      tpu.vector_store %arg8[%c124_130, %c0_131], %246 {strides = array<i32>} : memref<128x288xf32, #tpu.memory_space<vmem>>, vector<4x288xf32>,
      %248 = vector.extract_strided_slice %243 {offsets = [0, 0], sizes = [124, 32], strides = [1, 1]} : vector<128x32xf32> to vector<124x32xf32>
      %c4_132 = arith.constant 4 : index
      %c0_133 = arith.constant 0 : index
      %249 = vector.load %arg8[%c4_132, %c0_133] : memref<128x288xf32, #tpu.memory_space<vmem>>, vector<124x32xf32>
      tpu.vector_store %arg8[%c4_132, %c0_133], %248 {strides = array<i32>} : memref<128x288xf32, #tpu.memory_space<vmem>>, vector<124x32xf32>,
      %250 = vector.extract_strided_slice %243 {offsets = [0, 0], sizes = [125, 32], strides = [1, 1]} : vector<128x32xf32> to vector<125x32xf32>
      %c3_134 = arith.constant 3 : index
      %c32_135 = arith.constant 32 : index
      %251 = vector.load %arg8[%c3_134, %c32_135] : memref<128x288xf32, #tpu.memory_space<vmem>>, vector<125x32xf32>
      tpu.vector_store %arg8[%c3_134, %c32_135], %250 {strides = array<i32>} : memref<128x288xf32, #tpu.memory_space<vmem>>, vector<125x32xf32>,
      %252 = vector.extract_strided_slice %243 {offsets = [0, 0], sizes = [126, 32], strides = [1, 1]} : vector<128x32xf32> to vector<126x32xf32>
      %c2_136 = arith.constant 2 : index
      %c64_137 = arith.constant 64 : index
      %253 = vector.load %arg8[%c2_136, %c64_137] : memref<128x288xf32, #tpu.memory_space<vmem>>, vector<126x32xf32>
      tpu.vector_store %arg8[%c2_136, %c64_137], %252 {strides = array<i32>} : memref<128x288xf32, #tpu.memory_space<vmem>>, vector<126x32xf32>,
      %254 = vector.extract_strided_slice %243 {offsets = [0, 0], sizes = [127, 32], strides = [1, 1]} : vector<128x32xf32> to vector<127x32xf32>
      %c1_138 = arith.constant 1 : index
      %c96_139 = arith.constant 96 : index
      %255 = vector.load %arg8[%c1_138, %c96_139] : memref<128x288xf32, #tpu.memory_space<vmem>>, vector<127x32xf32>
      tpu.vector_store %arg8[%c1_138, %c96_139], %254 {strides = array<i32>} : memref<128x288xf32, #tpu.memory_space<vmem>>, vector<127x32xf32>,
      %c0_140 = arith.constant 0 : index
      %c128_141 = arith.constant 128 : index
      %256 = vector.load %arg8[%c0_140, %c128_141] : memref<128x288xf32, #tpu.memory_space<vmem>>, vector<128x32xf32>
      tpu.vector_store %arg8[%c0_140, %c128_141], %243 {strides = array<i32>} : memref<128x288xf32, #tpu.memory_space<vmem>>, vector<128x32xf32>,
      %257 = vector.extract_strided_slice %243 {offsets = [1, 0], sizes = [127, 32], strides = [1, 1]} : vector<128x32xf32> to vector<127x32xf32>
      %c0_142 = arith.constant 0 : index
      %c160_143 = arith.constant 160 : index
      %258 = vector.load %arg8[%c0_142, %c160_143] : memref<128x288xf32, #tpu.memory_space<vmem>>, vector<127x32xf32>
      tpu.vector_store %arg8[%c0_142, %c160_143], %257 {strides = array<i32>} : memref<128x288xf32, #tpu.memory_space<vmem>>, vector<127x32xf32>,
      %259 = vector.extract_strided_slice %243 {offsets = [2, 0], sizes = [126, 32], strides = [1, 1]} : vector<128x32xf32> to vector<126x32xf32>
      %c0_144 = arith.constant 0 : index
      %c192_145 = arith.constant 192 : index
      %260 = vector.load %arg8[%c0_144, %c192_145] : memref<128x288xf32, #tpu.memory_space<vmem>>, vector<126x32xf32>
      tpu.vector_store %arg8[%c0_144, %c192_145], %259 {strides = array<i32>} : memref<128x288xf32, #tpu.memory_space<vmem>>, vector<126x32xf32>,
      %261 = vector.extract_strided_slice %243 {offsets = [3, 0], sizes = [125, 32], strides = [1, 1]} : vector<128x32xf32> to vector<125x32xf32>
      %c0_146 = arith.constant 0 : index
      %c224_147 = arith.constant 224 : index
      %262 = vector.load %arg8[%c0_146, %c224_147] : memref<128x288xf32, #tpu.memory_space<vmem>>, vector<125x32xf32>
      tpu.vector_store %arg8[%c0_146, %c224_147], %261 {strides = array<i32>} : memref<128x288xf32, #tpu.memory_space<vmem>>, vector<125x32xf32>,
      %263 = vector.extract_strided_slice %243 {offsets = [4, 0], sizes = [124, 32], strides = [1, 1]} : vector<128x32xf32> to vector<124x32xf32>
      %c0_148 = arith.constant 0 : index
      %c256_149 = arith.constant 256 : index
      %264 = vector.load %arg8[%c0_148, %c256_149] : memref<128x288xf32, #tpu.memory_space<vmem>>, vector<124x32xf32>
      tpu.vector_store %arg8[%c0_148, %c256_149], %263 {strides = array<i32>} : memref<128x288xf32, #tpu.memory_space<vmem>>, vector<124x32xf32>,
      %c0_150 = arith.constant 0 : index
      %c0_151 = arith.constant 0 : index
      %265 = vector.load %arg8[%c0_150, %c0_151] : memref<128x288xf32, #tpu.memory_space<vmem>>, vector<128x288xf32>
      %c4_152 = arith.constant 4 : index
      %c0_153 = arith.constant 0 : index
      %c0_154 = arith.constant 0 : index
      %266 = vector.load %arg2[%c4_152, %c0_153, %c0_154] : memref<8x288x32xf32, #tpu.memory_space<vmem>>, vector<1x288x32xf32>
      %267 = vector.shape_cast %266 : vector<1x288x32xf32> to vector<288x32xf32>
      %cst_155 = arith.constant dense<0.000000e+00> : vector<128x32xf32>
      %268 = tpu.matmul %265, %267, %cst_155 {dimension_numbers = #tpu.dot_dimension_numbers<[1], [0], [0], [1], [0, 0, 1, 1], [], []>} : vector<128x288xf32>, vector<288x32xf32>, vector<128x32xf32> -> vector<128x32xf32>
      %c4_156 = arith.constant 4 : index
      %c0_157 = arith.constant 0 : index
      %269 = vector.load %arg3[%c4_156, %c0_157] : memref<8x32xf32, #tpu.memory_space<vmem>>, vector<1x32xf32>
      %270 = vector.shape_cast %269 : vector<1x32xf32> to vector<32xf32>
      %271 = vector.shape_cast %270 : vector<32xf32> to vector<1x32xf32>
      %272 = vector.broadcast %271 : vector<1x32xf32> to vector<128x32xf32>
      %273 = arith.addf %268, %272 : vector<128x32xf32>
      %cst_158 = arith.constant 5.000000e-01 : f32
      %274 = vector.broadcast %cst_158 : f32 to vector<128x32xf32>
      %275 = arith.mulf %274, %273 : vector<128x32xf32>
      %cst_159 = arith.constant 0.707106769 : f32
      %276 = vector.broadcast %cst_159 : f32 to vector<128x32xf32>
      %277 = arith.mulf %273, %276 : vector<128x32xf32>
      %278 = math.absf %277 : vector<128x32xf32>
      %cst_160 = arith.constant 0.327591091 : f32
      %279 = vector.broadcast %cst_160 : f32 to vector<128x32xf32>
      %280 = arith.mulf %279, %278 : vector<128x32xf32>
      %cst_161 = arith.constant 1.000000e+00 : f32
      %281 = vector.broadcast %cst_161 : f32 to vector<128x32xf32>
      %282 = arith.addf %281, %280 : vector<128x32xf32>
      %cst_162 = arith.constant 1.000000e+00 : f32
      %283 = vector.broadcast %cst_162 : f32 to vector<128x32xf32>
      %284 = arith.divf %283, %282 : vector<128x32xf32>
      %cst_163 = arith.constant 1.06140542 : f32
      %285 = vector.broadcast %cst_163 : f32 to vector<128x32xf32>
      %286 = arith.mulf %285, %284 : vector<128x32xf32>
      %cst_164 = arith.constant -1.45315206 : f32
      %287 = vector.broadcast %cst_164 : f32 to vector<128x32xf32>
      %288 = arith.addf %286, %287 : vector<128x32xf32>
      %289 = arith.mulf %288, %284 : vector<128x32xf32>
      %cst_165 = arith.constant 1.42141378 : f32
      %290 = vector.broadcast %cst_165 : f32 to vector<128x32xf32>
      %291 = arith.addf %289, %290 : vector<128x32xf32>
      %292 = arith.mulf %291, %284 : vector<128x32xf32>
      %cst_166 = arith.constant -0.284496725 : f32
      %293 = vector.broadcast %cst_166 : f32 to vector<128x32xf32>
      %294 = arith.addf %292, %293 : vector<128x32xf32>
      %295 = arith.mulf %294, %284 : vector<128x32xf32>
      %cst_167 = arith.constant 0.254829586 : f32
      %296 = vector.broadcast %cst_167 : f32 to vector<128x32xf32>
      %297 = arith.addf %295, %296 : vector<128x32xf32>
      %298 = arith.mulf %297, %284 : vector<128x32xf32>
      %cst_168 = arith.constant 0.000000e+00 : f32
      %299 = vector.broadcast %cst_168 : f32 to vector<128x32xf32>
      %300 = arith.subf %299, %278 : vector<128x32xf32>
      %301 = arith.mulf %300, %278 : vector<128x32xf32>
      %302 = math.exp %301 : vector<128x32xf32>
      %303 = arith.mulf %298, %302 : vector<128x32xf32>
      %cst_169 = arith.constant 1.000000e+00 : f32
      %304 = vector.broadcast %cst_169 : f32 to vector<128x32xf32>
      %305 = arith.subf %304, %303 : vector<128x32xf32>
      %cst_170 = arith.constant 0.000000e+00 : f32
      %306 = vector.broadcast %cst_170 : f32 to vector<128x32xf32>
      %307 = arith.cmpf olt, %277, %306 : vector<128x32xf32>
      %cst_171 = arith.constant 0.000000e+00 : f32
      %308 = vector.broadcast %cst_171 : f32 to vector<128x32xf32>
      %309 = arith.subf %308, %305 : vector<128x32xf32>
      %310 = arith.select %307, %309, %305 : vector<128x32xi1>, vector<128x32xf32>
      %cst_172 = arith.constant 1.000000e+00 : f32
      %311 = vector.broadcast %cst_172 : f32 to vector<128x32xf32>
      %312 = arith.addf %311, %310 : vector<128x32xf32>
      %313 = arith.mulf %275, %312 : vector<128x32xf32>
      %cst_173 = arith.constant 0.000000e+00 : f32
      %314 = vector.broadcast %cst_173 : f32 to vector<3x32xf32>
      %c0_174 = arith.constant 0 : index
      %c0_175 = arith.constant 0 : index
      %315 = vector.load %arg7[%c0_174, %c0_175] : memref<136x32xf32, #tpu.memory_space<vmem>>, vector<3x32xf32>
      tpu.vector_store %arg7[%c0_174, %c0_175], %314 {strides = array<i32>} : memref<136x32xf32, #tpu.memory_space<vmem>>, vector<3x32xf32>,
      %c3_176 = arith.constant 3 : index
      %c0_177 = arith.constant 0 : index
      %316 = vector.load %arg7[%c3_176, %c0_177] : memref<136x32xf32, #tpu.memory_space<vmem>>, vector<128x32xf32>
      tpu.vector_store %arg7[%c3_176, %c0_177], %313 {strides = array<i32>} : memref<136x32xf32, #tpu.memory_space<vmem>>, vector<128x32xf32>,
      %cst_178 = arith.constant 0.000000e+00 : f32
      %317 = vector.broadcast %cst_178 : f32 to vector<3x32xf32>
      %c131 = arith.constant 131 : index
      %c0_179 = arith.constant 0 : index
      %318 = vector.load %arg7[%c131, %c0_179] : memref<136x32xf32, #tpu.memory_space<vmem>>, vector<3x32xf32>
      tpu.vector_store %arg7[%c131, %c0_179], %317 {strides = array<i32>} : memref<136x32xf32, #tpu.memory_space<vmem>>, vector<3x32xf32>,
      %c0_180 = arith.constant 0 : index
      %c0_181 = arith.constant 0 : index
      %319 = tpu.strided_load %arg7[%c0_180, %c0_181] {strides = array<i32: 2, 1>} : memref<136x32xf32, #tpu.memory_space<vmem>>, vector<64x32xf32>
      %c0_182 = arith.constant 0 : index
      %c0_183 = arith.constant 0 : index
      %320 = vector.load %arg8[%c0_182, %c0_183] : memref<128x288xf32, #tpu.memory_space<vmem>>, vector<64x32xf32>
      tpu.vector_store %arg8[%c0_182, %c0_183], %319 {strides = array<i32>} : memref<128x288xf32, #tpu.memory_space<vmem>>, vector<64x32xf32>,
      %c1_184 = arith.constant 1 : index
      %c0_185 = arith.constant 0 : index
      %321 = tpu.strided_load %arg7[%c1_184, %c0_185] {strides = array<i32: 2, 1>} : memref<136x32xf32, #tpu.memory_space<vmem>>, vector<64x32xf32>
      %c0_186 = arith.constant 0 : index
      %c32_187 = arith.constant 32 : index
      %322 = vector.load %arg8[%c0_186, %c32_187] : memref<128x288xf32, #tpu.memory_space<vmem>>, vector<64x32xf32>
      tpu.vector_store %arg8[%c0_186, %c32_187], %321 {strides = array<i32>} : memref<128x288xf32, #tpu.memory_space<vmem>>, vector<64x32xf32>,
      %c2_188 = arith.constant 2 : index
      %c0_189 = arith.constant 0 : index
      %323 = tpu.strided_load %arg7[%c2_188, %c0_189] {strides = array<i32: 2, 1>} : memref<136x32xf32, #tpu.memory_space<vmem>>, vector<64x32xf32>
      %c0_190 = arith.constant 0 : index
      %c64_191 = arith.constant 64 : index
      %324 = vector.load %arg8[%c0_190, %c64_191] : memref<128x288xf32, #tpu.memory_space<vmem>>, vector<64x32xf32>
      tpu.vector_store %arg8[%c0_190, %c64_191], %323 {strides = array<i32>} : memref<128x288xf32, #tpu.memory_space<vmem>>, vector<64x32xf32>,
      %c3_192 = arith.constant 3 : index
      %c0_193 = arith.constant 0 : index
      %325 = tpu.strided_load %arg7[%c3_192, %c0_193] {strides = array<i32: 2, 1>} : memref<136x32xf32, #tpu.memory_space<vmem>>, vector<64x32xf32>
      %c0_194 = arith.constant 0 : index
      %c96_195 = arith.constant 96 : index
      %326 = vector.load %arg8[%c0_194, %c96_195] : memref<128x288xf32, #tpu.memory_space<vmem>>, vector<64x32xf32>
      tpu.vector_store %arg8[%c0_194, %c96_195], %325 {strides = array<i32>} : memref<128x288xf32, #tpu.memory_space<vmem>>, vector<64x32xf32>,
      %c4_196 = arith.constant 4 : index
      %c0_197 = arith.constant 0 : index
      %327 = tpu.strided_load %arg7[%c4_196, %c0_197] {strides = array<i32: 2, 1>} : memref<136x32xf32, #tpu.memory_space<vmem>>, vector<64x32xf32>
      %c0_198 = arith.constant 0 : index
      %c128_199 = arith.constant 128 : index
      %328 = vector.load %arg8[%c0_198, %c128_199] : memref<128x288xf32, #tpu.memory_space<vmem>>, vector<64x32xf32>
      tpu.vector_store %arg8[%c0_198, %c128_199], %327 {strides = array<i32>} : memref<128x288xf32, #tpu.memory_space<vmem>>, vector<64x32xf32>,
      %c5 = arith.constant 5 : index
      %c0_200 = arith.constant 0 : index
      %329 = tpu.strided_load %arg7[%c5, %c0_200] {strides = array<i32: 2, 1>} : memref<136x32xf32, #tpu.memory_space<vmem>>, vector<64x32xf32>
      %c0_201 = arith.constant 0 : index
      %c160_202 = arith.constant 160 : index
      %330 = vector.load %arg8[%c0_201, %c160_202] : memref<128x288xf32, #tpu.memory_space<vmem>>, vector<64x32xf32>
      tpu.vector_store %arg8[%c0_201, %c160_202], %329 {strides = array<i32>} : memref<128x288xf32, #tpu.memory_space<vmem>>, vector<64x32xf32>,
      %c6 = arith.constant 6 : index
      %c0_203 = arith.constant 0 : index
      %331 = tpu.strided_load %arg7[%c6, %c0_203] {strides = array<i32: 2, 1>} : memref<136x32xf32, #tpu.memory_space<vmem>>, vector<64x32xf32>
      %c0_204 = arith.constant 0 : index
      %c192_205 = arith.constant 192 : index
      %332 = vector.load %arg8[%c0_204, %c192_205] : memref<128x288xf32, #tpu.memory_space<vmem>>, vector<64x32xf32>
      tpu.vector_store %arg8[%c0_204, %c192_205], %331 {strides = array<i32>} : memref<128x288xf32, #tpu.memory_space<vmem>>, vector<64x32xf32>,
      %c7 = arith.constant 7 : index
      %c0_206 = arith.constant 0 : index
      %333 = tpu.strided_load %arg7[%c7, %c0_206] {strides = array<i32: 2, 1>} : memref<136x32xf32, #tpu.memory_space<vmem>>, vector<64x32xf32>
      %c0_207 = arith.constant 0 : index
      %c224_208 = arith.constant 224 : index
      %334 = vector.load %arg8[%c0_207, %c224_208] : memref<128x288xf32, #tpu.memory_space<vmem>>, vector<64x32xf32>
      tpu.vector_store %arg8[%c0_207, %c224_208], %333 {strides = array<i32>} : memref<128x288xf32, #tpu.memory_space<vmem>>, vector<64x32xf32>,
      %c0_209 = arith.constant 0 : index
      %c0_210 = arith.constant 0 : index
      %335 = vector.load %arg8[%c0_209, %c0_210] : memref<128x288xf32, #tpu.memory_space<vmem>>, vector<64x256xf32>
      %c5_211 = arith.constant 5 : index
      %c0_212 = arith.constant 0 : index
      %c0_213 = arith.constant 0 : index
      %336 = vector.load %arg2[%c5_211, %c0_212, %c0_213] : memref<8x288x32xf32, #tpu.memory_space<vmem>>, vector<1x256x32xf32>
      %337 = vector.shape_cast %336 : vector<1x256x32xf32> to vector<256x32xf32>
      %cst_214 = arith.constant dense<0.000000e+00> : vector<64x32xf32>
      %338 = tpu.matmul %335, %337, %cst_214 {dimension_numbers = #tpu.dot_dimension_numbers<[1], [0], [0], [1], [0, 0, 1, 1], [], []>} : vector<64x256xf32>, vector<256x32xf32>, vector<64x32xf32> -> vector<64x32xf32>
      %c5_215 = arith.constant 5 : index
      %c0_216 = arith.constant 0 : index
      %339 = vector.load %arg3[%c5_215, %c0_216] : memref<8x32xf32, #tpu.memory_space<vmem>>, vector<1x32xf32>
      %340 = vector.shape_cast %339 : vector<1x32xf32> to vector<32xf32>
      %341 = vector.shape_cast %340 : vector<32xf32> to vector<1x32xf32>
      %342 = vector.broadcast %341 : vector<1x32xf32> to vector<64x32xf32>
      %343 = arith.addf %338, %342 : vector<64x32xf32>
      %cst_217 = arith.constant 5.000000e-01 : f32
      %344 = vector.broadcast %cst_217 : f32 to vector<64x32xf32>
      %345 = arith.mulf %344, %343 : vector<64x32xf32>
      %cst_218 = arith.constant 0.707106769 : f32
      %346 = vector.broadcast %cst_218 : f32 to vector<64x32xf32>
      %347 = arith.mulf %343, %346 : vector<64x32xf32>
      %348 = math.absf %347 : vector<64x32xf32>
      %cst_219 = arith.constant 0.327591091 : f32
      %349 = vector.broadcast %cst_219 : f32 to vector<64x32xf32>
      %350 = arith.mulf %349, %348 : vector<64x32xf32>
      %cst_220 = arith.constant 1.000000e+00 : f32
      %351 = vector.broadcast %cst_220 : f32 to vector<64x32xf32>
      %352 = arith.addf %351, %350 : vector<64x32xf32>
      %cst_221 = arith.constant 1.000000e+00 : f32
      %353 = vector.broadcast %cst_221 : f32 to vector<64x32xf32>
      %354 = arith.divf %353, %352 : vector<64x32xf32>
      %cst_222 = arith.constant 1.06140542 : f32
      %355 = vector.broadcast %cst_222 : f32 to vector<64x32xf32>
      %356 = arith.mulf %355, %354 : vector<64x32xf32>
      %cst_223 = arith.constant -1.45315206 : f32
      %357 = vector.broadcast %cst_223 : f32 to vector<64x32xf32>
      %358 = arith.addf %356, %357 : vector<64x32xf32>
      %359 = arith.mulf %358, %354 : vector<64x32xf32>
      %cst_224 = arith.constant 1.42141378 : f32
      %360 = vector.broadcast %cst_224 : f32 to vector<64x32xf32>
      %361 = arith.addf %359, %360 : vector<64x32xf32>
      %362 = arith.mulf %361, %354 : vector<64x32xf32>
      %cst_225 = arith.constant -0.284496725 : f32
      %363 = vector.broadcast %cst_225 : f32 to vector<64x32xf32>
      %364 = arith.addf %362, %363 : vector<64x32xf32>
      %365 = arith.mulf %364, %354 : vector<64x32xf32>
      %cst_226 = arith.constant 0.254829586 : f32
      %366 = vector.broadcast %cst_226 : f32 to vector<64x32xf32>
      %367 = arith.addf %365, %366 : vector<64x32xf32>
      %368 = arith.mulf %367, %354 : vector<64x32xf32>
      %cst_227 = arith.constant 0.000000e+00 : f32
      %369 = vector.broadcast %cst_227 : f32 to vector<64x32xf32>
      %370 = arith.subf %369, %348 : vector<64x32xf32>
      %371 = arith.mulf %370, %348 : vector<64x32xf32>
      %372 = math.exp %371 : vector<64x32xf32>
      %373 = arith.mulf %368, %372 : vector<64x32xf32>
      %cst_228 = arith.constant 1.000000e+00 : f32
      %374 = vector.broadcast %cst_228 : f32 to vector<64x32xf32>
      %375 = arith.subf %374, %373 : vector<64x32xf32>
      %cst_229 = arith.constant 0.000000e+00 : f32
      %376 = vector.broadcast %cst_229 : f32 to vector<64x32xf32>
      %377 = arith.cmpf olt, %347, %376 : vector<64x32xf32>
      %cst_230 = arith.constant 0.000000e+00 : f32
      %378 = vector.broadcast %cst_230 : f32 to vector<64x32xf32>
      %379 = arith.subf %378, %375 : vector<64x32xf32>
      %380 = arith.select %377, %379, %375 : vector<64x32xi1>, vector<64x32xf32>
      %cst_231 = arith.constant 1.000000e+00 : f32
      %381 = vector.broadcast %cst_231 : f32 to vector<64x32xf32>
      %382 = arith.addf %381, %380 : vector<64x32xf32>
      %383 = arith.mulf %345, %382 : vector<64x32xf32>
      %cst_232 = arith.constant 0.000000e+00 : f32
      %384 = vector.broadcast %cst_232 : f32 to vector<3x32xf32>
      %c0_233 = arith.constant 0 : index
      %c0_234 = arith.constant 0 : index
      %385 = vector.load %arg7[%c0_233, %c0_234] : memref<136x32xf32, #tpu.memory_space<vmem>>, vector<3x32xf32>
      tpu.vector_store %arg7[%c0_233, %c0_234], %384 {strides = array<i32>} : memref<136x32xf32, #tpu.memory_space<vmem>>, vector<3x32xf32>,
      %c3_235 = arith.constant 3 : index
      %c0_236 = arith.constant 0 : index
      %386 = vector.load %arg7[%c3_235, %c0_236] : memref<136x32xf32, #tpu.memory_space<vmem>>, vector<64x32xf32>
      tpu.vector_store %arg7[%c3_235, %c0_236], %383 {strides = array<i32>} : memref<136x32xf32, #tpu.memory_space<vmem>>, vector<64x32xf32>,
      %cst_237 = arith.constant 0.000000e+00 : f32
      %387 = vector.broadcast %cst_237 : f32 to vector<3x32xf32>
      %c67 = arith.constant 67 : index
      %c0_238 = arith.constant 0 : index
      %388 = vector.load %arg7[%c67, %c0_238] : memref<136x32xf32, #tpu.memory_space<vmem>>, vector<3x32xf32>
      tpu.vector_store %arg7[%c67, %c0_238], %387 {strides = array<i32>} : memref<136x32xf32, #tpu.memory_space<vmem>>, vector<3x32xf32>,
      %c0_239 = arith.constant 0 : index
      %c0_240 = arith.constant 0 : index
      %389 = tpu.strided_load %arg7[%c0_239, %c0_240] {strides = array<i32: 2, 1>} : memref<136x32xf32, #tpu.memory_space<vmem>>, vector<32x32xf32>
      %c0_241 = arith.constant 0 : index
      %c0_242 = arith.constant 0 : index
      %390 = vector.load %arg8[%c0_241, %c0_242] : memref<128x288xf32, #tpu.memory_space<vmem>>, vector<32x32xf32>
      tpu.vector_store %arg8[%c0_241, %c0_242], %389 {strides = array<i32>} : memref<128x288xf32, #tpu.memory_space<vmem>>, vector<32x32xf32>,
      %c1_243 = arith.constant 1 : index
      %c0_244 = arith.constant 0 : index
      %391 = tpu.strided_load %arg7[%c1_243, %c0_244] {strides = array<i32: 2, 1>} : memref<136x32xf32, #tpu.memory_space<vmem>>, vector<32x32xf32>
      %c0_245 = arith.constant 0 : index
      %c32_246 = arith.constant 32 : index
      %392 = vector.load %arg8[%c0_245, %c32_246] : memref<128x288xf32, #tpu.memory_space<vmem>>, vector<32x32xf32>
      tpu.vector_store %arg8[%c0_245, %c32_246], %391 {strides = array<i32>} : memref<128x288xf32, #tpu.memory_space<vmem>>, vector<32x32xf32>,
      %c2_247 = arith.constant 2 : index
      %c0_248 = arith.constant 0 : index
      %393 = tpu.strided_load %arg7[%c2_247, %c0_248] {strides = array<i32: 2, 1>} : memref<136x32xf32, #tpu.memory_space<vmem>>, vector<32x32xf32>
      %c0_249 = arith.constant 0 : index
      %c64_250 = arith.constant 64 : index
      %394 = vector.load %arg8[%c0_249, %c64_250] : memref<128x288xf32, #tpu.memory_space<vmem>>, vector<32x32xf32>
      tpu.vector_store %arg8[%c0_249, %c64_250], %393 {strides = array<i32>} : memref<128x288xf32, #tpu.memory_space<vmem>>, vector<32x32xf32>,
      %c3_251 = arith.constant 3 : index
      %c0_252 = arith.constant 0 : index
      %395 = tpu.strided_load %arg7[%c3_251, %c0_252] {strides = array<i32: 2, 1>} : memref<136x32xf32, #tpu.memory_space<vmem>>, vector<32x32xf32>
      %c0_253 = arith.constant 0 : index
      %c96_254 = arith.constant 96 : index
      %396 = vector.load %arg8[%c0_253, %c96_254] : memref<128x288xf32, #tpu.memory_space<vmem>>, vector<32x32xf32>
      tpu.vector_store %arg8[%c0_253, %c96_254], %395 {strides = array<i32>} : memref<128x288xf32, #tpu.memory_space<vmem>>, vector<32x32xf32>,
      %c4_255 = arith.constant 4 : index
      %c0_256 = arith.constant 0 : index
      %397 = tpu.strided_load %arg7[%c4_255, %c0_256] {strides = array<i32: 2, 1>} : memref<136x32xf32, #tpu.memory_space<vmem>>, vector<32x32xf32>
      %c0_257 = arith.constant 0 : index
      %c128_258 = arith.constant 128 : index
      %398 = vector.load %arg8[%c0_257, %c128_258] : memref<128x288xf32, #tpu.memory_space<vmem>>, vector<32x32xf32>
      tpu.vector_store %arg8[%c0_257, %c128_258], %397 {strides = array<i32>} : memref<128x288xf32, #tpu.memory_space<vmem>>, vector<32x32xf32>,
      %c5_259 = arith.constant 5 : index
      %c0_260 = arith.constant 0 : index
      %399 = tpu.strided_load %arg7[%c5_259, %c0_260] {strides = array<i32: 2, 1>} : memref<136x32xf32, #tpu.memory_space<vmem>>, vector<32x32xf32>
      %c0_261 = arith.constant 0 : index
      %c160_262 = arith.constant 160 : index
      %400 = vector.load %arg8[%c0_261, %c160_262] : memref<128x288xf32, #tpu.memory_space<vmem>>, vector<32x32xf32>
      tpu.vector_store %arg8[%c0_261, %c160_262], %399 {strides = array<i32>} : memref<128x288xf32, #tpu.memory_space<vmem>>, vector<32x32xf32>,
      %c6_263 = arith.constant 6 : index
      %c0_264 = arith.constant 0 : index
      %401 = tpu.strided_load %arg7[%c6_263, %c0_264] {strides = array<i32: 2, 1>} : memref<136x32xf32, #tpu.memory_space<vmem>>, vector<32x32xf32>
      %c0_265 = arith.constant 0 : index
      %c192_266 = arith.constant 192 : index
      %402 = vector.load %arg8[%c0_265, %c192_266] : memref<128x288xf32, #tpu.memory_space<vmem>>, vector<32x32xf32>
      tpu.vector_store %arg8[%c0_265, %c192_266], %401 {strides = array<i32>} : memref<128x288xf32, #tpu.memory_space<vmem>>, vector<32x32xf32>,
      %c7_267 = arith.constant 7 : index
      %c0_268 = arith.constant 0 : index
      %403 = tpu.strided_load %arg7[%c7_267, %c0_268] {strides = array<i32: 2, 1>} : memref<136x32xf32, #tpu.memory_space<vmem>>, vector<32x32xf32>
      %c0_269 = arith.constant 0 : index
      %c224_270 = arith.constant 224 : index
      %404 = vector.load %arg8[%c0_269, %c224_270] : memref<128x288xf32, #tpu.memory_space<vmem>>, vector<32x32xf32>
      tpu.vector_store %arg8[%c0_269, %c224_270], %403 {strides = array<i32>} : memref<128x288xf32, #tpu.memory_space<vmem>>, vector<32x32xf32>,
      %c0_271 = arith.constant 0 : index
      %c0_272 = arith.constant 0 : index
      %405 = vector.load %arg8[%c0_271, %c0_272] : memref<128x288xf32, #tpu.memory_space<vmem>>, vector<32x256xf32>
      %c6_273 = arith.constant 6 : index
      %c0_274 = arith.constant 0 : index
      %c0_275 = arith.constant 0 : index
      %406 = vector.load %arg2[%c6_273, %c0_274, %c0_275] : memref<8x288x32xf32, #tpu.memory_space<vmem>>, vector<1x256x32xf32>
      %407 = vector.shape_cast %406 : vector<1x256x32xf32> to vector<256x32xf32>
      %cst_276 = arith.constant dense<0.000000e+00> : vector<32x32xf32>
      %408 = tpu.matmul %405, %407, %cst_276 {dimension_numbers = #tpu.dot_dimension_numbers<[1], [0], [0], [1], [0, 0, 1, 1], [], []>} : vector<32x256xf32>, vector<256x32xf32>, vector<32x32xf32> -> vector<32x32xf32>
      %c6_277 = arith.constant 6 : index
      %c0_278 = arith.constant 0 : index
      %409 = vector.load %arg3[%c6_277, %c0_278] : memref<8x32xf32, #tpu.memory_space<vmem>>, vector<1x32xf32>
      %410 = vector.shape_cast %409 : vector<1x32xf32> to vector<32xf32>
      %411 = vector.shape_cast %410 : vector<32xf32> to vector<1x32xf32>
      %412 = vector.broadcast %411 : vector<1x32xf32> to vector<32x32xf32>
      %413 = arith.addf %408, %412 : vector<32x32xf32>
      %cst_279 = arith.constant 5.000000e-01 : f32
      %414 = vector.broadcast %cst_279 : f32 to vector<32x32xf32>
      %415 = arith.mulf %414, %413 : vector<32x32xf32>
      %cst_280 = arith.constant 0.707106769 : f32
      %416 = vector.broadcast %cst_280 : f32 to vector<32x32xf32>
      %417 = arith.mulf %413, %416 : vector<32x32xf32>
      %418 = math.absf %417 : vector<32x32xf32>
      %cst_281 = arith.constant 0.327591091 : f32
      %419 = vector.broadcast %cst_281 : f32 to vector<32x32xf32>
      %420 = arith.mulf %419, %418 : vector<32x32xf32>
      %cst_282 = arith.constant 1.000000e+00 : f32
      %421 = vector.broadcast %cst_282 : f32 to vector<32x32xf32>
      %422 = arith.addf %421, %420 : vector<32x32xf32>
      %cst_283 = arith.constant 1.000000e+00 : f32
      %423 = vector.broadcast %cst_283 : f32 to vector<32x32xf32>
      %424 = arith.divf %423, %422 : vector<32x32xf32>
      %cst_284 = arith.constant 1.06140542 : f32
      %425 = vector.broadcast %cst_284 : f32 to vector<32x32xf32>
      %426 = arith.mulf %425, %424 : vector<32x32xf32>
      %cst_285 = arith.constant -1.45315206 : f32
      %427 = vector.broadcast %cst_285 : f32 to vector<32x32xf32>
      %428 = arith.addf %426, %427 : vector<32x32xf32>
      %429 = arith.mulf %428, %424 : vector<32x32xf32>
      %cst_286 = arith.constant 1.42141378 : f32
      %430 = vector.broadcast %cst_286 : f32 to vector<32x32xf32>
      %431 = arith.addf %429, %430 : vector<32x32xf32>
      %432 = arith.mulf %431, %424 : vector<32x32xf32>
      %cst_287 = arith.constant -0.284496725 : f32
      %433 = vector.broadcast %cst_287 : f32 to vector<32x32xf32>
      %434 = arith.addf %432, %433 : vector<32x32xf32>
      %435 = arith.mulf %434, %424 : vector<32x32xf32>
      %cst_288 = arith.constant 0.254829586 : f32
      %436 = vector.broadcast %cst_288 : f32 to vector<32x32xf32>
      %437 = arith.addf %435, %436 : vector<32x32xf32>
      %438 = arith.mulf %437, %424 : vector<32x32xf32>
      %cst_289 = arith.constant 0.000000e+00 : f32
      %439 = vector.broadcast %cst_289 : f32 to vector<32x32xf32>
      %440 = arith.subf %439, %418 : vector<32x32xf32>
      %441 = arith.mulf %440, %418 : vector<32x32xf32>
      %442 = math.exp %441 : vector<32x32xf32>
      %443 = arith.mulf %438, %442 : vector<32x32xf32>
      %cst_290 = arith.constant 1.000000e+00 : f32
      %444 = vector.broadcast %cst_290 : f32 to vector<32x32xf32>
      %445 = arith.subf %444, %443 : vector<32x32xf32>
      %cst_291 = arith.constant 0.000000e+00 : f32
      %446 = vector.broadcast %cst_291 : f32 to vector<32x32xf32>
      %447 = arith.cmpf olt, %417, %446 : vector<32x32xf32>
      %cst_292 = arith.constant 0.000000e+00 : f32
      %448 = vector.broadcast %cst_292 : f32 to vector<32x32xf32>
      %449 = arith.subf %448, %445 : vector<32x32xf32>
      %450 = arith.select %447, %449, %445 : vector<32x32xi1>, vector<32x32xf32>
      %cst_293 = arith.constant 1.000000e+00 : f32
      %451 = vector.broadcast %cst_293 : f32 to vector<32x32xf32>
      %452 = arith.addf %451, %450 : vector<32x32xf32>
      %453 = arith.mulf %415, %452 : vector<32x32xf32>
      %cst_294 = arith.constant 0.000000e+00 : f32
      %454 = vector.broadcast %cst_294 : f32 to vector<3x32xf32>
      %c0_295 = arith.constant 0 : index
      %c0_296 = arith.constant 0 : index
      %455 = vector.load %arg7[%c0_295, %c0_296] : memref<136x32xf32, #tpu.memory_space<vmem>>, vector<3x32xf32>
      tpu.vector_store %arg7[%c0_295, %c0_296], %454 {strides = array<i32>} : memref<136x32xf32, #tpu.memory_space<vmem>>, vector<3x32xf32>,
      %c3_297 = arith.constant 3 : index
      %c0_298 = arith.constant 0 : index
      %456 = vector.load %arg7[%c3_297, %c0_298] : memref<136x32xf32, #tpu.memory_space<vmem>>, vector<32x32xf32>
      tpu.vector_store %arg7[%c3_297, %c0_298], %453 {strides = array<i32>} : memref<136x32xf32, #tpu.memory_space<vmem>>, vector<32x32xf32>,
      %cst_299 = arith.constant 0.000000e+00 : f32
      %457 = vector.broadcast %cst_299 : f32 to vector<3x32xf32>
      %c35 = arith.constant 35 : index
      %c0_300 = arith.constant 0 : index
      %458 = vector.load %arg7[%c35, %c0_300] : memref<136x32xf32, #tpu.memory_space<vmem>>, vector<3x32xf32>
      tpu.vector_store %arg7[%c35, %c0_300], %457 {strides = array<i32>} : memref<136x32xf32, #tpu.memory_space<vmem>>, vector<3x32xf32>,
      %c0_301 = arith.constant 0 : index
      %c0_302 = arith.constant 0 : index
      %459 = tpu.strided_load %arg7[%c0_301, %c0_302] {strides = array<i32: 2, 1>} : memref<136x32xf32, #tpu.memory_space<vmem>>, vector<16x32xf32>
      %c0_303 = arith.constant 0 : index
      %c0_304 = arith.constant 0 : index
      %460 = vector.load %arg8[%c0_303, %c0_304] : memref<128x288xf32, #tpu.memory_space<vmem>>, vector<16x32xf32>
      tpu.vector_store %arg8[%c0_303, %c0_304], %459 {strides = array<i32>} : memref<128x288xf32, #tpu.memory_space<vmem>>, vector<16x32xf32>,
      %c1_305 = arith.constant 1 : index
      %c0_306 = arith.constant 0 : index
      %461 = tpu.strided_load %arg7[%c1_305, %c0_306] {strides = array<i32: 2, 1>} : memref<136x32xf32, #tpu.memory_space<vmem>>, vector<16x32xf32>
      %c0_307 = arith.constant 0 : index
      %c32_308 = arith.constant 32 : index
      %462 = vector.load %arg8[%c0_307, %c32_308] : memref<128x288xf32, #tpu.memory_space<vmem>>, vector<16x32xf32>
      tpu.vector_store %arg8[%c0_307, %c32_308], %461 {strides = array<i32>} : memref<128x288xf32, #tpu.memory_space<vmem>>, vector<16x32xf32>,
      %c2_309 = arith.constant 2 : index
      %c0_310 = arith.constant 0 : index
      %463 = tpu.strided_load %arg7[%c2_309, %c0_310] {strides = array<i32: 2, 1>} : memref<136x32xf32, #tpu.memory_space<vmem>>, vector<16x32xf32>
      %c0_311 = arith.constant 0 : index
      %c64_312 = arith.constant 64 : index
      %464 = vector.load %arg8[%c0_311, %c64_312] : memref<128x288xf32, #tpu.memory_space<vmem>>, vector<16x32xf32>
      tpu.vector_store %arg8[%c0_311, %c64_312], %463 {strides = array<i32>} : memref<128x288xf32, #tpu.memory_space<vmem>>, vector<16x32xf32>,
      %c3_313 = arith.constant 3 : index
      %c0_314 = arith.constant 0 : index
      %465 = tpu.strided_load %arg7[%c3_313, %c0_314] {strides = array<i32: 2, 1>} : memref<136x32xf32, #tpu.memory_space<vmem>>, vector<16x32xf32>
      %c0_315 = arith.constant 0 : index
      %c96_316 = arith.constant 96 : index
      %466 = vector.load %arg8[%c0_315, %c96_316] : memref<128x288xf32, #tpu.memory_space<vmem>>, vector<16x32xf32>
      tpu.vector_store %arg8[%c0_315, %c96_316], %465 {strides = array<i32>} : memref<128x288xf32, #tpu.memory_space<vmem>>, vector<16x32xf32>,
      %c4_317 = arith.constant 4 : index
      %c0_318 = arith.constant 0 : index
      %467 = tpu.strided_load %arg7[%c4_317, %c0_318] {strides = array<i32: 2, 1>} : memref<136x32xf32, #tpu.memory_space<vmem>>, vector<16x32xf32>
      %c0_319 = arith.constant 0 : index
      %c128_320 = arith.constant 128 : index
      %468 = vector.load %arg8[%c0_319, %c128_320] : memref<128x288xf32, #tpu.memory_space<vmem>>, vector<16x32xf32>
      tpu.vector_store %arg8[%c0_319, %c128_320], %467 {strides = array<i32>} : memref<128x288xf32, #tpu.memory_space<vmem>>, vector<16x32xf32>,
      %c5_321 = arith.constant 5 : index
      %c0_322 = arith.constant 0 : index
      %469 = tpu.strided_load %arg7[%c5_321, %c0_322] {strides = array<i32: 2, 1>} : memref<136x32xf32, #tpu.memory_space<vmem>>, vector<16x32xf32>
      %c0_323 = arith.constant 0 : index
      %c160_324 = arith.constant 160 : index
      %470 = vector.load %arg8[%c0_323, %c160_324] : memref<128x288xf32, #tpu.memory_space<vmem>>, vector<16x32xf32>
      tpu.vector_store %arg8[%c0_323, %c160_324], %469 {strides = array<i32>} : memref<128x288xf32, #tpu.memory_space<vmem>>, vector<16x32xf32>,
      %c6_325 = arith.constant 6 : index
      %c0_326 = arith.constant 0 : index
      %471 = tpu.strided_load %arg7[%c6_325, %c0_326] {strides = array<i32: 2, 1>} : memref<136x32xf32, #tpu.memory_space<vmem>>, vector<16x32xf32>
      %c0_327 = arith.constant 0 : index
      %c192_328 = arith.constant 192 : index
      %472 = vector.load %arg8[%c0_327, %c192_328] : memref<128x288xf32, #tpu.memory_space<vmem>>, vector<16x32xf32>
      tpu.vector_store %arg8[%c0_327, %c192_328], %471 {strides = array<i32>} : memref<128x288xf32, #tpu.memory_space<vmem>>, vector<16x32xf32>,
      %c7_329 = arith.constant 7 : index
      %c0_330 = arith.constant 0 : index
      %473 = tpu.strided_load %arg7[%c7_329, %c0_330] {strides = array<i32: 2, 1>} : memref<136x32xf32, #tpu.memory_space<vmem>>, vector<16x32xf32>
      %c0_331 = arith.constant 0 : index
      %c224_332 = arith.constant 224 : index
      %474 = vector.load %arg8[%c0_331, %c224_332] : memref<128x288xf32, #tpu.memory_space<vmem>>, vector<16x32xf32>
      tpu.vector_store %arg8[%c0_331, %c224_332], %473 {strides = array<i32>} : memref<128x288xf32, #tpu.memory_space<vmem>>, vector<16x32xf32>,
      %c0_333 = arith.constant 0 : index
      %c0_334 = arith.constant 0 : index
      %475 = vector.load %arg8[%c0_333, %c0_334] : memref<128x288xf32, #tpu.memory_space<vmem>>, vector<16x256xf32>
      %c7_335 = arith.constant 7 : index
      %c0_336 = arith.constant 0 : index
      %c0_337 = arith.constant 0 : index
      %476 = vector.load %arg2[%c7_335, %c0_336, %c0_337] : memref<8x288x32xf32, #tpu.memory_space<vmem>>, vector<1x256x32xf32>
      %477 = vector.shape_cast %476 : vector<1x256x32xf32> to vector<256x32xf32>
      %cst_338 = arith.constant dense<0.000000e+00> : vector<16x32xf32>
      %478 = tpu.matmul %475, %477, %cst_338 {dimension_numbers = #tpu.dot_dimension_numbers<[1], [0], [0], [1], [0, 0, 1, 1], [], []>} : vector<16x256xf32>, vector<256x32xf32>, vector<16x32xf32> -> vector<16x32xf32>
      %c7_339 = arith.constant 7 : index
      %c0_340 = arith.constant 0 : index
      %479 = vector.load %arg3[%c7_339, %c0_340] : memref<8x32xf32, #tpu.memory_space<vmem>>, vector<1x32xf32>
      %480 = vector.shape_cast %479 : vector<1x32xf32> to vector<32xf32>
      %481 = vector.shape_cast %480 : vector<32xf32> to vector<1x32xf32>
      %482 = vector.broadcast %481 : vector<1x32xf32> to vector<16x32xf32>
      %483 = arith.addf %478, %482 : vector<16x32xf32>
      %cst_341 = arith.constant 5.000000e-01 : f32
      %484 = vector.broadcast %cst_341 : f32 to vector<16x32xf32>
      %485 = arith.mulf %484, %483 : vector<16x32xf32>
      %cst_342 = arith.constant 0.707106769 : f32
      %486 = vector.broadcast %cst_342 : f32 to vector<16x32xf32>
      %487 = arith.mulf %483, %486 : vector<16x32xf32>
      %488 = math.absf %487 : vector<16x32xf32>
      %cst_343 = arith.constant 0.327591091 : f32
      %489 = vector.broadcast %cst_343 : f32 to vector<16x32xf32>
      %490 = arith.mulf %489, %488 : vector<16x32xf32>
      %cst_344 = arith.constant 1.000000e+00 : f32
      %491 = vector.broadcast %cst_344 : f32 to vector<16x32xf32>
      %492 = arith.addf %491, %490 : vector<16x32xf32>
      %cst_345 = arith.constant 1.000000e+00 : f32
      %493 = vector.broadcast %cst_345 : f32 to vector<16x32xf32>
      %494 = arith.divf %493, %492 : vector<16x32xf32>
      %cst_346 = arith.constant 1.06140542 : f32
      %495 = vector.broadcast %cst_346 : f32 to vector<16x32xf32>
      %496 = arith.mulf %495, %494 : vector<16x32xf32>
      %cst_347 = arith.constant -1.45315206 : f32
      %497 = vector.broadcast %cst_347 : f32 to vector<16x32xf32>
      %498 = arith.addf %496, %497 : vector<16x32xf32>
      %499 = arith.mulf %498, %494 : vector<16x32xf32>
      %cst_348 = arith.constant 1.42141378 : f32
      %500 = vector.broadcast %cst_348 : f32 to vector<16x32xf32>
      %501 = arith.addf %499, %500 : vector<16x32xf32>
      %502 = arith.mulf %501, %494 : vector<16x32xf32>
      %cst_349 = arith.constant -0.284496725 : f32
      %503 = vector.broadcast %cst_349 : f32 to vector<16x32xf32>
      %504 = arith.addf %502, %503 : vector<16x32xf32>
      %505 = arith.mulf %504, %494 : vector<16x32xf32>
      %cst_350 = arith.constant 0.254829586 : f32
      %506 = vector.broadcast %cst_350 : f32 to vector<16x32xf32>
      %507 = arith.addf %505, %506 : vector<16x32xf32>
      %508 = arith.mulf %507, %494 : vector<16x32xf32>
      %cst_351 = arith.constant 0.000000e+00 : f32
      %509 = vector.broadcast %cst_351 : f32 to vector<16x32xf32>
      %510 = arith.subf %509, %488 : vector<16x32xf32>
      %511 = arith.mulf %510, %488 : vector<16x32xf32>
      %512 = math.exp %511 : vector<16x32xf32>
      %513 = arith.mulf %508, %512 : vector<16x32xf32>
      %cst_352 = arith.constant 1.000000e+00 : f32
      %514 = vector.broadcast %cst_352 : f32 to vector<16x32xf32>
      %515 = arith.subf %514, %513 : vector<16x32xf32>
      %cst_353 = arith.constant 0.000000e+00 : f32
      %516 = vector.broadcast %cst_353 : f32 to vector<16x32xf32>
      %517 = arith.cmpf olt, %487, %516 : vector<16x32xf32>
      %cst_354 = arith.constant 0.000000e+00 : f32
      %518 = vector.broadcast %cst_354 : f32 to vector<16x32xf32>
      %519 = arith.subf %518, %515 : vector<16x32xf32>
      %520 = arith.select %517, %519, %515 : vector<16x32xi1>, vector<16x32xf32>
      %cst_355 = arith.constant 1.000000e+00 : f32
      %521 = vector.broadcast %cst_355 : f32 to vector<16x32xf32>
      %522 = arith.addf %521, %520 : vector<16x32xf32>
      %523 = arith.mulf %485, %522 : vector<16x32xf32>
      %cst_356 = arith.constant 0.000000e+00 : f32
      %524 = vector.broadcast %cst_356 : f32 to vector<3x32xf32>
      %c0_357 = arith.constant 0 : index
      %c0_358 = arith.constant 0 : index
      %525 = vector.load %arg7[%c0_357, %c0_358] : memref<136x32xf32, #tpu.memory_space<vmem>>, vector<3x32xf32>
      tpu.vector_store %arg7[%c0_357, %c0_358], %524 {strides = array<i32>} : memref<136x32xf32, #tpu.memory_space<vmem>>, vector<3x32xf32>,
      %c3_359 = arith.constant 3 : index
      %c0_360 = arith.constant 0 : index
      %526 = vector.load %arg7[%c3_359, %c0_360] : memref<136x32xf32, #tpu.memory_space<vmem>>, vector<16x32xf32>
      tpu.vector_store %arg7[%c3_359, %c0_360], %523 {strides = array<i32>} : memref<136x32xf32, #tpu.memory_space<vmem>>, vector<16x32xf32>,
      %cst_361 = arith.constant 0.000000e+00 : f32
      %527 = vector.broadcast %cst_361 : f32 to vector<3x32xf32>
      %c19 = arith.constant 19 : index
      %c0_362 = arith.constant 0 : index
      %528 = vector.load %arg7[%c19, %c0_362] : memref<136x32xf32, #tpu.memory_space<vmem>>, vector<3x32xf32>
      tpu.vector_store %arg7[%c19, %c0_362], %527 {strides = array<i32>} : memref<136x32xf32, #tpu.memory_space<vmem>>, vector<3x32xf32>,
      %c0_363 = arith.constant 0 : index
      %c0_364 = arith.constant 0 : index
      %529 = tpu.strided_load %arg7[%c0_363, %c0_364] {strides = array<i32: 2, 1>} : memref<136x32xf32, #tpu.memory_space<vmem>>, vector<8x32xf32>
      %c0_365 = arith.constant 0 : index
      %c0_366 = arith.constant 0 : index
      %530 = vector.load %arg8[%c0_365, %c0_366] : memref<128x288xf32, #tpu.memory_space<vmem>>, vector<8x32xf32>
      tpu.vector_store %arg8[%c0_365, %c0_366], %529 {strides = array<i32>} : memref<128x288xf32, #tpu.memory_space<vmem>>, vector<8x32xf32>,
      %c1_367 = arith.constant 1 : index
      %c0_368 = arith.constant 0 : index
      %531 = tpu.strided_load %arg7[%c1_367, %c0_368] {strides = array<i32: 2, 1>} : memref<136x32xf32, #tpu.memory_space<vmem>>, vector<8x32xf32>
      %c0_369 = arith.constant 0 : index
      %c32_370 = arith.constant 32 : index
      %532 = vector.load %arg8[%c0_369, %c32_370] : memref<128x288xf32, #tpu.memory_space<vmem>>, vector<8x32xf32>
      tpu.vector_store %arg8[%c0_369, %c32_370], %531 {strides = array<i32>} : memref<128x288xf32, #tpu.memory_space<vmem>>, vector<8x32xf32>,
      %c2_371 = arith.constant 2 : index
      %c0_372 = arith.constant 0 : index
      %533 = tpu.strided_load %arg7[%c2_371, %c0_372] {strides = array<i32: 2, 1>} : memref<136x32xf32, #tpu.memory_space<vmem>>, vector<8x32xf32>
      %c0_373 = arith.constant 0 : index
      %c64_374 = arith.constant 64 : index
      %534 = vector.load %arg8[%c0_373, %c64_374] : memref<128x288xf32, #tpu.memory_space<vmem>>, vector<8x32xf32>
      tpu.vector_store %arg8[%c0_373, %c64_374], %533 {strides = array<i32>} : memref<128x288xf32, #tpu.memory_space<vmem>>, vector<8x32xf32>,
      %c3_375 = arith.constant 3 : index
      %c0_376 = arith.constant 0 : index
      %535 = tpu.strided_load %arg7[%c3_375, %c0_376] {strides = array<i32: 2, 1>} : memref<136x32xf32, #tpu.memory_space<vmem>>, vector<8x32xf32>
      %c0_377 = arith.constant 0 : index
      %c96_378 = arith.constant 96 : index
      %536 = vector.load %arg8[%c0_377, %c96_378] : memref<128x288xf32, #tpu.memory_space<vmem>>, vector<8x32xf32>
      tpu.vector_store %arg8[%c0_377, %c96_378], %535 {strides = array<i32>} : memref<128x288xf32, #tpu.memory_space<vmem>>, vector<8x32xf32>,
      %c4_379 = arith.constant 4 : index
      %c0_380 = arith.constant 0 : index
      %537 = tpu.strided_load %arg7[%c4_379, %c0_380] {strides = array<i32: 2, 1>} : memref<136x32xf32, #tpu.memory_space<vmem>>, vector<8x32xf32>
      %c0_381 = arith.constant 0 : index
      %c128_382 = arith.constant 128 : index
      %538 = vector.load %arg8[%c0_381, %c128_382] : memref<128x288xf32, #tpu.memory_space<vmem>>, vector<8x32xf32>
      tpu.vector_store %arg8[%c0_381, %c128_382], %537 {strides = array<i32>} : memref<128x288xf32, #tpu.memory_space<vmem>>, vector<8x32xf32>,
      %c5_383 = arith.constant 5 : index
      %c0_384 = arith.constant 0 : index
      %539 = tpu.strided_load %arg7[%c5_383, %c0_384] {strides = array<i32: 2, 1>} : memref<136x32xf32, #tpu.memory_space<vmem>>, vector<8x32xf32>
      %c0_385 = arith.constant 0 : index
      %c160_386 = arith.constant 160 : index
      %540 = vector.load %arg8[%c0_385, %c160_386] : memref<128x288xf32, #tpu.memory_space<vmem>>, vector<8x32xf32>
      tpu.vector_store %arg8[%c0_385, %c160_386], %539 {strides = array<i32>} : memref<128x288xf32, #tpu.memory_space<vmem>>, vector<8x32xf32>,
      %c6_387 = arith.constant 6 : index
      %c0_388 = arith.constant 0 : index
      %541 = tpu.strided_load %arg7[%c6_387, %c0_388] {strides = array<i32: 2, 1>} : memref<136x32xf32, #tpu.memory_space<vmem>>, vector<8x32xf32>
      %c0_389 = arith.constant 0 : index
      %c192_390 = arith.constant 192 : index
      %542 = vector.load %arg8[%c0_389, %c192_390] : memref<128x288xf32, #tpu.memory_space<vmem>>, vector<8x32xf32>
      tpu.vector_store %arg8[%c0_389, %c192_390], %541 {strides = array<i32>} : memref<128x288xf32, #tpu.memory_space<vmem>>, vector<8x32xf32>,
      %c7_391 = arith.constant 7 : index
      %c0_392 = arith.constant 0 : index
      %543 = tpu.strided_load %arg7[%c7_391, %c0_392] {strides = array<i32: 2, 1>} : memref<136x32xf32, #tpu.memory_space<vmem>>, vector<8x32xf32>
      %c0_393 = arith.constant 0 : index
      %c224_394 = arith.constant 224 : index
      %544 = vector.load %arg8[%c0_393, %c224_394] : memref<128x288xf32, #tpu.memory_space<vmem>>, vector<8x32xf32>
      tpu.vector_store %arg8[%c0_393, %c224_394], %543 {strides = array<i32>} : memref<128x288xf32, #tpu.memory_space<vmem>>, vector<8x32xf32>,
      %c0_395 = arith.constant 0 : index
      %c0_396 = arith.constant 0 : index
      %545 = vector.load %arg4[%c0_395, %c0_396] : memref<32x256xf32, #tpu.memory_space<vmem>>, vector<32x256xf32>
      %c0_397 = arith.constant 0 : index
      %c0_398 = arith.constant 0 : index
      %546 = vector.load %arg8[%c0_397, %c0_398] : memref<128x288xf32, #tpu.memory_space<vmem>>, vector<8x256xf32>
      %cst_399 = arith.constant dense<0.000000e+00> : vector<32x8xf32>
      %547 = tpu.matmul %545, %546, %cst_399 {dimension_numbers = #tpu.dot_dimension_numbers<[1], [1], [0], [0], [0, 0, 1, 0], [], []>} : vector<32x256xf32>, vector<8x256xf32>, vector<32x8xf32> -> vector<32x8xf32>
      %c0_400 = arith.constant 0 : index
      %c0_401 = arith.constant 0 : index
      %548 = vector.load %arg5[%c0_400, %c0_401] : memref<32x1xf32, #tpu.memory_space<vmem>>, vector<32x1xf32>
      %549 = vector.broadcast %548 : vector<32x1xf32> to vector<32x8xf32>
      %550 = arith.addf %547, %549 : vector<32x8xf32>
      %cst_402 = arith.constant 5.000000e-01 : f32
      %551 = vector.broadcast %cst_402 : f32 to vector<32x8xf32>
      %552 = arith.mulf %551, %550 : vector<32x8xf32>
      %cst_403 = arith.constant 0.707106769 : f32
      %553 = vector.broadcast %cst_403 : f32 to vector<32x8xf32>
      %554 = arith.mulf %550, %553 : vector<32x8xf32>
      %555 = math.absf %554 : vector<32x8xf32>
      %cst_404 = arith.constant 0.327591091 : f32
      %556 = vector.broadcast %cst_404 : f32 to vector<32x8xf32>
      %557 = arith.mulf %556, %555 : vector<32x8xf32>
      %cst_405 = arith.constant 1.000000e+00 : f32
      %558 = vector.broadcast %cst_405 : f32 to vector<32x8xf32>
      %559 = arith.addf %558, %557 : vector<32x8xf32>
      %cst_406 = arith.constant 1.000000e+00 : f32
      %560 = vector.broadcast %cst_406 : f32 to vector<32x8xf32>
      %561 = arith.divf %560, %559 : vector<32x8xf32>
      %cst_407 = arith.constant 1.06140542 : f32
      %562 = vector.broadcast %cst_407 : f32 to vector<32x8xf32>
      %563 = arith.mulf %562, %561 : vector<32x8xf32>
      %cst_408 = arith.constant -1.45315206 : f32
      %564 = vector.broadcast %cst_408 : f32 to vector<32x8xf32>
      %565 = arith.addf %563, %564 : vector<32x8xf32>
      %566 = arith.mulf %565, %561 : vector<32x8xf32>
      %cst_409 = arith.constant 1.42141378 : f32
      %567 = vector.broadcast %cst_409 : f32 to vector<32x8xf32>
      %568 = arith.addf %566, %567 : vector<32x8xf32>
      %569 = arith.mulf %568, %561 : vector<32x8xf32>
      %cst_410 = arith.constant -0.284496725 : f32
      %570 = vector.broadcast %cst_410 : f32 to vector<32x8xf32>
      %571 = arith.addf %569, %570 : vector<32x8xf32>
      %572 = arith.mulf %571, %561 : vector<32x8xf32>
      %cst_411 = arith.constant 0.254829586 : f32
      %573 = vector.broadcast %cst_411 : f32 to vector<32x8xf32>
      %574 = arith.addf %572, %573 : vector<32x8xf32>
      %575 = arith.mulf %574, %561 : vector<32x8xf32>
      %cst_412 = arith.constant 0.000000e+00 : f32
      %576 = vector.broadcast %cst_412 : f32 to vector<32x8xf32>
      %577 = arith.subf %576, %555 : vector<32x8xf32>
      %578 = arith.mulf %577, %555 : vector<32x8xf32>
      %579 = math.exp %578 : vector<32x8xf32>
      %580 = arith.mulf %575, %579 : vector<32x8xf32>
      %cst_413 = arith.constant 1.000000e+00 : f32
      %581 = vector.broadcast %cst_413 : f32 to vector<32x8xf32>
      %582 = arith.subf %581, %580 : vector<32x8xf32>
      %cst_414 = arith.constant 0.000000e+00 : f32
      %583 = vector.broadcast %cst_414 : f32 to vector<32x8xf32>
      %584 = arith.cmpf olt, %554, %583 : vector<32x8xf32>
      %cst_415 = arith.constant 0.000000e+00 : f32
      %585 = vector.broadcast %cst_415 : f32 to vector<32x8xf32>
      %586 = arith.subf %585, %582 : vector<32x8xf32>
      %587 = arith.select %584, %586, %582 : vector<32x8xi1>, vector<32x8xf32>
      %cst_416 = arith.constant 1.000000e+00 : f32
      %588 = vector.broadcast %cst_416 : f32 to vector<32x8xf32>
      %589 = arith.addf %588, %587 : vector<32x8xf32>
      %590 = arith.mulf %552, %589 : vector<32x8xf32>
      %c0_417 = arith.constant 0 : index
      %c0_418 = arith.constant 0 : index
      %c0_419 = arith.constant 0 : index
      %591 = vector.load %arg6[%c0_417, %c0_418, %c0_419] : memref<1x32x8xf32, #tpu.memory_space<vmem>>, vector<1x32x8xf32>
      %592 = vector.shape_cast %591 : vector<1x32x8xf32> to vector<32x8xf32>
      %593 = vector.shape_cast %590 : vector<32x8xf32> to vector<1x32x8xf32>
      tpu.vector_store %arg6[%c0_417, %c0_418, %c0_419], %593 {strides = array<i32>} : memref<1x32x8xf32, #tpu.memory_space<vmem>>, vector<1x32x8xf32>,
    } else {
    }
    %c2_i32_0 = arith.constant 2 : i32
    %3 = arith.cmpi sge, %arg0, %c2_i32_0 : i32
    %4 = arith.extui %3 : i1 to i32
    %c0_i32_1 = arith.constant 0 : i32
    %5 = arith.cmpi ne, %4, %c0_i32_1 : i32
    scf.if %5 {
      %cst = arith.constant 0.000000e+00 : f32
      %6 = vector.broadcast %cst : f32 to vector<1x32x8xf32>
      %c0 = arith.constant 0 : index
      %c0_2 = arith.constant 0 : index
      %c0_3 = arith.constant 0 : index
      %7 = vector.load %arg6[%c0, %c0_2, %c0_3] : memref<1x32x8xf32, #tpu.memory_space<vmem>>, vector<1x32x8xf32>
      tpu.vector_store %arg6[%c0, %c0_2, %c0_3], %6 {strides = array<i32>} : memref<1x32x8xf32, #tpu.memory_space<vmem>>, vector<1x32x8xf32>,
    } else {
    }
    return
  }
  func.func @transform_0(%arg0: i32) -> (i32, i32, i32) {
    %c0_i32 = arith.constant 0 : i32
    %c0_i32_0 = arith.constant 0 : i32
    %c0_i32_1 = arith.constant 0 : i32
    return %arg0, %c0_i32, %c0_i32_0 : i32, i32, i32
  }
  func.func @transform_1(%arg0: i32) -> (i32, i32, i32) {
    %c0_i32 = arith.constant 0 : i32
    %c0_i32_0 = arith.constant 0 : i32
    %c0_i32_1 = arith.constant 0 : i32
    %c0_i32_2 = arith.constant 0 : i32
    return %c0_i32, %c0_i32_0, %c0_i32_1 : i32, i32, i32
  }
  func.func @transform_2(%arg0: i32) -> (i32, i32) {
    %c0_i32 = arith.constant 0 : i32
    %c0_i32_0 = arith.constant 0 : i32
    %c0_i32_1 = arith.constant 0 : i32
    return %c0_i32, %c0_i32_0 : i32, i32
  }
  func.func @transform_3(%arg0: i32) -> (i32, i32) {
    %c0_i32 = arith.constant 0 : i32
    %c0_i32_0 = arith.constant 0 : i32
    %c0_i32_1 = arith.constant 0 : i32
    return %c0_i32, %c0_i32_0 : i32, i32
  }
  func.func @transform_4(%arg0: i32) -> (i32, i32) {
    %c0_i32 = arith.constant 0 : i32
    %c0_i32_0 = arith.constant 0 : i32
    %c0_i32_1 = arith.constant 0 : i32
    return %c0_i32, %c0_i32_0 : i32, i32
  }
  func.func @transform_5(%arg0: i32) -> (i32, i32, i32) {
    %c0_i32 = arith.constant 0 : i32
    %c0_i32_0 = arith.constant 0 : i32
    %c0_i32_1 = arith.constant 0 : i32
    return %arg0, %c0_i32, %c0_i32_0 : i32, i32, i32
  }
}

</mosaic_0001>

<llo_original>
// kernel: tpu_custom_call.1
$region0: #{tpu_custom_call.1}
  #allocation0 [shape = 'u32[]', space=smem, size = 0x4, offset = 0x4, fixed_abs, tag = 'smem constant byte address 0x4 - core index']
  #allocation1 [shape = 'u32[144,128]{1,0:T(1,128)}', space=vmem, size = 0x12000, scoped, tag = 'internal scratch']
  #allocation2 [shape = 'f32[136,32]{1,0:T(8,128)}', space=vmem, size = 0x11000, scoped, tag = 'scratch operand']
  #allocation3 [shape = 'f32[128,288]{1,0:T(8,128)}', space=vmem, size = 0x30000, scoped, tag = 'scratch operand']
  %s0 = inlined_call_operand.vmem [shape: f32[8,128,8], index: 0, kind: input, shape index: {}]
  %s1 = inlined_call_operand.vmem [shape: f32[8,288,32], index: 1, kind: input, shape index: {}]
  %s2 = inlined_call_operand.vmem [shape: f32[8,32], index: 2, kind: input, shape index: {}]
  %s3 = inlined_call_operand.vmem [shape: f32[32,256], index: 3, kind: input, shape index: {}]
  %s4 = inlined_call_operand.vmem [shape: f32[32,1], index: 4, kind: input, shape index: {}]
  %s5 = inlined_call_operand.vmem [shape: f32[8,32,8], index: 5, kind: output, shape index: {}]
  %s6 = sld [smem:[#allocation0]]
  $region61: #{tpu_custom_call.1} parent=0
    _
  %s8 = ssub.s32 1, %s6
  %s9 = scalar_select 0, %s8, %s6
  loop: start=0, step=1, limit=10
  $region2: #{tpu_custom_call.1} parent=0 // loop_pre_header
    _
  $region3: #{tpu_custom_call.1} parent=0 // loop_header
    %s11 = sphi 0, %s15
    %p12 = scmp.ge.s32.totalorder %s11, 10
    %s21 = sphi 0, %s23
    %s24 = sphi 0, %s21
    %s25 = sphi 0, %s24
    %s41 = sphi 0, %s25
    %s45 = sphi 0, %s45
    %s47 = sphi 0, %s45
    %s48 = sphi 0, %s47
    %s62 = sphi 0, %s48
    %s66 = sphi 0, %s66
    %s68 = sphi 0, %s66
    %s69 = sphi 0, %s68
    %s83 = sphi 0, %s69
    %s87 = sphi 0, %s87
    %s89 = sphi 0, %s87
    %s90 = sphi 0, %s89
    %s104 = sphi 0, %s90
    %s108 = sphi 0, %s108
    %s110 = sphi 0, %s108
    %s111 = sphi 0, %s110
    %s125 = sphi 0, %s111
    %s131 = sphi 0, %s133
    %s134 = sphi 0, %s131
    %s135 = sphi 0, %s134
    %s151 = sphi 0, %s135
  $region4: #{tpu_custom_call.1} parent=0 // loop_header_branch
    %14 = sbr.rel (%p12) target = $region8
  $region5: #{tpu_custom_call.1} parent=0 // loop_body
    %s16 = ssub.s32 %s11, 1
    %s17 = ssub.s32 %s11, 2
    %s18 = sadd.s32 %s11, 1
    %s19 = ssub.s32 %s11, %s18
    %p20 = scmp.eq.s32.totalorder %s19, 0
    %s22 = sadd.s32 %s21, 1
    %s23 = scalar_select %p20, %s21, %s22
    %p26 = pneg %p20
    %p27 = scmp.eq.s32.totalorder %s11, 7
    %p28 = por %p26, %p27
    %p29 = scmp.ne.s32.totalorder %s21, %s24
    %p30 = scmp.eq.s32.totalorder %s11, 0
    %p31 = por %p29, %p30
    %p32 = scmp.ne.s32.totalorder %s21, %s24
    %p33 = scmp.eq.s32.totalorder %s16, 7
    %p34 = por %p32, %p33
    %p35 = scmp.ne.s32.totalorder %s24, %s25
    %p36 = scmp.eq.s32.totalorder %s16, 0
    %p37 = por %p35, %p36
    %p38 = scmp.ne.s32.totalorder %s24, %s25
    %p39 = scmp.eq.s32.totalorder %s17, 7
    %p40 = por %p38, %p39
    %p42 = scmp.ne.s32.totalorder %s25, %s41
    %p43 = scmp.eq.s32.totalorder %s17, 0
    %p44 = por %p42, %p43
    %s46 = sadd.s32 %s45, 1
    %p49 = scmp.eq.s32.totalorder %s11, 7
    %p50 = scmp.ne.s32.totalorder %s45, %s47
    %p51 = scmp.eq.s32.totalorder %s11, 0
    %p52 = por %p50, %p51
    %p53 = scmp.ne.s32.totalorder %s45, %s47
    %p54 = scmp.eq.s32.totalorder %s16, 7
    %p55 = por %p53, %p54
    %p56 = scmp.ne.s32.totalorder %s47, %s48
    %p57 = scmp.eq.s32.totalorder %s16, 0
    %p58 = por %p56, %p57
    %p59 = scmp.ne.s32.totalorder %s47, %s48
    %p60 = scmp.eq.s32.totalorder %s17, 7
    %p61 = por %p59, %p60
    %p63 = scmp.ne.s32.totalorder %s48, %s62
    %p64 = scmp.eq.s32.totalorder %s17, 0
    %p65 = por %p63, %p64
    %s67 = sadd.s32 %s66, 1
    %p70 = scmp.eq.s32.totalorder %s11, 7
    %p71 = scmp.ne.s32.totalorder %s66, %s68
    %p72 = scmp.eq.s32.totalorder %s11, 0
    %p73 = por %p71, %p72
    %p74 = scmp.ne.s32.totalorder %s66, %s68
    %p75 = scmp.eq.s32.totalorder %s16, 7
    %p76 = por %p74, %p75
    %p77 = scmp.ne.s32.totalorder %s68, %s69
    %p78 = scmp.eq.s32.totalorder %s16, 0
    %p79 = por %p77, %p78
    %p80 = scmp.ne.s32.totalorder %s68, %s69
    %p81 = scmp.eq.s32.totalorder %s17, 7
    %p82 = por %p80, %p81
    %p84 = scmp.ne.s32.totalorder %s69, %s83
    %p85 = scmp.eq.s32.totalorder %s17, 0
    %p86 = por %p84, %p85
    %s88 = sadd.s32 %s87, 1
    %p91 = scmp.eq.s32.totalorder %s11, 7
    %p92 = scmp.ne.s32.totalorder %s87, %s89
    %p93 = scmp.eq.s32.totalorder %s11, 0
    %p94 = por %p92, %p93
    %p95 = scmp.ne.s32.totalorder %s87, %s89
    %p96 = scmp.eq.s32.totalorder %s16, 7
    %p97 = por %p95, %p96
    %p98 = scmp.ne.s32.totalorder %s89, %s90
    %p99 = scmp.eq.s32.totalorder %s16, 0
    %p100 = por %p98, %p99
    %p101 = scmp.ne.s32.totalorder %s89, %s90
    %p102 = scmp.eq.s32.totalorder %s17, 7
    %p103 = por %p101, %p102
    %p105 = scmp.ne.s32.totalorder %s90, %s104
    %p106 = scmp.eq.s32.totalorder %s17, 0
    %p107 = por %p105, %p106
    %s109 = sadd.s32 %s108, 1
    %p112 = scmp.eq.s32.totalorder %s11, 7
    %p113 = scmp.ne.s32.totalorder %s108, %s110
    %p114 = scmp.eq.s32.totalorder %s11, 0
    %p115 = por %p113, %p114
    %p116 = scmp.ne.s32.totalorder %s108, %s110
    %p117 = scmp.eq.s32.totalorder %s16, 7
    %p118 = por %p116, %p117
    %p119 = scmp.ne.s32.totalorder %s110, %s111
    %p120 = scmp.eq.s32.totalorder %s16, 0
    %p121 = por %p119, %p120
    %p122 = scmp.ne.s32.totalorder %s110, %s111
    %p123 = scmp.eq.s32.totalorder %s17, 7
    %p124 = por %p122, %p123
    %p126 = scmp.ne.s32.totalorder %s111, %s125
    %p127 = scmp.eq.s32.totalorder %s17, 0
    %p128 = por %p126, %p127
    %s129 = ssub.s32 %s11, %s18
    %p130 = scmp.eq.s32.totalorder %s129, 0
    %s132 = sadd.s32 %s131, 1
    %s133 = scalar_select %p130, %s131, %s132
    %p136 = pneg %p130
    %p137 = scmp.eq.s32.totalorder %s11, 7
    %p138 = por %p136, %p137
    %p139 = scmp.ne.s32.totalorder %s131, %s134
    %p140 = scmp.eq.s32.totalorder %s11, 0
    %p141 = por %p139, %p140
    %p142 = scmp.ne.s32.totalorder %s131, %s134
    %p143 = scmp.eq.s32.totalorder %s16, 7
    %p144 = por %p142, %p143
    %p145 = scmp.ne.s32.totalorder %s134, %s135
    %p146 = scmp.eq.s32.totalorder %s16, 0
    %p147 = por %p145, %p146
    %p148 = scmp.ne.s32.totalorder %s134, %s135
    %p149 = scmp.eq.s32.totalorder %s17, 7
    %p150 = por %p148, %p149
    %p152 = scmp.ne.s32.totalorder %s135, %s151
    %p153 = scmp.eq.s32.totalorder %s17, 0
    %p154 = por %p152, %p153
    %p155 = scmp.le.s32.totalorder 1, %s11
    %p156 = scmp.lt.s32.totalorder %s11, 9
    %p157 = pnand %p155, %p156
    %p158 = pneg %p157
    // Predicated region
    $region9: #{tpu_custom_call.1} parent=5 // pred_check
      _
    $region10: #{tpu_custom_call.1} parent=5 // pred_check_branch
      %160 = sbr.rel (%p157) target = $region12
    $region11: #{tpu_custom_call.1} parent=5 // pred_region
      %s161 = ssub.s32 %s11, 1
      // Predicated region
      $region13: #{tpu_custom_call.1} parent=11 // pred_check
        %p162 = pneg %p58
      $region14: #{tpu_custom_call.1} parent=11 // pred_check_branch
        %164 = sbr.rel (%p162) target = $region16
      $region15: #{tpu_custom_call.1} parent=11 // pred_region
        _
      $region16: #{tpu_custom_call.1} parent=11 // pred_fallthru
        _
      // Predicated region
      $region17: #{tpu_custom_call.1} parent=11 // pred_check
        %p165 = pneg %p79
      $region18: #{tpu_custom_call.1} parent=11 // pred_check_branch
        %167 = sbr.rel (%p165) target = $region20
      $region19: #{tpu_custom_call.1} parent=11 // pred_region
        _
      $region20: #{tpu_custom_call.1} parent=11 // pred_fallthru
        _
      // Predicated region
      $region21: #{tpu_custom_call.1} parent=11 // pred_check
        %p168 = pneg %p100
      $region22: #{tpu_custom_call.1} parent=11 // pred_check_branch
        %170 = sbr.rel (%p168) target = $region24
      $region23: #{tpu_custom_call.1} parent=11 // pred_region
        _
      $region24: #{tpu_custom_call.1} parent=11 // pred_fallthru
        _
      // Predicated region
      $region25: #{tpu_custom_call.1} parent=11 // pred_check
        %p171 = pneg %p121
      $region26: #{tpu_custom_call.1} parent=11 // pred_check_branch
        %173 = sbr.rel (%p171) target = $region28
      $region27: #{tpu_custom_call.1} parent=11 // pred_region
        _
      $region28: #{tpu_custom_call.1} parent=11 // pred_fallthru
        _
    $region12: #{tpu_custom_call.1} parent=5 // pred_fallthru
      _
    %p174 = scmp.lt.s32.totalorder %s11, 8
    // Predicated region
    $region29: #{tpu_custom_call.1} parent=5 // pred_check
      %p175 = pneg %p174
    $region30: #{tpu_custom_call.1} parent=5 // pred_check_branch
      %177 = sbr.rel (%p175) target = $region32
    $region31: #{tpu_custom_call.1} parent=5 // pred_region
      // Predicated region
      $region33: #{tpu_custom_call.1} parent=31 // pred_check
        %p178 = pneg %p31
      $region34: #{tpu_custom_call.1} parent=31 // pred_check_branch
        %180 = sbr.rel (%p178) target = $region36
      $region35: #{tpu_custom_call.1} parent=31 // pred_region
        %p181 = scmp.lt.s32.totalorder %s11, 7
        %s182 = scalar_select %p181, %s11, 7
        %s183 = smul.addr %s182, 16
        %s184 = smul.addr %s183, 8
        %s185 = scalar_lea.vmem %s0, %s184
      $region36: #{tpu_custom_call.1} parent=31 // pred_fallthru
        _
    $region32: #{tpu_custom_call.1} parent=5 // pred_fallthru
      _
    %p186 = scmp.le.s32.totalorder 1, %s11
    %p187 = scmp.lt.s32.totalorder %s11, 9
    %p188 = pnand %p186, %p187
    %p189 = pneg %p188
    // Predicated region
    $region37: #{tpu_custom_call.1} parent=5 // pred_check
      _
    $region38: #{tpu_custom_call.1} parent=5 // pred_check_branch
      %191 = sbr.rel (%p188) target = $region40
    $region39: #{tpu_custom_call.1} parent=5 // pred_region
      %s192 = ssub.s32 %s11, 1
      %p193 = scmp.lt.s32.totalorder %s16, 7
      %s194 = scalar_select %p193, %s16, 7
      %s195 = smul.addr %s194, 16
      %s196 = smul.addr %s195, 8
      %s197 = scalar_lea.vmem %s0, %s196
      %p198 = pneg %p37
      %p199 = pneg %p34
      %p200 = pneg %p58
      %p201 = pneg %p55
      %p202 = pneg %p79
      %p203 = pneg %p76
      %p204 = pneg %p100
      %p205 = pneg %p97
      %p206 = pneg %p121
      %p207 = pneg %p118
      %p208 = pneg %p147
      %p209 = pneg %p144
      %p210 = scmp.lt.s32.totalorder %s16, 7
      %s211 = scalar_select %p210, %s16, 7
      %s212 = smul.addr %s211, 4
      %s213 = smul.addr %s212, 8
      %s214 = scalar_lea.vmem %s5, %s213
      %p215 = scmp.lt.s32.totalorder %s16, 7
      %s216 = scalar_select %p215, %s16, 7
      %s217 = smul.addr %s216, 16
      %s218 = smul.addr %s217, 8
      %s219 = scalar_lea.vmem %s0, %s218
      %p220 = scmp.lt.s32.totalorder %s16, 7
      %s221 = scalar_select %p220, %s16, 7
      %s222 = smul.addr %s221, 4
      %s223 = smul.addr %s222, 8
      %s224 = scalar_lea.vmem %s5, %s223
      %p225 = scmp.lt.s32.totalorder %s16, 2
      // Predicated region
      $region41: #{tpu_custom_call.1} parent=39 // pred_check
        %p226 = pneg %p225
      $region42: #{tpu_custom_call.1} parent=39 // pred_check_branch
        %228 = sbr.rel (%p226) target = $region44
      $region43: #{tpu_custom_call.1} parent=39 // pred_region
        %v229 = vld [vmem:[%s219] sm:$0xff]
        %v230 = vld [vmem:[%s219 + $0x8] sm:$0xff]
        %v231 = vld [vmem:[%s219 + $0x10] sm:$0xff]
        %v232 = vld [vmem:[%s219 + $0x18] sm:$0xff]
        %v233 = vld [vmem:[%s219 + $0x20] sm:$0xff]
        %v234 = vld [vmem:[%s219 + $0x28] sm:$0xff]
        %v235 = vld [vmem:[%s219 + $0x30] sm:$0xff]
        %v236 = vld [vmem:[%s219 + $0x38] sm:$0xff]
        %v237 = vld [vmem:[%s219 + $0x40] sm:$0xff]
        %v238 = vld [vmem:[%s219 + $0x48] sm:$0xff]
        %v239 = vld [vmem:[%s219 + $0x50] sm:$0xff]
        %v240 = vld [vmem:[%s219 + $0x58] sm:$0xff]
        %v241 = vld [vmem:[%s219 + $0x60] sm:$0xff]
        %v242 = vld [vmem:[%s219 + $0x68] sm:$0xff]
        %v243 = vld [vmem:[%s219 + $0x70] sm:$0xff]
        %v244 = vld [vmem:[%s219 + $0x78] sm:$0xff]
        %v245 = vld [vmem:[%s1] sm:$0xff]
        %v246 = vld [vmem:[%s2] sm:$0x1]
        %v247 = vlaneseq
        %v248 = vshrl.u32 %v247, 7
        %v249 = vsub.s32 0, %v248
        %v250 = vrot.slane %v246, %v249
        %vm251 = vcmask 64512
        %v253 = vsel %vm251, %v229, 0
        %v256 = vsel %vm251, %v230, 0
        %v259 = vsel %vm251, %v231, 0
        %v262 = vsel %vm251, %v232, 0
        %v265 = vsel %vm251, %v233, 0
        %v268 = vsel %vm251, %v234, 0
        %v271 = vsel %vm251, %v235, 0
        %v274 = vsel %vm251, %v236, 0
        %v277 = vsel %vm251, %v237, 0
        %v280 = vsel %vm251, %v238, 0
        %v283 = vsel %vm251, %v239, 0
        %v286 = vsel %vm251, %v240, 0
        %v289 = vsel %vm251, %v241, 0
        %v292 = vsel %vm251, %v242, 0
        %v295 = vsel %vm251, %v243, 0
        %v298 = vsel %vm251, %v244, 0
        %300 = vmatprep.subr.mxu0 0.0
        %301 = vmatpush1.msra.mxu0 %v245
        %302 = vmatprep.subr.mxu0 0.0
        %303 = vmatpush1.msra.mxu0 0.0
        %304 = vmatprep.subr.mxu0 0.0
        %305 = vmatpush1.msra.mxu0 0.0
        %306 = vmatprep.subr.mxu0 0.0
        %307 = vmatpush1.msra.mxu0 0.0
        %308 = vmatprep.subr.mxu0 0.0
        %309 = vmatpush1.msra.mxu0 0.0
        %310 = vmatprep.subr.mxu0 0.0
        %311 = vmatpush1.msra.mxu0 0.0
        %312 = vmatprep.subr.mxu0 0.0
        %313 = vmatpush1.msra.mxu0 0.0
        %314 = vmatprep.subr.mxu0 0.0
        %315 = vmatpush1.msra.mxu0 0.0
        %316 = vmatprep.subr.mxu0 0.0
        %317 = vmatpush1.msra.mxu0 0.0
        %318 = vmatprep.subr.mxu0 0.0
        %319 = vmatpush1.msra.mxu0 0.0
        %320 = vmatprep.subr.mxu0 0.0
        %321 = vmatpush1.msra.mxu0 0.0
        %322 = vmatprep.subr.mxu0 0.0
        %323 = vmatpush1.msra.mxu0 0.0
        %324 = vmatprep.subr.mxu0 0.0
        %325 = vmatpush1.msra.mxu0 0.0
        %326 = vmatprep.subr.mxu0 0.0
        %327 = vmatpush1.msra.mxu0 0.0
        %328 = vmatprep.subr.mxu0 0.0
        %329 = vmatpush1.msra.mxu0 0.0
        %330 = vmatprep.subr.mxu0 0.0
        %331 = vmatpush1.msra.mxu0 0.0
        %332 = vmatprep.subr.mxu0 0.0
        %333 = vmatpush1.msra.mxu0 0.0
        %334 = vmatprep.subr.mxu0 0.0
        %335 = vmatpush1.msra.mxu0 0.0
        %336 = vmatprep.subr.mxu0 0.0
        %337 = vmatpush1.msra.mxu0 0.0
        %338 = vmatprep.subr.mxu0 0.0
        %339 = vmatpush1.msra.mxu0 0.0
        %340 = vmatprep.subr.mxu0 0.0
        %341 = vmatpush1.msra.mxu0 0.0
        %342 = vmatprep.subr.mxu0 0.0
        %343 = vmatpush1.msra.mxu0 0.0
        %344 = vmatprep.subr.mxu0 0.0
        %345 = vmatpush1.msra.mxu0 0.0
        %346 = vmatprep.subr.mxu0 0.0
        %347 = vmatpush1.msra.mxu0 0.0
        %348 = vmatprep.subr.mxu0 0.0
        %349 = vmatpush1.msra.mxu0 0.0
        %350 = vmatprep.subr.mxu0 0.0
        %351 = vmatpush1.msra.mxu0 0.0
        %352 = vmatprep.subr.mxu0 0.0
        %353 = vmatpush1.msra.mxu0 0.0
        %354 = vmatprep.subr.mxu0 0.0
        %355 = vmatpush1.msra.mxu0 0.0
        %356 = vmatprep.subr.mxu0 0.0
        %357 = vmatpush1.msra.mxu0 0.0
        %358 = vmatprep.subr.mxu0 0.0
        %359 = vmatpush1.msra.mxu0 0.0
        %360 = vmatprep.subr.mxu0 0.0
        %361 = vmatpush1.msra.mxu0 0.0
        %362 = vmatprep.subr.mxu0 0.0
        %363 = vmatpush1.msra.mxu0 0.0
        %364 = vmatprep.mubr.f32.mxu0 0.0
        %365 = vmatmul.mubr.f32.gmra.mrb[0].mxu0 %v253
        %v366 = vpop.f32.mrb[0].mxu0
        %v367 = vadd.f32 %v250, %v366
        %v368 = vpop.f32.mrb[0].mxu0
        %369 = vmatprep.mubr.f32.mxu0 0.0
        %370 = vmatmul.mubr.f32.gmra.mrb[0].mxu0 %v256
        %v371 = vpop.f32.mrb[0].mxu0
        %v372 = vadd.f32 %v250, %v371
        %v373 = vpop.f32.mrb[0].mxu0
        %374 = vmatprep.mubr.f32.mxu0 0.0
        %375 = vmatmul.mubr.f32.gmra.mrb[0].mxu0 %v259
        %v376 = vpop.f32.mrb[0].mxu0
        %v377 = vadd.f32 %v250, %v376
        %v378 = vpop.f32.mrb[0].mxu0
        %379 = vmatprep.mubr.f32.mxu0 0.0
        %380 = vmatmul.mubr.f32.gmra.mrb[0].mxu0 %v262
        %v381 = vpop.f32.mrb[0].mxu0
        %v382 = vadd.f32 %v250, %v381
        %v383 = vpop.f32.mrb[0].mxu0
        %384 = vmatprep.mubr.f32.mxu0 0.0
        %385 = vmatmul.mubr.f32.gmra.mrb[0].mxu0 %v265
        %v386 = vpop.f32.mrb[0].mxu0
        %v387 = vadd.f32 %v250, %v386
        %v388 = vpop.f32.mrb[0].mxu0
        %389 = vmatprep.mubr.f32.mxu0 0.0
        %390 = vmatmul.mubr.f32.gmra.mrb[0].mxu0 %v268
        %v391 = vpop.f32.mrb[0].mxu0
        %v392 = vadd.f32 %v250, %v391
        %v393 = vpop.f32.mrb[0].mxu0
        %394 = vmatprep.mubr.f32.mxu0 0.0
        %395 = vmatmul.mubr.f32.gmra.mrb[0].mxu0 %v271
        %v396 = vpop.f32.mrb[0].mxu0
        %v397 = vadd.f32 %v250, %v396
        %v398 = vpop.f32.mrb[0].mxu0
        %399 = vmatprep.mubr.f32.mxu0 0.0
        %400 = vmatmul.mubr.f32.gmra.mrb[0].mxu0 %v274
        %v401 = vpop.f32.mrb[0].mxu0
        %v402 = vadd.f32 %v250, %v401
        %v403 = vpop.f32.mrb[0].mxu0
        %404 = vmatprep.mubr.f32.mxu0 0.0
        %405 = vmatmul.mubr.f32.gmra.mrb[0].mxu0 %v277
        %v406 = vpop.f32.mrb[0].mxu0
        %v407 = vadd.f32 %v250, %v406
        %v408 = vpop.f32.mrb[0].mxu0
        %409 = vmatprep.mubr.f32.mxu0 0.0
        %410 = vmatmul.mubr.f32.gmra.mrb[0].mxu0 %v280
        %v411 = vpop.f32.mrb[0].mxu0
        %v412 = vadd.f32 %v250, %v411
        %v413 = vpop.f32.mrb[0].mxu0
        %414 = vmatprep.mubr.f32.mxu0 0.0
        %415 = vmatmul.mubr.f32.gmra.mrb[0].mxu0 %v283
        %v416 = vpop.f32.mrb[0].mxu0
        %v417 = vadd.f32 %v250, %v416
        %v418 = vpop.f32.mrb[0].mxu0
        %419 = vmatprep.mubr.f32.mxu0 0.0
        %420 = vmatmul.mubr.f32.gmra.mrb[0].mxu0 %v286
        %v421 = vpop.f32.mrb[0].mxu0
        %v422 = vadd.f32 %v250, %v421
        %v423 = vpop.f32.mrb[0].mxu0
        %424 = vmatprep.mubr.f32.mxu0 0.0
        %425 = vmatmul.mubr.f32.gmra.mrb[0].mxu0 %v289
        %v426 = vpop.f32.mrb[0].mxu0
        %v427 = vadd.f32 %v250, %v426
        %v428 = vpop.f32.mrb[0].mxu0
        %429 = vmatprep.mubr.f32.mxu0 0.0
        %430 = vmatmul.mubr.f32.gmra.mrb[0].mxu0 %v292
        %v431 = vpop.f32.mrb[0].mxu0
        %v432 = vadd.f32 %v250, %v431
        %v433 = vpop.f32.mrb[0].mxu0
        %434 = vmatprep.mubr.f32.mxu0 0.0
        %435 = vmatmul.mubr.f32.gmra.mrb[0].mxu0 %v295
        %v436 = vpop.f32.mrb[0].mxu0
        %v437 = vadd.f32 %v250, %v436
        %v438 = vpop.f32.mrb[0].mxu0
        %439 = vmatprep.mubr.f32.mxu0 0.0
        %440 = vmatmul.mubr.f32.gmra.mrb[0].mxu0 %v298
        %v441 = vpop.f32.mrb[0].mxu0
        %v442 = vadd.f32 %v250, %v441
        %v443 = vpop.f32.mrb[0].mxu0
        %444 = vdwg.mxu0
        %v445 = vmul.f32 %v367, 0.5
        %v446 = vmul.f32 %v372, 0.5
        %v447 = vmul.f32 %v377, 0.5
        %v448 = vmul.f32 %v382, 0.5
        %v449 = vmul.f32 %v387, 0.5
        %v450 = vmul.f32 %v392, 0.5
        %v451 = vmul.f32 %v397, 0.5
        %v452 = vmul.f32 %v402, 0.5
        %v453 = vmul.f32 %v407, 0.5
        %v454 = vmul.f32 %v412, 0.5
        %v455 = vmul.f32 %v417, 0.5
        %v456 = vmul.f32 %v422, 0.5
        %v457 = vmul.f32 %v427, 0.5
        %v458 = vmul.f32 %v432, 0.5
        %v459 = vmul.f32 %v437, 0.5
        %v460 = vmul.f32 %v442, 0.5
        %v461 = vmul.f32 %v367, 0.70710677
        %v462 = vmul.f32 %v372, 0.70710677
        %v463 = vmul.f32 %v377, 0.70710677
        %v464 = vmul.f32 %v382, 0.70710677
        %v465 = vmul.f32 %v387, 0.70710677
        %v466 = vmul.f32 %v392, 0.70710677
        %v467 = vmul.f32 %v397, 0.70710677
        %v468 = vmul.f32 %v402, 0.70710677
        %v469 = vmul.f32 %v407, 0.70710677
        %v470 = vmul.f32 %v412, 0.70710677
        %v471 = vmul.f32 %v417, 0.70710677
        %v472 = vmul.f32 %v422, 0.70710677
        %v473 = vmul.f32 %v427, 0.70710677
        %v474 = vmul.f32 %v432, 0.70710677
        %v475 = vmul.f32 %v437, 0.70710677
        %v476 = vmul.f32 %v442, 0.70710677
        %v477 = vand.u32 2147483647, %v461
        %v478 = vand.u32 2147483647, %v462
        %v479 = vand.u32 2147483647, %v463
        %v480 = vand.u32 2147483647, %v464
        %v481 = vand.u32 2147483647, %v465
        %v482 = vand.u32 2147483647, %v466
        %v483 = vand.u32 2147483647, %v467
        %v484 = vand.u32 2147483647, %v468
        %v485 = vand.u32 2147483647, %v469
        %v486 = vand.u32 2147483647, %v470
        %v487 = vand.u32 2147483647, %v471
        %v488 = vand.u32 2147483647, %v472
        %v489 = vand.u32 2147483647, %v473
        %v490 = vand.u32 2147483647, %v474
        %v491 = vand.u32 2147483647, %v475
        %v492 = vand.u32 2147483647, %v476
        %v493 = vmul.f32 %v477, 0.3275911
        %v494 = vmul.f32 %v478, 0.3275911
        %v495 = vmul.f32 %v479, 0.3275911
        %v496 = vmul.f32 %v480, 0.3275911
        %v497 = vmul.f32 %v481, 0.3275911
        %v498 = vmul.f32 %v482, 0.3275911
        %v499 = vmul.f32 %v483, 0.3275911
        %v500 = vmul.f32 %v484, 0.3275911
        %v501 = vmul.f32 %v485, 0.3275911
        %v502 = vmul.f32 %v486, 0.3275911
        %v503 = vmul.f32 %v487, 0.3275911
        %v504 = vmul.f32 %v488, 0.3275911
        %v505 = vmul.f32 %v489, 0.3275911
        %v506 = vmul.f32 %v490, 0.3275911
        %v507 = vmul.f32 %v491, 0.3275911
        %v508 = vmul.f32 %v492, 0.3275911
        %v509 = vadd.f32 %v493, 1.0
        %v510 = vadd.f32 %v494, 1.0
        %v511 = vadd.f32 %v495, 1.0
        %v512 = vadd.f32 %v496, 1.0
        %v513 = vadd.f32 %v497, 1.0
        %v514 = vadd.f32 %v498, 1.0
        %v515 = vadd.f32 %v499, 1.0
        %v516 = vadd.f32 %v500, 1.0
        %v517 = vadd.f32 %v501, 1.0
        %v518 = vadd.f32 %v502, 1.0
        %v519 = vadd.f32 %v503, 1.0
        %v520 = vadd.f32 %v504, 1.0
        %v521 = vadd.f32 %v505, 1.0
        %v522 = vadd.f32 %v506, 1.0
        %v523 = vadd.f32 %v507, 1.0
        %v524 = vadd.f32 %v508, 1.0
        %v525 = vrcp.pop %v509
        %v526 = vmul.f32 1.0, %v525
        %v527 = vrcp.pop %v510
        %v528 = vmul.f32 1.0, %v527
        %v529 = vrcp.pop %v511
        %v530 = vmul.f32 1.0, %v529
        %v531 = vrcp.pop %v512
        %v532 = vmul.f32 1.0, %v531
        %v533 = vrcp.pop %v513
        %v534 = vmul.f32 1.0, %v533
        %v535 = vrcp.pop %v514
        %v536 = vmul.f32 1.0, %v535
        %v537 = vrcp.pop %v515
        %v538 = vmul.f32 1.0, %v537
        %v539 = vrcp.pop %v516
        %v540 = vmul.f32 1.0, %v539
        %v541 = vrcp.pop %v517
        %v542 = vmul.f32 1.0, %v541
        %v543 = vrcp.pop %v518
        %v544 = vmul.f32 1.0, %v543
        %v545 = vrcp.pop %v519
        %v546 = vmul.f32 1.0, %v545
        %v547 = vrcp.pop %v520
        %v548 = vmul.f32 1.0, %v547
        %v549 = vrcp.pop %v521
        %v550 = vmul.f32 1.0, %v549
        %v551 = vrcp.pop %v522
        %v552 = vmul.f32 1.0, %v551
        %v553 = vrcp.pop %v523
        %v554 = vmul.f32 1.0, %v553
        %v555 = vrcp.pop %v524
        %v556 = vmul.f32 1.0, %v555
        %v557 = vmul.f32 %v526, 1.0614054
        %v558 = vmul.f32 %v528, 1.0614054
        %v559 = vmul.f32 %v530, 1.0614054
        %v560 = vmul.f32 %v532, 1.0614054
        %v561 = vmul.f32 %v534, 1.0614054
        %v562 = vmul.f32 %v536, 1.0614054
        %v563 = vmul.f32 %v538, 1.0614054
        %v564 = vmul.f32 %v540, 1.0614054
        %v565 = vmul.f32 %v542, 1.0614054
        %v566 = vmul.f32 %v544, 1.0614054
        %v567 = vmul.f32 %v546, 1.0614054
        %v568 = vmul.f32 %v548, 1.0614054
        %v569 = vmul.f32 %v550, 1.0614054
        %v570 = vmul.f32 %v552, 1.0614054
        %v571 = vmul.f32 %v554, 1.0614054
        %v572 = vmul.f32 %v556, 1.0614054
        %v573 = vadd.f32 %v557, -1.4531521
        %v574 = vadd.f32 %v558, -1.4531521
        %v575 = vadd.f32 %v559, -1.4531521
        %v576 = vadd.f32 %v560, -1.4531521
        %v577 = vadd.f32 %v561, -1.4531521
        %v578 = vadd.f32 %v562, -1.4531521
        %v579 = vadd.f32 %v563, -1.4531521
        %v580 = vadd.f32 %v564, -1.4531521
        %v581 = vadd.f32 %v565, -1.4531521
        %v582 = vadd.f32 %v566, -1.4531521
        %v583 = vadd.f32 %v567, -1.4531521
        %v584 = vadd.f32 %v568, -1.4531521
        %v585 = vadd.f32 %v569, -1.4531521
        %v586 = vadd.f32 %v570, -1.4531521
        %v587 = vadd.f32 %v571, -1.4531521
        %v588 = vadd.f32 %v572, -1.4531521
        %v589 = vmul.f32 %v573, %v526
        %v590 = vmul.f32 %v574, %v528
        %v591 = vmul.f32 %v575, %v530
        %v592 = vmul.f32 %v576, %v532
        %v593 = vmul.f32 %v577, %v534
        %v594 = vmul.f32 %v578, %v536
        %v595 = vmul.f32 %v579, %v538
        %v596 = vmul.f32 %v580, %v540
        %v597 = vmul.f32 %v581, %v542
        %v598 = vmul.f32 %v582, %v544
        %v599 = vmul.f32 %v583, %v546
        %v600 = vmul.f32 %v584, %v548
        %v601 = vmul.f32 %v585, %v550
        %v602 = vmul.f32 %v586, %v552
        %v603 = vmul.f32 %v587, %v554
        %v604 = vmul.f32 %v588, %v556
        %v605 = vadd.f32 %v589, 1.4214138
        %v606 = vadd.f32 %v590, 1.4214138
        %v607 = vadd.f32 %v591, 1.4214138
        %v608 = vadd.f32 %v592, 1.4214138
        %v609 = vadd.f32 %v593, 1.4214138
        %v610 = vadd.f32 %v594, 1.4214138
        %v611 = vadd.f32 %v595, 1.4214138
        %v612 = vadd.f32 %v596, 1.4214138
        %v613 = vadd.f32 %v597, 1.4214138
        %v614 = vadd.f32 %v598, 1.4214138
        %v615 = vadd.f32 %v599, 1.4214138
        %v616 = vadd.f32 %v600, 1.4214138
        %v617 = vadd.f32 %v601, 1.4214138
        %v618 = vadd.f32 %v602, 1.4214138
        %v619 = vadd.f32 %v603, 1.4214138
        %v620 = vadd.f32 %v604, 1.4214138
        %v621 = vmul.f32 %v605, %v526
        %v622 = vmul.f32 %v606, %v528
        %v623 = vmul.f32 %v607, %v530
        %v624 = vmul.f32 %v608, %v532
        %v625 = vmul.f32 %v609, %v534
        %v626 = vmul.f32 %v610, %v536
        %v627 = vmul.f32 %v611, %v538
        %v628 = vmul.f32 %v612, %v540
        %v629 = vmul.f32 %v613, %v542
        %v630 = vmul.f32 %v614, %v544
        %v631 = vmul.f32 %v615, %v546
        %v632 = vmul.f32 %v616, %v548
        %v633 = vmul.f32 %v617, %v550
        %v634 = vmul.f32 %v618, %v552
        %v635 = vmul.f32 %v619, %v554
        %v636 = vmul.f32 %v620, %v556
        %v637 = vadd.f32 %v621, -0.28449672
        %v638 = vadd.f32 %v622, -0.28449672
        %v639 = vadd.f32 %v623, -0.28449672
        %v640 = vadd.f32 %v624, -0.28449672
        %v641 = vadd.f32 %v625, -0.28449672
        %v642 = vadd.f32 %v626, -0.28449672
        %v643 = vadd.f32 %v627, -0.28449672
        %v644 = vadd.f32 %v628, -0.28449672
        %v645 = vadd.f32 %v629, -0.28449672
        %v646 = vadd.f32 %v630, -0.28449672
        %v647 = vadd.f32 %v631, -0.28449672
        %v648 = vadd.f32 %v632, -0.28449672
        %v649 = vadd.f32 %v633, -0.28449672
        %v650 = vadd.f32 %v634, -0.28449672
        %v651 = vadd.f32 %v635, -0.28449672
        %v652 = vadd.f32 %v636, -0.28449672
        %v653 = vmul.f32 %v637, %v526
        %v654 = vmul.f32 %v638, %v528
        %v655 = vmul.f32 %v639, %v530
        %v656 = vmul.f32 %v640, %v532
        %v657 = vmul.f32 %v641, %v534
        %v658 = vmul.f32 %v642, %v536
        %v659 = vmul.f32 %v643, %v538
        %v660 = vmul.f32 %v644, %v540
        %v661 = vmul.f32 %v645, %v542
        %v662 = vmul.f32 %v646, %v544
        %v663 = vmul.f32 %v647, %v546
        %v664 = vmul.f32 %v648, %v548
        %v665 = vmul.f32 %v649, %v550
        %v666 = vmul.f32 %v650, %v552
        %v667 = vmul.f32 %v651, %v554
        %v668 = vmul.f32 %v652, %v556
        %v669 = vadd.f32 %v653, 0.2548296
        %v670 = vadd.f32 %v654, 0.2548296
        %v671 = vadd.f32 %v655, 0.2548296
        %v672 = vadd.f32 %v656, 0.2548296
        %v673 = vadd.f32 %v657, 0.2548296
        %v674 = vadd.f32 %v658, 0.2548296
        %v675 = vadd.f32 %v659, 0.2548296
        %v676 = vadd.f32 %v660, 0.2548296
        %v677 = vadd.f32 %v661, 0.2548296
        %v678 = vadd.f32 %v662, 0.2548296
        %v679 = vadd.f32 %v663, 0.2548296
        %v680 = vadd.f32 %v664, 0.2548296
        %v681 = vadd.f32 %v665, 0.2548296
        %v682 = vadd.f32 %v666, 0.2548296
        %v683 = vadd.f32 %v667, 0.2548296
        %v684 = vadd.f32 %v668, 0.2548296
        %v685 = vmul.f32 %v669, %v526
        %v686 = vmul.f32 %v670, %v528
        %v687 = vmul.f32 %v671, %v530
        %v688 = vmul.f32 %v672, %v532
        %v689 = vmul.f32 %v673, %v534
        %v690 = vmul.f32 %v674, %v536
        %v691 = vmul.f32 %v675, %v538
        %v692 = vmul.f32 %v676, %v540
        %v693 = vmul.f32 %v677, %v542
        %v694 = vmul.f32 %v678, %v544
        %v695 = vmul.f32 %v679, %v546
        %v696 = vmul.f32 %v680, %v548
        %v697 = vmul.f32 %v681, %v550
        %v698 = vmul.f32 %v682, %v552
        %v699 = vmul.f32 %v683, %v554
        %v700 = vmul.f32 %v684, %v556
        %v701 = vsub.f32 0.0, %v477
        %v702 = vsub.f32 0.0, %v478
        %v703 = vsub.f32 0.0, %v479
        %v704 = vsub.f32 0.0, %v480
        %v705 = vsub.f32 0.0, %v481
        %v706 = vsub.f32 0.0, %v482
        %v707 = vsub.f32 0.0, %v483
        %v708 = vsub.f32 0.0, %v484
        %v709 = vsub.f32 0.0, %v485
        %v710 = vsub.f32 0.0, %v486
        %v711 = vsub.f32 0.0, %v487
        %v712 = vsub.f32 0.0, %v488
        %v713 = vsub.f32 0.0, %v489
        %v714 = vsub.f32 0.0, %v490
        %v715 = vsub.f32 0.0, %v491
        %v716 = vsub.f32 0.0, %v492
        %v717 = vmul.f32 %v701, %v477
        %v718 = vmul.f32 %v702, %v478
        %v719 = vmul.f32 %v703, %v479
        %v720 = vmul.f32 %v704, %v480
        %v721 = vmul.f32 %v705, %v481
        %v722 = vmul.f32 %v706, %v482
        %v723 = vmul.f32 %v707, %v483
        %v724 = vmul.f32 %v708, %v484
        %v725 = vmul.f32 %v709, %v485
        %v726 = vmul.f32 %v710, %v486
        %v727 = vmul.f32 %v711, %v487
        %v728 = vmul.f32 %v712, %v488
        %v729 = vmul.f32 %v713, %v489
        %v730 = vmul.f32 %v714, %v490
        %v731 = vmul.f32 %v715, %v491
        %v732 = vmul.f32 %v716, %v492
        %v733 = vmul.f32 %v717, 1.442695
        %v734 = vpow.pop %v733
        %v735 = vmul.f32 %v718, 1.442695
        %v736 = vpow.pop %v735
        %v737 = vmul.f32 %v719, 1.442695
        %v738 = vpow.pop %v737
        %v739 = vmul.f32 %v720, 1.442695
        %v740 = vpow.pop %v739
        %v741 = vmul.f32 %v721, 1.442695
        %v742 = vpow.pop %v741
        %v743 = vmul.f32 %v722, 1.442695
        %v744 = vpow.pop %v743
        %v745 = vmul.f32 %v723, 1.442695
        %v746 = vpow.pop %v745
        %v747 = vmul.f32 %v724, 1.442695
        %v748 = vpow.pop %v747
        %v749 = vmul.f32 %v725, 1.442695
        %v750 = vpow.pop %v749
        %v751 = vmul.f32 %v726, 1.442695
        %v752 = vpow.pop %v751
        %v753 = vmul.f32 %v727, 1.442695
        %v754 = vpow.pop %v753
        %v755 = vmul.f32 %v728, 1.442695
        %v756 = vpow.pop %v755
        %v757 = vmul.f32 %v729, 1.442695
        %v758 = vpow.pop %v757
        %v759 = vmul.f32 %v730, 1.442695
        %v760 = vpow.pop %v759
        %v761 = vmul.f32 %v731, 1.442695
        %v762 = vpow.pop %v761
        %v763 = vmul.f32 %v732, 1.442695
        %v764 = vpow.pop %v763
        %v765 = vmul.f32 %v685, %v734
        %v766 = vmul.f32 %v686, %v736
        %v767 = vmul.f32 %v687, %v738
        %v768 = vmul.f32 %v688, %v740
        %v769 = vmul.f32 %v689, %v742
        %v770 = vmul.f32 %v690, %v744
        %v771 = vmul.f32 %v691, %v746
        %v772 = vmul.f32 %v692, %v748
        %v773 = vmul.f32 %v693, %v750
        %v774 = vmul.f32 %v694, %v752
        %v775 = vmul.f32 %v695, %v754
        %v776 = vmul.f32 %v696, %v756
        %v777 = vmul.f32 %v697, %v758
        %v778 = vmul.f32 %v698, %v760
        %v779 = vmul.f32 %v699, %v762
        %v780 = vmul.f32 %v700, %v764
        %v781 = vsub.f32 1.0, %v765
        %v782 = vsub.f32 1.0, %v766
        %v783 = vsub.f32 1.0, %v767
        %v784 = vsub.f32 1.0, %v768
        %v785 = vsub.f32 1.0, %v769
        %v786 = vsub.f32 1.0, %v770
        %v787 = vsub.f32 1.0, %v771
        %v788 = vsub.f32 1.0, %v772
        %v789 = vsub.f32 1.0, %v773
        %v790 = vsub.f32 1.0, %v774
        %v791 = vsub.f32 1.0, %v775
        %v792 = vsub.f32 1.0, %v776
        %v793 = vsub.f32 1.0, %v777
        %v794 = vsub.f32 1.0, %v778
        %v795 = vsub.f32 1.0, %v779
        %v796 = vsub.f32 1.0, %v780
        %vm797 = vcmp.lt.f32.partialorder %v461, 0.0
        %vm798 = vcmp.lt.f32.partialorder %v462, 0.0
        %vm799 = vcmp.lt.f32.partialorder %v463, 0.0
        %vm800 = vcmp.lt.f32.partialorder %v464, 0.0
        %vm801 = vcmp.lt.f32.partialorder %v465, 0.0
        %vm802 = vcmp.lt.f32.partialorder %v466, 0.0
        %vm803 = vcmp.lt.f32.partialorder %v467, 0.0
        %vm804 = vcmp.lt.f32.partialorder %v468, 0.0
        %vm805 = vcmp.lt.f32.partialorder %v469, 0.0
        %vm806 = vcmp.lt.f32.partialorder %v470, 0.0
        %vm807 = vcmp.lt.f32.partialorder %v471, 0.0
        %vm808 = vcmp.lt.f32.partialorder %v472, 0.0
        %vm809 = vcmp.lt.f32.partialorder %v473, 0.0
        %vm810 = vcmp.lt.f32.partialorder %v474, 0.0
        %vm811 = vcmp.lt.f32.partialorder %v475, 0.0
        %vm812 = vcmp.lt.f32.partialorder %v476, 0.0
        %v813 = vsub.f32 0.0, %v781
        %v814 = vsub.f32 0.0, %v782
        %v815 = vsub.f32 0.0, %v783
        %v816 = vsub.f32 0.0, %v784
        %v817 = vsub.f32 0.0, %v785
        %v818 = vsub.f32 0.0, %v786
        %v819 = vsub.f32 0.0, %v787
        %v820 = vsub.f32 0.0, %v788
        %v821 = vsub.f32 0.0, %v789
        %v822 = vsub.f32 0.0, %v790
        %v823 = vsub.f32 0.0, %v791
        %v824 = vsub.f32 0.0, %v792
        %v825 = vsub.f32 0.0, %v793
        %v826 = vsub.f32 0.0, %v794
        %v827 = vsub.f32 0.0, %v795
        %v828 = vsub.f32 0.0, %v796
        %v829 = vsel %vm797, %v813, %v781
        %v830 = vsel %vm798, %v814, %v782
        %v831 = vsel %vm799, %v815, %v783
        %v832 = vsel %vm800, %v816, %v784
        %v833 = vsel %vm801, %v817, %v785
        %v834 = vsel %vm802, %v818, %v786
        %v835 = vsel %vm803, %v819, %v787
        %v836 = vsel %vm804, %v820, %v788
        %v837 = vsel %vm805, %v821, %v789
        %v838 = vsel %vm806, %v822, %v790
        %v839 = vsel %vm807, %v823, %v791
        %v840 = vsel %vm808, %v824, %v792
        %v841 = vsel %vm809, %v825, %v793
        %v842 = vsel %vm810, %v826, %v794
        %v843 = vsel %vm811, %v827, %v795
        %v844 = vsel %vm812, %v828, %v796
        %v845 = vadd.f32 %v829, 1.0
        %v846 = vadd.f32 %v830, 1.0
        %v847 = vadd.f32 %v831, 1.0
        %v848 = vadd.f32 %v832, 1.0
        %v849 = vadd.f32 %v833, 1.0
        %v850 = vadd.f32 %v834, 1.0
        %v851 = vadd.f32 %v835, 1.0
        %v852 = vadd.f32 %v836, 1.0
        %v853 = vadd.f32 %v837, 1.0
        %v854 = vadd.f32 %v838, 1.0
        %v855 = vadd.f32 %v839, 1.0
        %v856 = vadd.f32 %v840, 1.0
        %v857 = vadd.f32 %v841, 1.0
        %v858 = vadd.f32 %v842, 1.0
        %v859 = vadd.f32 %v843, 1.0
        %v860 = vadd.f32 %v844, 1.0
        %v861 = vmul.f32 %v445, %v845
        %v862 = vmul.f32 %v446, %v846
        %v863 = vmul.f32 %v447, %v847
        %v864 = vmul.f32 %v448, %v848
        %v865 = vmul.f32 %v449, %v849
        %v866 = vmul.f32 %v450, %v850
        %v867 = vmul.f32 %v451, %v851
        %v868 = vmul.f32 %v452, %v852
        %v869 = vmul.f32 %v453, %v853
        %v870 = vmul.f32 %v454, %v854
        %v871 = vmul.f32 %v455, %v855
        %v872 = vmul.f32 %v456, %v856
        %v873 = vmul.f32 %v457, %v857
        %v874 = vmul.f32 %v458, %v858
        %v875 = vmul.f32 %v459, %v859
        %v876 = vmul.f32 %v460, %v860
        %s877 = scalar_lea.vmem %s1, 288
        %v878 = vld [vmem:[%s877] sm:$0xff]
        %v879 = vld [vmem:[%s877 + $0x8] sm:$0xff]
        %v880 = vld [vmem:[%s877 + $0x10] sm:$0xff]
        %v881 = vld [vmem:[%s877 + $0x18] sm:$0xff]
        %v882 = vld [vmem:[%s2 + $0x1] sm:$0x1]
        %v883 = vlaneseq
        %v884 = vshrl.u32 %v883, 7
        %v885 = vsub.s32 0, %v884
        %v886 = vrot.slane %v882, %v885
        %vm887 = vcmask 261120
        %v889 = vsel %vm887, %v861, 0
        %v892 = vsel %vm887, %v862, 0
        %v895 = vsel %vm887, %v863, 0
        %v898 = vsel %vm887, %v864, 0
        %v901 = vsel %vm887, %v865, 0
        %v904 = vsel %vm887, %v866, 0
        %v907 = vsel %vm887, %v867, 0
        %v910 = vsel %vm887, %v868, 0
        %v913 = vsel %vm887, %v869, 0
        %v916 = vsel %vm887, %v870, 0
        %v919 = vsel %vm887, %v871, 0
        %v922 = vsel %vm887, %v872, 0
        %v925 = vsel %vm887, %v873, 0
        %v928 = vsel %vm887, %v874, 0
        %v931 = vsel %vm887, %v875, 0
        %v934 = vsel %vm887, %v876, 0
        %936 = vmatprep.subr.mxu0 0.0
        %937 = vmatpush1.msra.mxu0 %v878
        %938 = vmatprep.subr.mxu0 0.0
        %939 = vmatpush1.msra.mxu0 %v879
        %940 = vmatprep.subr.mxu0 0.0
        %941 = vmatpush1.msra.mxu0 %v880
        %942 = vmatprep.subr.mxu0 0.0
        %943 = vmatpush1.msra.mxu0 %v881
        %944 = vmatprep.subr.mxu0 0.0
        %945 = vmatpush1.msra.mxu0 0.0
        %946 = vmatprep.subr.mxu0 0.0
        %947 = vmatpush1.msra.mxu0 0.0
        %948 = vmatprep.subr.mxu0 0.0
        %949 = vmatpush1.msra.mxu0 0.0
        %950 = vmatprep.subr.mxu0 0.0
        %951 = vmatpush1.msra.mxu0 0.0
        %952 = vmatprep.subr.mxu0 0.0
        %953 = vmatpush1.msra.mxu0 0.0
        %954 = vmatprep.subr.mxu0 0.0
        %955 = vmatpush1.msra.mxu0 0.0
        %956 = vmatprep.subr.mxu0 0.0
        %957 = vmatpush1.msra.mxu0 0.0
        %958 = vmatprep.subr.mxu0 0.0
        %959 = vmatpush1.msra.mxu0 0.0
        %960 = vmatprep.subr.mxu0 0.0
        %961 = vmatpush1.msra.mxu0 0.0
        %962 = vmatprep.subr.mxu0 0.0
        %963 = vmatpush1.msra.mxu0 0.0
        %964 = vmatprep.subr.mxu0 0.0
        %965 = vmatpush1.msra.mxu0 0.0
        %966 = vmatprep.subr.mxu0 0.0
        %967 = vmatpush1.msra.mxu0 0.0
        %968 = vmatprep.subr.mxu0 0.0
        %969 = vmatpush1.msra.mxu0 0.0
        %970 = vmatprep.subr.mxu0 0.0
        %971 = vmatpush1.msra.mxu0 0.0
        %972 = vmatprep.subr.mxu0 0.0
        %973 = vmatpush1.msra.mxu0 0.0
        %974 = vmatprep.subr.mxu0 0.0
        %975 = vmatpush1.msra.mxu0 0.0
        %976 = vmatprep.subr.mxu0 0.0
        %977 = vmatpush1.msra.mxu0 0.0
        %978 = vmatprep.subr.mxu0 0.0
        %979 = vmatpush1.msra.mxu0 0.0
        %980 = vmatprep.subr.mxu0 0.0
        %981 = vmatpush1.msra.mxu0 0.0
        %982 = vmatprep.subr.mxu0 0.0
        %983 = vmatpush1.msra.mxu0 0.0
        %984 = vmatprep.subr.mxu0 0.0
        %985 = vmatpush1.msra.mxu0 0.0
        %986 = vmatprep.subr.mxu0 0.0
        %987 = vmatpush1.msra.mxu0 0.0
        %988 = vmatprep.subr.mxu0 0.0
        %989 = vmatpush1.msra.mxu0 0.0
        %990 = vmatprep.subr.mxu0 0.0
        %991 = vmatpush1.msra.mxu0 0.0
        %992 = vmatprep.subr.mxu0 0.0
        %993 = vmatpush1.msra.mxu0 0.0
        %994 = vmatprep.subr.mxu0 0.0
        %995 = vmatpush1.msra.mxu0 0.0
        %996 = vmatprep.subr.mxu0 0.0
        %997 = vmatpush1.msra.mxu0 0.0
        %998 = vmatprep.subr.mxu0 0.0
        %999 = vmatpush1.msra.mxu0 0.0
        %1000 = vmatprep.mubr.f32.mxu0 0.0
        %1001 = vmatmul.mubr.f32.gmra.mrb[0].mxu0 %v889
        %v1002 = vpop.f32.mrb[0].mxu0
        %v1003 = vadd.f32 %v886, %v1002
        %v1004 = vpop.f32.mrb[0].mxu0
        %1005 = vmatprep.mubr.f32.mxu0 0.0
        %1006 = vmatmul.mubr.f32.gmra.mrb[0].mxu0 %v892
        %v1007 = vpop.f32.mrb[0].mxu0
        %v1008 = vadd.f32 %v886, %v1007
        %v1009 = vpop.f32.mrb[0].mxu0
        %1010 = vmatprep.mubr.f32.mxu0 0.0
        %1011 = vmatmul.mubr.f32.gmra.mrb[0].mxu0 %v895
        %v1012 = vpop.f32.mrb[0].mxu0
        %v1013 = vadd.f32 %v886, %v1012
        %v1014 = vpop.f32.mrb[0].mxu0
        %1015 = vmatprep.mubr.f32.mxu0 0.0
        %1016 = vmatmul.mubr.f32.gmra.mrb[0].mxu0 %v898
        %v1017 = vpop.f32.mrb[0].mxu0
        %v1018 = vadd.f32 %v886, %v1017
        %v1019 = vpop.f32.mrb[0].mxu0
        %1020 = vmatprep.mubr.f32.mxu0 0.0
        %1021 = vmatmul.mubr.f32.gmra.mrb[0].mxu0 %v901
        %v1022 = vpop.f32.mrb[0].mxu0
        %v1023 = vadd.f32 %v886, %v1022
        %v1024 = vpop.f32.mrb[0].mxu0
        %1025 = vmatprep.mubr.f32.mxu0 0.0
        %1026 = vmatmul.mubr.f32.gmra.mrb[0].mxu0 %v904
        %v1027 = vpop.f32.mrb[0].mxu0
        %v1028 = vadd.f32 %v886, %v1027
        %v1029 = vpop.f32.mrb[0].mxu0
        %1030 = vmatprep.mubr.f32.mxu0 0.0
        %1031 = vmatmul.mubr.f32.gmra.mrb[0].mxu0 %v907
        %v1032 = vpop.f32.mrb[0].mxu0
        %v1033 = vadd.f32 %v886, %v1032
        %v1034 = vpop.f32.mrb[0].mxu0
        %1035 = vmatprep.mubr.f32.mxu0 0.0
        %1036 = vmatmul.mubr.f32.gmra.mrb[0].mxu0 %v910
        %v1037 = vpop.f32.mrb[0].mxu0
        %v1038 = vadd.f32 %v886, %v1037
        %v1039 = vpop.f32.mrb[0].mxu0
        %1040 = vmatprep.mubr.f32.mxu0 0.0
        %1041 = vmatmul.mubr.f32.gmra.mrb[0].mxu0 %v913
        %v1042 = vpop.f32.mrb[0].mxu0
        %v1043 = vadd.f32 %v886, %v1042
        %v1044 = vpop.f32.mrb[0].mxu0
        %1045 = vmatprep.mubr.f32.mxu0 0.0
        %1046 = vmatmul.mubr.f32.gmra.mrb[0].mxu0 %v916
        %v1047 = vpop.f32.mrb[0].mxu0
        %v1048 = vadd.f32 %v886, %v1047
        %v1049 = vpop.f32.mrb[0].mxu0
        %1050 = vmatprep.mubr.f32.mxu0 0.0
        %1051 = vmatmul.mubr.f32.gmra.mrb[0].mxu0 %v919
        %v1052 = vpop.f32.mrb[0].mxu0
        %v1053 = vadd.f32 %v886, %v1052
        %v1054 = vpop.f32.mrb[0].mxu0
        %1055 = vmatprep.mubr.f32.mxu0 0.0
        %1056 = vmatmul.mubr.f32.gmra.mrb[0].mxu0 %v922
        %v1057 = vpop.f32.mrb[0].mxu0
        %v1058 = vadd.f32 %v886, %v1057
        %v1059 = vpop.f32.mrb[0].mxu0
        %1060 = vmatprep.mubr.f32.mxu0 0.0
        %1061 = vmatmul.mubr.f32.gmra.mrb[0].mxu0 %v925
        %v1062 = vpop.f32.mrb[0].mxu0
        %v1063 = vadd.f32 %v886, %v1062
        %v1064 = vpop.f32.mrb[0].mxu0
        %1065 = vmatprep.mubr.f32.mxu0 0.0
        %1066 = vmatmul.mubr.f32.gmra.mrb[0].mxu0 %v928
        %v1067 = vpop.f32.mrb[0].mxu0
        %v1068 = vadd.f32 %v886, %v1067
        %v1069 = vpop.f32.mrb[0].mxu0
        %1070 = vmatprep.mubr.f32.mxu0 0.0
        %1071 = vmatmul.mubr.f32.gmra.mrb[0].mxu0 %v931
        %v1072 = vpop.f32.mrb[0].mxu0
        %v1073 = vadd.f32 %v886, %v1072
        %v1074 = vpop.f32.mrb[0].mxu0
        %1075 = vmatprep.mubr.f32.mxu0 0.0
        %1076 = vmatmul.mubr.f32.gmra.mrb[0].mxu0 %v934
        %v1077 = vpop.f32.mrb[0].mxu0
        %v1078 = vadd.f32 %v886, %v1077
        %v1079 = vpop.f32.mrb[0].mxu0
        %1080 = vdwg.mxu0
        %v1081 = vmul.f32 %v1003, 0.5
        %v1082 = vmul.f32 %v1008, 0.5
        %v1083 = vmul.f32 %v1013, 0.5
        %v1084 = vmul.f32 %v1018, 0.5
        %v1085 = vmul.f32 %v1023, 0.5
        %v1086 = vmul.f32 %v1028, 0.5
        %v1087 = vmul.f32 %v1033, 0.5
        %v1088 = vmul.f32 %v1038, 0.5
        %v1089 = vmul.f32 %v1043, 0.5
        %v1090 = vmul.f32 %v1048, 0.5
        %v1091 = vmul.f32 %v1053, 0.5
        %v1092 = vmul.f32 %v1058, 0.5
        %v1093 = vmul.f32 %v1063, 0.5
        %v1094 = vmul.f32 %v1068, 0.5
        %v1095 = vmul.f32 %v1073, 0.5
        %v1096 = vmul.f32 %v1078, 0.5
        %v1097 = vmul.f32 %v1003, 0.70710677
        %v1098 = vmul.f32 %v1008, 0.70710677
        %v1099 = vmul.f32 %v1013, 0.70710677
        %v1100 = vmul.f32 %v1018, 0.70710677
        %v1101 = vmul.f32 %v1023, 0.70710677
        %v1102 = vmul.f32 %v1028, 0.70710677
        %v1103 = vmul.f32 %v1033, 0.70710677
        %v1104 = vmul.f32 %v1038, 0.70710677
        %v1105 = vmul.f32 %v1043, 0.70710677
        %v1106 = vmul.f32 %v1048, 0.70710677
        %v1107 = vmul.f32 %v1053, 0.70710677
        %v1108 = vmul.f32 %v1058, 0.70710677
        %v1109 = vmul.f32 %v1063, 0.70710677
        %v1110 = vmul.f32 %v1068, 0.70710677
        %v1111 = vmul.f32 %v1073, 0.70710677
        %v1112 = vmul.f32 %v1078, 0.70710677
        %v1113 = vand.u32 2147483647, %v1097
        %v1114 = vand.u32 2147483647, %v1098
        %v1115 = vand.u32 2147483647, %v1099
        %v1116 = vand.u32 2147483647, %v1100
        %v1117 = vand.u32 2147483647, %v1101
        %v1118 = vand.u32 2147483647, %v1102
        %v1119 = vand.u32 2147483647, %v1103
        %v1120 = vand.u32 2147483647, %v1104
        %v1121 = vand.u32 2147483647, %v1105
        %v1122 = vand.u32 2147483647, %v1106
        %v1123 = vand.u32 2147483647, %v1107
        %v1124 = vand.u32 2147483647, %v1108
        %v1125 = vand.u32 2147483647, %v1109
        %v1126 = vand.u32 2147483647, %v1110
        %v1127 = vand.u32 2147483647, %v1111
        %v1128 = vand.u32 2147483647, %v1112
        %v1129 = vmul.f32 %v1113, 0.3275911
        %v1130 = vmul.f32 %v1114, 0.3275911
        %v1131 = vmul.f32 %v1115, 0.3275911
        %v1132 = vmul.f32 %v1116, 0.3275911
        %v1133 = vmul.f32 %v1117, 0.3275911
        %v1134 = vmul.f32 %v1118, 0.3275911
        %v1135 = vmul.f32 %v1119, 0.3275911
        %v1136 = vmul.f32 %v1120, 0.3275911
        %v1137 = vmul.f32 %v1121, 0.3275911
        %v1138 = vmul.f32 %v1122, 0.3275911
        %v1139 = vmul.f32 %v1123, 0.3275911
        %v1140 = vmul.f32 %v1124, 0.3275911
        %v1141 = vmul.f32 %v1125, 0.3275911
        %v1142 = vmul.f32 %v1126, 0.3275911
        %v1143 = vmul.f32 %v1127, 0.3275911
        %v1144 = vmul.f32 %v1128, 0.3275911
        %v1145 = vadd.f32 %v1129, 1.0
        %v1146 = vadd.f32 %v1130, 1.0
        %v1147 = vadd.f32 %v1131, 1.0
        %v1148 = vadd.f32 %v1132, 1.0
        %v1149 = vadd.f32 %v1133, 1.0
        %v1150 = vadd.f32 %v1134, 1.0
        %v1151 = vadd.f32 %v1135, 1.0
        %v1152 = vadd.f32 %v1136, 1.0
        %v1153 = vadd.f32 %v1137, 1.0
        %v1154 = vadd.f32 %v1138, 1.0
        %v1155 = vadd.f32 %v1139, 1.0
        %v1156 = vadd.f32 %v1140, 1.0
        %v1157 = vadd.f32 %v1141, 1.0
        %v1158 = vadd.f32 %v1142, 1.0
        %v1159 = vadd.f32 %v1143, 1.0
        %v1160 = vadd.f32 %v1144, 1.0
        %v1161 = vrcp.pop %v1145
        %v1162 = vmul.f32 1.0, %v1161
        %v1163 = vrcp.pop %v1146
        %v1164 = vmul.f32 1.0, %v1163
        %v1165 = vrcp.pop %v1147
        %v1166 = vmul.f32 1.0, %v1165
        %v1167 = vrcp.pop %v1148
        %v1168 = vmul.f32 1.0, %v1167
        %v1169 = vrcp.pop %v1149
        %v1170 = vmul.f32 1.0, %v1169
        %v1171 = vrcp.pop %v1150
        %v1172 = vmul.f32 1.0, %v1171
        %v1173 = vrcp.pop %v1151
        %v1174 = vmul.f32 1.0, %v1173
        %v1175 = vrcp.pop %v1152
        %v1176 = vmul.f32 1.0, %v1175
        %v1177 = vrcp.pop %v1153
        %v1178 = vmul.f32 1.0, %v1177
        %v1179 = vrcp.pop %v1154
        %v1180 = vmul.f32 1.0, %v1179
        %v1181 = vrcp.pop %v1155
        %v1182 = vmul.f32 1.0, %v1181
        %v1183 = vrcp.pop %v1156
        %v1184 = vmul.f32 1.0, %v1183
        %v1185 = vrcp.pop %v1157
        %v1186 = vmul.f32 1.0, %v1185
        %v1187 = vrcp.pop %v1158
        %v1188 = vmul.f32 1.0, %v1187
        %v1189 = vrcp.pop %v1159
        %v1190 = vmul.f32 1.0, %v1189
        %v1191 = vrcp.pop %v1160
        %v1192 = vmul.f32 1.0, %v1191
        %v1193 = vmul.f32 %v1162, 1.0614054
        %v1194 = vmul.f32 %v1164, 1.0614054
        %v1195 = vmul.f32 %v1166, 1.0614054
        %v1196 = vmul.f32 %v1168, 1.0614054
        %v1197 = vmul.f32 %v1170, 1.0614054
        %v1198 = vmul.f32 %v1172, 1.0614054
        %v1199 = vmul.f32 %v1174, 1.0614054
        %v1200 = vmul.f32 %v1176, 1.0614054
        %v1201 = vmul.f32 %v1178, 1.0614054
        %v1202 = vmul.f32 %v1180, 1.0614054
        %v1203 = vmul.f32 %v1182, 1.0614054
        %v1204 = vmul.f32 %v1184, 1.0614054
        %v1205 = vmul.f32 %v1186, 1.0614054
        %v1206 = vmul.f32 %v1188, 1.0614054
        %v1207 = vmul.f32 %v1190, 1.0614054
        %v1208 = vmul.f32 %v1192, 1.0614054
        %v1209 = vadd.f32 %v1193, -1.4531521
        %v1210 = vadd.f32 %v1194, -1.4531521
        %v1211 = vadd.f32 %v1195, -1.4531521
        %v1212 = vadd.f32 %v1196, -1.4531521
        %v1213 = vadd.f32 %v1197, -1.4531521
        %v1214 = vadd.f32 %v1198, -1.4531521
        %v1215 = vadd.f32 %v1199, -1.4531521
        %v1216 = vadd.f32 %v1200, -1.4531521
        %v1217 = vadd.f32 %v1201, -1.4531521
        %v1218 = vadd.f32 %v1202, -1.4531521
        %v1219 = vadd.f32 %v1203, -1.4531521
        %v1220 = vadd.f32 %v1204, -1.4531521
        %v1221 = vadd.f32 %v1205, -1.4531521
        %v1222 = vadd.f32 %v1206, -1.4531521
        %v1223 = vadd.f32 %v1207, -1.4531521
        %v1224 = vadd.f32 %v1208, -1.4531521
        %v1225 = vmul.f32 %v1209, %v1162
        %v1226 = vmul.f32 %v1210, %v1164
        %v1227 = vmul.f32 %v1211, %v1166
        %v1228 = vmul.f32 %v1212, %v1168
        %v1229 = vmul.f32 %v1213, %v1170
        %v1230 = vmul.f32 %v1214, %v1172
        %v1231 = vmul.f32 %v1215, %v1174
        %v1232 = vmul.f32 %v1216, %v1176
        %v1233 = vmul.f32 %v1217, %v1178
        %v1234 = vmul.f32 %v1218, %v1180
        %v1235 = vmul.f32 %v1219, %v1182
        %v1236 = vmul.f32 %v1220, %v1184
        %v1237 = vmul.f32 %v1221, %v1186
        %v1238 = vmul.f32 %v1222, %v1188
        %v1239 = vmul.f32 %v1223, %v1190
        %v1240 = vmul.f32 %v1224, %v1192
        %v1241 = vadd.f32 %v1225, 1.4214138
        %v1242 = vadd.f32 %v1226, 1.4214138
        %v1243 = vadd.f32 %v1227, 1.4214138
        %v1244 = vadd.f32 %v1228, 1.4214138
        %v1245 = vadd.f32 %v1229, 1.4214138
        %v1246 = vadd.f32 %v1230, 1.4214138
        %v1247 = vadd.f32 %v1231, 1.4214138
        %v1248 = vadd.f32 %v1232, 1.4214138
        %v1249 = vadd.f32 %v1233, 1.4214138
        %v1250 = vadd.f32 %v1234, 1.4214138
        %v1251 = vadd.f32 %v1235, 1.4214138
        %v1252 = vadd.f32 %v1236, 1.4214138
        %v1253 = vadd.f32 %v1237, 1.4214138
        %v1254 = vadd.f32 %v1238, 1.4214138
        %v1255 = vadd.f32 %v1239, 1.4214138
        %v1256 = vadd.f32 %v1240, 1.4214138
        %v1257 = vmul.f32 %v1241, %v1162
        %v1258 = vmul.f32 %v1242, %v1164
        %v1259 = vmul.f32 %v1243, %v1166
        %v1260 = vmul.f32 %v1244, %v1168
        %v1261 = vmul.f32 %v1245, %v1170
        %v1262 = vmul.f32 %v1246, %v1172
        %v1263 = vmul.f32 %v1247, %v1174
        %v1264 = vmul.f32 %v1248, %v1176
        %v1265 = vmul.f32 %v1249, %v1178
        %v1266 = vmul.f32 %v1250, %v1180
        %v1267 = vmul.f32 %v1251, %v1182
        %v1268 = vmul.f32 %v1252, %v1184
        %v1269 = vmul.f32 %v1253, %v1186
        %v1270 = vmul.f32 %v1254, %v1188
        %v1271 = vmul.f32 %v1255, %v1190
        %v1272 = vmul.f32 %v1256, %v1192
        %v1273 = vadd.f32 %v1257, -0.28449672
        %v1274 = vadd.f32 %v1258, -0.28449672
        %v1275 = vadd.f32 %v1259, -0.28449672
        %v1276 = vadd.f32 %v1260, -0.28449672
        %v1277 = vadd.f32 %v1261, -0.28449672
        %v1278 = vadd.f32 %v1262, -0.28449672
        %v1279 = vadd.f32 %v1263, -0.28449672
        %v1280 = vadd.f32 %v1264, -0.28449672
        %v1281 = vadd.f32 %v1265, -0.28449672
        %v1282 = vadd.f32 %v1266, -0.28449672
        %v1283 = vadd.f32 %v1267, -0.28449672
        %v1284 = vadd.f32 %v1268, -0.28449672
        %v1285 = vadd.f32 %v1269, -0.28449672
        %v1286 = vadd.f32 %v1270, -0.28449672
        %v1287 = vadd.f32 %v1271, -0.28449672
        %v1288 = vadd.f32 %v1272, -0.28449672
        %v1289 = vmul.f32 %v1273, %v1162
        %v1290 = vmul.f32 %v1274, %v1164
        %v1291 = vmul.f32 %v1275, %v1166
        %v1292 = vmul.f32 %v1276, %v1168
        %v1293 = vmul.f32 %v1277, %v1170
        %v1294 = vmul.f32 %v1278, %v1172
        %v1295 = vmul.f32 %v1279, %v1174
        %v1296 = vmul.f32 %v1280, %v1176
        %v1297 = vmul.f32 %v1281, %v1178
        %v1298 = vmul.f32 %v1282, %v1180
        %v1299 = vmul.f32 %v1283, %v1182
        %v1300 = vmul.f32 %v1284, %v1184
        %v1301 = vmul.f32 %v1285, %v1186
        %v1302 = vmul.f32 %v1286, %v1188
        %v1303 = vmul.f32 %v1287, %v1190
        %v1304 = vmul.f32 %v1288, %v1192
        %v1305 = vadd.f32 %v1289, 0.2548296
        %v1306 = vadd.f32 %v1290, 0.2548296
        %v1307 = vadd.f32 %v1291, 0.2548296
        %v1308 = vadd.f32 %v1292, 0.2548296
        %v1309 = vadd.f32 %v1293, 0.2548296
        %v1310 = vadd.f32 %v1294, 0.2548296
        %v1311 = vadd.f32 %v1295, 0.2548296
        %v1312 = vadd.f32 %v1296, 0.2548296
        %v1313 = vadd.f32 %v1297, 0.2548296
        %v1314 = vadd.f32 %v1298, 0.2548296
        %v1315 = vadd.f32 %v1299, 0.2548296
        %v1316 = vadd.f32 %v1300, 0.2548296
        %v1317 = vadd.f32 %v1301, 0.2548296
        %v1318 = vadd.f32 %v1302, 0.2548296
        %v1319 = vadd.f32 %v1303, 0.2548296
        %v1320 = vadd.f32 %v1304, 0.2548296
        %v1321 = vmul.f32 %v1305, %v1162
        %v1322 = vmul.f32 %v1306, %v1164
        %v1323 = vmul.f32 %v1307, %v1166
        %v1324 = vmul.f32 %v1308, %v1168
        %v1325 = vmul.f32 %v1309, %v1170
        %v1326 = vmul.f32 %v1310, %v1172
        %v1327 = vmul.f32 %v1311, %v1174
        %v1328 = vmul.f32 %v1312, %v1176
        %v1329 = vmul.f32 %v1313, %v1178
        %v1330 = vmul.f32 %v1314, %v1180
        %v1331 = vmul.f32 %v1315, %v1182
        %v1332 = vmul.f32 %v1316, %v1184
        %v1333 = vmul.f32 %v1317, %v1186
        %v1334 = vmul.f32 %v1318, %v1188
        %v1335 = vmul.f32 %v1319, %v1190
        %v1336 = vmul.f32 %v1320, %v1192
        %v1337 = vsub.f32 0.0, %v1113
        %v1338 = vsub.f32 0.0, %v1114
        %v1339 = vsub.f32 0.0, %v1115
        %v1340 = vsub.f32 0.0, %v1116
        %v1341 = vsub.f32 0.0, %v1117
        %v1342 = vsub.f32 0.0, %v1118
        %v1343 = vsub.f32 0.0, %v1119
        %v1344 = vsub.f32 0.0, %v1120
        %v1345 = vsub.f32 0.0, %v1121
        %v1346 = vsub.f32 0.0, %v1122
        %v1347 = vsub.f32 0.0, %v1123
        %v1348 = vsub.f32 0.0, %v1124
        %v1349 = vsub.f32 0.0, %v1125
        %v1350 = vsub.f32 0.0, %v1126
        %v1351 = vsub.f32 0.0, %v1127
        %v1352 = vsub.f32 0.0, %v1128
        %v1353 = vmul.f32 %v1337, %v1113
        %v1354 = vmul.f32 %v1338, %v1114
        %v1355 = vmul.f32 %v1339, %v1115
        %v1356 = vmul.f32 %v1340, %v1116
        %v1357 = vmul.f32 %v1341, %v1117
        %v1358 = vmul.f32 %v1342, %v1118
        %v1359 = vmul.f32 %v1343, %v1119
        %v1360 = vmul.f32 %v1344, %v1120
        %v1361 = vmul.f32 %v1345, %v1121
        %v1362 = vmul.f32 %v1346, %v1122
        %v1363 = vmul.f32 %v1347, %v1123
        %v1364 = vmul.f32 %v1348, %v1124
        %v1365 = vmul.f32 %v1349, %v1125
        %v1366 = vmul.f32 %v1350, %v1126
        %v1367 = vmul.f32 %v1351, %v1127
        %v1368 = vmul.f32 %v1352, %v1128
        %v1369 = vmul.f32 %v1353, 1.442695
        %v1370 = vpow.pop %v1369
        %v1371 = vmul.f32 %v1354, 1.442695
        %v1372 = vpow.pop %v1371
        %v1373 = vmul.f32 %v1355, 1.442695
        %v1374 = vpow.pop %v1373
        %v1375 = vmul.f32 %v1356, 1.442695
        %v1376 = vpow.pop %v1375
        %v1377 = vmul.f32 %v1357, 1.442695
        %v1378 = vpow.pop %v1377
        %v1379 = vmul.f32 %v1358, 1.442695
        %v1380 = vpow.pop %v1379
        %v1381 = vmul.f32 %v1359, 1.442695
        %v1382 = vpow.pop %v1381
        %v1383 = vmul.f32 %v1360, 1.442695
        %v1384 = vpow.pop %v1383
        %v1385 = vmul.f32 %v1361, 1.442695
        %v1386 = vpow.pop %v1385
        %v1387 = vmul.f32 %v1362, 1.442695
        %v1388 = vpow.pop %v1387
        %v1389 = vmul.f32 %v1363, 1.442695
        %v1390 = vpow.pop %v1389
        %v1391 = vmul.f32 %v1364, 1.442695
        %v1392 = vpow.pop %v1391
        %v1393 = vmul.f32 %v1365, 1.442695
        %v1394 = vpow.pop %v1393
        %v1395 = vmul.f32 %v1366, 1.442695
        %v1396 = vpow.pop %v1395
        %v1397 = vmul.f32 %v1367, 1.442695
        %v1398 = vpow.pop %v1397
        %v1399 = vmul.f32 %v1368, 1.442695
        %v1400 = vpow.pop %v1399
        %v1401 = vmul.f32 %v1321, %v1370
        %v1402 = vmul.f32 %v1322, %v1372
        %v1403 = vmul.f32 %v1323, %v1374
        %v1404 = vmul.f32 %v1324, %v1376
        %v1405 = vmul.f32 %v1325, %v1378
        %v1406 = vmul.f32 %v1326, %v1380
        %v1407 = vmul.f32 %v1327, %v1382
        %v1408 = vmul.f32 %v1328, %v1384
        %v1409 = vmul.f32 %v1329, %v1386
        %v1410 = vmul.f32 %v1330, %v1388
        %v1411 = vmul.f32 %v1331, %v1390
        %v1412 = vmul.f32 %v1332, %v1392
        %v1413 = vmul.f32 %v1333, %v1394
        %v1414 = vmul.f32 %v1334, %v1396
        %v1415 = vmul.f32 %v1335, %v1398
        %v1416 = vmul.f32 %v1336, %v1400
        %v1417 = vsub.f32 1.0, %v1401
        %v1418 = vsub.f32 1.0, %v1402
        %v1419 = vsub.f32 1.0, %v1403
        %v1420 = vsub.f32 1.0, %v1404
        %v1421 = vsub.f32 1.0, %v1405
        %v1422 = vsub.f32 1.0, %v1406
        %v1423 = vsub.f32 1.0, %v1407
        %v1424 = vsub.f32 1.0, %v1408
        %v1425 = vsub.f32 1.0, %v1409
        %v1426 = vsub.f32 1.0, %v1410
        %v1427 = vsub.f32 1.0, %v1411
        %v1428 = vsub.f32 1.0, %v1412
        %v1429 = vsub.f32 1.0, %v1413
        %v1430 = vsub.f32 1.0, %v1414
        %v1431 = vsub.f32 1.0, %v1415
        %v1432 = vsub.f32 1.0, %v1416
        %vm1433 = vcmp.lt.f32.partialorder %v1097, 0.0
        %vm1434 = vcmp.lt.f32.partialorder %v1098, 0.0
        %vm1435 = vcmp.lt.f32.partialorder %v1099, 0.0
        %vm1436 = vcmp.lt.f32.partialorder %v1100, 0.0
        %vm1437 = vcmp.lt.f32.partialorder %v1101, 0.0
        %vm1438 = vcmp.lt.f32.partialorder %v1102, 0.0
        %vm1439 = vcmp.lt.f32.partialorder %v1103, 0.0
        %vm1440 = vcmp.lt.f32.partialorder %v1104, 0.0
        %vm1441 = vcmp.lt.f32.partialorder %v1105, 0.0
        %vm1442 = vcmp.lt.f32.partialorder %v1106, 0.0
        %vm1443 = vcmp.lt.f32.partialorder %v1107, 0.0
        %vm1444 = vcmp.lt.f32.partialorder %v1108, 0.0
        %vm1445 = vcmp.lt.f32.partialorder %v1109, 0.0
        %vm1446 = vcmp.lt.f32.partialorder %v1110, 0.0
        %vm1447 = vcmp.lt.f32.partialorder %v1111, 0.0
        %vm1448 = vcmp.lt.f32.partialorder %v1112, 0.0
        %v1449 = vsub.f32 0.0, %v1417
        %v1450 = vsub.f32 0.0, %v1418
        %v1451 = vsub.f32 0.0, %v1419
        %v1452 = vsub.f32 0.0, %v1420
        %v1453 = vsub.f32 0.0, %v1421
        %v1454 = vsub.f32 0.0, %v1422
        %v1455 = vsub.f32 0.0, %v1423
        %v1456 = vsub.f32 0.0, %v1424
        %v1457 = vsub.f32 0.0, %v1425
        %v1458 = vsub.f32 0.0, %v1426
        %v1459 = vsub.f32 0.0, %v1427
        %v1460 = vsub.f32 0.0, %v1428
        %v1461 = vsub.f32 0.0, %v1429
        %v1462 = vsub.f32 0.0, %v1430
        %v1463 = vsub.f32 0.0, %v1431
        %v1464 = vsub.f32 0.0, %v1432
        %v1465 = vsel %vm1433, %v1449, %v1417
        %v1466 = vsel %vm1434, %v1450, %v1418
        %v1467 = vsel %vm1435, %v1451, %v1419
        %v1468 = vsel %vm1436, %v1452, %v1420
        %v1469 = vsel %vm1437, %v1453, %v1421
        %v1470 = vsel %vm1438, %v1454, %v1422
        %v1471 = vsel %vm1439, %v1455, %v1423
        %v1472 = vsel %vm1440, %v1456, %v1424
        %v1473 = vsel %vm1441, %v1457, %v1425
        %v1474 = vsel %vm1442, %v1458, %v1426
        %v1475 = vsel %vm1443, %v1459, %v1427
        %v1476 = vsel %vm1444, %v1460, %v1428
        %v1477 = vsel %vm1445, %v1461, %v1429
        %v1478 = vsel %vm1446, %v1462, %v1430
        %v1479 = vsel %vm1447, %v1463, %v1431
        %v1480 = vsel %vm1448, %v1464, %v1432
        %v1481 = vadd.f32 %v1465, 1.0
        %v1482 = vadd.f32 %v1466, 1.0
        %v1483 = vadd.f32 %v1467, 1.0
        %v1484 = vadd.f32 %v1468, 1.0
        %v1485 = vadd.f32 %v1469, 1.0
        %v1486 = vadd.f32 %v1470, 1.0
        %v1487 = vadd.f32 %v1471, 1.0
        %v1488 = vadd.f32 %v1472, 1.0
        %v1489 = vadd.f32 %v1473, 1.0
        %v1490 = vadd.f32 %v1474, 1.0
        %v1491 = vadd.f32 %v1475, 1.0
        %v1492 = vadd.f32 %v1476, 1.0
        %v1493 = vadd.f32 %v1477, 1.0
        %v1494 = vadd.f32 %v1478, 1.0
        %v1495 = vadd.f32 %v1479, 1.0
        %v1496 = vadd.f32 %v1480, 1.0
        %v1497 = vmul.f32 %v1081, %v1481
        %v1498 = vmul.f32 %v1082, %v1482
        %v1499 = vmul.f32 %v1083, %v1483
        %v1500 = vmul.f32 %v1084, %v1484
        %v1501 = vmul.f32 %v1085, %v1485
        %v1502 = vmul.f32 %v1086, %v1486
        %v1503 = vmul.f32 %v1087, %v1487
        %v1504 = vmul.f32 %v1088, %v1488
        %v1505 = vmul.f32 %v1089, %v1489
        %v1506 = vmul.f32 %v1090, %v1490
        %v1507 = vmul.f32 %v1091, %v1491
        %v1508 = vmul.f32 %v1092, %v1492
        %v1509 = vmul.f32 %v1093, %v1493
        %v1510 = vmul.f32 %v1094, %v1494
        %v1511 = vmul.f32 %v1095, %v1495
        %v1512 = vmul.f32 %v1096, %v1496
        %1513 = vst [vmem:[#allocation3] sm:$0xf] 0.0
        %1514 = vst [vmem:[#allocation3 + $0x8] sm:$0xf] 0.0
        %vm1515 = vcmask 257024
        %1516 = vst.msk [vmem:[#allocation3 + $0x10] sm:$0xf] %vm1515, 0.0
        %1517 = vst [vmem:[#allocation3 + $0x168] sm:$0xf0] 0.0
        %1518 = vst [vmem:[#allocation3 + $0x170] sm:$0xf0] 0.0
        %vm1519 = vcmask 261124
        %1520 = vst.msk [vmem:[#allocation3 + $0x178] sm:$0xf0] %vm1519, 0.0
        %vm1537 = vcmask 1043456
        %v1538 = vrot.slane %v1497, 4
        %v1539 = vrot.slane %v1498, 4
        %v1540 = vsel %vm1537, %v1538, %v1539
        %v1541 = vrot.slane %v1499, 4
        %v1542 = vsel %vm1537, %v1539, %v1541
        %v1543 = vrot.slane %v1500, 4
        %v1544 = vsel %vm1537, %v1541, %v1543
        %v1545 = vrot.slane %v1501, 4
        %v1546 = vsel %vm1537, %v1543, %v1545
        %v1547 = vrot.slane %v1502, 4
        %v1548 = vsel %vm1537, %v1545, %v1547
        %v1549 = vrot.slane %v1503, 4
        %v1550 = vsel %vm1537, %v1547, %v1549
        %v1551 = vrot.slane %v1504, 4
        %v1552 = vsel %vm1537, %v1549, %v1551
        %v1553 = vrot.slane %v1505, 4
        %v1554 = vsel %vm1537, %v1551, %v1553
        %v1555 = vrot.slane %v1506, 4
        %v1556 = vsel %vm1537, %v1553, %v1555
        %v1557 = vrot.slane %v1507, 4
        %v1558 = vsel %vm1537, %v1555, %v1557
        %v1559 = vrot.slane %v1508, 4
        %v1560 = vsel %vm1537, %v1557, %v1559
        %v1561 = vrot.slane %v1509, 4
        %v1562 = vsel %vm1537, %v1559, %v1561
        %v1563 = vrot.slane %v1510, 4
        %v1564 = vsel %vm1537, %v1561, %v1563
        %v1565 = vrot.slane %v1511, 4
        %v1566 = vsel %vm1537, %v1563, %v1565
        %v1567 = vrot.slane %v1512, 4
        %v1568 = vsel %vm1537, %v1565, %v1567
        %1585 = vst.msk [vmem:[#allocation3] sm:$0xf0] %vm1519, %v1538
        %1586 = vst.msk [vmem:[#allocation3 + $0x18] sm:$0xff] %vm887, %v1540
        %1587 = vst.msk [vmem:[#allocation3 + $0x30] sm:$0xff] %vm887, %v1542
        %1588 = vst.msk [vmem:[#allocation3 + $0x48] sm:$0xff] %vm887, %v1544
        %1589 = vst.msk [vmem:[#allocation3 + $0x60] sm:$0xff] %vm887, %v1546
        %1590 = vst.msk [vmem:[#allocation3 + $0x78] sm:$0xff] %vm887, %v1548
        %1591 = vst.msk [vmem:[#allocation3 + $0x90] sm:$0xff] %vm887, %v1550
        %1592 = vst.msk [vmem:[#allocation3 + $0xa8] sm:$0xff] %vm887, %v1552
        %1593 = vst.msk [vmem:[#allocation3 + $0xc0] sm:$0xff] %vm887, %v1554
        %1594 = vst.msk [vmem:[#allocation3 + $0xd8] sm:$0xff] %vm887, %v1556
        %1595 = vst.msk [vmem:[#allocation3 + $0xf0] sm:$0xff] %vm887, %v1558
        %1596 = vst.msk [vmem:[#allocation3 + $0x108] sm:$0xff] %vm887, %v1560
        %1597 = vst.msk [vmem:[#allocation3 + $0x120] sm:$0xff] %vm887, %v1562
        %1598 = vst.msk [vmem:[#allocation3 + $0x138] sm:$0xff] %vm887, %v1564
        %1599 = vst.msk [vmem:[#allocation3 + $0x150] sm:$0xff] %vm887, %v1566
        %1600 = vst.msk [vmem:[#allocation3 + $0x168] sm:$0xff] %vm887, %v1568
        %vm1601 = vcmask 1042432
        %v1602 = vrot.slane %v1497, 5
        %v1603 = vrot.slane %v1498, 5
        %v1604 = vsel %vm1601, %v1602, %v1603
        %v1605 = vrot.slane %v1499, 5
        %v1606 = vsel %vm1601, %v1603, %v1605
        %v1607 = vrot.slane %v1500, 5
        %v1608 = vsel %vm1601, %v1605, %v1607
        %v1609 = vrot.slane %v1501, 5
        %v1610 = vsel %vm1601, %v1607, %v1609
        %v1611 = vrot.slane %v1502, 5
        %v1612 = vsel %vm1601, %v1609, %v1611
        %v1613 = vrot.slane %v1503, 5
        %v1614 = vsel %vm1601, %v1611, %v1613
        %v1615 = vrot.slane %v1504, 5
        %v1616 = vsel %vm1601, %v1613, %v1615
        %v1617 = vrot.slane %v1505, 5
        %v1618 = vsel %vm1601, %v1615, %v1617
        %v1619 = vrot.slane %v1506, 5
        %v1620 = vsel %vm1601, %v1617, %v1619
        %v1621 = vrot.slane %v1507, 5
        %v1622 = vsel %vm1601, %v1619, %v1621
        %v1623 = vrot.slane %v1508, 5
        %v1624 = vsel %vm1601, %v1621, %v1623
        %v1625 = vrot.slane %v1509, 5
        %v1626 = vsel %vm1601, %v1623, %v1625
        %v1627 = vrot.slane %v1510, 5
        %v1628 = vsel %vm1601, %v1625, %v1627
        %v1629 = vrot.slane %v1511, 5
        %v1630 = vsel %vm1601, %v1627, %v1629
        %v1631 = vrot.slane %v1512, 5
        %v1632 = vsel %vm1601, %v1629, %v1631
        %1633 = vrot.lane.b32.xlu0 %v1602, 32
        %v1634 = vpop.permute.xlu0 %1633
        %1635 = vrot.lane.b32.xlu0 %v1604, 32
        %v1636 = vpop.permute.xlu0 %1635
        %1637 = vrot.lane.b32.xlu0 %v1606, 32
        %v1638 = vpop.permute.xlu0 %1637
        %1639 = vrot.lane.b32.xlu0 %v1608, 32
        %v1640 = vpop.permute.xlu0 %1639
        %1641 = vrot.lane.b32.xlu0 %v1610, 32
        %v1642 = vpop.permute.xlu0 %1641
        %1643 = vrot.lane.b32.xlu0 %v1612, 32
        %v1644 = vpop.permute.xlu0 %1643
        %1645 = vrot.lane.b32.xlu0 %v1614, 32
        %v1646 = vpop.permute.xlu0 %1645
        %1647 = vrot.lane.b32.xlu0 %v1616, 32
        %v1648 = vpop.permute.xlu0 %1647
        %1649 = vrot.lane.b32.xlu0 %v1618, 32
        %v1650 = vpop.permute.xlu0 %1649
        %1651 = vrot.lane.b32.xlu0 %v1620, 32
        %v1652 = vpop.permute.xlu0 %1651
        %1653 = vrot.lane.b32.xlu0 %v1622, 32
        %v1654 = vpop.permute.xlu0 %1653
        %1655 = vrot.lane.b32.xlu0 %v1624, 32
        %v1656 = vpop.permute.xlu0 %1655
        %1657 = vrot.lane.b32.xlu0 %v1626, 32
        %v1658 = vpop.permute.xlu0 %1657
        %1659 = vrot.lane.b32.xlu0 %v1628, 32
        %v1660 = vpop.permute.xlu0 %1659
        %1661 = vrot.lane.b32.xlu0 %v1630, 32
        %v1662 = vpop.permute.xlu0 %1661
        %1663 = vrot.lane.b32.xlu0 %v1632, 32
        %v1664 = vpop.permute.xlu0 %1663
        %vm1681 = vcmask 523523
        %1682 = vst.msk [vmem:[#allocation3] sm:$0xf8] %vm1681, %v1634
        %vm1683 = vcmask 523520
        %1684 = vst.msk [vmem:[#allocation3 + $0x18] sm:$0xff] %vm1683, %v1636
        %1685 = vst.msk [vmem:[#allocation3 + $0x30] sm:$0xff] %vm1683, %v1638
        %1686 = vst.msk [vmem:[#allocation3 + $0x48] sm:$0xff] %vm1683, %v1640
        %1687 = vst.msk [vmem:[#allocation3 + $0x60] sm:$0xff] %vm1683, %v1642
        %1688 = vst.msk [vmem:[#allocation3 + $0x78] sm:$0xff] %vm1683, %v1644
        %1689 = vst.msk [vmem:[#allocation3 + $0x90] sm:$0xff] %vm1683, %v1646
        %1690 = vst.msk [vmem:[#allocation3 + $0xa8] sm:$0xff] %vm1683, %v1648
        %1691 = vst.msk [vmem:[#allocation3 + $0xc0] sm:$0xff] %vm1683, %v1650
        %1692 = vst.msk [vmem:[#allocation3 + $0xd8] sm:$0xff] %vm1683, %v1652
        %1693 = vst.msk [vmem:[#allocation3 + $0xf0] sm:$0xff] %vm1683, %v1654
        %1694 = vst.msk [vmem:[#allocation3 + $0x108] sm:$0xff] %vm1683, %v1656
        %1695 = vst.msk [vmem:[#allocation3 + $0x120] sm:$0xff] %vm1683, %v1658
        %1696 = vst.msk [vmem:[#allocation3 + $0x138] sm:$0xff] %vm1683, %v1660
        %1697 = vst.msk [vmem:[#allocation3 + $0x150] sm:$0xff] %vm1683, %v1662
        %1698 = vst.msk [vmem:[#allocation3 + $0x168] sm:$0xff] %vm1683, %v1664
        %vm1699 = vcmask 1041408
        %v1700 = vrot.slane %v1497, 6
        %v1701 = vrot.slane %v1498, 6
        %v1702 = vsel %vm1699, %v1700, %v1701
        %v1703 = vrot.slane %v1499, 6
        %v1704 = vsel %vm1699, %v1701, %v1703
        %v1705 = vrot.slane %v1500, 6
        %v1706 = vsel %vm1699, %v1703, %v1705
        %v1707 = vrot.slane %v1501, 6
        %v1708 = vsel %vm1699, %v1705, %v1707
        %v1709 = vrot.slane %v1502, 6
        %v1710 = vsel %vm1699, %v1707, %v1709
        %v1711 = vrot.slane %v1503, 6
        %v1712 = vsel %vm1699, %v1709, %v1711
        %v1713 = vrot.slane %v1504, 6
        %v1714 = vsel %vm1699, %v1711, %v1713
        %v1715 = vrot.slane %v1505, 6
        %v1716 = vsel %vm1699, %v1713, %v1715
        %v1717 = vrot.slane %v1506, 6
        %v1718 = vsel %vm1699, %v1715, %v1717
        %v1719 = vrot.slane %v1507, 6
        %v1720 = vsel %vm1699, %v1717, %v1719
        %v1721 = vrot.slane %v1508, 6
        %v1722 = vsel %vm1699, %v1719, %v1721
        %v1723 = vrot.slane %v1509, 6
        %v1724 = vsel %vm1699, %v1721, %v1723
        %v1725 = vrot.slane %v1510, 6
        %v1726 = vsel %vm1699, %v1723, %v1725
        %v1727 = vrot.slane %v1511, 6
        %v1728 = vsel %vm1699, %v1725, %v1727
        %v1729 = vrot.slane %v1512, 6
        %v1730 = vsel %vm1699, %v1727, %v1729
        %1731 = vrot.lane.b32.xlu0 %v1700, 64
        %v1732 = vpop.permute.xlu0 %1731
        %1733 = vrot.lane.b32.xlu0 %v1702, 64
        %v1734 = vpop.permute.xlu0 %1733
        %1735 = vrot.lane.b32.xlu0 %v1704, 64
        %v1736 = vpop.permute.xlu0 %1735
        %1737 = vrot.lane.b32.xlu0 %v1706, 64
        %v1738 = vpop.permute.xlu0 %1737
        %1739 = vrot.lane.b32.xlu0 %v1708, 64
        %v1740 = vpop.permute.xlu0 %1739
        %1741 = vrot.lane.b32.xlu0 %v1710, 64
        %v1742 = vpop.permute.xlu0 %1741
        %1743 = vrot.lane.b32.xlu0 %v1712, 64
        %v1744 = vpop.permute.xlu0 %1743
        %1745 = vrot.lane.b32.xlu0 %v1714, 64
        %v1746 = vpop.permute.xlu0 %1745
        %1747 = vrot.lane.b32.xlu0 %v1716, 64
        %v1748 = vpop.permute.xlu0 %1747
        %1749 = vrot.lane.b32.xlu0 %v1718, 64
        %v1750 = vpop.permute.xlu0 %1749
        %1751 = vrot.lane.b32.xlu0 %v1720, 64
        %v1752 = vpop.permute.xlu0 %1751
        %1753 = vrot.lane.b32.xlu0 %v1722, 64
        %v1754 = vpop.permute.xlu0 %1753
        %1755 = vrot.lane.b32.xlu0 %v1724, 64
        %v1756 = vpop.permute.xlu0 %1755
        %1757 = vrot.lane.b32.xlu0 %v1726, 64
        %v1758 = vpop.permute.xlu0 %1757
        %1759 = vrot.lane.b32.xlu0 %v1728, 64
        %v1760 = vpop.permute.xlu0 %1759
        %1761 = vrot.lane.b32.xlu0 %v1730, 64
        %v1762 = vpop.permute.xlu0 %1761
        %vm1779 = vcmask 785922
        %1780 = vst.msk [vmem:[#allocation3] sm:$0xfc] %vm1779, %v1732
        %vm1781 = vcmask 785920
        %1782 = vst.msk [vmem:[#allocation3 + $0x18] sm:$0xff] %vm1781, %v1734
        %1783 = vst.msk [vmem:[#allocation3 + $0x30] sm:$0xff] %vm1781, %v1736
        %1784 = vst.msk [vmem:[#allocation3 + $0x48] sm:$0xff] %vm1781, %v1738
        %1785 = vst.msk [vmem:[#allocation3 + $0x60] sm:$0xff] %vm1781, %v1740
        %1786 = vst.msk [vmem:[#allocation3 + $0x78] sm:$0xff] %vm1781, %v1742
        %1787 = vst.msk [vmem:[#allocation3 + $0x90] sm:$0xff] %vm1781, %v1744
        %1788 = vst.msk [vmem:[#allocation3 + $0xa8] sm:$0xff] %vm1781, %v1746
        %1789 = vst.msk [vmem:[#allocation3 + $0xc0] sm:$0xff] %vm1781, %v1748
        %1790 = vst.msk [vmem:[#allocation3 + $0xd8] sm:$0xff] %vm1781, %v1750
        %1791 = vst.msk [vmem:[#allocation3 + $0xf0] sm:$0xff] %vm1781, %v1752
        %1792 = vst.msk [vmem:[#allocation3 + $0x108] sm:$0xff] %vm1781, %v1754
        %1793 = vst.msk [vmem:[#allocation3 + $0x120] sm:$0xff] %vm1781, %v1756
        %1794 = vst.msk [vmem:[#allocation3 + $0x138] sm:$0xff] %vm1781, %v1758
        %1795 = vst.msk [vmem:[#allocation3 + $0x150] sm:$0xff] %vm1781, %v1760
        %1796 = vst.msk [vmem:[#allocation3 + $0x168] sm:$0xff] %vm1781, %v1762
        %vm1797 = vcmask 1040384
        %v1798 = vrot.slane %v1497, 7
        %v1799 = vrot.slane %v1498, 7
        %v1800 = vsel %vm1797, %v1798, %v1799
        %v1801 = vrot.slane %v1499, 7
        %v1802 = vsel %vm1797, %v1799, %v1801
        %v1803 = vrot.slane %v1500, 7
        %v1804 = vsel %vm1797, %v1801, %v1803
        %v1805 = vrot.slane %v1501, 7
        %v1806 = vsel %vm1797, %v1803, %v1805
        %v1807 = vrot.slane %v1502, 7
        %v1808 = vsel %vm1797, %v1805, %v1807
        %v1809 = vrot.slane %v1503, 7
        %v1810 = vsel %vm1797, %v1807, %v1809
        %v1811 = vrot.slane %v1504, 7
        %v1812 = vsel %vm1797, %v1809, %v1811
        %v1813 = vrot.slane %v1505, 7
        %v1814 = vsel %vm1797, %v1811, %v1813
        %v1815 = vrot.slane %v1506, 7
        %v1816 = vsel %vm1797, %v1813, %v1815
        %v1817 = vrot.slane %v1507, 7
        %v1818 = vsel %vm1797, %v1815, %v1817
        %v1819 = vrot.slane %v1508, 7
        %v1820 = vsel %vm1797, %v1817, %v1819
        %v1821 = vrot.slane %v1509, 7
        %v1822 = vsel %vm1797, %v1819, %v1821
        %v1823 = vrot.slane %v1510, 7
        %v1824 = vsel %vm1797, %v1821, %v1823
        %v1825 = vrot.slane %v1511, 7
        %v1826 = vsel %vm1797, %v1823, %v1825
        %v1827 = vrot.slane %v1512, 7
        %v1828 = vsel %vm1797, %v1825, %v1827
        %1829 = vrot.lane.b32.xlu0 %v1798, 96
        %v1830 = vpop.permute.xlu0 %1829
        %1831 = vrot.lane.b32.xlu0 %v1800, 96
        %v1832 = vpop.permute.xlu0 %1831
        %1833 = vrot.lane.b32.xlu0 %v1802, 96
        %v1834 = vpop.permute.xlu0 %1833
        %1835 = vrot.lane.b32.xlu0 %v1804, 96
        %v1836 = vpop.permute.xlu0 %1835
        %1837 = vrot.lane.b32.xlu0 %v1806, 96
        %v1838 = vpop.permute.xlu0 %1837
        %1839 = vrot.lane.b32.xlu0 %v1808, 96
        %v1840 = vpop.permute.xlu0 %1839
        %1841 = vrot.lane.b32.xlu0 %v1810, 96
        %v1842 = vpop.permute.xlu0 %1841
        %1843 = vrot.lane.b32.xlu0 %v1812, 96
        %v1844 = vpop.permute.xlu0 %1843
        %1845 = vrot.lane.b32.xlu0 %v1814, 96
        %v1846 = vpop.permute.xlu0 %1845
        %1847 = vrot.lane.b32.xlu0 %v1816, 96
        %v1848 = vpop.permute.xlu0 %1847
        %1849 = vrot.lane.b32.xlu0 %v1818, 96
        %v1850 = vpop.permute.xlu0 %1849
        %1851 = vrot.lane.b32.xlu0 %v1820, 96
        %v1852 = vpop.permute.xlu0 %1851
        %1853 = vrot.lane.b32.xlu0 %v1822, 96
        %v1854 = vpop.permute.xlu0 %1853
        %1855 = vrot.lane.b32.xlu0 %v1824, 96
        %v1856 = vpop.permute.xlu0 %1855
        %1857 = vrot.lane.b32.xlu0 %v1826, 96
        %v1858 = vpop.permute.xlu0 %1857
        %1859 = vrot.lane.b32.xlu0 %v1828, 96
        %v1860 = vpop.permute.xlu0 %1859
        %vm1877 = vcmask 1048321
        %1878 = vst.msk [vmem:[#allocation3] sm:$0xfe] %vm1877, %v1830
        %vm1879 = vcmask 1048320
        %1880 = vst.msk [vmem:[#allocation3 + $0x18] sm:$0xff] %vm1879, %v1832
        %1881 = vst.msk [vmem:[#allocation3 + $0x30] sm:$0xff] %vm1879, %v1834
        %1882 = vst.msk [vmem:[#allocation3 + $0x48] sm:$0xff] %vm1879, %v1836
        %1883 = vst.msk [vmem:[#allocation3 + $0x60] sm:$0xff] %vm1879, %v1838
        %1884 = vst.msk [vmem:[#allocation3 + $0x78] sm:$0xff] %vm1879, %v1840
        %1885 = vst.msk [vmem:[#allocation3 + $0x90] sm:$0xff] %vm1879, %v1842
        %1886 = vst.msk [vmem:[#allocation3 + $0xa8] sm:$0xff] %vm1879, %v1844
        %1887 = vst.msk [vmem:[#allocation3 + $0xc0] sm:$0xff] %vm1879, %v1846
        %1888 = vst.msk [vmem:[#allocation3 + $0xd8] sm:$0xff] %vm1879, %v1848
        %1889 = vst.msk [vmem:[#allocation3 + $0xf0] sm:$0xff] %vm1879, %v1850
        %1890 = vst.msk [vmem:[#allocation3 + $0x108] sm:$0xff] %vm1879, %v1852
        %1891 = vst.msk [vmem:[#allocation3 + $0x120] sm:$0xff] %vm1879, %v1854
        %1892 = vst.msk [vmem:[#allocation3 + $0x138] sm:$0xff] %vm1879, %v1856
        %1893 = vst.msk [vmem:[#allocation3 + $0x150] sm:$0xff] %vm1879, %v1858
        %1894 = vst.msk [vmem:[#allocation3 + $0x168] sm:$0xff] %vm1879, %v1860
        %1895 = vst.msk [vmem:[#allocation3 + $0x8] sm:$0xff] %vm887, %v1497
        %1896 = vst.msk [vmem:[#allocation3 + $0x20] sm:$0xff] %vm887, %v1498
        %1897 = vst.msk [vmem:[#allocation3 + $0x38] sm:$0xff] %vm887, %v1499
        %1898 = vst.msk [vmem:[#allocation3 + $0x50] sm:$0xff] %vm887, %v1500
        %1899 = vst.msk [vmem:[#allocation3 + $0x68] sm:$0xff] %vm887, %v1501
        %1900 = vst.msk [vmem:[#allocation3 + $0x80] sm:$0xff] %vm887, %v1502
        %1901 = vst.msk [vmem:[#allocation3 + $0x98] sm:$0xff] %vm887, %v1503
        %1902 = vst.msk [vmem:[#allocation3 + $0xb0] sm:$0xff] %vm887, %v1504
        %1903 = vst.msk [vmem:[#allocation3 + $0xc8] sm:$0xff] %vm887, %v1505
        %1904 = vst.msk [vmem:[#allocation3 + $0xe0] sm:$0xff] %vm887, %v1506
        %1905 = vst.msk [vmem:[#allocation3 + $0xf8] sm:$0xff] %vm887, %v1507
        %1906 = vst.msk [vmem:[#allocation3 + $0x110] sm:$0xff] %vm887, %v1508
        %1907 = vst.msk [vmem:[#allocation3 + $0x128] sm:$0xff] %vm887, %v1509
        %1908 = vst.msk [vmem:[#allocation3 + $0x140] sm:$0xff] %vm887, %v1510
        %1909 = vst.msk [vmem:[#allocation3 + $0x158] sm:$0xff] %vm887, %v1511
        %1910 = vst.msk [vmem:[#allocation3 + $0x170] sm:$0xff] %vm887, %v1512
        %vm1911 = vcmask 1046528
        %v1912 = vrot.slane %v1497, 1
        %v1913 = vrot.slane %v1498, 1
        %v1914 = vsel %vm1911, %v1912, %v1913
        %v1915 = vrot.slane %v1499, 1
        %v1916 = vsel %vm1911, %v1913, %v1915
        %v1917 = vrot.slane %v1500, 1
        %v1918 = vsel %vm1911, %v1915, %v1917
        %v1919 = vrot.slane %v1501, 1
        %v1920 = vsel %vm1911, %v1917, %v1919
        %v1921 = vrot.slane %v1502, 1
        %v1922 = vsel %vm1911, %v1919, %v1921
        %v1923 = vrot.slane %v1503, 1
        %v1924 = vsel %vm1911, %v1921, %v1923
        %v1925 = vrot.slane %v1504, 1
        %v1926 = vsel %vm1911, %v1923, %v1925
        %v1927 = vrot.slane %v1505, 1
        %v1928 = vsel %vm1911, %v1925, %v1927
        %v1929 = vrot.slane %v1506, 1
        %v1930 = vsel %vm1911, %v1927, %v1929
        %v1931 = vrot.slane %v1507, 1
        %v1932 = vsel %vm1911, %v1929, %v1931
        %v1933 = vrot.slane %v1508, 1
        %v1934 = vsel %vm1911, %v1931, %v1933
        %v1935 = vrot.slane %v1509, 1
        %v1936 = vsel %vm1911, %v1933, %v1935
        %v1937 = vrot.slane %v1510, 1
        %v1938 = vsel %vm1911, %v1935, %v1937
        %v1939 = vrot.slane %v1511, 1
        %v1940 = vsel %vm1911, %v1937, %v1939
        %v1941 = vrot.slane %v1512, 1
        %v1942 = vsel %vm1911, %v1939, %v1941
        %1943 = vrot.lane.b32.xlu0 %v1914, 32
        %v1944 = vpop.permute.xlu0 %1943
        %1945 = vrot.lane.b32.xlu0 %v1916, 32
        %v1946 = vpop.permute.xlu0 %1945
        %1947 = vrot.lane.b32.xlu0 %v1918, 32
        %v1948 = vpop.permute.xlu0 %1947
        %1949 = vrot.lane.b32.xlu0 %v1920, 32
        %v1950 = vpop.permute.xlu0 %1949
        %1951 = vrot.lane.b32.xlu0 %v1922, 32
        %v1952 = vpop.permute.xlu0 %1951
        %1953 = vrot.lane.b32.xlu0 %v1924, 32
        %v1954 = vpop.permute.xlu0 %1953
        %1955 = vrot.lane.b32.xlu0 %v1926, 32
        %v1956 = vpop.permute.xlu0 %1955
        %1957 = vrot.lane.b32.xlu0 %v1928, 32
        %v1958 = vpop.permute.xlu0 %1957
        %1959 = vrot.lane.b32.xlu0 %v1930, 32
        %v1960 = vpop.permute.xlu0 %1959
        %1961 = vrot.lane.b32.xlu0 %v1932, 32
        %v1962 = vpop.permute.xlu0 %1961
        %1963 = vrot.lane.b32.xlu0 %v1934, 32
        %v1964 = vpop.permute.xlu0 %1963
        %1965 = vrot.lane.b32.xlu0 %v1936, 32
        %v1966 = vpop.permute.xlu0 %1965
        %1967 = vrot.lane.b32.xlu0 %v1938, 32
        %v1968 = vpop.permute.xlu0 %1967
        %1969 = vrot.lane.b32.xlu0 %v1940, 32
        %v1970 = vpop.permute.xlu0 %1969
        %1971 = vrot.lane.b32.xlu0 %v1942, 32
        %v1972 = vpop.permute.xlu0 %1971
        %1973 = vrot.lane.b32.xlu0 %v1941, 32
        %v1974 = vpop.permute.xlu0 %1973
        %1991 = vst.msk [vmem:[#allocation3 + $0x8] sm:$0xff] %vm1683, %v1944
        %1992 = vst.msk [vmem:[#allocation3 + $0x20] sm:$0xff] %vm1683, %v1946
        %1993 = vst.msk [vmem:[#allocation3 + $0x38] sm:$0xff] %vm1683, %v1948
        %1994 = vst.msk [vmem:[#allocation3 + $0x50] sm:$0xff] %vm1683, %v1950
        %1995 = vst.msk [vmem:[#allocation3 + $0x68] sm:$0xff] %vm1683, %v1952
        %1996 = vst.msk [vmem:[#allocation3 + $0x80] sm:$0xff] %vm1683, %v1954
        %1997 = vst.msk [vmem:[#allocation3 + $0x98] sm:$0xff] %vm1683, %v1956
        %1998 = vst.msk [vmem:[#allocation3 + $0xb0] sm:$0xff] %vm1683, %v1958
        %1999 = vst.msk [vmem:[#allocation3 + $0xc8] sm:$0xff] %vm1683, %v1960
        %2000 = vst.msk [vmem:[#allocation3 + $0xe0] sm:$0xff] %vm1683, %v1962
        %2001 = vst.msk [vmem:[#allocation3 + $0xf8] sm:$0xff] %vm1683, %v1964
        %2002 = vst.msk [vmem:[#allocation3 + $0x110] sm:$0xff] %vm1683, %v1966
        %2003 = vst.msk [vmem:[#allocation3 + $0x128] sm:$0xff] %vm1683, %v1968
        %2004 = vst.msk [vmem:[#allocation3 + $0x140] sm:$0xff] %vm1683, %v1970
        %2005 = vst.msk [vmem:[#allocation3 + $0x158] sm:$0xff] %vm1683, %v1972
        %vm2006 = vcmask 522496
        %2007 = vst.msk [vmem:[#allocation3 + $0x170] sm:$0x7f] %vm2006, %v1974
        %vm2008 = vcmask 1045504
        %v2009 = vrot.slane %v1497, 2
        %v2010 = vrot.slane %v1498, 2
        %v2011 = vsel %vm2008, %v2009, %v2010
        %v2012 = vrot.slane %v1499, 2
        %v2013 = vsel %vm2008, %v2010, %v2012
        %v2014 = vrot.slane %v1500, 2
        %v2015 = vsel %vm2008, %v2012, %v2014
        %v2016 = vrot.slane %v1501, 2
        %v2017 = vsel %vm2008, %v2014, %v2016
        %v2018 = vrot.slane %v1502, 2
        %v2019 = vsel %vm2008, %v2016, %v2018
        %v2020 = vrot.slane %v1503, 2
        %v2021 = vsel %vm2008, %v2018, %v2020
        %v2022 = vrot.slane %v1504, 2
        %v2023 = vsel %vm2008, %v2020, %v2022
        %v2024 = vrot.slane %v1505, 2
        %v2025 = vsel %vm2008, %v2022, %v2024
        %v2026 = vrot.slane %v1506, 2
        %v2027 = vsel %vm2008, %v2024, %v2026
        %v2028 = vrot.slane %v1507, 2
        %v2029 = vsel %vm2008, %v2026, %v2028
        %v2030 = vrot.slane %v1508, 2
        %v2031 = vsel %vm2008, %v2028, %v2030
        %v2032 = vrot.slane %v1509, 2
        %v2033 = vsel %vm2008, %v2030, %v2032
        %v2034 = vrot.slane %v1510, 2
        %v2035 = vsel %vm2008, %v2032, %v2034
        %v2036 = vrot.slane %v1511, 2
        %v2037 = vsel %vm2008, %v2034, %v2036
        %v2038 = vrot.slane %v1512, 2
        %v2039 = vsel %vm2008, %v2036, %v2038
        %2040 = vrot.lane.b32.xlu0 %v2011, 64
        %v2041 = vpop.permute.xlu0 %2040
        %2042 = vrot.lane.b32.xlu0 %v2013, 64
        %v2043 = vpop.permute.xlu0 %2042
        %2044 = vrot.lane.b32.xlu0 %v2015, 64
        %v2045 = vpop.permute.xlu0 %2044
        %2046 = vrot.lane.b32.xlu0 %v2017, 64
        %v2047 = vpop.permute.xlu0 %2046
        %2048 = vrot.lane.b32.xlu0 %v2019, 64
        %v2049 = vpop.permute.xlu0 %2048
        %2050 = vrot.lane.b32.xlu0 %v2021, 64
        %v2051 = vpop.permute.xlu0 %2050
        %2052 = vrot.lane.b32.xlu0 %v2023, 64
        %v2053 = vpop.permute.xlu0 %2052
        %2054 = vrot.lane.b32.xlu0 %v2025, 64
        %v2055 = vpop.permute.xlu0 %2054
        %2056 = vrot.lane.b32.xlu0 %v2027, 64
        %v2057 = vpop.permute.xlu0 %2056
        %2058 = vrot.lane.b32.xlu0 %v2029, 64
        %v2059 = vpop.permute.xlu0 %2058
        %2060 = vrot.lane.b32.xlu0 %v2031, 64
        %v2061 = vpop.permute.xlu0 %2060
        %2062 = vrot.lane.b32.xlu0 %v2033, 64
        %v2063 = vpop.permute.xlu0 %2062
        %2064 = vrot.lane.b32.xlu0 %v2035, 64
        %v2065 = vpop.permute.xlu0 %2064
        %2066 = vrot.lane.b32.xlu0 %v2037, 64
        %v2067 = vpop.permute.xlu0 %2066
        %2068 = vrot.lane.b32.xlu0 %v2039, 64
        %v2069 = vpop.permute.xlu0 %2068
        %2070 = vrot.lane.b32.xlu0 %v2038, 64
        %v2071 = vpop.permute.xlu0 %2070
        %2088 = vst.msk [vmem:[#allocation3 + $0x8] sm:$0xff] %vm1781, %v2041
        %2089 = vst.msk [vmem:[#allocation3 + $0x20] sm:$0xff] %vm1781, %v2043
        %2090 = vst.msk [vmem:[#allocation3 + $0x38] sm:$0xff] %vm1781, %v2045
        %2091 = vst.msk [vmem:[#allocation3 + $0x50] sm:$0xff] %vm1781, %v2047
        %2092 = vst.msk [vmem:[#allocation3 + $0x68] sm:$0xff] %vm1781, %v2049
        %2093 = vst.msk [vmem:[#allocation3 + $0x80] sm:$0xff] %vm1781, %v2051
        %2094 = vst.msk [vmem:[#allocation3 + $0x98] sm:$0xff] %vm1781, %v2053
        %2095 = vst.msk [vmem:[#allocation3 + $0xb0] sm:$0xff] %vm1781, %v2055
        %2096 = vst.msk [vmem:[#allocation3 + $0xc8] sm:$0xff] %vm1781, %v2057
        %2097 = vst.msk [vmem:[#allocation3 + $0xe0] sm:$0xff] %vm1781, %v2059
        %2098 = vst.msk [vmem:[#allocation3 + $0xf8] sm:$0xff] %vm1781, %v2061
        %2099 = vst.msk [vmem:[#allocation3 + $0x110] sm:$0xff] %vm1781, %v2063
        %2100 = vst.msk [vmem:[#allocation3 + $0x128] sm:$0xff] %vm1781, %v2065
        %2101 = vst.msk [vmem:[#allocation3 + $0x140] sm:$0xff] %vm1781, %v2067
        %2102 = vst.msk [vmem:[#allocation3 + $0x158] sm:$0xff] %vm1781, %v2069
        %vm2103 = vcmask 783872
        %2104 = vst.msk [vmem:[#allocation3 + $0x170] sm:$0x3f] %vm2103, %v2071
        %vm2105 = vcmask 1044480
        %v2106 = vrot.slane %v1497, 3
        %v2107 = vrot.slane %v1498, 3
        %v2108 = vsel %vm2105, %v2106, %v2107
        %v2109 = vrot.slane %v1499, 3
        %v2110 = vsel %vm2105, %v2107, %v2109
        %v2111 = vrot.slane %v1500, 3
        %v2112 = vsel %vm2105, %v2109, %v2111
        %v2113 = vrot.slane %v1501, 3
        %v2114 = vsel %vm2105, %v2111, %v2113
        %v2115 = vrot.slane %v1502, 3
        %v2116 = vsel %vm2105, %v2113, %v2115
        %v2117 = vrot.slane %v1503, 3
        %v2118 = vsel %vm2105, %v2115, %v2117
        %v2119 = vrot.slane %v1504, 3
        %v2120 = vsel %vm2105, %v2117, %v2119
        %v2121 = vrot.slane %v1505, 3
        %v2122 = vsel %vm2105, %v2119, %v2121
        %v2123 = vrot.slane %v1506, 3
        %v2124 = vsel %vm2105, %v2121, %v2123
        %v2125 = vrot.slane %v1507, 3
        %v2126 = vsel %vm2105, %v2123, %v2125
        %v2127 = vrot.slane %v1508, 3
        %v2128 = vsel %vm2105, %v2125, %v2127
        %v2129 = vrot.slane %v1509, 3
        %v2130 = vsel %vm2105, %v2127, %v2129
        %v2131 = vrot.slane %v1510, 3
        %v2132 = vsel %vm2105, %v2129, %v2131
        %v2133 = vrot.slane %v1511, 3
        %v2134 = vsel %vm2105, %v2131, %v2133
        %v2135 = vrot.slane %v1512, 3
        %v2136 = vsel %vm2105, %v2133, %v2135
        %2137 = vrot.lane.b32.xlu0 %v2108, 96
        %v2138 = vpop.permute.xlu0 %2137
        %2139 = vrot.lane.b32.xlu0 %v2110, 96
        %v2140 = vpop.permute.xlu0 %2139
        %2141 = vrot.lane.b32.xlu0 %v2112, 96
        %v2142 = vpop.permute.xlu0 %2141
        %2143 = vrot.lane.b32.xlu0 %v2114, 96
        %v2144 = vpop.permute.xlu0 %2143
        %2145 = vrot.lane.b32.xlu0 %v2116, 96
        %v2146 = vpop.permute.xlu0 %2145
        %2147 = vrot.lane.b32.xlu0 %v2118, 96
        %v2148 = vpop.permute.xlu0 %2147
        %2149 = vrot.lane.b32.xlu0 %v2120, 96
        %v2150 = vpop.permute.xlu0 %2149
        %2151 = vrot.lane.b32.xlu0 %v2122, 96
        %v2152 = vpop.permute.xlu0 %2151
        %2153 = vrot.lane.b32.xlu0 %v2124, 96
        %v2154 = vpop.permute.xlu0 %2153
        %2155 = vrot.lane.b32.xlu0 %v2126, 96
        %v2156 = vpop.permute.xlu0 %2155
        %2157 = vrot.lane.b32.xlu0 %v2128, 96
        %v2158 = vpop.permute.xlu0 %2157
        %2159 = vrot.lane.b32.xlu0 %v2130, 96
        %v2160 = vpop.permute.xlu0 %2159
        %2161 = vrot.lane.b32.xlu0 %v2132, 96
        %v2162 = vpop.permute.xlu0 %2161
        %2163 = vrot.lane.b32.xlu0 %v2134, 96
        %v2164 = vpop.permute.xlu0 %2163
        %2165 = vrot.lane.b32.xlu0 %v2136, 96
        %v2166 = vpop.permute.xlu0 %2165
        %2167 = vrot.lane.b32.xlu0 %v2135, 96
        %v2168 = vpop.permute.xlu0 %2167
        %2185 = vst.msk [vmem:[#allocation3 + $0x8] sm:$0xff] %vm1879, %v2138
        %2186 = vst.msk [vmem:[#allocation3 + $0x20] sm:$0xff] %vm1879, %v2140
        %2187 = vst.msk [vmem:[#allocation3 + $0x38] sm:$0xff] %vm1879, %v2142
        %2188 = vst.msk [vmem:[#allocation3 + $0x50] sm:$0xff] %vm1879, %v2144
        %2189 = vst.msk [vmem:[#allocation3 + $0x68] sm:$0xff] %vm1879, %v2146
        %2190 = vst.msk [vmem:[#allocation3 + $0x80] sm:$0xff] %vm1879, %v2148
        %2191 = vst.msk [vmem:[#allocation3 + $0x98] sm:$0xff] %vm1879, %v2150
        %2192 = vst.msk [vmem:[#allocation3 + $0xb0] sm:$0xff] %vm1879, %v2152
        %2193 = vst.msk [vmem:[#allocation3 + $0xc8] sm:$0xff] %vm1879, %v2154
        %2194 = vst.msk [vmem:[#allocation3 + $0xe0] sm:$0xff] %vm1879, %v2156
        %2195 = vst.msk [vmem:[#allocation3 + $0xf8] sm:$0xff] %vm1879, %v2158
        %2196 = vst.msk [vmem:[#allocation3 + $0x110] sm:$0xff] %vm1879, %v2160
        %2197 = vst.msk [vmem:[#allocation3 + $0x128] sm:$0xff] %vm1879, %v2162
        %2198 = vst.msk [vmem:[#allocation3 + $0x140] sm:$0xff] %vm1879, %v2164
        %2199 = vst.msk [vmem:[#allocation3 + $0x158] sm:$0xff] %vm1879, %v2166
        %vm2200 = vcmask 1045248
        %2201 = vst.msk [vmem:[#allocation3 + $0x170] sm:$0x1f] %vm2200, %v2168
        %2203 = vst.msk [vmem:[#allocation3 + $0x10] sm:$0xff] %vm887, %v1540
        %2204 = vst.msk [vmem:[#allocation3 + $0x28] sm:$0xff] %vm887, %v1542
        %2205 = vst.msk [vmem:[#allocation3 + $0x40] sm:$0xff] %vm887, %v1544
        %2206 = vst.msk [vmem:[#allocation3 + $0x58] sm:$0xff] %vm887, %v1546
        %2207 = vst.msk [vmem:[#allocation3 + $0x70] sm:$0xff] %vm887, %v1548
        %2208 = vst.msk [vmem:[#allocation3 + $0x88] sm:$0xff] %vm887, %v1550
        %2209 = vst.msk [vmem:[#allocation3 + $0xa0] sm:$0xff] %vm887, %v1552
        %2210 = vst.msk [vmem:[#allocation3 + $0xb8] sm:$0xff] %vm887, %v1554
        %2211 = vst.msk [vmem:[#allocation3 + $0xd0] sm:$0xff] %vm887, %v1556
        %2212 = vst.msk [vmem:[#allocation3 + $0xe8] sm:$0xff] %vm887, %v1558
        %2213 = vst.msk [vmem:[#allocation3 + $0x100] sm:$0xff] %vm887, %v1560
        %2214 = vst.msk [vmem:[#allocation3 + $0x118] sm:$0xff] %vm887, %v1562
        %2215 = vst.msk [vmem:[#allocation3 + $0x130] sm:$0xff] %vm887, %v1564
        %2216 = vst.msk [vmem:[#allocation3 + $0x148] sm:$0xff] %vm887, %v1566
        %2217 = vst.msk [vmem:[#allocation3 + $0x160] sm:$0xff] %vm887, %v1568
        %2218 = vst.msk [vmem:[#allocation3 + $0x178] sm:$0xf] %vm1515, %v1567
        %v2219 = vld [vmem:[#allocation3] sm:$0xff]
        %v2220 = vld [vmem:[#allocation3 + $0x8] sm:$0xff]
        %v2221 = vld [vmem:[#allocation3 + $0x10] sm:$0xff]
        %v2222 = vld [vmem:[#allocation3 + $0x18] sm:$0xff]
        %v2223 = vld [vmem:[#allocation3 + $0x20] sm:$0xff]
        %v2224 = vld [vmem:[#allocation3 + $0x28] sm:$0xff]
        %v2225 = vld [vmem:[#allocation3 + $0x30] sm:$0xff]
        %v2226 = vld [vmem:[#allocation3 + $0x38] sm:$0xff]
        %v2227 = vld [vmem:[#allocation3 + $0x40] sm:$0xff]
        %v2228 = vld [vmem:[#allocation3 + $0x48] sm:$0xff]
        %v2229 = vld [vmem:[#allocation3 + $0x50] sm:$0xff]
        %v2230 = vld [vmem:[#allocation3 + $0x58] sm:$0xff]
        %v2231 = vld [vmem:[#allocation3 + $0x60] sm:$0xff]
        %v2232 = vld [vmem:[#allocation3 + $0x68] sm:$0xff]
        %v2233 = vld [vmem:[#allocation3 + $0x70] sm:$0xff]
        %v2234 = vld [vmem:[#allocation3 + $0x78] sm:$0xff]
        %v2235 = vld [vmem:[#allocation3 + $0x80] sm:$0xff]
        %v2236 = vld [vmem:[#allocation3 + $0x88] sm:$0xff]
        %v2237 = vld [vmem:[#allocation3 + $0x90] sm:$0xff]
        %v2238 = vld [vmem:[#allocation3 + $0x98] sm:$0xff]
        %v2239 = vld [vmem:[#allocation3 + $0xa0] sm:$0xff]
        %v2240 = vld [vmem:[#allocation3 + $0xa8] sm:$0xff]
        %v2241 = vld [vmem:[#allocation3 + $0xb0] sm:$0xff]
        %v2242 = vld [vmem:[#allocation3 + $0xb8] sm:$0xff]
        %v2243 = vld [vmem:[#allocation3 + $0xc0] sm:$0xff]
        %v2244 = vld [vmem:[#allocation3 + $0xc8] sm:$0xff]
        %v2245 = vld [vmem:[#allocation3 + $0xd0] sm:$0xff]
        %v2246 = vld [vmem:[#allocation3 + $0xd8] sm:$0xff]
        %v2247 = vld [vmem:[#allocation3 + $0xe0] sm:$0xff]
        %v2248 = vld [vmem:[#allocation3 + $0xe8] sm:$0xff]
        %v2249 = vld [vmem:[#allocation3 + $0xf0] sm:$0xff]
        %v2250 = vld [vmem:[#allocation3 + $0xf8] sm:$0xff]
        %v2251 = vld [vmem:[#allocation3 + $0x100] sm:$0xff]
        %v2252 = vld [vmem:[#allocation3 + $0x108] sm:$0xff]
        %v2253 = vld [vmem:[#allocation3 + $0x110] sm:$0xff]
        %v2254 = vld [vmem:[#allocation3 + $0x118] sm:$0xff]
        %v2255 = vld [vmem:[#allocation3 + $0x120] sm:$0xff]
        %v2256 = vld [vmem:[#allocation3 + $0x128] sm:$0xff]
        %v2257 = vld [vmem:[#allocation3 + $0x130] sm:$0xff]
        %v2258 = vld [vmem:[#allocation3 + $0x138] sm:$0xff]
        %v2259 = vld [vmem:[#allocation3 + $0x140] sm:$0xff]
        %v2260 = vld [vmem:[#allocation3 + $0x148] sm:$0xff]
        %v2261 = vld [vmem:[#allocation3 + $0x150] sm:$0xff]
        %v2262 = vld [vmem:[#allocation3 + $0x158] sm:$0xff]
        %v2263 = vld [vmem:[#allocation3 + $0x160] sm:$0xff]
        %v2264 = vld [vmem:[#allocation3 + $0x168] sm:$0xff]
        %v2265 = vld [vmem:[#allocation3 + $0x170] sm:$0xff]
        %v2266 = vld [vmem:[#allocation3 + $0x178] sm:$0xff]
        %s2267 = scalar_lea.vmem %s1, 576
        %v2268 = vld [vmem:[%s2267] sm:$0xff]
        %v2269 = vld [vmem:[%s2267 + $0x8] sm:$0xff]
        %v2270 = vld [vmem:[%s2267 + $0x10] sm:$0xff]
        %v2271 = vld [vmem:[%s2267 + $0x18] sm:$0xff]
        %v2272 = vld [vmem:[%s2267 + $0x20] sm:$0xff]
        %v2273 = vld [vmem:[%s2267 + $0x28] sm:$0xff]
        %v2274 = vld [vmem:[%s2267 + $0x30] sm:$0xff]
        %v2275 = vld [vmem:[%s2267 + $0x38] sm:$0xff]
        %v2276 = vld [vmem:[%s2267 + $0x40] sm:$0xff]
        %v2277 = vld [vmem:[%s2267 + $0x48] sm:$0xff]
        %v2278 = vld [vmem:[%s2267 + $0x50] sm:$0xff]
        %v2279 = vld [vmem:[%s2267 + $0x58] sm:$0xff]
        %v2280 = vld [vmem:[%s2267 + $0x60] sm:$0xff]
        %v2281 = vld [vmem:[%s2267 + $0x68] sm:$0xff]
        %v2282 = vld [vmem:[%s2267 + $0x70] sm:$0xff]
        %v2283 = vld [vmem:[%s2267 + $0x78] sm:$0xff]
        %v2284 = vld [vmem:[%s2267 + $0x80] sm:$0xff]
        %v2285 = vld [vmem:[%s2267 + $0x88] sm:$0xff]
        %v2286 = vld [vmem:[%s2267 + $0x90] sm:$0xff]
        %v2287 = vld [vmem:[%s2267 + $0x98] sm:$0xff]
        %v2288 = vld [vmem:[%s2267 + $0xa0] sm:$0xff]
        %v2289 = vld [vmem:[%s2267 + $0xa8] sm:$0xff]
        %v2290 = vld [vmem:[%s2267 + $0xb0] sm:$0xff]
        %v2291 = vld [vmem:[%s2267 + $0xb8] sm:$0xff]
        %v2292 = vld [vmem:[%s2267 + $0xc0] sm:$0xff]
        %v2293 = vld [vmem:[%s2267 + $0xc8] sm:$0xff]
        %v2294 = vld [vmem:[%s2267 + $0xd0] sm:$0xff]
        %v2295 = vld [vmem:[%s2267 + $0xd8] sm:$0xff]
        %v2296 = vld [vmem:[%s2267 + $0xe0] sm:$0xff]
        %v2297 = vld [vmem:[%s2267 + $0xe8] sm:$0xff]
        %v2298 = vld [vmem:[%s2267 + $0xf0] sm:$0xff]
        %v2299 = vld [vmem:[%s2267 + $0xf8] sm:$0xff]
        %v2300 = vld [vmem:[%s2267 + $0x100] sm:$0xff]
        %v2301 = vld [vmem:[%s2267 + $0x108] sm:$0xff]
        %v2302 = vld [vmem:[%s2267 + $0x110] sm:$0xff]
        %v2303 = vld [vmem:[%s2267 + $0x118] sm:$0xff]
        %v2304 = vld [vmem:[%s2 + $0x2] sm:$0x1]
        %v2305 = vlaneseq
        %v2306 = vshrl.u32 %v2305, 7
        %v2307 = vsub.s32 0, %v2306
        %v2308 = vrot.slane %v2304, %v2307
        %v2310 = vsel %vm887, %v2221, 0
        %v2313 = vsel %vm887, %v2224, 0
        %v2316 = vsel %vm887, %v2227, 0
        %v2319 = vsel %vm887, %v2230, 0
        %v2322 = vsel %vm887, %v2233, 0
        %v2325 = vsel %vm887, %v2236, 0
        %v2328 = vsel %vm887, %v2239, 0
        %v2331 = vsel %vm887, %v2242, 0
        %v2334 = vsel %vm887, %v2245, 0
        %v2337 = vsel %vm887, %v2248, 0
        %v2340 = vsel %vm887, %v2251, 0
        %v2343 = vsel %vm887, %v2254, 0
        %v2346 = vsel %vm887, %v2257, 0
        %v2349 = vsel %vm887, %v2260, 0
        %v2352 = vsel %vm887, %v2263, 0
        %v2355 = vsel %vm887, %v2266, 0
        %2357 = vmatprep.subr.mxu0 0.0
        %2358 = vmatpush1.msra.mxu0 %v2268
        %2359 = vmatprep.subr.mxu0 0.0
        %2360 = vmatpush1.msra.mxu0 %v2269
        %2361 = vmatprep.subr.mxu0 0.0
        %2362 = vmatpush1.msra.mxu0 %v2270
        %2363 = vmatprep.subr.mxu0 0.0
        %2364 = vmatpush1.msra.mxu0 %v2271
        %2365 = vmatprep.subr.mxu0 0.0
        %2366 = vmatpush1.msra.mxu0 %v2272
        %2367 = vmatprep.subr.mxu0 0.0
        %2368 = vmatpush1.msra.mxu0 %v2273
        %2369 = vmatprep.subr.mxu0 0.0
        %2370 = vmatpush1.msra.mxu0 %v2274
        %2371 = vmatprep.subr.mxu0 0.0
        %2372 = vmatpush1.msra.mxu0 %v2275
        %2373 = vmatprep.subr.mxu0 0.0
        %2374 = vmatpush1.msra.mxu0 %v2276
        %2375 = vmatprep.subr.mxu0 0.0
        %2376 = vmatpush1.msra.mxu0 %v2277
        %2377 = vmatprep.subr.mxu0 0.0
        %2378 = vmatpush1.msra.mxu0 %v2278
        %2379 = vmatprep.subr.mxu0 0.0
        %2380 = vmatpush1.msra.mxu0 %v2279
        %2381 = vmatprep.subr.mxu0 0.0
        %2382 = vmatpush1.msra.mxu0 %v2280
        %2383 = vmatprep.subr.mxu0 0.0
        %2384 = vmatpush1.msra.mxu0 %v2281
        %2385 = vmatprep.subr.mxu0 0.0
        %2386 = vmatpush1.msra.mxu0 %v2282
        %2387 = vmatprep.subr.mxu0 0.0
        %2388 = vmatpush1.msra.mxu0 %v2283
        %2389 = vmatprep.subr.mxu0 0.0
        %2390 = vmatpush1.msra.mxu0 %v2284
        %2391 = vmatprep.subr.mxu0 0.0
        %2392 = vmatpush1.msra.mxu0 %v2285
        %2393 = vmatprep.subr.mxu0 0.0
        %2394 = vmatpush1.msra.mxu0 %v2286
        %2395 = vmatprep.subr.mxu0 0.0
        %2396 = vmatpush1.msra.mxu0 %v2287
        %2397 = vmatprep.subr.mxu0 0.0
        %2398 = vmatpush1.msra.mxu0 %v2288
        %2399 = vmatprep.subr.mxu0 0.0
        %2400 = vmatpush1.msra.mxu0 %v2289
        %2401 = vmatprep.subr.mxu0 0.0
        %2402 = vmatpush1.msra.mxu0 %v2290
        %2403 = vmatprep.subr.mxu0 0.0
        %2404 = vmatpush1.msra.mxu0 %v2291
        %2405 = vmatprep.subr.mxu0 0.0
        %2406 = vmatpush1.msra.mxu0 %v2292
        %2407 = vmatprep.subr.mxu0 0.0
        %2408 = vmatpush1.msra.mxu0 %v2293
        %2409 = vmatprep.subr.mxu0 0.0
        %2410 = vmatpush1.msra.mxu0 %v2294
        %2411 = vmatprep.subr.mxu0 0.0
        %2412 = vmatpush1.msra.mxu0 %v2295
        %2413 = vmatprep.subr.mxu0 0.0
        %2414 = vmatpush1.msra.mxu0 %v2296
        %2415 = vmatprep.subr.mxu0 0.0
        %2416 = vmatpush1.msra.mxu0 %v2297
        %2417 = vmatprep.subr.mxu0 0.0
        %2418 = vmatpush1.msra.mxu0 %v2298
        %2419 = vmatprep.subr.mxu0 0.0
        %2420 = vmatpush1.msra.mxu0 %v2299
        %2421 = vmatprep.mubr.f32.mxu0 %v2220
        %2422 = vmatmul.mubr.f32.gmra.mrb[0].mxu0 %v2219
        %v2423 = vpop.f32.mrb[0].mxu0
        %v2424 = vadd.f32 %v2308, %v2423
        %v2425 = vpop.f32.mrb[0].mxu0
        %2426 = vmatprep.mubr.f32.mxu0 %v2223
        %2427 = vmatmul.mubr.f32.gmra.mrb[0].mxu0 %v2222
        %v2428 = vpop.f32.mrb[0].mxu0
        %v2429 = vadd.f32 %v2308, %v2428
        %v2430 = vpop.f32.mrb[0].mxu0
        %2431 = vmatprep.mubr.f32.mxu0 %v2226
        %2432 = vmatmul.mubr.f32.gmra.mrb[0].mxu0 %v2225
        %v2433 = vpop.f32.mrb[0].mxu0
        %v2434 = vadd.f32 %v2308, %v2433
        %v2435 = vpop.f32.mrb[0].mxu0
        %2436 = vmatprep.mubr.f32.mxu0 %v2229
        %2437 = vmatmul.mubr.f32.gmra.mrb[0].mxu0 %v2228
        %v2438 = vpop.f32.mrb[0].mxu0
        %v2439 = vadd.f32 %v2308, %v2438
        %v2440 = vpop.f32.mrb[0].mxu0
        %2441 = vmatprep.mubr.f32.mxu0 %v2232
        %2442 = vmatmul.mubr.f32.gmra.mrb[0].mxu0 %v2231
        %v2443 = vpop.f32.mrb[0].mxu0
        %v2444 = vadd.f32 %v2308, %v2443
        %v2445 = vpop.f32.mrb[0].mxu0
        %2446 = vmatprep.mubr.f32.mxu0 %v2235
        %2447 = vmatmul.mubr.f32.gmra.mrb[0].mxu0 %v2234
        %v2448 = vpop.f32.mrb[0].mxu0
        %v2449 = vadd.f32 %v2308, %v2448
        %v2450 = vpop.f32.mrb[0].mxu0
        %2451 = vmatprep.mubr.f32.mxu0 %v2238
        %2452 = vmatmul.mubr.f32.gmra.mrb[0].mxu0 %v2237
        %v2453 = vpop.f32.mrb[0].mxu0
        %v2454 = vadd.f32 %v2308, %v2453
        %v2455 = vpop.f32.mrb[0].mxu0
        %2456 = vmatprep.mubr.f32.mxu0 %v2241
        %2457 = vmatmul.mubr.f32.gmra.mrb[0].mxu0 %v2240
        %v2458 = vpop.f32.mrb[0].mxu0
        %v2459 = vadd.f32 %v2308, %v2458
        %v2460 = vpop.f32.mrb[0].mxu0
        %2461 = vmatprep.mubr.f32.mxu0 %v2244
        %2462 = vmatmul.mubr.f32.gmra.mrb[0].mxu0 %v2243
        %v2463 = vpop.f32.mrb[0].mxu0
        %v2464 = vadd.f32 %v2308, %v2463
        %v2465 = vpop.f32.mrb[0].mxu0
        %2466 = vmatprep.mubr.f32.mxu0 %v2247
        %2467 = vmatmul.mubr.f32.gmra.mrb[0].mxu0 %v2246
        %v2468 = vpop.f32.mrb[0].mxu0
        %v2469 = vadd.f32 %v2308, %v2468
        %v2470 = vpop.f32.mrb[0].mxu0
        %2471 = vmatprep.mubr.f32.mxu0 %v2250
        %2472 = vmatmul.mubr.f32.gmra.mrb[0].mxu0 %v2249
        %v2473 = vpop.f32.mrb[0].mxu0
        %v2474 = vadd.f32 %v2308, %v2473
        %v2475 = vpop.f32.mrb[0].mxu0
        %2476 = vmatprep.mubr.f32.mxu0 %v2253
        %2477 = vmatmul.mubr.f32.gmra.mrb[0].mxu0 %v2252
        %v2478 = vpop.f32.mrb[0].mxu0
        %v2479 = vadd.f32 %v2308, %v2478
        %v2480 = vpop.f32.mrb[0].mxu0
        %2481 = vmatprep.mubr.f32.mxu0 %v2256
        %2482 = vmatmul.mubr.f32.gmra.mrb[0].mxu0 %v2255
        %v2483 = vpop.f32.mrb[0].mxu0
        %v2484 = vadd.f32 %v2308, %v2483
        %v2485 = vpop.f32.mrb[0].mxu0
        %2486 = vmatprep.mubr.f32.mxu0 %v2259
        %2487 = vmatmul.mubr.f32.gmra.mrb[0].mxu0 %v2258
        %v2488 = vpop.f32.mrb[0].mxu0
        %v2489 = vadd.f32 %v2308, %v2488
        %v2490 = vpop.f32.mrb[0].mxu0
        %2491 = vmatprep.mubr.f32.mxu0 %v2262
        %2492 = vmatmul.mubr.f32.gmra.mrb[0].mxu0 %v2261
        %v2493 = vpop.f32.mrb[0].mxu0
        %v2494 = vadd.f32 %v2308, %v2493
        %v2495 = vpop.f32.mrb[0].mxu0
        %2496 = vmatprep.mubr.f32.mxu0 %v2265
        %2497 = vmatmul.mubr.f32.gmra.mrb[0].mxu0 %v2264
        %v2498 = vpop.f32.mrb[0].mxu0
        %v2499 = vadd.f32 %v2308, %v2498
        %v2500 = vpop.f32.mrb[0].mxu0
        %2501 = vdwg.mxu0
        %2502 = vmatprep.subr.mxu0 0.0
        %2503 = vmatpush1.msra.mxu0 %v2300
        %2504 = vmatprep.subr.mxu0 0.0
        %2505 = vmatpush1.msra.mxu0 %v2301
        %2506 = vmatprep.subr.mxu0 0.0
        %2507 = vmatpush1.msra.mxu0 %v2302
        %2508 = vmatprep.subr.mxu0 0.0
        %2509 = vmatpush1.msra.mxu0 %v2303
        %2510 = vmatprep.subr.mxu0 0.0
        %2511 = vmatpush1.msra.mxu0 0.0
        %2512 = vmatprep.subr.mxu0 0.0
        %2513 = vmatpush1.msra.mxu0 0.0
        %2514 = vmatprep.subr.mxu0 0.0
        %2515 = vmatpush1.msra.mxu0 0.0
        %2516 = vmatprep.subr.mxu0 0.0
        %2517 = vmatpush1.msra.mxu0 0.0
        %2518 = vmatprep.subr.mxu0 0.0
        %2519 = vmatpush1.msra.mxu0 0.0
        %2520 = vmatprep.subr.mxu0 0.0
        %2521 = vmatpush1.msra.mxu0 0.0
        %2522 = vmatprep.subr.mxu0 0.0
        %2523 = vmatpush1.msra.mxu0 0.0
        %2524 = vmatprep.subr.mxu0 0.0
        %2525 = vmatpush1.msra.mxu0 0.0
        %2526 = vmatprep.subr.mxu0 0.0
        %2527 = vmatpush1.msra.mxu0 0.0
        %2528 = vmatprep.subr.mxu0 0.0
        %2529 = vmatpush1.msra.mxu0 0.0
        %2530 = vmatprep.subr.mxu0 0.0
        %2531 = vmatpush1.msra.mxu0 0.0
        %2532 = vmatprep.subr.mxu0 0.0
        %2533 = vmatpush1.msra.mxu0 0.0
        %2534 = vmatprep.subr.mxu0 0.0
        %2535 = vmatpush1.msra.mxu0 0.0
        %2536 = vmatprep.subr.mxu0 0.0
        %2537 = vmatpush1.msra.mxu0 0.0
        %2538 = vmatprep.subr.mxu0 0.0
        %2539 = vmatpush1.msra.mxu0 0.0
        %2540 = vmatprep.subr.mxu0 0.0
        %2541 = vmatpush1.msra.mxu0 0.0
        %2542 = vmatprep.subr.mxu0 0.0
        %2543 = vmatpush1.msra.mxu0 0.0
        %2544 = vmatprep.subr.mxu0 0.0
        %2545 = vmatpush1.msra.mxu0 0.0
        %2546 = vmatprep.subr.mxu0 0.0
        %2547 = vmatpush1.msra.mxu0 0.0
        %2548 = vmatprep.subr.mxu0 0.0
        %2549 = vmatpush1.msra.mxu0 0.0
        %2550 = vmatprep.subr.mxu0 0.0
        %2551 = vmatpush1.msra.mxu0 0.0
        %2552 = vmatprep.subr.mxu0 0.0
        %2553 = vmatpush1.msra.mxu0 0.0
        %2554 = vmatprep.subr.mxu0 0.0
        %2555 = vmatpush1.msra.mxu0 0.0
        %2556 = vmatprep.subr.mxu0 0.0
        %2557 = vmatpush1.msra.mxu0 0.0
        %2558 = vmatprep.subr.mxu0 0.0
        %2559 = vmatpush1.msra.mxu0 0.0
        %2560 = vmatprep.subr.mxu0 0.0
        %2561 = vmatpush1.msra.mxu0 0.0
        %2562 = vmatprep.subr.mxu0 0.0
        %2563 = vmatpush1.msra.mxu0 0.0
        %2564 = vmatprep.subr.mxu0 0.0
        %2565 = vmatpush1.msra.mxu0 0.0
        %2566 = vmatprep.mubr.f32.mxu0 0.0
        %2567 = vmatmul.mubr.f32.gmra.mrb[0].mxu0 %v2310
        %v2568 = vpop.f32.mrb[0].mxu0
        %v2569 = vadd.f32 %v2424, %v2568
        %v2570 = vpop.f32.mrb[0].mxu0
        %2571 = vmatprep.mubr.f32.mxu0 0.0
        %2572 = vmatmul.mubr.f32.gmra.mrb[0].mxu0 %v2313
        %v2573 = vpop.f32.mrb[0].mxu0
        %v2574 = vadd.f32 %v2429, %v2573
        %v2575 = vpop.f32.mrb[0].mxu0
        %2576 = vmatprep.mubr.f32.mxu0 0.0
        %2577 = vmatmul.mubr.f32.gmra.mrb[0].mxu0 %v2316
        %v2578 = vpop.f32.mrb[0].mxu0
        %v2579 = vadd.f32 %v2434, %v2578
        %v2580 = vpop.f32.mrb[0].mxu0
        %2581 = vmatprep.mubr.f32.mxu0 0.0
        %2582 = vmatmul.mubr.f32.gmra.mrb[0].mxu0 %v2319
        %v2583 = vpop.f32.mrb[0].mxu0
        %v2584 = vadd.f32 %v2439, %v2583
        %v2585 = vpop.f32.mrb[0].mxu0
        %2586 = vmatprep.mubr.f32.mxu0 0.0
        %2587 = vmatmul.mubr.f32.gmra.mrb[0].mxu0 %v2322
        %v2588 = vpop.f32.mrb[0].mxu0
        %v2589 = vadd.f32 %v2444, %v2588
        %v2590 = vpop.f32.mrb[0].mxu0
        %2591 = vmatprep.mubr.f32.mxu0 0.0
        %2592 = vmatmul.mubr.f32.gmra.mrb[0].mxu0 %v2325
        %v2593 = vpop.f32.mrb[0].mxu0
        %v2594 = vadd.f32 %v2449, %v2593
        %v2595 = vpop.f32.mrb[0].mxu0
        %2596 = vmatprep.mubr.f32.mxu0 0.0
        %2597 = vmatmul.mubr.f32.gmra.mrb[0].mxu0 %v2328
        %v2598 = vpop.f32.mrb[0].mxu0
        %v2599 = vadd.f32 %v2454, %v2598
        %v2600 = vpop.f32.mrb[0].mxu0
        %2601 = vmatprep.mubr.f32.mxu0 0.0
        %2602 = vmatmul.mubr.f32.gmra.mrb[0].mxu0 %v2331
        %v2603 = vpop.f32.mrb[0].mxu0
        %v2604 = vadd.f32 %v2459, %v2603
        %v2605 = vpop.f32.mrb[0].mxu0
        %2606 = vmatprep.mubr.f32.mxu0 0.0
        %2607 = vmatmul.mubr.f32.gmra.mrb[0].mxu0 %v2334
        %v2608 = vpop.f32.mrb[0].mxu0
        %v2609 = vadd.f32 %v2464, %v2608
        %v2610 = vpop.f32.mrb[0].mxu0
        %2611 = vmatprep.mubr.f32.mxu0 0.0
        %2612 = vmatmul.mubr.f32.gmra.mrb[0].mxu0 %v2337
        %v2613 = vpop.f32.mrb[0].mxu0
        %v2614 = vadd.f32 %v2469, %v2613
        %v2615 = vpop.f32.mrb[0].mxu0
        %2616 = vmatprep.mubr.f32.mxu0 0.0
        %2617 = vmatmul.mubr.f32.gmra.mrb[0].mxu0 %v2340
        %v2618 = vpop.f32.mrb[0].mxu0
        %v2619 = vadd.f32 %v2474, %v2618
        %v2620 = vpop.f32.mrb[0].mxu0
        %2621 = vmatprep.mubr.f32.mxu0 0.0
        %2622 = vmatmul.mubr.f32.gmra.mrb[0].mxu0 %v2343
        %v2623 = vpop.f32.mrb[0].mxu0
        %v2624 = vadd.f32 %v2479, %v2623
        %v2625 = vpop.f32.mrb[0].mxu0
        %2626 = vmatprep.mubr.f32.mxu0 0.0
        %2627 = vmatmul.mubr.f32.gmra.mrb[0].mxu0 %v2346
        %v2628 = vpop.f32.mrb[0].mxu0
        %v2629 = vadd.f32 %v2484, %v2628
        %v2630 = vpop.f32.mrb[0].mxu0
        %2631 = vmatprep.mubr.f32.mxu0 0.0
        %2632 = vmatmul.mubr.f32.gmra.mrb[0].mxu0 %v2349
        %v2633 = vpop.f32.mrb[0].mxu0
        %v2634 = vadd.f32 %v2489, %v2633
        %v2635 = vpop.f32.mrb[0].mxu0
        %2636 = vmatprep.mubr.f32.mxu0 0.0
        %2637 = vmatmul.mubr.f32.gmra.mrb[0].mxu0 %v2352
        %v2638 = vpop.f32.mrb[0].mxu0
        %v2639 = vadd.f32 %v2494, %v2638
        %v2640 = vpop.f32.mrb[0].mxu0
        %2641 = vmatprep.mubr.f32.mxu0 0.0
        %2642 = vmatmul.mubr.f32.gmra.mrb[0].mxu0 %v2355
        %v2643 = vpop.f32.mrb[0].mxu0
        %v2644 = vadd.f32 %v2499, %v2643
        %v2645 = vpop.f32.mrb[0].mxu0
        %2646 = vdwg.mxu0
        %v2647 = vmul.f32 %v2569, 0.5
        %v2648 = vmul.f32 %v2574, 0.5
        %v2649 = vmul.f32 %v2579, 0.5
        %v2650 = vmul.f32 %v2584, 0.5
        %v2651 = vmul.f32 %v2589, 0.5
        %v2652 = vmul.f32 %v2594, 0.5
        %v2653 = vmul.f32 %v2599, 0.5
        %v2654 = vmul.f32 %v2604, 0.5
        %v2655 = vmul.f32 %v2609, 0.5
        %v2656 = vmul.f32 %v2614, 0.5
        %v2657 = vmul.f32 %v2619, 0.5
        %v2658 = vmul.f32 %v2624, 0.5
        %v2659 = vmul.f32 %v2629, 0.5
        %v2660 = vmul.f32 %v2634, 0.5
        %v2661 = vmul.f32 %v2639, 0.5
        %v2662 = vmul.f32 %v2644, 0.5
        %v2663 = vmul.f32 %v2569, 0.70710677
        %v2664 = vmul.f32 %v2574, 0.70710677
        %v2665 = vmul.f32 %v2579, 0.70710677
        %v2666 = vmul.f32 %v2584, 0.70710677
        %v2667 = vmul.f32 %v2589, 0.70710677
        %v2668 = vmul.f32 %v2594, 0.70710677
        %v2669 = vmul.f32 %v2599, 0.70710677
        %v2670 = vmul.f32 %v2604, 0.70710677
        %v2671 = vmul.f32 %v2609, 0.70710677
        %v2672 = vmul.f32 %v2614, 0.70710677
        %v2673 = vmul.f32 %v2619, 0.70710677
        %v2674 = vmul.f32 %v2624, 0.70710677
        %v2675 = vmul.f32 %v2629, 0.70710677
        %v2676 = vmul.f32 %v2634, 0.70710677
        %v2677 = vmul.f32 %v2639, 0.70710677
        %v2678 = vmul.f32 %v2644, 0.70710677
        %v2679 = vand.u32 2147483647, %v2663
        %v2680 = vand.u32 2147483647, %v2664
        %v2681 = vand.u32 2147483647, %v2665
        %v2682 = vand.u32 2147483647, %v2666
        %v2683 = vand.u32 2147483647, %v2667
        %v2684 = vand.u32 2147483647, %v2668
        %v2685 = vand.u32 2147483647, %v2669
        %v2686 = vand.u32 2147483647, %v2670
        %v2687 = vand.u32 2147483647, %v2671
        %v2688 = vand.u32 2147483647, %v2672
        %v2689 = vand.u32 2147483647, %v2673
        %v2690 = vand.u32 2147483647, %v2674
        %v2691 = vand.u32 2147483647, %v2675
        %v2692 = vand.u32 2147483647, %v2676
        %v2693 = vand.u32 2147483647, %v2677
        %v2694 = vand.u32 2147483647, %v2678
        %v2695 = vmul.f32 %v2679, 0.3275911
        %v2696 = vmul.f32 %v2680, 0.3275911
        %v2697 = vmul.f32 %v2681, 0.3275911
        %v2698 = vmul.f32 %v2682, 0.3275911
        %v2699 = vmul.f32 %v2683, 0.3275911
        %v2700 = vmul.f32 %v2684, 0.3275911
        %v2701 = vmul.f32 %v2685, 0.3275911
        %v2702 = vmul.f32 %v2686, 0.3275911
        %v2703 = vmul.f32 %v2687, 0.3275911
        %v2704 = vmul.f32 %v2688, 0.3275911
        %v2705 = vmul.f32 %v2689, 0.3275911
        %v2706 = vmul.f32 %v2690, 0.3275911
        %v2707 = vmul.f32 %v2691, 0.3275911
        %v2708 = vmul.f32 %v2692, 0.3275911
        %v2709 = vmul.f32 %v2693, 0.3275911
        %v2710 = vmul.f32 %v2694, 0.3275911
        %v2711 = vadd.f32 %v2695, 1.0
        %v2712 = vadd.f32 %v2696, 1.0
        %v2713 = vadd.f32 %v2697, 1.0
        %v2714 = vadd.f32 %v2698, 1.0
        %v2715 = vadd.f32 %v2699, 1.0
        %v2716 = vadd.f32 %v2700, 1.0
        %v2717 = vadd.f32 %v2701, 1.0
        %v2718 = vadd.f32 %v2702, 1.0
        %v2719 = vadd.f32 %v2703, 1.0
        %v2720 = vadd.f32 %v2704, 1.0
        %v2721 = vadd.f32 %v2705, 1.0
        %v2722 = vadd.f32 %v2706, 1.0
        %v2723 = vadd.f32 %v2707, 1.0
        %v2724 = vadd.f32 %v2708, 1.0
        %v2725 = vadd.f32 %v2709, 1.0
        %v2726 = vadd.f32 %v2710, 1.0
        %v2727 = vrcp.pop %v2711
        %v2728 = vmul.f32 1.0, %v2727
        %v2729 = vrcp.pop %v2712
        %v2730 = vmul.f32 1.0, %v2729
        %v2731 = vrcp.pop %v2713
        %v2732 = vmul.f32 1.0, %v2731
        %v2733 = vrcp.pop %v2714
        %v2734 = vmul.f32 1.0, %v2733
        %v2735 = vrcp.pop %v2715
        %v2736 = vmul.f32 1.0, %v2735
        %v2737 = vrcp.pop %v2716
        %v2738 = vmul.f32 1.0, %v2737
        %v2739 = vrcp.pop %v2717
        %v2740 = vmul.f32 1.0, %v2739
        %v2741 = vrcp.pop %v2718
        %v2742 = vmul.f32 1.0, %v2741
        %v2743 = vrcp.pop %v2719
        %v2744 = vmul.f32 1.0, %v2743
        %v2745 = vrcp.pop %v2720
        %v2746 = vmul.f32 1.0, %v2745
        %v2747 = vrcp.pop %v2721
        %v2748 = vmul.f32 1.0, %v2747
        %v2749 = vrcp.pop %v2722
        %v2750 = vmul.f32 1.0, %v2749
        %v2751 = vrcp.pop %v2723
        %v2752 = vmul.f32 1.0, %v2751
        %v2753 = vrcp.pop %v2724
        %v2754 = vmul.f32 1.0, %v2753
        %v2755 = vrcp.pop %v2725
        %v2756 = vmul.f32 1.0, %v2755
        %v2757 = vrcp.pop %v2726
        %v2758 = vmul.f32 1.0, %v2757
        %v2759 = vmul.f32 %v2728, 1.0614054
        %v2760 = vmul.f32 %v2730, 1.0614054
        %v2761 = vmul.f32 %v2732, 1.0614054
        %v2762 = vmul.f32 %v2734, 1.0614054
        %v2763 = vmul.f32 %v2736, 1.0614054
        %v2764 = vmul.f32 %v2738, 1.0614054
        %v2765 = vmul.f32 %v2740, 1.0614054
        %v2766 = vmul.f32 %v2742, 1.0614054
        %v2767 = vmul.f32 %v2744, 1.0614054
        %v2768 = vmul.f32 %v2746, 1.0614054
        %v2769 = vmul.f32 %v2748, 1.0614054
        %v2770 = vmul.f32 %v2750, 1.0614054
        %v2771 = vmul.f32 %v2752, 1.0614054
        %v2772 = vmul.f32 %v2754, 1.0614054
        %v2773 = vmul.f32 %v2756, 1.0614054
        %v2774 = vmul.f32 %v2758, 1.0614054
        %v2775 = vadd.f32 %v2759, -1.4531521
        %v2776 = vadd.f32 %v2760, -1.4531521
        %v2777 = vadd.f32 %v2761, -1.4531521
        %v2778 = vadd.f32 %v2762, -1.4531521
        %v2779 = vadd.f32 %v2763, -1.4531521
        %v2780 = vadd.f32 %v2764, -1.4531521
        %v2781 = vadd.f32 %v2765, -1.4531521
        %v2782 = vadd.f32 %v2766, -1.4531521
        %v2783 = vadd.f32 %v2767, -1.4531521
        %v2784 = vadd.f32 %v2768, -1.4531521
        %v2785 = vadd.f32 %v2769, -1.4531521
        %v2786 = vadd.f32 %v2770, -1.4531521
        %v2787 = vadd.f32 %v2771, -1.4531521
        %v2788 = vadd.f32 %v2772, -1.4531521
        %v2789 = vadd.f32 %v2773, -1.4531521
        %v2790 = vadd.f32 %v2774, -1.4531521
        %v2791 = vmul.f32 %v2775, %v2728
        %v2792 = vmul.f32 %v2776, %v2730
        %v2793 = vmul.f32 %v2777, %v2732
        %v2794 = vmul.f32 %v2778, %v2734
        %v2795 = vmul.f32 %v2779, %v2736
        %v2796 = vmul.f32 %v2780, %v2738
        %v2797 = vmul.f32 %v2781, %v2740
        %v2798 = vmul.f32 %v2782, %v2742
        %v2799 = vmul.f32 %v2783, %v2744
        %v2800 = vmul.f32 %v2784, %v2746
        %v2801 = vmul.f32 %v2785, %v2748
        %v2802 = vmul.f32 %v2786, %v2750
        %v2803 = vmul.f32 %v2787, %v2752
        %v2804 = vmul.f32 %v2788, %v2754
        %v2805 = vmul.f32 %v2789, %v2756
        %v2806 = vmul.f32 %v2790, %v2758
        %v2807 = vadd.f32 %v2791, 1.4214138
        %v2808 = vadd.f32 %v2792, 1.4214138
        %v2809 = vadd.f32 %v2793, 1.4214138
        %v2810 = vadd.f32 %v2794, 1.4214138
        %v2811 = vadd.f32 %v2795, 1.4214138
        %v2812 = vadd.f32 %v2796, 1.4214138
        %v2813 = vadd.f32 %v2797, 1.4214138
        %v2814 = vadd.f32 %v2798, 1.4214138
        %v2815 = vadd.f32 %v2799, 1.4214138
        %v2816 = vadd.f32 %v2800, 1.4214138
        %v2817 = vadd.f32 %v2801, 1.4214138
        %v2818 = vadd.f32 %v2802, 1.4214138
        %v2819 = vadd.f32 %v2803, 1.4214138
        %v2820 = vadd.f32 %v2804, 1.4214138
        %v2821 = vadd.f32 %v2805, 1.4214138
        %v2822 = vadd.f32 %v2806, 1.4214138
        %v2823 = vmul.f32 %v2807, %v2728
        %v2824 = vmul.f32 %v2808, %v2730
        %v2825 = vmul.f32 %v2809, %v2732
        %v2826 = vmul.f32 %v2810, %v2734
        %v2827 = vmul.f32 %v2811, %v2736
        %v2828 = vmul.f32 %v2812, %v2738
        %v2829 = vmul.f32 %v2813, %v2740
        %v2830 = vmul.f32 %v2814, %v2742
        %v2831 = vmul.f32 %v2815, %v2744
        %v2832 = vmul.f32 %v2816, %v2746
        %v2833 = vmul.f32 %v2817, %v2748
        %v2834 = vmul.f32 %v2818, %v2750
        %v2835 = vmul.f32 %v2819, %v2752
        %v2836 = vmul.f32 %v2820, %v2754
        %v2837 = vmul.f32 %v2821, %v2756
        %v2838 = vmul.f32 %v2822, %v2758
        %v2839 = vadd.f32 %v2823, -0.28449672
        %v2840 = vadd.f32 %v2824, -0.28449672
        %v2841 = vadd.f32 %v2825, -0.28449672
        %v2842 = vadd.f32 %v2826, -0.28449672
        %v2843 = vadd.f32 %v2827, -0.28449672
        %v2844 = vadd.f32 %v2828, -0.28449672
        %v2845 = vadd.f32 %v2829, -0.28449672
        %v2846 = vadd.f32 %v2830, -0.28449672
        %v2847 = vadd.f32 %v2831, -0.28449672
        %v2848 = vadd.f32 %v2832, -0.28449672
        %v2849 = vadd.f32 %v2833, -0.28449672
        %v2850 = vadd.f32 %v2834, -0.28449672
        %v2851 = vadd.f32 %v2835, -0.28449672
        %v2852 = vadd.f32 %v2836, -0.28449672
        %v2853 = vadd.f32 %v2837, -0.28449672
        %v2854 = vadd.f32 %v2838, -0.28449672
        %v2855 = vmul.f32 %v2839, %v2728
        %v2856 = vmul.f32 %v2840, %v2730
        %v2857 = vmul.f32 %v2841, %v2732
        %v2858 = vmul.f32 %v2842, %v2734
        %v2859 = vmul.f32 %v2843, %v2736
        %v2860 = vmul.f32 %v2844, %v2738
        %v2861 = vmul.f32 %v2845, %v2740
        %v2862 = vmul.f32 %v2846, %v2742
        %v2863 = vmul.f32 %v2847, %v2744
        %v2864 = vmul.f32 %v2848, %v2746
        %v2865 = vmul.f32 %v2849, %v2748
        %v2866 = vmul.f32 %v2850, %v2750
        %v2867 = vmul.f32 %v2851, %v2752
        %v2868 = vmul.f32 %v2852, %v2754
        %v2869 = vmul.f32 %v2853, %v2756
        %v2870 = vmul.f32 %v2854, %v2758
        %v2871 = vadd.f32 %v2855, 0.2548296
        %v2872 = vadd.f32 %v2856, 0.2548296
        %v2873 = vadd.f32 %v2857, 0.2548296
        %v2874 = vadd.f32 %v2858, 0.2548296
        %v2875 = vadd.f32 %v2859, 0.2548296
        %v2876 = vadd.f32 %v2860, 0.2548296
        %v2877 = vadd.f32 %v2861, 0.2548296
        %v2878 = vadd.f32 %v2862, 0.2548296
        %v2879 = vadd.f32 %v2863, 0.2548296
        %v2880 = vadd.f32 %v2864, 0.2548296
        %v2881 = vadd.f32 %v2865, 0.2548296
        %v2882 = vadd.f32 %v2866, 0.2548296
        %v2883 = vadd.f32 %v2867, 0.2548296
        %v2884 = vadd.f32 %v2868, 0.2548296
        %v2885 = vadd.f32 %v2869, 0.2548296
        %v2886 = vadd.f32 %v2870, 0.2548296
        %v2887 = vmul.f32 %v2871, %v2728
        %v2888 = vmul.f32 %v2872, %v2730
        %v2889 = vmul.f32 %v2873, %v2732
        %v2890 = vmul.f32 %v2874, %v2734
        %v2891 = vmul.f32 %v2875, %v2736
        %v2892 = vmul.f32 %v2876, %v2738
        %v2893 = vmul.f32 %v2877, %v2740
        %v2894 = vmul.f32 %v2878, %v2742
        %v2895 = vmul.f32 %v2879, %v2744
        %v2896 = vmul.f32 %v2880, %v2746
        %v2897 = vmul.f32 %v2881, %v2748
        %v2898 = vmul.f32 %v2882, %v2750
        %v2899 = vmul.f32 %v2883, %v2752
        %v2900 = vmul.f32 %v2884, %v2754
        %v2901 = vmul.f32 %v2885, %v2756
        %v2902 = vmul.f32 %v2886, %v2758
        %v2903 = vsub.f32 0.0, %v2679
        %v2904 = vsub.f32 0.0, %v2680
        %v2905 = vsub.f32 0.0, %v2681
        %v2906 = vsub.f32 0.0, %v2682
        %v2907 = vsub.f32 0.0, %v2683
        %v2908 = vsub.f32 0.0, %v2684
        %v2909 = vsub.f32 0.0, %v2685
        %v2910 = vsub.f32 0.0, %v2686
        %v2911 = vsub.f32 0.0, %v2687
        %v2912 = vsub.f32 0.0, %v2688
        %v2913 = vsub.f32 0.0, %v2689
        %v2914 = vsub.f32 0.0, %v2690
        %v2915 = vsub.f32 0.0, %v2691
        %v2916 = vsub.f32 0.0, %v2692
        %v2917 = vsub.f32 0.0, %v2693
        %v2918 = vsub.f32 0.0, %v2694
        %v2919 = vmul.f32 %v2903, %v2679
        %v2920 = vmul.f32 %v2904, %v2680
        %v2921 = vmul.f32 %v2905, %v2681
        %v2922 = vmul.f32 %v2906, %v2682
        %v2923 = vmul.f32 %v2907, %v2683
        %v2924 = vmul.f32 %v2908, %v2684
        %v2925 = vmul.f32 %v2909, %v2685
        %v2926 = vmul.f32 %v2910, %v2686
        %v2927 = vmul.f32 %v2911, %v2687
        %v2928 = vmul.f32 %v2912, %v2688
        %v2929 = vmul.f32 %v2913, %v2689
        %v2930 = vmul.f32 %v2914, %v2690
        %v2931 = vmul.f32 %v2915, %v2691
        %v2932 = vmul.f32 %v2916, %v2692
        %v2933 = vmul.f32 %v2917, %v2693
        %v2934 = vmul.f32 %v2918, %v2694
        %v2935 = vmul.f32 %v2919, 1.442695
        %v2936 = vpow.pop %v2935
        %v2937 = vmul.f32 %v2920, 1.442695
        %v2938 = vpow.pop %v2937
        %v2939 = vmul.f32 %v2921, 1.442695
        %v2940 = vpow.pop %v2939
        %v2941 = vmul.f32 %v2922, 1.442695
        %v2942 = vpow.pop %v2941
        %v2943 = vmul.f32 %v2923, 1.442695
        %v2944 = vpow.pop %v2943
        %v2945 = vmul.f32 %v2924, 1.442695
        %v2946 = vpow.pop %v2945
        %v2947 = vmul.f32 %v2925, 1.442695
        %v2948 = vpow.pop %v2947
        %v2949 = vmul.f32 %v2926, 1.442695
        %v2950 = vpow.pop %v2949
        %v2951 = vmul.f32 %v2927, 1.442695
        %v2952 = vpow.pop %v2951
        %v2953 = vmul.f32 %v2928, 1.442695
        %v2954 = vpow.pop %v2953
        %v2955 = vmul.f32 %v2929, 1.442695
        %v2956 = vpow.pop %v2955
        %v2957 = vmul.f32 %v2930, 1.442695
        %v2958 = vpow.pop %v2957
        %v2959 = vmul.f32 %v2931, 1.442695
        %v2960 = vpow.pop %v2959
        %v2961 = vmul.f32 %v2932, 1.442695
        %v2962 = vpow.pop %v2961
        %v2963 = vmul.f32 %v2933, 1.442695
        %v2964 = vpow.pop %v2963
        %v2965 = vmul.f32 %v2934, 1.442695
        %v2966 = vpow.pop %v2965
        %v2967 = vmul.f32 %v2887, %v2936
        %v2968 = vmul.f32 %v2888, %v2938
        %v2969 = vmul.f32 %v2889, %v2940
        %v2970 = vmul.f32 %v2890, %v2942
        %v2971 = vmul.f32 %v2891, %v2944
        %v2972 = vmul.f32 %v2892, %v2946
        %v2973 = vmul.f32 %v2893, %v2948
        %v2974 = vmul.f32 %v2894, %v2950
        %v2975 = vmul.f32 %v2895, %v2952
        %v2976 = vmul.f32 %v2896, %v2954
        %v2977 = vmul.f32 %v2897, %v2956
        %v2978 = vmul.f32 %v2898, %v2958
        %v2979 = vmul.f32 %v2899, %v2960
        %v2980 = vmul.f32 %v2900, %v2962
        %v2981 = vmul.f32 %v2901, %v2964
        %v2982 = vmul.f32 %v2902, %v2966
        %v2983 = vsub.f32 1.0, %v2967
        %v2984 = vsub.f32 1.0, %v2968
        %v2985 = vsub.f32 1.0, %v2969
        %v2986 = vsub.f32 1.0, %v2970
        %v2987 = vsub.f32 1.0, %v2971
        %v2988 = vsub.f32 1.0, %v2972
        %v2989 = vsub.f32 1.0, %v2973
        %v2990 = vsub.f32 1.0, %v2974
        %v2991 = vsub.f32 1.0, %v2975
        %v2992 = vsub.f32 1.0, %v2976
        %v2993 = vsub.f32 1.0, %v2977
        %v2994 = vsub.f32 1.0, %v2978
        %v2995 = vsub.f32 1.0, %v2979
        %v2996 = vsub.f32 1.0, %v2980
        %v2997 = vsub.f32 1.0, %v2981
        %v2998 = vsub.f32 1.0, %v2982
        %vm2999 = vcmp.lt.f32.partialorder %v2663, 0.0
        %vm3000 = vcmp.lt.f32.partialorder %v2664, 0.0
        %vm3001 = vcmp.lt.f32.partialorder %v2665, 0.0
        %vm3002 = vcmp.lt.f32.partialorder %v2666, 0.0
        %vm3003 = vcmp.lt.f32.partialorder %v2667, 0.0
        %vm3004 = vcmp.lt.f32.partialorder %v2668, 0.0
        %vm3005 = vcmp.lt.f32.partialorder %v2669, 0.0
        %vm3006 = vcmp.lt.f32.partialorder %v2670, 0.0
        %vm3007 = vcmp.lt.f32.partialorder %v2671, 0.0
        %vm3008 = vcmp.lt.f32.partialorder %v2672, 0.0
        %vm3009 = vcmp.lt.f32.partialorder %v2673, 0.0
        %vm3010 = vcmp.lt.f32.partialorder %v2674, 0.0
        %vm3011 = vcmp.lt.f32.partialorder %v2675, 0.0
        %vm3012 = vcmp.lt.f32.partialorder %v2676, 0.0
        %vm3013 = vcmp.lt.f32.partialorder %v2677, 0.0
        %vm3014 = vcmp.lt.f32.partialorder %v2678, 0.0
        %v3015 = vsub.f32 0.0, %v2983
        %v3016 = vsub.f32 0.0, %v2984
        %v3017 = vsub.f32 0.0, %v2985
        %v3018 = vsub.f32 0.0, %v2986
        %v3019 = vsub.f32 0.0, %v2987
        %v3020 = vsub.f32 0.0, %v2988
        %v3021 = vsub.f32 0.0, %v2989
        %v3022 = vsub.f32 0.0, %v2990
        %v3023 = vsub.f32 0.0, %v2991
        %v3024 = vsub.f32 0.0, %v2992
        %v3025 = vsub.f32 0.0, %v2993
        %v3026 = vsub.f32 0.0, %v2994
        %v3027 = vsub.f32 0.0, %v2995
        %v3028 = vsub.f32 0.0, %v2996
        %v3029 = vsub.f32 0.0, %v2997
        %v3030 = vsub.f32 0.0, %v2998
        %v3031 = vsel %vm2999, %v3015, %v2983
        %v3032 = vsel %vm3000, %v3016, %v2984
        %v3033 = vsel %vm3001, %v3017, %v2985
        %v3034 = vsel %vm3002, %v3018, %v2986
        %v3035 = vsel %vm3003, %v3019, %v2987
        %v3036 = vsel %vm3004, %v3020, %v2988
        %v3037 = vsel %vm3005, %v3021, %v2989
        %v3038 = vsel %vm3006, %v3022, %v2990
        %v3039 = vsel %vm3007, %v3023, %v2991
        %v3040 = vsel %vm3008, %v3024, %v2992
        %v3041 = vsel %vm3009, %v3025, %v2993
        %v3042 = vsel %vm3010, %v3026, %v2994
        %v3043 = vsel %vm3011, %v3027, %v2995
        %v3044 = vsel %vm3012, %v3028, %v2996
        %v3045 = vsel %vm3013, %v3029, %v2997
        %v3046 = vsel %vm3014, %v3030, %v2998
        %v3047 = vadd.f32 %v3031, 1.0
        %v3048 = vadd.f32 %v3032, 1.0
        %v3049 = vadd.f32 %v3033, 1.0
        %v3050 = vadd.f32 %v3034, 1.0
        %v3051 = vadd.f32 %v3035, 1.0
        %v3052 = vadd.f32 %v3036, 1.0
        %v3053 = vadd.f32 %v3037, 1.0
        %v3054 = vadd.f32 %v3038, 1.0
        %v3055 = vadd.f32 %v3039, 1.0
        %v3056 = vadd.f32 %v3040, 1.0
        %v3057 = vadd.f32 %v3041, 1.0
        %v3058 = vadd.f32 %v3042, 1.0
        %v3059 = vadd.f32 %v3043, 1.0
        %v3060 = vadd.f32 %v3044, 1.0
        %v3061 = vadd.f32 %v3045, 1.0
        %v3062 = vadd.f32 %v3046, 1.0
        %v3063 = vmul.f32 %v2647, %v3047
        %v3064 = vmul.f32 %v2648, %v3048
        %v3065 = vmul.f32 %v2649, %v3049
        %v3066 = vmul.f32 %v2650, %v3050
        %v3067 = vmul.f32 %v2651, %v3051
        %v3068 = vmul.f32 %v2652, %v3052
        %v3069 = vmul.f32 %v2653, %v3053
        %v3070 = vmul.f32 %v2654, %v3054
        %v3071 = vmul.f32 %v2655, %v3055
        %v3072 = vmul.f32 %v2656, %v3056
        %v3073 = vmul.f32 %v2657, %v3057
        %v3074 = vmul.f32 %v2658, %v3058
        %v3075 = vmul.f32 %v2659, %v3059
        %v3076 = vmul.f32 %v2660, %v3060
        %v3077 = vmul.f32 %v2661, %v3061
        %v3078 = vmul.f32 %v2662, %v3062
        %3079 = vst [vmem:[#allocation3] sm:$0xf] 0.0
        %3080 = vst [vmem:[#allocation3 + $0x8] sm:$0xf] 0.0
        %3081 = vst.msk [vmem:[#allocation3 + $0x10] sm:$0xf] %vm1515, 0.0
        %3082 = vst [vmem:[#allocation3 + $0x168] sm:$0xf0] 0.0
        %3083 = vst [vmem:[#allocation3 + $0x170] sm:$0xf0] 0.0
        %3084 = vst.msk [vmem:[#allocation3 + $0x178] sm:$0xf0] %vm1519, 0.0
        %v3101 = vrot.slane %v3063, 4
        %v3102 = vrot.slane %v3064, 4
        %v3103 = vsel %vm1537, %v3101, %v3102
        %v3104 = vrot.slane %v3065, 4
        %v3105 = vsel %vm1537, %v3102, %v3104
        %v3106 = vrot.slane %v3066, 4
        %v3107 = vsel %vm1537, %v3104, %v3106
        %v3108 = vrot.slane %v3067, 4
        %v3109 = vsel %vm1537, %v3106, %v3108
        %v3110 = vrot.slane %v3068, 4
        %v3111 = vsel %vm1537, %v3108, %v3110
        %v3112 = vrot.slane %v3069, 4
        %v3113 = vsel %vm1537, %v3110, %v3112
        %v3114 = vrot.slane %v3070, 4
        %v3115 = vsel %vm1537, %v3112, %v3114
        %v3116 = vrot.slane %v3071, 4
        %v3117 = vsel %vm1537, %v3114, %v3116
        %v3118 = vrot.slane %v3072, 4
        %v3119 = vsel %vm1537, %v3116, %v3118
        %v3120 = vrot.slane %v3073, 4
        %v3121 = vsel %vm1537, %v3118, %v3120
        %v3122 = vrot.slane %v3074, 4
        %v3123 = vsel %vm1537, %v3120, %v3122
        %v3124 = vrot.slane %v3075, 4
        %v3125 = vsel %vm1537, %v3122, %v3124
        %v3126 = vrot.slane %v3076, 4
        %v3127 = vsel %vm1537, %v3124, %v3126
        %v3128 = vrot.slane %v3077, 4
        %v3129 = vsel %vm1537, %v3126, %v3128
        %v3130 = vrot.slane %v3078, 4
        %v3131 = vsel %vm1537, %v3128, %v3130
        %3148 = vst.msk [vmem:[#allocation3] sm:$0xf0] %vm1519, %v3101
        %3149 = vst.msk [vmem:[#allocation3 + $0x18] sm:$0xff] %vm887, %v3103
        %3150 = vst.msk [vmem:[#allocation3 + $0x30] sm:$0xff] %vm887, %v3105
        %3151 = vst.msk [vmem:[#allocation3 + $0x48] sm:$0xff] %vm887, %v3107
        %3152 = vst.msk [vmem:[#allocation3 + $0x60] sm:$0xff] %vm887, %v3109
        %3153 = vst.msk [vmem:[#allocation3 + $0x78] sm:$0xff] %vm887, %v3111
        %3154 = vst.msk [vmem:[#allocation3 + $0x90] sm:$0xff] %vm887, %v3113
        %3155 = vst.msk [vmem:[#allocation3 + $0xa8] sm:$0xff] %vm887, %v3115
        %3156 = vst.msk [vmem:[#allocation3 + $0xc0] sm:$0xff] %vm887, %v3117
        %3157 = vst.msk [vmem:[#allocation3 + $0xd8] sm:$0xff] %vm887, %v3119
        %3158 = vst.msk [vmem:[#allocation3 + $0xf0] sm:$0xff] %vm887, %v3121
        %3159 = vst.msk [vmem:[#allocation3 + $0x108] sm:$0xff] %vm887, %v3123
        %3160 = vst.msk [vmem:[#allocation3 + $0x120] sm:$0xff] %vm887, %v3125
        %3161 = vst.msk [vmem:[#allocation3 + $0x138] sm:$0xff] %vm887, %v3127
        %3162 = vst.msk [vmem:[#allocation3 + $0x150] sm:$0xff] %vm887, %v3129
        %3163 = vst.msk [vmem:[#allocation3 + $0x168] sm:$0xff] %vm887, %v3131
        %v3164 = vrot.slane %v3063, 5
        %v3165 = vrot.slane %v3064, 5
        %v3166 = vsel %vm1601, %v3164, %v3165
        %v3167 = vrot.slane %v3065, 5
        %v3168 = vsel %vm1601, %v3165, %v3167
        %v3169 = vrot.slane %v3066, 5
        %v3170 = vsel %vm1601, %v3167, %v3169
        %v3171 = vrot.slane %v3067, 5
        %v3172 = vsel %vm1601, %v3169, %v3171
        %v3173 = vrot.slane %v3068, 5
        %v3174 = vsel %vm1601, %v3171, %v3173
        %v3175 = vrot.slane %v3069, 5
        %v3176 = vsel %vm1601, %v3173, %v3175
        %v3177 = vrot.slane %v3070, 5
        %v3178 = vsel %vm1601, %v3175, %v3177
        %v3179 = vrot.slane %v3071, 5
        %v3180 = vsel %vm1601, %v3177, %v3179
        %v3181 = vrot.slane %v3072, 5
        %v3182 = vsel %vm1601, %v3179, %v3181
        %v3183 = vrot.slane %v3073, 5
        %v3184 = vsel %vm1601, %v3181, %v3183
        %v3185 = vrot.slane %v3074, 5
        %v3186 = vsel %vm1601, %v3183, %v3185
        %v3187 = vrot.slane %v3075, 5
        %v3188 = vsel %vm1601, %v3185, %v3187
        %v3189 = vrot.slane %v3076, 5
        %v3190 = vsel %vm1601, %v3187, %v3189
        %v3191 = vrot.slane %v3077, 5
        %v3192 = vsel %vm1601, %v3189, %v3191
        %v3193 = vrot.slane %v3078, 5
        %v3194 = vsel %vm1601, %v3191, %v3193
        %3195 = vrot.lane.b32.xlu0 %v3164, 32
        %v3196 = vpop.permute.xlu0 %3195
        %3197 = vrot.lane.b32.xlu0 %v3166, 32
        %v3198 = vpop.permute.xlu0 %3197
        %3199 = vrot.lane.b32.xlu0 %v3168, 32
        %v3200 = vpop.permute.xlu0 %3199
        %3201 = vrot.lane.b32.xlu0 %v3170, 32
        %v3202 = vpop.permute.xlu0 %3201
        %3203 = vrot.lane.b32.xlu0 %v3172, 32
        %v3204 = vpop.permute.xlu0 %3203
        %3205 = vrot.lane.b32.xlu0 %v3174, 32
        %v3206 = vpop.permute.xlu0 %3205
        %3207 = vrot.lane.b32.xlu0 %v3176, 32
        %v3208 = vpop.permute.xlu0 %3207
        %3209 = vrot.lane.b32.xlu0 %v3178, 32
        %v3210 = vpop.permute.xlu0 %3209
        %3211 = vrot.lane.b32.xlu0 %v3180, 32
        %v3212 = vpop.permute.xlu0 %3211
        %3213 = vrot.lane.b32.xlu0 %v3182, 32
        %v3214 = vpop.permute.xlu0 %3213
        %3215 = vrot.lane.b32.xlu0 %v3184, 32
        %v3216 = vpop.permute.xlu0 %3215
        %3217 = vrot.lane.b32.xlu0 %v3186, 32
        %v3218 = vpop.permute.xlu0 %3217
        %3219 = vrot.lane.b32.xlu0 %v3188, 32
        %v3220 = vpop.permute.xlu0 %3219
        %3221 = vrot.lane.b32.xlu0 %v3190, 32
        %v3222 = vpop.permute.xlu0 %3221
        %3223 = vrot.lane.b32.xlu0 %v3192, 32
        %v3224 = vpop.permute.xlu0 %3223
        %3225 = vrot.lane.b32.xlu0 %v3194, 32
        %v3226 = vpop.permute.xlu0 %3225
        %3243 = vst.msk [vmem:[#allocation3] sm:$0xf8] %vm1681, %v3196
        %3244 = vst.msk [vmem:[#allocation3 + $0x18] sm:$0xff] %vm1683, %v3198
        %3245 = vst.msk [vmem:[#allocation3 + $0x30] sm:$0xff] %vm1683, %v3200
        %3246 = vst.msk [vmem:[#allocation3 + $0x48] sm:$0xff] %vm1683, %v3202
        %3247 = vst.msk [vmem:[#allocation3 + $0x60] sm:$0xff] %vm1683, %v3204
        %3248 = vst.msk [vmem:[#allocation3 + $0x78] sm:$0xff] %vm1683, %v3206
        %3249 = vst.msk [vmem:[#allocation3 + $0x90] sm:$0xff] %vm1683, %v3208
        %3250 = vst.msk [vmem:[#allocation3 + $0xa8] sm:$0xff] %vm1683, %v3210
        %3251 = vst.msk [vmem:[#allocation3 + $0xc0] sm:$0xff] %vm1683, %v3212
        %3252 = vst.msk [vmem:[#allocation3 + $0xd8] sm:$0xff] %vm1683, %v3214
        %3253 = vst.msk [vmem:[#allocation3 + $0xf0] sm:$0xff] %vm1683, %v3216
        %3254 = vst.msk [vmem:[#allocation3 + $0x108] sm:$0xff] %vm1683, %v3218
        %3255 = vst.msk [vmem:[#allocation3 + $0x120] sm:$0xff] %vm1683, %v3220
        %3256 = vst.msk [vmem:[#allocation3 + $0x138] sm:$0xff] %vm1683, %v3222
        %3257 = vst.msk [vmem:[#allocation3 + $0x150] sm:$0xff] %vm1683, %v3224
        %3258 = vst.msk [vmem:[#allocation3 + $0x168] sm:$0xff] %vm1683, %v3226
        %v3259 = vrot.slane %v3063, 6
        %v3260 = vrot.slane %v3064, 6
        %v3261 = vsel %vm1699, %v3259, %v3260
        %v3262 = vrot.slane %v3065, 6
        %v3263 = vsel %vm1699, %v3260, %v3262
        %v3264 = vrot.slane %v3066, 6
        %v3265 = vsel %vm1699, %v3262, %v3264
        %v3266 = vrot.slane %v3067, 6
        %v3267 = vsel %vm1699, %v3264, %v3266
        %v3268 = vrot.slane %v3068, 6
        %v3269 = vsel %vm1699, %v3266, %v3268
        %v3270 = vrot.slane %v3069, 6
        %v3271 = vsel %vm1699, %v3268, %v3270
        %v3272 = vrot.slane %v3070, 6
        %v3273 = vsel %vm1699, %v3270, %v3272
        %v3274 = vrot.slane %v3071, 6
        %v3275 = vsel %vm1699, %v3272, %v3274
        %v3276 = vrot.slane %v3072, 6
        %v3277 = vsel %vm1699, %v3274, %v3276
        %v3278 = vrot.slane %v3073, 6
        %v3279 = vsel %vm1699, %v3276, %v3278
        %v3280 = vrot.slane %v3074, 6
        %v3281 = vsel %vm1699, %v3278, %v3280
        %v3282 = vrot.slane %v3075, 6
        %v3283 = vsel %vm1699, %v3280, %v3282
        %v3284 = vrot.slane %v3076, 6
        %v3285 = vsel %vm1699, %v3282, %v3284
        %v3286 = vrot.slane %v3077, 6
        %v3287 = vsel %vm1699, %v3284, %v3286
        %v3288 = vrot.slane %v3078, 6
        %v3289 = vsel %vm1699, %v3286, %v3288
        %3290 = vrot.lane.b32.xlu0 %v3259, 64
        %v3291 = vpop.permute.xlu0 %3290
        %3292 = vrot.lane.b32.xlu0 %v3261, 64
        %v3293 = vpop.permute.xlu0 %3292
        %3294 = vrot.lane.b32.xlu0 %v3263, 64
        %v3295 = vpop.permute.xlu0 %3294
        %3296 = vrot.lane.b32.xlu0 %v3265, 64
        %v3297 = vpop.permute.xlu0 %3296
        %3298 = vrot.lane.b32.xlu0 %v3267, 64
        %v3299 = vpop.permute.xlu0 %3298
        %3300 = vrot.lane.b32.xlu0 %v3269, 64
        %v3301 = vpop.permute.xlu0 %3300
        %3302 = vrot.lane.b32.xlu0 %v3271, 64
        %v3303 = vpop.permute.xlu0 %3302
        %3304 = vrot.lane.b32.xlu0 %v3273, 64
        %v3305 = vpop.permute.xlu0 %3304
        %3306 = vrot.lane.b32.xlu0 %v3275, 64
        %v3307 = vpop.permute.xlu0 %3306
        %3308 = vrot.lane.b32.xlu0 %v3277, 64
        %v3309 = vpop.permute.xlu0 %3308
        %3310 = vrot.lane.b32.xlu0 %v3279, 64
        %v3311 = vpop.permute.xlu0 %3310
        %3312 = vrot.lane.b32.xlu0 %v3281, 64
        %v3313 = vpop.permute.xlu0 %3312
        %3314 = vrot.lane.b32.xlu0 %v3283, 64
        %v3315 = vpop.permute.xlu0 %3314
        %3316 = vrot.lane.b32.xlu0 %v3285, 64
        %v3317 = vpop.permute.xlu0 %3316
        %3318 = vrot.lane.b32.xlu0 %v3287, 64
        %v3319 = vpop.permute.xlu0 %3318
        %3320 = vrot.lane.b32.xlu0 %v3289, 64
        %v3321 = vpop.permute.xlu0 %3320
        %3338 = vst.msk [vmem:[#allocation3] sm:$0xfc] %vm1779, %v3291
        %3339 = vst.msk [vmem:[#allocation3 + $0x18] sm:$0xff] %vm1781, %v3293
        %3340 = vst.msk [vmem:[#allocation3 + $0x30] sm:$0xff] %vm1781, %v3295
        %3341 = vst.msk [vmem:[#allocation3 + $0x48] sm:$0xff] %vm1781, %v3297
        %3342 = vst.msk [vmem:[#allocation3 + $0x60] sm:$0xff] %vm1781, %v3299
        %3343 = vst.msk [vmem:[#allocation3 + $0x78] sm:$0xff] %vm1781, %v3301
        %3344 = vst.msk [vmem:[#allocation3 + $0x90] sm:$0xff] %vm1781, %v3303
        %3345 = vst.msk [vmem:[#allocation3 + $0xa8] sm:$0xff] %vm1781, %v3305
        %3346 = vst.msk [vmem:[#allocation3 + $0xc0] sm:$0xff] %vm1781, %v3307
        %3347 = vst.msk [vmem:[#allocation3 + $0xd8] sm:$0xff] %vm1781, %v3309
        %3348 = vst.msk [vmem:[#allocation3 + $0xf0] sm:$0xff] %vm1781, %v3311
        %3349 = vst.msk [vmem:[#allocation3 + $0x108] sm:$0xff] %vm1781, %v3313
        %3350 = vst.msk [vmem:[#allocation3 + $0x120] sm:$0xff] %vm1781, %v3315
        %3351 = vst.msk [vmem:[#allocation3 + $0x138] sm:$0xff] %vm1781, %v3317
        %3352 = vst.msk [vmem:[#allocation3 + $0x150] sm:$0xff] %vm1781, %v3319
        %3353 = vst.msk [vmem:[#allocation3 + $0x168] sm:$0xff] %vm1781, %v3321
        %v3354 = vrot.slane %v3063, 7
        %v3355 = vrot.slane %v3064, 7
        %v3356 = vsel %vm1797, %v3354, %v3355
        %v3357 = vrot.slane %v3065, 7
        %v3358 = vsel %vm1797, %v3355, %v3357
        %v3359 = vrot.slane %v3066, 7
        %v3360 = vsel %vm1797, %v3357, %v3359
        %v3361 = vrot.slane %v3067, 7
        %v3362 = vsel %vm1797, %v3359, %v3361
        %v3363 = vrot.slane %v3068, 7
        %v3364 = vsel %vm1797, %v3361, %v3363
        %v3365 = vrot.slane %v3069, 7
        %v3366 = vsel %vm1797, %v3363, %v3365
        %v3367 = vrot.slane %v3070, 7
        %v3368 = vsel %vm1797, %v3365, %v3367
        %v3369 = vrot.slane %v3071, 7
        %v3370 = vsel %vm1797, %v3367, %v3369
        %v3371 = vrot.slane %v3072, 7
        %v3372 = vsel %vm1797, %v3369, %v3371
        %v3373 = vrot.slane %v3073, 7
        %v3374 = vsel %vm1797, %v3371, %v3373
        %v3375 = vrot.slane %v3074, 7
        %v3376 = vsel %vm1797, %v3373, %v3375
        %v3377 = vrot.slane %v3075, 7
        %v3378 = vsel %vm1797, %v3375, %v3377
        %v3379 = vrot.slane %v3076, 7
        %v3380 = vsel %vm1797, %v3377, %v3379
        %v3381 = vrot.slane %v3077, 7
        %v3382 = vsel %vm1797, %v3379, %v3381
        %v3383 = vrot.slane %v3078, 7
        %v3384 = vsel %vm1797, %v3381, %v3383
        %3385 = vrot.lane.b32.xlu0 %v3354, 96
        %v3386 = vpop.permute.xlu0 %3385
        %3387 = vrot.lane.b32.xlu0 %v3356, 96
        %v3388 = vpop.permute.xlu0 %3387
        %3389 = vrot.lane.b32.xlu0 %v3358, 96
        %v3390 = vpop.permute.xlu0 %3389
        %3391 = vrot.lane.b32.xlu0 %v3360, 96
        %v3392 = vpop.permute.xlu0 %3391
        %3393 = vrot.lane.b32.xlu0 %v3362, 96
        %v3394 = vpop.permute.xlu0 %3393
        %3395 = vrot.lane.b32.xlu0 %v3364, 96
        %v3396 = vpop.permute.xlu0 %3395
        %3397 = vrot.lane.b32.xlu0 %v3366, 96
        %v3398 = vpop.permute.xlu0 %3397
        %3399 = vrot.lane.b32.xlu0 %v3368, 96
        %v3400 = vpop.permute.xlu0 %3399
        %3401 = vrot.lane.b32.xlu0 %v3370, 96
        %v3402 = vpop.permute.xlu0 %3401
        %3403 = vrot.lane.b32.xlu0 %v3372, 96
        %v3404 = vpop.permute.xlu0 %3403
        %3405 = vrot.lane.b32.xlu0 %v3374, 96
        %v3406 = vpop.permute.xlu0 %3405
        %3407 = vrot.lane.b32.xlu0 %v3376, 96
        %v3408 = vpop.permute.xlu0 %3407
        %3409 = vrot.lane.b32.xlu0 %v3378, 96
        %v3410 = vpop.permute.xlu0 %3409
        %3411 = vrot.lane.b32.xlu0 %v3380, 96
        %v3412 = vpop.permute.xlu0 %3411
        %3413 = vrot.lane.b32.xlu0 %v3382, 96
        %v3414 = vpop.permute.xlu0 %3413
        %3415 = vrot.lane.b32.xlu0 %v3384, 96
        %v3416 = vpop.permute.xlu0 %3415
        %3433 = vst.msk [vmem:[#allocation3] sm:$0xfe] %vm1877, %v3386
        %3434 = vst.msk [vmem:[#allocation3 + $0x18] sm:$0xff] %vm1879, %v3388
        %3435 = vst.msk [vmem:[#allocation3 + $0x30] sm:$0xff] %vm1879, %v3390
        %3436 = vst.msk [vmem:[#allocation3 + $0x48] sm:$0xff] %vm1879, %v3392
        %3437 = vst.msk [vmem:[#allocation3 + $0x60] sm:$0xff] %vm1879, %v3394
        %3438 = vst.msk [vmem:[#allocation3 + $0x78] sm:$0xff] %vm1879, %v3396
        %3439 = vst.msk [vmem:[#allocation3 + $0x90] sm:$0xff] %vm1879, %v3398
        %3440 = vst.msk [vmem:[#allocation3 + $0xa8] sm:$0xff] %vm1879, %v3400
        %3441 = vst.msk [vmem:[#allocation3 + $0xc0] sm:$0xff] %vm1879, %v3402
        %3442 = vst.msk [vmem:[#allocation3 + $0xd8] sm:$0xff] %vm1879, %v3404
        %3443 = vst.msk [vmem:[#allocation3 + $0xf0] sm:$0xff] %vm1879, %v3406
        %3444 = vst.msk [vmem:[#allocation3 + $0x108] sm:$0xff] %vm1879, %v3408
        %3445 = vst.msk [vmem:[#allocation3 + $0x120] sm:$0xff] %vm1879, %v3410
        %3446 = vst.msk [vmem:[#allocation3 + $0x138] sm:$0xff] %vm1879, %v3412
        %3447 = vst.msk [vmem:[#allocation3 + $0x150] sm:$0xff] %vm1879, %v3414
        %3448 = vst.msk [vmem:[#allocation3 + $0x168] sm:$0xff] %vm1879, %v3416
        %3449 = vst.msk [vmem:[#allocation3 + $0x8] sm:$0xff] %vm887, %v3063
        %3450 = vst.msk [vmem:[#allocation3 + $0x20] sm:$0xff] %vm887, %v3064
        %3451 = vst.msk [vmem:[#allocation3 + $0x38] sm:$0xff] %vm887, %v3065
        %3452 = vst.msk [vmem:[#allocation3 + $0x50] sm:$0xff] %vm887, %v3066
        %3453 = vst.msk [vmem:[#allocation3 + $0x68] sm:$0xff] %vm887, %v3067
        %3454 = vst.msk [vmem:[#allocation3 + $0x80] sm:$0xff] %vm887, %v3068
        %3455 = vst.msk [vmem:[#allocation3 + $0x98] sm:$0xff] %vm887, %v3069
        %3456 = vst.msk [vmem:[#allocation3 + $0xb0] sm:$0xff] %vm887, %v3070
        %3457 = vst.msk [vmem:[#allocation3 + $0xc8] sm:$0xff] %vm887, %v3071
        %3458 = vst.msk [vmem:[#allocation3 + $0xe0] sm:$0xff] %vm887, %v3072
        %3459 = vst.msk [vmem:[#allocation3 + $0xf8] sm:$0xff] %vm887, %v3073
        %3460 = vst.msk [vmem:[#allocation3 + $0x110] sm:$0xff] %vm887, %v3074
        %3461 = vst.msk [vmem:[#allocation3 + $0x128] sm:$0xff] %vm887, %v3075
        %3462 = vst.msk [vmem:[#allocation3 + $0x140] sm:$0xff] %vm887, %v3076
        %3463 = vst.msk [vmem:[#allocation3 + $0x158] sm:$0xff] %vm887, %v3077
        %3464 = vst.msk [vmem:[#allocation3 + $0x170] sm:$0xff] %vm887, %v3078
        %v3465 = vrot.slane %v3063, 1
        %v3466 = vrot.slane %v3064, 1
        %v3467 = vsel %vm1911, %v3465, %v3466
        %v3468 = vrot.slane %v3065, 1
        %v3469 = vsel %vm1911, %v3466, %v3468
        %v3470 = vrot.slane %v3066, 1
        %v3471 = vsel %vm1911, %v3468, %v3470
        %v3472 = vrot.slane %v3067, 1
        %v3473 = vsel %vm1911, %v3470, %v3472
        %v3474 = vrot.slane %v3068, 1
        %v3475 = vsel %vm1911, %v3472, %v3474
        %v3476 = vrot.slane %v3069, 1
        %v3477 = vsel %vm1911, %v3474, %v3476
        %v3478 = vrot.slane %v3070, 1
        %v3479 = vsel %vm1911, %v3476, %v3478
        %v3480 = vrot.slane %v3071, 1
        %v3481 = vsel %vm1911, %v3478, %v3480
        %v3482 = vrot.slane %v3072, 1
        %v3483 = vsel %vm1911, %v3480, %v3482
        %v3484 = vrot.slane %v3073, 1
        %v3485 = vsel %vm1911, %v3482, %v3484
        %v3486 = vrot.slane %v3074, 1
        %v3487 = vsel %vm1911, %v3484, %v3486
        %v3488 = vrot.slane %v3075, 1
        %v3489 = vsel %vm1911, %v3486, %v3488
        %v3490 = vrot.slane %v3076, 1
        %v3491 = vsel %vm1911, %v3488, %v3490
        %v3492 = vrot.slane %v3077, 1
        %v3493 = vsel %vm1911, %v3490, %v3492
        %v3494 = vrot.slane %v3078, 1
        %v3495 = vsel %vm1911, %v3492, %v3494
        %3496 = vrot.lane.b32.xlu0 %v3467, 32
        %v3497 = vpop.permute.xlu0 %3496
        %3498 = vrot.lane.b32.xlu0 %v3469, 32
        %v3499 = vpop.permute.xlu0 %3498
        %3500 = vrot.lane.b32.xlu0 %v3471, 32
        %v3501 = vpop.permute.xlu0 %3500
        %3502 = vrot.lane.b32.xlu0 %v3473, 32
        %v3503 = vpop.permute.xlu0 %3502
        %3504 = vrot.lane.b32.xlu0 %v3475, 32
        %v3505 = vpop.permute.xlu0 %3504
        %3506 = vrot.lane.b32.xlu0 %v3477, 32
        %v3507 = vpop.permute.xlu0 %3506
        %3508 = vrot.lane.b32.xlu0 %v3479, 32
        %v3509 = vpop.permute.xlu0 %3508
        %3510 = vrot.lane.b32.xlu0 %v3481, 32
        %v3511 = vpop.permute.xlu0 %3510
        %3512 = vrot.lane.b32.xlu0 %v3483, 32
        %v3513 = vpop.permute.xlu0 %3512
        %3514 = vrot.lane.b32.xlu0 %v3485, 32
        %v3515 = vpop.permute.xlu0 %3514
        %3516 = vrot.lane.b32.xlu0 %v3487, 32
        %v3517 = vpop.permute.xlu0 %3516
        %3518 = vrot.lane.b32.xlu0 %v3489, 32
        %v3519 = vpop.permute.xlu0 %3518
        %3520 = vrot.lane.b32.xlu0 %v3491, 32
        %v3521 = vpop.permute.xlu0 %3520
        %3522 = vrot.lane.b32.xlu0 %v3493, 32
        %v3523 = vpop.permute.xlu0 %3522
        %3524 = vrot.lane.b32.xlu0 %v3495, 32
        %v3525 = vpop.permute.xlu0 %3524
        %3526 = vrot.lane.b32.xlu0 %v3494, 32
        %v3527 = vpop.permute.xlu0 %3526
        %3544 = vst.msk [vmem:[#allocation3 + $0x8] sm:$0xff] %vm1683, %v3497
        %3545 = vst.msk [vmem:[#allocation3 + $0x20] sm:$0xff] %vm1683, %v3499
        %3546 = vst.msk [vmem:[#allocation3 + $0x38] sm:$0xff] %vm1683, %v3501
        %3547 = vst.msk [vmem:[#allocation3 + $0x50] sm:$0xff] %vm1683, %v3503
        %3548 = vst.msk [vmem:[#allocation3 + $0x68] sm:$0xff] %vm1683, %v3505
        %3549 = vst.msk [vmem:[#allocation3 + $0x80] sm:$0xff] %vm1683, %v3507
        %3550 = vst.msk [vmem:[#allocation3 + $0x98] sm:$0xff] %vm1683, %v3509
        %3551 = vst.msk [vmem:[#allocation3 + $0xb0] sm:$0xff] %vm1683, %v3511
        %3552 = vst.msk [vmem:[#allocation3 + $0xc8] sm:$0xff] %vm1683, %v3513
        %3553 = vst.msk [vmem:[#allocation3 + $0xe0] sm:$0xff] %vm1683, %v3515
        %3554 = vst.msk [vmem:[#allocation3 + $0xf8] sm:$0xff] %vm1683, %v3517
        %3555 = vst.msk [vmem:[#allocation3 + $0x110] sm:$0xff] %vm1683, %v3519
        %3556 = vst.msk [vmem:[#allocation3 + $0x128] sm:$0xff] %vm1683, %v3521
        %3557 = vst.msk [vmem:[#allocation3 + $0x140] sm:$0xff] %vm1683, %v3523
        %3558 = vst.msk [vmem:[#allocation3 + $0x158] sm:$0xff] %vm1683, %v3525
        %3559 = vst.msk [vmem:[#allocation3 + $0x170] sm:$0x7f] %vm2006, %v3527
        %v3560 = vrot.slane %v3063, 2
        %v3561 = vrot.slane %v3064, 2
        %v3562 = vsel %vm2008, %v3560, %v3561
        %v3563 = vrot.slane %v3065, 2
        %v3564 = vsel %vm2008, %v3561, %v3563
        %v3565 = vrot.slane %v3066, 2
        %v3566 = vsel %vm2008, %v3563, %v3565
        %v3567 = vrot.slane %v3067, 2
        %v3568 = vsel %vm2008, %v3565, %v3567
        %v3569 = vrot.slane %v3068, 2
        %v3570 = vsel %vm2008, %v3567, %v3569
        %v3571 = vrot.slane %v3069, 2
        %v3572 = vsel %vm2008, %v3569, %v3571
        %v3573 = vrot.slane %v3070, 2
        %v3574 = vsel %vm2008, %v3571, %v3573
        %v3575 = vrot.slane %v3071, 2
        %v3576 = vsel %vm2008, %v3573, %v3575
        %v3577 = vrot.slane %v3072, 2
        %v3578 = vsel %vm2008, %v3575, %v3577
        %v3579 = vrot.slane %v3073, 2
        %v3580 = vsel %vm2008, %v3577, %v3579
        %v3581 = vrot.slane %v3074, 2
        %v3582 = vsel %vm2008, %v3579, %v3581
        %v3583 = vrot.slane %v3075, 2
        %v3584 = vsel %vm2008, %v3581, %v3583
        %v3585 = vrot.slane %v3076, 2
        %v3586 = vsel %vm2008, %v3583, %v3585
        %v3587 = vrot.slane %v3077, 2
        %v3588 = vsel %vm2008, %v3585, %v3587
        %v3589 = vrot.slane %v3078, 2
        %v3590 = vsel %vm2008, %v3587, %v3589
        %3591 = vrot.lane.b32.xlu0 %v3562, 64
        %v3592 = vpop.permute.xlu0 %3591
        %3593 = vrot.lane.b32.xlu0 %v3564, 64
        %v3594 = vpop.permute.xlu0 %3593
        %3595 = vrot.lane.b32.xlu0 %v3566, 64
        %v3596 = vpop.permute.xlu0 %3595
        %3597 = vrot.lane.b32.xlu0 %v3568, 64
        %v3598 = vpop.permute.xlu0 %3597
        %3599 = vrot.lane.b32.xlu0 %v3570, 64
        %v3600 = vpop.permute.xlu0 %3599
        %3601 = vrot.lane.b32.xlu0 %v3572, 64
        %v3602 = vpop.permute.xlu0 %3601
        %3603 = vrot.lane.b32.xlu0 %v3574, 64
        %v3604 = vpop.permute.xlu0 %3603
        %3605 = vrot.lane.b32.xlu0 %v3576, 64
        %v3606 = vpop.permute.xlu0 %3605
        %3607 = vrot.lane.b32.xlu0 %v3578, 64
        %v3608 = vpop.permute.xlu0 %3607
        %3609 = vrot.lane.b32.xlu0 %v3580, 64
        %v3610 = vpop.permute.xlu0 %3609
        %3611 = vrot.lane.b32.xlu0 %v3582, 64
        %v3612 = vpop.permute.xlu0 %3611
        %3613 = vrot.lane.b32.xlu0 %v3584, 64
        %v3614 = vpop.permute.xlu0 %3613
        %3615 = vrot.lane.b32.xlu0 %v3586, 64
        %v3616 = vpop.permute.xlu0 %3615
        %3617 = vrot.lane.b32.xlu0 %v3588, 64
        %v3618 = vpop.permute.xlu0 %3617
        %3619 = vrot.lane.b32.xlu0 %v3590, 64
        %v3620 = vpop.permute.xlu0 %3619
        %3621 = vrot.lane.b32.xlu0 %v3589, 64
        %v3622 = vpop.permute.xlu0 %3621
        %3639 = vst.msk [vmem:[#allocation3 + $0x8] sm:$0xff] %vm1781, %v3592
        %3640 = vst.msk [vmem:[#allocation3 + $0x20] sm:$0xff] %vm1781, %v3594
        %3641 = vst.msk [vmem:[#allocation3 + $0x38] sm:$0xff] %vm1781, %v3596
        %3642 = vst.msk [vmem:[#allocation3 + $0x50] sm:$0xff] %vm1781, %v3598
        %3643 = vst.msk [vmem:[#allocation3 + $0x68] sm:$0xff] %vm1781, %v3600
        %3644 = vst.msk [vmem:[#allocation3 + $0x80] sm:$0xff] %vm1781, %v3602
        %3645 = vst.msk [vmem:[#allocation3 + $0x98] sm:$0xff] %vm1781, %v3604
        %3646 = vst.msk [vmem:[#allocation3 + $0xb0] sm:$0xff] %vm1781, %v3606
        %3647 = vst.msk [vmem:[#allocation3 + $0xc8] sm:$0xff] %vm1781, %v3608
        %3648 = vst.msk [vmem:[#allocation3 + $0xe0] sm:$0xff] %vm1781, %v3610
        %3649 = vst.msk [vmem:[#allocation3 + $0xf8] sm:$0xff] %vm1781, %v3612
        %3650 = vst.msk [vmem:[#allocation3 + $0x110] sm:$0xff] %vm1781, %v3614
        %3651 = vst.msk [vmem:[#allocation3 + $0x128] sm:$0xff] %vm1781, %v3616
        %3652 = vst.msk [vmem:[#allocation3 + $0x140] sm:$0xff] %vm1781, %v3618
        %3653 = vst.msk [vmem:[#allocation3 + $0x158] sm:$0xff] %vm1781, %v3620
        %3654 = vst.msk [vmem:[#allocation3 + $0x170] sm:$0x3f] %vm2103, %v3622
        %v3655 = vrot.slane %v3063, 3
        %v3656 = vrot.slane %v3064, 3
        %v3657 = vsel %vm2105, %v3655, %v3656
        %v3658 = vrot.slane %v3065, 3
        %v3659 = vsel %vm2105, %v3656, %v3658
        %v3660 = vrot.slane %v3066, 3
        %v3661 = vsel %vm2105, %v3658, %v3660
        %v3662 = vrot.slane %v3067, 3
        %v3663 = vsel %vm2105, %v3660, %v3662
        %v3664 = vrot.slane %v3068, 3
        %v3665 = vsel %vm2105, %v3662, %v3664
        %v3666 = vrot.slane %v3069, 3
        %v3667 = vsel %vm2105, %v3664, %v3666
        %v3668 = vrot.slane %v3070, 3
        %v3669 = vsel %vm2105, %v3666, %v3668
        %v3670 = vrot.slane %v3071, 3
        %v3671 = vsel %vm2105, %v3668, %v3670
        %v3672 = vrot.slane %v3072, 3
        %v3673 = vsel %vm2105, %v3670, %v3672
        %v3674 = vrot.slane %v3073, 3
        %v3675 = vsel %vm2105, %v3672, %v3674
        %v3676 = vrot.slane %v3074, 3
        %v3677 = vsel %vm2105, %v3674, %v3676
        %v3678 = vrot.slane %v3075, 3
        %v3679 = vsel %vm2105, %v3676, %v3678
        %v3680 = vrot.slane %v3076, 3
        %v3681 = vsel %vm2105, %v3678, %v3680
        %v3682 = vrot.slane %v3077, 3
        %v3683 = vsel %vm2105, %v3680, %v3682
        %v3684 = vrot.slane %v3078, 3
        %v3685 = vsel %vm2105, %v3682, %v3684
        %3686 = vrot.lane.b32.xlu0 %v3657, 96
        %v3687 = vpop.permute.xlu0 %3686
        %3688 = vrot.lane.b32.xlu0 %v3659, 96
        %v3689 = vpop.permute.xlu0 %3688
        %3690 = vrot.lane.b32.xlu0 %v3661, 96
        %v3691 = vpop.permute.xlu0 %3690
        %3692 = vrot.lane.b32.xlu0 %v3663, 96
        %v3693 = vpop.permute.xlu0 %3692
        %3694 = vrot.lane.b32.xlu0 %v3665, 96
        %v3695 = vpop.permute.xlu0 %3694
        %3696 = vrot.lane.b32.xlu0 %v3667, 96
        %v3697 = vpop.permute.xlu0 %3696
        %3698 = vrot.lane.b32.xlu0 %v3669, 96
        %v3699 = vpop.permute.xlu0 %3698
        %3700 = vrot.lane.b32.xlu0 %v3671, 96
        %v3701 = vpop.permute.xlu0 %3700
        %3702 = vrot.lane.b32.xlu0 %v3673, 96
        %v3703 = vpop.permute.xlu0 %3702
        %3704 = vrot.lane.b32.xlu0 %v3675, 96
        %v3705 = vpop.permute.xlu0 %3704
        %3706 = vrot.lane.b32.xlu0 %v3677, 96
        %v3707 = vpop.permute.xlu0 %3706
        %3708 = vrot.lane.b32.xlu0 %v3679, 96
        %v3709 = vpop.permute.xlu0 %3708
        %3710 = vrot.lane.b32.xlu0 %v3681, 96
        %v3711 = vpop.permute.xlu0 %3710
        %3712 = vrot.lane.b32.xlu0 %v3683, 96
        %v3713 = vpop.permute.xlu0 %3712
        %3714 = vrot.lane.b32.xlu0 %v3685, 96
        %v3715 = vpop.permute.xlu0 %3714
        %3716 = vrot.lane.b32.xlu0 %v3684, 96
        %v3717 = vpop.permute.xlu0 %3716
        %3734 = vst.msk [vmem:[#allocation3 + $0x8] sm:$0xff] %vm1879, %v3687
        %3735 = vst.msk [vmem:[#allocation3 + $0x20] sm:$0xff] %vm1879, %v3689
        %3736 = vst.msk [vmem:[#allocation3 + $0x38] sm:$0xff] %vm1879, %v3691
        %3737 = vst.msk [vmem:[#allocation3 + $0x50] sm:$0xff] %vm1879, %v3693
        %3738 = vst.msk [vmem:[#allocation3 + $0x68] sm:$0xff] %vm1879, %v3695
        %3739 = vst.msk [vmem:[#allocation3 + $0x80] sm:$0xff] %vm1879, %v3697
        %3740 = vst.msk [vmem:[#allocation3 + $0x98] sm:$0xff] %vm1879, %v3699
        %3741 = vst.msk [vmem:[#allocation3 + $0xb0] sm:$0xff] %vm1879, %v3701
        %3742 = vst.msk [vmem:[#allocation3 + $0xc8] sm:$0xff] %vm1879, %v3703
        %3743 = vst.msk [vmem:[#allocation3 + $0xe0] sm:$0xff] %vm1879, %v3705
        %3744 = vst.msk [vmem:[#allocation3 + $0xf8] sm:$0xff] %vm1879, %v3707
        %3745 = vst.msk [vmem:[#allocation3 + $0x110] sm:$0xff] %vm1879, %v3709
        %3746 = vst.msk [vmem:[#allocation3 + $0x128] sm:$0xff] %vm1879, %v3711
        %3747 = vst.msk [vmem:[#allocation3 + $0x140] sm:$0xff] %vm1879, %v3713
        %3748 = vst.msk [vmem:[#allocation3 + $0x158] sm:$0xff] %vm1879, %v3715
        %3749 = vst.msk [vmem:[#allocation3 + $0x170] sm:$0x1f] %vm2200, %v3717
        %3751 = vst.msk [vmem:[#allocation3 + $0x10] sm:$0xff] %vm887, %v3103
        %3752 = vst.msk [vmem:[#allocation3 + $0x28] sm:$0xff] %vm887, %v3105
        %3753 = vst.msk [vmem:[#allocation3 + $0x40] sm:$0xff] %vm887, %v3107
        %3754 = vst.msk [vmem:[#allocation3 + $0x58] sm:$0xff] %vm887, %v3109
        %3755 = vst.msk [vmem:[#allocation3 + $0x70] sm:$0xff] %vm887, %v3111
        %3756 = vst.msk [vmem:[#allocation3 + $0x88] sm:$0xff] %vm887, %v3113
        %3757 = vst.msk [vmem:[#allocation3 + $0xa0] sm:$0xff] %vm887, %v3115
        %3758 = vst.msk [vmem:[#allocation3 + $0xb8] sm:$0xff] %vm887, %v3117
        %3759 = vst.msk [vmem:[#allocation3 + $0xd0] sm:$0xff] %vm887, %v3119
        %3760 = vst.msk [vmem:[#allocation3 + $0xe8] sm:$0xff] %vm887, %v3121
        %3761 = vst.msk [vmem:[#allocation3 + $0x100] sm:$0xff] %vm887, %v3123
        %3762 = vst.msk [vmem:[#allocation3 + $0x118] sm:$0xff] %vm887, %v3125
        %3763 = vst.msk [vmem:[#allocation3 + $0x130] sm:$0xff] %vm887, %v3127
        %3764 = vst.msk [vmem:[#allocation3 + $0x148] sm:$0xff] %vm887, %v3129
        %3765 = vst.msk [vmem:[#allocation3 + $0x160] sm:$0xff] %vm887, %v3131
        %3766 = vst.msk [vmem:[#allocation3 + $0x178] sm:$0xf] %vm1515, %v3130
        %v3767 = vld [vmem:[#allocation3] sm:$0xff]
        %v3768 = vld [vmem:[#allocation3 + $0x8] sm:$0xff]
        %v3769 = vld [vmem:[#allocation3 + $0x10] sm:$0xff]
        %v3770 = vld [vmem:[#allocation3 + $0x18] sm:$0xff]
        %v3771 = vld [vmem:[#allocation3 + $0x20] sm:$0xff]
        %v3772 = vld [vmem:[#allocation3 + $0x28] sm:$0xff]
        %v3773 = vld [vmem:[#allocation3 + $0x30] sm:$0xff]
        %v3774 = vld [vmem:[#allocation3 + $0x38] sm:$0xff]
        %v3775 = vld [vmem:[#allocation3 + $0x40] sm:$0xff]
        %v3776 = vld [vmem:[#allocation3 + $0x48] sm:$0xff]
        %v3777 = vld [vmem:[#allocation3 + $0x50] sm:$0xff]
        %v3778 = vld [vmem:[#allocation3 + $0x58] sm:$0xff]
        %v3779 = vld [vmem:[#allocation3 + $0x60] sm:$0xff]
        %v3780 = vld [vmem:[#allocation3 + $0x68] sm:$0xff]
        %v3781 = vld [vmem:[#allocation3 + $0x70] sm:$0xff]
        %v3782 = vld [vmem:[#allocation3 + $0x78] sm:$0xff]
        %v3783 = vld [vmem:[#allocation3 + $0x80] sm:$0xff]
        %v3784 = vld [vmem:[#allocation3 + $0x88] sm:$0xff]
        %v3785 = vld [vmem:[#allocation3 + $0x90] sm:$0xff]
        %v3786 = vld [vmem:[#allocation3 + $0x98] sm:$0xff]
        %v3787 = vld [vmem:[#allocation3 + $0xa0] sm:$0xff]
        %v3788 = vld [vmem:[#allocation3 + $0xa8] sm:$0xff]
        %v3789 = vld [vmem:[#allocation3 + $0xb0] sm:$0xff]
        %v3790 = vld [vmem:[#allocation3 + $0xb8] sm:$0xff]
        %v3791 = vld [vmem:[#allocation3 + $0xc0] sm:$0xff]
        %v3792 = vld [vmem:[#allocation3 + $0xc8] sm:$0xff]
        %v3793 = vld [vmem:[#allocation3 + $0xd0] sm:$0xff]
        %v3794 = vld [vmem:[#allocation3 + $0xd8] sm:$0xff]
        %v3795 = vld [vmem:[#allocation3 + $0xe0] sm:$0xff]
        %v3796 = vld [vmem:[#allocation3 + $0xe8] sm:$0xff]
        %v3797 = vld [vmem:[#allocation3 + $0xf0] sm:$0xff]
        %v3798 = vld [vmem:[#allocation3 + $0xf8] sm:$0xff]
        %v3799 = vld [vmem:[#allocation3 + $0x100] sm:$0xff]
        %v3800 = vld [vmem:[#allocation3 + $0x108] sm:$0xff]
        %v3801 = vld [vmem:[#allocation3 + $0x110] sm:$0xff]
        %v3802 = vld [vmem:[#allocation3 + $0x118] sm:$0xff]
        %v3803 = vld [vmem:[#allocation3 + $0x120] sm:$0xff]
        %v3804 = vld [vmem:[#allocation3 + $0x128] sm:$0xff]
        %v3805 = vld [vmem:[#allocation3 + $0x130] sm:$0xff]
        %v3806 = vld [vmem:[#allocation3 + $0x138] sm:$0xff]
        %v3807 = vld [vmem:[#allocation3 + $0x140] sm:$0xff]
        %v3808 = vld [vmem:[#allocation3 + $0x148] sm:$0xff]
        %v3809 = vld [vmem:[#allocation3 + $0x150] sm:$0xff]
        %v3810 = vld [vmem:[#allocation3 + $0x158] sm:$0xff]
        %v3811 = vld [vmem:[#allocation3 + $0x160] sm:$0xff]
        %v3812 = vld [vmem:[#allocation3 + $0x168] sm:$0xff]
        %v3813 = vld [vmem:[#allocation3 + $0x170] sm:$0xff]
        %v3814 = vld [vmem:[#allocation3 + $0x178] sm:$0xff]
        %s3815 = scalar_lea.vmem %s1, 864
        %v3816 = vld [vmem:[%s3815] sm:$0xff]
        %v3817 = vld [vmem:[%s3815 + $0x8] sm:$0xff]
        %v3818 = vld [vmem:[%s3815 + $0x10] sm:$0xff]
        %v3819 = vld [vmem:[%s3815 + $0x18] sm:$0xff]
        %v3820 = vld [vmem:[%s3815 + $0x20] sm:$0xff]
        %v3821 = vld [vmem:[%s3815 + $0x28] sm:$0xff]
        %v3822 = vld [vmem:[%s3815 + $0x30] sm:$0xff]
        %v3823 = vld [vmem:[%s3815 + $0x38] sm:$0xff]
        %v3824 = vld [vmem:[%s3815 + $0x40] sm:$0xff]
        %v3825 = vld [vmem:[%s3815 + $0x48] sm:$0xff]
        %v3826 = vld [vmem:[%s3815 + $0x50] sm:$0xff]
        %v3827 = vld [vmem:[%s3815 + $0x58] sm:$0xff]
        %v3828 = vld [vmem:[%s3815 + $0x60] sm:$0xff]
        %v3829 = vld [vmem:[%s3815 + $0x68] sm:$0xff]
        %v3830 = vld [vmem:[%s3815 + $0x70] sm:$0xff]
        %v3831 = vld [vmem:[%s3815 + $0x78] sm:$0xff]
        %v3832 = vld [vmem:[%s3815 + $0x80] sm:$0xff]
        %v3833 = vld [vmem:[%s3815 + $0x88] sm:$0xff]
        %v3834 = vld [vmem:[%s3815 + $0x90] sm:$0xff]
        %v3835 = vld [vmem:[%s3815 + $0x98] sm:$0xff]
        %v3836 = vld [vmem:[%s3815 + $0xa0] sm:$0xff]
        %v3837 = vld [vmem:[%s3815 + $0xa8] sm:$0xff]
        %v3838 = vld [vmem:[%s3815 + $0xb0] sm:$0xff]
        %v3839 = vld [vmem:[%s3815 + $0xb8] sm:$0xff]
        %v3840 = vld [vmem:[%s3815 + $0xc0] sm:$0xff]
        %v3841 = vld [vmem:[%s3815 + $0xc8] sm:$0xff]
        %v3842 = vld [vmem:[%s3815 + $0xd0] sm:$0xff]
        %v3843 = vld [vmem:[%s3815 + $0xd8] sm:$0xff]
        %v3844 = vld [vmem:[%s3815 + $0xe0] sm:$0xff]
        %v3845 = vld [vmem:[%s3815 + $0xe8] sm:$0xff]
        %v3846 = vld [vmem:[%s3815 + $0xf0] sm:$0xff]
        %v3847 = vld [vmem:[%s3815 + $0xf8] sm:$0xff]
        %v3848 = vld [vmem:[%s3815 + $0x100] sm:$0xff]
        %v3849 = vld [vmem:[%s3815 + $0x108] sm:$0xff]
        %v3850 = vld [vmem:[%s3815 + $0x110] sm:$0xff]
        %v3851 = vld [vmem:[%s3815 + $0x118] sm:$0xff]
        %v3852 = vld [vmem:[%s2 + $0x3] sm:$0x1]
        %v3853 = vlaneseq
        %v3854 = vshrl.u32 %v3853, 7
        %v3855 = vsub.s32 0, %v3854
        %v3856 = vrot.slane %v3852, %v3855
        %v3858 = vsel %vm887, %v3769, 0
        %v3861 = vsel %vm887, %v3772, 0
        %v3864 = vsel %vm887, %v3775, 0
        %v3867 = vsel %vm887, %v3778, 0
        %v3870 = vsel %vm887, %v3781, 0
        %v3873 = vsel %vm887, %v3784, 0
        %v3876 = vsel %vm887, %v3787, 0
        %v3879 = vsel %vm887, %v3790, 0
        %v3882 = vsel %vm887, %v3793, 0
        %v3885 = vsel %vm887, %v3796, 0
        %v3888 = vsel %vm887, %v3799, 0
        %v3891 = vsel %vm887, %v3802, 0
        %v3894 = vsel %vm887, %v3805, 0
        %v3897 = vsel %vm887, %v3808, 0
        %v3900 = vsel %vm887, %v3811, 0
        %v3903 = vsel %vm887, %v3814, 0
        %3905 = vmatprep.subr.mxu0 0.0
        %3906 = vmatpush1.msra.mxu0 %v3816
        %3907 = vmatprep.subr.mxu0 0.0
        %3908 = vmatpush1.msra.mxu0 %v3817
        %3909 = vmatprep.subr.mxu0 0.0
        %3910 = vmatpush1.msra.mxu0 %v3818
        %3911 = vmatprep.subr.mxu0 0.0
        %3912 = vmatpush1.msra.mxu0 %v3819
        %3913 = vmatprep.subr.mxu0 0.0
        %3914 = vmatpush1.msra.mxu0 %v3820
        %3915 = vmatprep.subr.mxu0 0.0
        %3916 = vmatpush1.msra.mxu0 %v3821
        %3917 = vmatprep.subr.mxu0 0.0
        %3918 = vmatpush1.msra.mxu0 %v3822
        %3919 = vmatprep.subr.mxu0 0.0
        %3920 = vmatpush1.msra.mxu0 %v3823
        %3921 = vmatprep.subr.mxu0 0.0
        %3922 = vmatpush1.msra.mxu0 %v3824
        %3923 = vmatprep.subr.mxu0 0.0
        %3924 = vmatpush1.msra.mxu0 %v3825
        %3925 = vmatprep.subr.mxu0 0.0
        %3926 = vmatpush1.msra.mxu0 %v3826
        %3927 = vmatprep.subr.mxu0 0.0
        %3928 = vmatpush1.msra.mxu0 %v3827
        %3929 = vmatprep.subr.mxu0 0.0
        %3930 = vmatpush1.msra.mxu0 %v3828
        %3931 = vmatprep.subr.mxu0 0.0
        %3932 = vmatpush1.msra.mxu0 %v3829
        %3933 = vmatprep.subr.mxu0 0.0
        %3934 = vmatpush1.msra.mxu0 %v3830
        %3935 = vmatprep.subr.mxu0 0.0
        %3936 = vmatpush1.msra.mxu0 %v3831
        %3937 = vmatprep.subr.mxu0 0.0
        %3938 = vmatpush1.msra.mxu0 %v3832
        %3939 = vmatprep.subr.mxu0 0.0
        %3940 = vmatpush1.msra.mxu0 %v3833
        %3941 = vmatprep.subr.mxu0 0.0
        %3942 = vmatpush1.msra.mxu0 %v3834
        %3943 = vmatprep.subr.mxu0 0.0
        %3944 = vmatpush1.msra.mxu0 %v3835
        %3945 = vmatprep.subr.mxu0 0.0
        %3946 = vmatpush1.msra.mxu0 %v3836
        %3947 = vmatprep.subr.mxu0 0.0
        %3948 = vmatpush1.msra.mxu0 %v3837
        %3949 = vmatprep.subr.mxu0 0.0
        %3950 = vmatpush1.msra.mxu0 %v3838
        %3951 = vmatprep.subr.mxu0 0.0
        %3952 = vmatpush1.msra.mxu0 %v3839
        %3953 = vmatprep.subr.mxu0 0.0
        %3954 = vmatpush1.msra.mxu0 %v3840
        %3955 = vmatprep.subr.mxu0 0.0
        %3956 = vmatpush1.msra.mxu0 %v3841
        %3957 = vmatprep.subr.mxu0 0.0
        %3958 = vmatpush1.msra.mxu0 %v3842
        %3959 = vmatprep.subr.mxu0 0.0
        %3960 = vmatpush1.msra.mxu0 %v3843
        %3961 = vmatprep.subr.mxu0 0.0
        %3962 = vmatpush1.msra.mxu0 %v3844
        %3963 = vmatprep.subr.mxu0 0.0
        %3964 = vmatpush1.msra.mxu0 %v3845
        %3965 = vmatprep.subr.mxu0 0.0
        %3966 = vmatpush1.msra.mxu0 %v3846
        %3967 = vmatprep.subr.mxu0 0.0
        %3968 = vmatpush1.msra.mxu0 %v3847
        %3969 = vmatprep.mubr.f32.mxu0 %v3768
        %3970 = vmatmul.mubr.f32.gmra.mrb[0].mxu0 %v3767
        %v3971 = vpop.f32.mrb[0].mxu0
        %v3972 = vadd.f32 %v3856, %v3971
        %v3973 = vpop.f32.mrb[0].mxu0
        %3974 = vmatprep.mubr.f32.mxu0 %v3771
        %3975 = vmatmul.mubr.f32.gmra.mrb[0].mxu0 %v3770
        %v3976 = vpop.f32.mrb[0].mxu0
        %v3977 = vadd.f32 %v3856, %v3976
        %v3978 = vpop.f32.mrb[0].mxu0
        %3979 = vmatprep.mubr.f32.mxu0 %v3774
        %3980 = vmatmul.mubr.f32.gmra.mrb[0].mxu0 %v3773
        %v3981 = vpop.f32.mrb[0].mxu0
        %v3982 = vadd.f32 %v3856, %v3981
        %v3983 = vpop.f32.mrb[0].mxu0
        %3984 = vmatprep.mubr.f32.mxu0 %v3777
        %3985 = vmatmul.mubr.f32.gmra.mrb[0].mxu0 %v3776
        %v3986 = vpop.f32.mrb[0].mxu0
        %v3987 = vadd.f32 %v3856, %v3986
        %v3988 = vpop.f32.mrb[0].mxu0
        %3989 = vmatprep.mubr.f32.mxu0 %v3780
        %3990 = vmatmul.mubr.f32.gmra.mrb[0].mxu0 %v3779
        %v3991 = vpop.f32.mrb[0].mxu0
        %v3992 = vadd.f32 %v3856, %v3991
        %v3993 = vpop.f32.mrb[0].mxu0
        %3994 = vmatprep.mubr.f32.mxu0 %v3783
        %3995 = vmatmul.mubr.f32.gmra.mrb[0].mxu0 %v3782
        %v3996 = vpop.f32.mrb[0].mxu0
        %v3997 = vadd.f32 %v3856, %v3996
        %v3998 = vpop.f32.mrb[0].mxu0
        %3999 = vmatprep.mubr.f32.mxu0 %v3786
        %4000 = vmatmul.mubr.f32.gmra.mrb[0].mxu0 %v3785
        %v4001 = vpop.f32.mrb[0].mxu0
        %v4002 = vadd.f32 %v3856, %v4001
        %v4003 = vpop.f32.mrb[0].mxu0
        %4004 = vmatprep.mubr.f32.mxu0 %v3789
        %4005 = vmatmul.mubr.f32.gmra.mrb[0].mxu0 %v3788
        %v4006 = vpop.f32.mrb[0].mxu0
        %v4007 = vadd.f32 %v3856, %v4006
        %v4008 = vpop.f32.mrb[0].mxu0
        %4009 = vmatprep.mubr.f32.mxu0 %v3792
        %4010 = vmatmul.mubr.f32.gmra.mrb[0].mxu0 %v3791
        %v4011 = vpop.f32.mrb[0].mxu0
        %v4012 = vadd.f32 %v3856, %v4011
        %v4013 = vpop.f32.mrb[0].mxu0
        %4014 = vmatprep.mubr.f32.mxu0 %v3795
        %4015 = vmatmul.mubr.f32.gmra.mrb[0].mxu0 %v3794
        %v4016 = vpop.f32.mrb[0].mxu0
        %v4017 = vadd.f32 %v3856, %v4016
        %v4018 = vpop.f32.mrb[0].mxu0
        %4019 = vmatprep.mubr.f32.mxu0 %v3798
        %4020 = vmatmul.mubr.f32.gmra.mrb[0].mxu0 %v3797
        %v4021 = vpop.f32.mrb[0].mxu0
        %v4022 = vadd.f32 %v3856, %v4021
        %v4023 = vpop.f32.mrb[0].mxu0
        %4024 = vmatprep.mubr.f32.mxu0 %v3801
        %4025 = vmatmul.mubr.f32.gmra.mrb[0].mxu0 %v3800
        %v4026 = vpop.f32.mrb[0].mxu0
        %v4027 = vadd.f32 %v3856, %v4026
        %v4028 = vpop.f32.mrb[0].mxu0
        %4029 = vmatprep.mubr.f32.mxu0 %v3804
        %4030 = vmatmul.mubr.f32.gmra.mrb[0].mxu0 %v3803
        %v4031 = vpop.f32.mrb[0].mxu0
        %v4032 = vadd.f32 %v3856, %v4031
        %v4033 = vpop.f32.mrb[0].mxu0
        %4034 = vmatprep.mubr.f32.mxu0 %v3807
        %4035 = vmatmul.mubr.f32.gmra.mrb[0].mxu0 %v3806
        %v4036 = vpop.f32.mrb[0].mxu0
        %v4037 = vadd.f32 %v3856, %v4036
        %v4038 = vpop.f32.mrb[0].mxu0
        %4039 = vmatprep.mubr.f32.mxu0 %v3810
        %4040 = vmatmul.mubr.f32.gmra.mrb[0].mxu0 %v3809
        %v4041 = vpop.f32.mrb[0].mxu0
        %v4042 = vadd.f32 %v3856, %v4041
        %v4043 = vpop.f32.mrb[0].mxu0
        %4044 = vmatprep.mubr.f32.mxu0 %v3813
        %4045 = vmatmul.mubr.f32.gmra.mrb[0].mxu0 %v3812
        %v4046 = vpop.f32.mrb[0].mxu0
        %v4047 = vadd.f32 %v3856, %v4046
        %v4048 = vpop.f32.mrb[0].mxu0
        %4049 = vdwg.mxu0
        %4050 = vmatprep.subr.mxu0 0.0
        %4051 = vmatpush1.msra.mxu0 %v3848
        %4052 = vmatprep.subr.mxu0 0.0
        %4053 = vmatpush1.msra.mxu0 %v3849
        %4054 = vmatprep.subr.mxu0 0.0
        %4055 = vmatpush1.msra.mxu0 %v3850
        %4056 = vmatprep.subr.mxu0 0.0
        %4057 = vmatpush1.msra.mxu0 %v3851
        %4058 = vmatprep.subr.mxu0 0.0
        %4059 = vmatpush1.msra.mxu0 0.0
        %4060 = vmatprep.subr.mxu0 0.0
        %4061 = vmatpush1.msra.mxu0 0.0
        %4062 = vmatprep.subr.mxu0 0.0
        %4063 = vmatpush1.msra.mxu0 0.0
        %4064 = vmatprep.subr.mxu0 0.0
        %4065 = vmatpush1.msra.mxu0 0.0
        %4066 = vmatprep.subr.mxu0 0.0
        %4067 = vmatpush1.msra.mxu0 0.0
        %4068 = vmatprep.subr.mxu0 0.0
        %4069 = vmatpush1.msra.mxu0 0.0
        %4070 = vmatprep.subr.mxu0 0.0
        %4071 = vmatpush1.msra.mxu0 0.0
        %4072 = vmatprep.subr.mxu0 0.0
        %4073 = vmatpush1.msra.mxu0 0.0
        %4074 = vmatprep.subr.mxu0 0.0
        %4075 = vmatpush1.msra.mxu0 0.0
        %4076 = vmatprep.subr.mxu0 0.0
        %4077 = vmatpush1.msra.mxu0 0.0
        %4078 = vmatprep.subr.mxu0 0.0
        %4079 = vmatpush1.msra.mxu0 0.0
        %4080 = vmatprep.subr.mxu0 0.0
        %4081 = vmatpush1.msra.mxu0 0.0
        %4082 = vmatprep.subr.mxu0 0.0
        %4083 = vmatpush1.msra.mxu0 0.0
        %4084 = vmatprep.subr.mxu0 0.0
        %4085 = vmatpush1.msra.mxu0 0.0
        %4086 = vmatprep.subr.mxu0 0.0
        %4087 = vmatpush1.msra.mxu0 0.0
        %4088 = vmatprep.subr.mxu0 0.0
        %4089 = vmatpush1.msra.mxu0 0.0
        %4090 = vmatprep.subr.mxu0 0.0
        %4091 = vmatpush1.msra.mxu0 0.0
        %4092 = vmatprep.subr.mxu0 0.0
        %4093 = vmatpush1.msra.mxu0 0.0
        %4094 = vmatprep.subr.mxu0 0.0
        %4095 = vmatpush1.msra.mxu0 0.0
        %4096 = vmatprep.subr.mxu0 0.0
        %4097 = vmatpush1.msra.mxu0 0.0
        %4098 = vmatprep.subr.mxu0 0.0
        %4099 = vmatpush1.msra.mxu0 0.0
        %4100 = vmatprep.subr.mxu0 0.0
        %4101 = vmatpush1.msra.mxu0 0.0
        %4102 = vmatprep.subr.mxu0 0.0
        %4103 = vmatpush1.msra.mxu0 0.0
        %4104 = vmatprep.subr.mxu0 0.0
        %4105 = vmatpush1.msra.mxu0 0.0
        %4106 = vmatprep.subr.mxu0 0.0
        %4107 = vmatpush1.msra.mxu0 0.0
        %4108 = vmatprep.subr.mxu0 0.0
        %4109 = vmatpush1.msra.mxu0 0.0
        %4110 = vmatprep.subr.mxu0 0.0
        %4111 = vmatpush1.msra.mxu0 0.0
        %4112 = vmatprep.subr.mxu0 0.0
        %4113 = vmatpush1.msra.mxu0 0.0
        %4114 = vmatprep.mubr.f32.mxu0 0.0
        %4115 = vmatmul.mubr.f32.gmra.mrb[0].mxu0 %v3858
        %v4116 = vpop.f32.mrb[0].mxu0
        %v4117 = vadd.f32 %v3972, %v4116
        %v4118 = vpop.f32.mrb[0].mxu0
        %4119 = vmatprep.mubr.f32.mxu0 0.0
        %4120 = vmatmul.mubr.f32.gmra.mrb[0].mxu0 %v3861
        %v4121 = vpop.f32.mrb[0].mxu0
        %v4122 = vadd.f32 %v3977, %v4121
        %v4123 = vpop.f32.mrb[0].mxu0
        %4124 = vmatprep.mubr.f32.mxu0 0.0
        %4125 = vmatmul.mubr.f32.gmra.mrb[0].mxu0 %v3864
        %v4126 = vpop.f32.mrb[0].mxu0
        %v4127 = vadd.f32 %v3982, %v4126
        %v4128 = vpop.f32.mrb[0].mxu0
        %4129 = vmatprep.mubr.f32.mxu0 0.0
        %4130 = vmatmul.mubr.f32.gmra.mrb[0].mxu0 %v3867
        %v4131 = vpop.f32.mrb[0].mxu0
        %v4132 = vadd.f32 %v3987, %v4131
        %v4133 = vpop.f32.mrb[0].mxu0
        %4134 = vmatprep.mubr.f32.mxu0 0.0
        %4135 = vmatmul.mubr.f32.gmra.mrb[0].mxu0 %v3870
        %v4136 = vpop.f32.mrb[0].mxu0
        %v4137 = vadd.f32 %v3992, %v4136
        %v4138 = vpop.f32.mrb[0].mxu0
        %4139 = vmatprep.mubr.f32.mxu0 0.0
        %4140 = vmatmul.mubr.f32.gmra.mrb[0].mxu0 %v3873
        %v4141 = vpop.f32.mrb[0].mxu0
        %v4142 = vadd.f32 %v3997, %v4141
        %v4143 = vpop.f32.mrb[0].mxu0
        %4144 = vmatprep.mubr.f32.mxu0 0.0
        %4145 = vmatmul.mubr.f32.gmra.mrb[0].mxu0 %v3876
        %v4146 = vpop.f32.mrb[0].mxu0
        %v4147 = vadd.f32 %v4002, %v4146
        %v4148 = vpop.f32.mrb[0].mxu0
        %4149 = vmatprep.mubr.f32.mxu0 0.0
        %4150 = vmatmul.mubr.f32.gmra.mrb[0].mxu0 %v3879
        %v4151 = vpop.f32.mrb[0].mxu0
        %v4152 = vadd.f32 %v4007, %v4151
        %v4153 = vpop.f32.mrb[0].mxu0
        %4154 = vmatprep.mubr.f32.mxu0 0.0
        %4155 = vmatmul.mubr.f32.gmra.mrb[0].mxu0 %v3882
        %v4156 = vpop.f32.mrb[0].mxu0
        %v4157 = vadd.f32 %v4012, %v4156
        %v4158 = vpop.f32.mrb[0].mxu0
        %4159 = vmatprep.mubr.f32.mxu0 0.0
        %4160 = vmatmul.mubr.f32.gmra.mrb[0].mxu0 %v3885
        %v4161 = vpop.f32.mrb[0].mxu0
        %v4162 = vadd.f32 %v4017, %v4161
        %v4163 = vpop.f32.mrb[0].mxu0
        %4164 = vmatprep.mubr.f32.mxu0 0.0
        %4165 = vmatmul.mubr.f32.gmra.mrb[0].mxu0 %v3888
        %v4166 = vpop.f32.mrb[0].mxu0
        %v4167 = vadd.f32 %v4022, %v4166
        %v4168 = vpop.f32.mrb[0].mxu0
        %4169 = vmatprep.mubr.f32.mxu0 0.0
        %4170 = vmatmul.mubr.f32.gmra.mrb[0].mxu0 %v3891
        %v4171 = vpop.f32.mrb[0].mxu0
        %v4172 = vadd.f32 %v4027, %v4171
        %v4173 = vpop.f32.mrb[0].mxu0
        %4174 = vmatprep.mubr.f32.mxu0 0.0
        %4175 = vmatmul.mubr.f32.gmra.mrb[0].mxu0 %v3894
        %v4176 = vpop.f32.mrb[0].mxu0
        %v4177 = vadd.f32 %v4032, %v4176
        %v4178 = vpop.f32.mrb[0].mxu0
        %4179 = vmatprep.mubr.f32.mxu0 0.0
        %4180 = vmatmul.mubr.f32.gmra.mrb[0].mxu0 %v3897
        %v4181 = vpop.f32.mrb[0].mxu0
        %v4182 = vadd.f32 %v4037, %v4181
        %v4183 = vpop.f32.mrb[0].mxu0
        %4184 = vmatprep.mubr.f32.mxu0 0.0
        %4185 = vmatmul.mubr.f32.gmra.mrb[0].mxu0 %v3900
        %v4186 = vpop.f32.mrb[0].mxu0
        %v4187 = vadd.f32 %v4042, %v4186
        %v4188 = vpop.f32.mrb[0].mxu0
        %4189 = vmatprep.mubr.f32.mxu0 0.0
        %4190 = vmatmul.mubr.f32.gmra.mrb[0].mxu0 %v3903
        %v4191 = vpop.f32.mrb[0].mxu0
        %v4192 = vadd.f32 %v4047, %v4191
        %v4193 = vpop.f32.mrb[0].mxu0
        %4194 = vdwg.mxu0
        %v4195 = vmul.f32 %v4117, 0.5
        %v4196 = vmul.f32 %v4122, 0.5
        %v4197 = vmul.f32 %v4127, 0.5
        %v4198 = vmul.f32 %v4132, 0.5
        %v4199 = vmul.f32 %v4137, 0.5
        %v4200 = vmul.f32 %v4142, 0.5
        %v4201 = vmul.f32 %v4147, 0.5
        %v4202 = vmul.f32 %v4152, 0.5
        %v4203 = vmul.f32 %v4157, 0.5
        %v4204 = vmul.f32 %v4162, 0.5
        %v4205 = vmul.f32 %v4167, 0.5
        %v4206 = vmul.f32 %v4172, 0.5
        %v4207 = vmul.f32 %v4177, 0.5
        %v4208 = vmul.f32 %v4182, 0.5
        %v4209 = vmul.f32 %v4187, 0.5
        %v4210 = vmul.f32 %v4192, 0.5
        %v4211 = vmul.f32 %v4117, 0.70710677
        %v4212 = vmul.f32 %v4122, 0.70710677
        %v4213 = vmul.f32 %v4127, 0.70710677
        %v4214 = vmul.f32 %v4132, 0.70710677
        %v4215 = vmul.f32 %v4137, 0.70710677
        %v4216 = vmul.f32 %v4142, 0.70710677
        %v4217 = vmul.f32 %v4147, 0.70710677
        %v4218 = vmul.f32 %v4152, 0.70710677
        %v4219 = vmul.f32 %v4157, 0.70710677
        %v4220 = vmul.f32 %v4162, 0.70710677
        %v4221 = vmul.f32 %v4167, 0.70710677
        %v4222 = vmul.f32 %v4172, 0.70710677
        %v4223 = vmul.f32 %v4177, 0.70710677
        %v4224 = vmul.f32 %v4182, 0.70710677
        %v4225 = vmul.f32 %v4187, 0.70710677
        %v4226 = vmul.f32 %v4192, 0.70710677
        %v4227 = vand.u32 2147483647, %v4211
        %v4228 = vand.u32 2147483647, %v4212
        %v4229 = vand.u32 2147483647, %v4213
        %v4230 = vand.u32 2147483647, %v4214
        %v4231 = vand.u32 2147483647, %v4215
        %v4232 = vand.u32 2147483647, %v4216
        %v4233 = vand.u32 2147483647, %v4217
        %v4234 = vand.u32 2147483647, %v4218
        %v4235 = vand.u32 2147483647, %v4219
        %v4236 = vand.u32 2147483647, %v4220
        %v4237 = vand.u32 2147483647, %v4221
        %v4238 = vand.u32 2147483647, %v4222
        %v4239 = vand.u32 2147483647, %v4223
        %v4240 = vand.u32 2147483647, %v4224
        %v4241 = vand.u32 2147483647, %v4225
        %v4242 = vand.u32 2147483647, %v4226
        %v4243 = vmul.f32 %v4227, 0.3275911
        %v4244 = vmul.f32 %v4228, 0.3275911
        %v4245 = vmul.f32 %v4229, 0.3275911
        %v4246 = vmul.f32 %v4230, 0.3275911
        %v4247 = vmul.f32 %v4231, 0.3275911
        %v4248 = vmul.f32 %v4232, 0.3275911
        %v4249 = vmul.f32 %v4233, 0.3275911
        %v4250 = vmul.f32 %v4234, 0.3275911
        %v4251 = vmul.f32 %v4235, 0.3275911
        %v4252 = vmul.f32 %v4236, 0.3275911
        %v4253 = vmul.f32 %v4237, 0.3275911
        %v4254 = vmul.f32 %v4238, 0.3275911
        %v4255 = vmul.f32 %v4239, 0.3275911
        %v4256 = vmul.f32 %v4240, 0.3275911
        %v4257 = vmul.f32 %v4241, 0.3275911
        %v4258 = vmul.f32 %v4242, 0.3275911
        %v4259 = vadd.f32 %v4243, 1.0
        %v4260 = vadd.f32 %v4244, 1.0
        %v4261 = vadd.f32 %v4245, 1.0
        %v4262 = vadd.f32 %v4246, 1.0
        %v4263 = vadd.f32 %v4247, 1.0
        %v4264 = vadd.f32 %v4248, 1.0
        %v4265 = vadd.f32 %v4249, 1.0
        %v4266 = vadd.f32 %v4250, 1.0
        %v4267 = vadd.f32 %v4251, 1.0
        %v4268 = vadd.f32 %v4252, 1.0
        %v4269 = vadd.f32 %v4253, 1.0
        %v4270 = vadd.f32 %v4254, 1.0
        %v4271 = vadd.f32 %v4255, 1.0
        %v4272 = vadd.f32 %v4256, 1.0
        %v4273 = vadd.f32 %v4257, 1.0
        %v4274 = vadd.f32 %v4258, 1.0
        %v4275 = vrcp.pop %v4259
        %v4276 = vmul.f32 1.0, %v4275
        %v4277 = vrcp.pop %v4260
        %v4278 = vmul.f32 1.0, %v4277
        %v4279 = vrcp.pop %v4261
        %v4280 = vmul.f32 1.0, %v4279
        %v4281 = vrcp.pop %v4262
        %v4282 = vmul.f32 1.0, %v4281
        %v4283 = vrcp.pop %v4263
        %v4284 = vmul.f32 1.0, %v4283
        %v4285 = vrcp.pop %v4264
        %v4286 = vmul.f32 1.0, %v4285
        %v4287 = vrcp.pop %v4265
        %v4288 = vmul.f32 1.0, %v4287
        %v4289 = vrcp.pop %v4266
        %v4290 = vmul.f32 1.0, %v4289
        %v4291 = vrcp.pop %v4267
        %v4292 = vmul.f32 1.0, %v4291
        %v4293 = vrcp.pop %v4268
        %v4294 = vmul.f32 1.0, %v4293
        %v4295 = vrcp.pop %v4269
        %v4296 = vmul.f32 1.0, %v4295
        %v4297 = vrcp.pop %v4270
        %v4298 = vmul.f32 1.0, %v4297
        %v4299 = vrcp.pop %v4271
        %v4300 = vmul.f32 1.0, %v4299
        %v4301 = vrcp.pop %v4272
        %v4302 = vmul.f32 1.0, %v4301
        %v4303 = vrcp.pop %v4273
        %v4304 = vmul.f32 1.0, %v4303
        %v4305 = vrcp.pop %v4274
        %v4306 = vmul.f32 1.0, %v4305
        %v4307 = vmul.f32 %v4276, 1.0614054
        %v4308 = vmul.f32 %v4278, 1.0614054
        %v4309 = vmul.f32 %v4280, 1.0614054
        %v4310 = vmul.f32 %v4282, 1.0614054
        %v4311 = vmul.f32 %v4284, 1.0614054
        %v4312 = vmul.f32 %v4286, 1.0614054
        %v4313 = vmul.f32 %v4288, 1.0614054
        %v4314 = vmul.f32 %v4290, 1.0614054
        %v4315 = vmul.f32 %v4292, 1.0614054
        %v4316 = vmul.f32 %v4294, 1.0614054
        %v4317 = vmul.f32 %v4296, 1.0614054
        %v4318 = vmul.f32 %v4298, 1.0614054
        %v4319 = vmul.f32 %v4300, 1.0614054
        %v4320 = vmul.f32 %v4302, 1.0614054
        %v4321 = vmul.f32 %v4304, 1.0614054
        %v4322 = vmul.f32 %v4306, 1.0614054
        %v4323 = vadd.f32 %v4307, -1.4531521
        %v4324 = vadd.f32 %v4308, -1.4531521
        %v4325 = vadd.f32 %v4309, -1.4531521
        %v4326 = vadd.f32 %v4310, -1.4531521
        %v4327 = vadd.f32 %v4311, -1.4531521
        %v4328 = vadd.f32 %v4312, -1.4531521
        %v4329 = vadd.f32 %v4313, -1.4531521
        %v4330 = vadd.f32 %v4314, -1.4531521
        %v4331 = vadd.f32 %v4315, -1.4531521
        %v4332 = vadd.f32 %v4316, -1.4531521
        %v4333 = vadd.f32 %v4317, -1.4531521
        %v4334 = vadd.f32 %v4318, -1.4531521
        %v4335 = vadd.f32 %v4319, -1.4531521
        %v4336 = vadd.f32 %v4320, -1.4531521
        %v4337 = vadd.f32 %v4321, -1.4531521
        %v4338 = vadd.f32 %v4322, -1.4531521
        %v4339 = vmul.f32 %v4323, %v4276
        %v4340 = vmul.f32 %v4324, %v4278
        %v4341 = vmul.f32 %v4325, %v4280
        %v4342 = vmul.f32 %v4326, %v4282
        %v4343 = vmul.f32 %v4327, %v4284
        %v4344 = vmul.f32 %v4328, %v4286
        %v4345 = vmul.f32 %v4329, %v4288
        %v4346 = vmul.f32 %v4330, %v4290
        %v4347 = vmul.f32 %v4331, %v4292
        %v4348 = vmul.f32 %v4332, %v4294
        %v4349 = vmul.f32 %v4333, %v4296
        %v4350 = vmul.f32 %v4334, %v4298
        %v4351 = vmul.f32 %v4335, %v4300
        %v4352 = vmul.f32 %v4336, %v4302
        %v4353 = vmul.f32 %v4337, %v4304
        %v4354 = vmul.f32 %v4338, %v4306
        %v4355 = vadd.f32 %v4339, 1.4214138
        %v4356 = vadd.f32 %v4340, 1.4214138
        %v4357 = vadd.f32 %v4341, 1.4214138
        %v4358 = vadd.f32 %v4342, 1.4214138
        %v4359 = vadd.f32 %v4343, 1.4214138
        %v4360 = vadd.f32 %v4344, 1.4214138
        %v4361 = vadd.f32 %v4345, 1.4214138
        %v4362 = vadd.f32 %v4346, 1.4214138
        %v4363 = vadd.f32 %v4347, 1.4214138
        %v4364 = vadd.f32 %v4348, 1.4214138
        %v4365 = vadd.f32 %v4349, 1.4214138
        %v4366 = vadd.f32 %v4350, 1.4214138
        %v4367 = vadd.f32 %v4351, 1.4214138
        %v4368 = vadd.f32 %v4352, 1.4214138
        %v4369 = vadd.f32 %v4353, 1.4214138
        %v4370 = vadd.f32 %v4354, 1.4214138
        %v4371 = vmul.f32 %v4355, %v4276
        %v4372 = vmul.f32 %v4356, %v4278
        %v4373 = vmul.f32 %v4357, %v4280
        %v4374 = vmul.f32 %v4358, %v4282
        %v4375 = vmul.f32 %v4359, %v4284
        %v4376 = vmul.f32 %v4360, %v4286
        %v4377 = vmul.f32 %v4361, %v4288
        %v4378 = vmul.f32 %v4362, %v4290
        %v4379 = vmul.f32 %v4363, %v4292
        %v4380 = vmul.f32 %v4364, %v4294
        %v4381 = vmul.f32 %v4365, %v4296
        %v4382 = vmul.f32 %v4366, %v4298
        %v4383 = vmul.f32 %v4367, %v4300
        %v4384 = vmul.f32 %v4368, %v4302
        %v4385 = vmul.f32 %v4369, %v4304
        %v4386 = vmul.f32 %v4370, %v4306
        %v4387 = vadd.f32 %v4371, -0.28449672
        %v4388 = vadd.f32 %v4372, -0.28449672
        %v4389 = vadd.f32 %v4373, -0.28449672
        %v4390 = vadd.f32 %v4374, -0.28449672
        %v4391 = vadd.f32 %v4375, -0.28449672
        %v4392 = vadd.f32 %v4376, -0.28449672
        %v4393 = vadd.f32 %v4377, -0.28449672
        %v4394 = vadd.f32 %v4378, -0.28449672
        %v4395 = vadd.f32 %v4379, -0.28449672
        %v4396 = vadd.f32 %v4380, -0.28449672
        %v4397 = vadd.f32 %v4381, -0.28449672
        %v4398 = vadd.f32 %v4382, -0.28449672
        %v4399 = vadd.f32 %v4383, -0.28449672
        %v4400 = vadd.f32 %v4384, -0.28449672
        %v4401 = vadd.f32 %v4385, -0.28449672
        %v4402 = vadd.f32 %v4386, -0.28449672
        %v4403 = vmul.f32 %v4387, %v4276
        %v4404 = vmul.f32 %v4388, %v4278
        %v4405 = vmul.f32 %v4389, %v4280
        %v4406 = vmul.f32 %v4390, %v4282
        %v4407 = vmul.f32 %v4391, %v4284
        %v4408 = vmul.f32 %v4392, %v4286
        %v4409 = vmul.f32 %v4393, %v4288
        %v4410 = vmul.f32 %v4394, %v4290
        %v4411 = vmul.f32 %v4395, %v4292
        %v4412 = vmul.f32 %v4396, %v4294
        %v4413 = vmul.f32 %v4397, %v4296
        %v4414 = vmul.f32 %v4398, %v4298
        %v4415 = vmul.f32 %v4399, %v4300
        %v4416 = vmul.f32 %v4400, %v4302
        %v4417 = vmul.f32 %v4401, %v4304
        %v4418 = vmul.f32 %v4402, %v4306
        %v4419 = vadd.f32 %v4403, 0.2548296
        %v4420 = vadd.f32 %v4404, 0.2548296
        %v4421 = vadd.f32 %v4405, 0.2548296
        %v4422 = vadd.f32 %v4406, 0.2548296
        %v4423 = vadd.f32 %v4407, 0.2548296
        %v4424 = vadd.f32 %v4408, 0.2548296
        %v4425 = vadd.f32 %v4409, 0.2548296
        %v4426 = vadd.f32 %v4410, 0.2548296
        %v4427 = vadd.f32 %v4411, 0.2548296
        %v4428 = vadd.f32 %v4412, 0.2548296
        %v4429 = vadd.f32 %v4413, 0.2548296
        %v4430 = vadd.f32 %v4414, 0.2548296
        %v4431 = vadd.f32 %v4415, 0.2548296
        %v4432 = vadd.f32 %v4416, 0.2548296
        %v4433 = vadd.f32 %v4417, 0.2548296
        %v4434 = vadd.f32 %v4418, 0.2548296
        %v4435 = vmul.f32 %v4419, %v4276
        %v4436 = vmul.f32 %v4420, %v4278
        %v4437 = vmul.f32 %v4421, %v4280
        %v4438 = vmul.f32 %v4422, %v4282
        %v4439 = vmul.f32 %v4423, %v4284
        %v4440 = vmul.f32 %v4424, %v4286
        %v4441 = vmul.f32 %v4425, %v4288
        %v4442 = vmul.f32 %v4426, %v4290
        %v4443 = vmul.f32 %v4427, %v4292
        %v4444 = vmul.f32 %v4428, %v4294
        %v4445 = vmul.f32 %v4429, %v4296
        %v4446 = vmul.f32 %v4430, %v4298
        %v4447 = vmul.f32 %v4431, %v4300
        %v4448 = vmul.f32 %v4432, %v4302
        %v4449 = vmul.f32 %v4433, %v4304
        %v4450 = vmul.f32 %v4434, %v4306
        %v4451 = vsub.f32 0.0, %v4227
        %v4452 = vsub.f32 0.0, %v4228
        %v4453 = vsub.f32 0.0, %v4229
        %v4454 = vsub.f32 0.0, %v4230
        %v4455 = vsub.f32 0.0, %v4231
        %v4456 = vsub.f32 0.0, %v4232
        %v4457 = vsub.f32 0.0, %v4233
        %v4458 = vsub.f32 0.0, %v4234
        %v4459 = vsub.f32 0.0, %v4235
        %v4460 = vsub.f32 0.0, %v4236
        %v4461 = vsub.f32 0.0, %v4237
        %v4462 = vsub.f32 0.0, %v4238
        %v4463 = vsub.f32 0.0, %v4239
        %v4464 = vsub.f32 0.0, %v4240
        %v4465 = vsub.f32 0.0, %v4241
        %v4466 = vsub.f32 0.0, %v4242
        %v4467 = vmul.f32 %v4451, %v4227
        %v4468 = vmul.f32 %v4452, %v4228
        %v4469 = vmul.f32 %v4453, %v4229
        %v4470 = vmul.f32 %v4454, %v4230
        %v4471 = vmul.f32 %v4455, %v4231
        %v4472 = vmul.f32 %v4456, %v4232
        %v4473 = vmul.f32 %v4457, %v4233
        %v4474 = vmul.f32 %v4458, %v4234
        %v4475 = vmul.f32 %v4459, %v4235
        %v4476 = vmul.f32 %v4460, %v4236
        %v4477 = vmul.f32 %v4461, %v4237
        %v4478 = vmul.f32 %v4462, %v4238
        %v4479 = vmul.f32 %v4463, %v4239
        %v4480 = vmul.f32 %v4464, %v4240
        %v4481 = vmul.f32 %v4465, %v4241
        %v4482 = vmul.f32 %v4466, %v4242
        %v4483 = vmul.f32 %v4467, 1.442695
        %v4484 = vpow.pop %v4483
        %v4485 = vmul.f32 %v4468, 1.442695
        %v4486 = vpow.pop %v4485
        %v4487 = vmul.f32 %v4469, 1.442695
        %v4488 = vpow.pop %v4487
        %v4489 = vmul.f32 %v4470, 1.442695
        %v4490 = vpow.pop %v4489
        %v4491 = vmul.f32 %v4471, 1.442695
        %v4492 = vpow.pop %v4491
        %v4493 = vmul.f32 %v4472, 1.442695
        %v4494 = vpow.pop %v4493
        %v4495 = vmul.f32 %v4473, 1.442695
        %v4496 = vpow.pop %v4495
        %v4497 = vmul.f32 %v4474, 1.442695
        %v4498 = vpow.pop %v4497
        %v4499 = vmul.f32 %v4475, 1.442695
        %v4500 = vpow.pop %v4499
        %v4501 = vmul.f32 %v4476, 1.442695
        %v4502 = vpow.pop %v4501
        %v4503 = vmul.f32 %v4477, 1.442695
        %v4504 = vpow.pop %v4503
        %v4505 = vmul.f32 %v4478, 1.442695
        %v4506 = vpow.pop %v4505
        %v4507 = vmul.f32 %v4479, 1.442695
        %v4508 = vpow.pop %v4507
        %v4509 = vmul.f32 %v4480, 1.442695
        %v4510 = vpow.pop %v4509
        %v4511 = vmul.f32 %v4481, 1.442695
        %v4512 = vpow.pop %v4511
        %v4513 = vmul.f32 %v4482, 1.442695
        %v4514 = vpow.pop %v4513
        %v4515 = vmul.f32 %v4435, %v4484
        %v4516 = vmul.f32 %v4436, %v4486
        %v4517 = vmul.f32 %v4437, %v4488
        %v4518 = vmul.f32 %v4438, %v4490
        %v4519 = vmul.f32 %v4439, %v4492
        %v4520 = vmul.f32 %v4440, %v4494
        %v4521 = vmul.f32 %v4441, %v4496
        %v4522 = vmul.f32 %v4442, %v4498
        %v4523 = vmul.f32 %v4443, %v4500
        %v4524 = vmul.f32 %v4444, %v4502
        %v4525 = vmul.f32 %v4445, %v4504
        %v4526 = vmul.f32 %v4446, %v4506
        %v4527 = vmul.f32 %v4447, %v4508
        %v4528 = vmul.f32 %v4448, %v4510
        %v4529 = vmul.f32 %v4449, %v4512
        %v4530 = vmul.f32 %v4450, %v4514
        %v4531 = vsub.f32 1.0, %v4515
        %v4532 = vsub.f32 1.0, %v4516
        %v4533 = vsub.f32 1.0, %v4517
        %v4534 = vsub.f32 1.0, %v4518
        %v4535 = vsub.f32 1.0, %v4519
        %v4536 = vsub.f32 1.0, %v4520
        %v4537 = vsub.f32 1.0, %v4521
        %v4538 = vsub.f32 1.0, %v4522
        %v4539 = vsub.f32 1.0, %v4523
        %v4540 = vsub.f32 1.0, %v4524
        %v4541 = vsub.f32 1.0, %v4525
        %v4542 = vsub.f32 1.0, %v4526
        %v4543 = vsub.f32 1.0, %v4527
        %v4544 = vsub.f32 1.0, %v4528
        %v4545 = vsub.f32 1.0, %v4529
        %v4546 = vsub.f32 1.0, %v4530
        %vm4547 = vcmp.lt.f32.partialorder %v4211, 0.0
        %vm4548 = vcmp.lt.f32.partialorder %v4212, 0.0
        %vm4549 = vcmp.lt.f32.partialorder %v4213, 0.0
        %vm4550 = vcmp.lt.f32.partialorder %v4214, 0.0
        %vm4551 = vcmp.lt.f32.partialorder %v4215, 0.0
        %vm4552 = vcmp.lt.f32.partialorder %v4216, 0.0
        %vm4553 = vcmp.lt.f32.partialorder %v4217, 0.0
        %vm4554 = vcmp.lt.f32.partialorder %v4218, 0.0
        %vm4555 = vcmp.lt.f32.partialorder %v4219, 0.0
        %vm4556 = vcmp.lt.f32.partialorder %v4220, 0.0
        %vm4557 = vcmp.lt.f32.partialorder %v4221, 0.0
        %vm4558 = vcmp.lt.f32.partialorder %v4222, 0.0
        %vm4559 = vcmp.lt.f32.partialorder %v4223, 0.0
        %vm4560 = vcmp.lt.f32.partialorder %v4224, 0.0
        %vm4561 = vcmp.lt.f32.partialorder %v4225, 0.0
        %vm4562 = vcmp.lt.f32.partialorder %v4226, 0.0
        %v4563 = vsub.f32 0.0, %v4531
        %v4564 = vsub.f32 0.0, %v4532
        %v4565 = vsub.f32 0.0, %v4533
        %v4566 = vsub.f32 0.0, %v4534
        %v4567 = vsub.f32 0.0, %v4535
        %v4568 = vsub.f32 0.0, %v4536
        %v4569 = vsub.f32 0.0, %v4537
        %v4570 = vsub.f32 0.0, %v4538
        %v4571 = vsub.f32 0.0, %v4539
        %v4572 = vsub.f32 0.0, %v4540
        %v4573 = vsub.f32 0.0, %v4541
        %v4574 = vsub.f32 0.0, %v4542
        %v4575 = vsub.f32 0.0, %v4543
        %v4576 = vsub.f32 0.0, %v4544
        %v4577 = vsub.f32 0.0, %v4545
        %v4578 = vsub.f32 0.0, %v4546
        %v4579 = vsel %vm4547, %v4563, %v4531
        %v4580 = vsel %vm4548, %v4564, %v4532
        %v4581 = vsel %vm4549, %v4565, %v4533
        %v4582 = vsel %vm4550, %v4566, %v4534
        %v4583 = vsel %vm4551, %v4567, %v4535
        %v4584 = vsel %vm4552, %v4568, %v4536
        %v4585 = vsel %vm4553, %v4569, %v4537
        %v4586 = vsel %vm4554, %v4570, %v4538
        %v4587 = vsel %vm4555, %v4571, %v4539
        %v4588 = vsel %vm4556, %v4572, %v4540
        %v4589 = vsel %vm4557, %v4573, %v4541
        %v4590 = vsel %vm4558, %v4574, %v4542
        %v4591 = vsel %vm4559, %v4575, %v4543
        %v4592 = vsel %vm4560, %v4576, %v4544
        %v4593 = vsel %vm4561, %v4577, %v4545
        %v4594 = vsel %vm4562, %v4578, %v4546
        %v4595 = vadd.f32 %v4579, 1.0
        %v4596 = vadd.f32 %v4580, 1.0
        %v4597 = vadd.f32 %v4581, 1.0
        %v4598 = vadd.f32 %v4582, 1.0
        %v4599 = vadd.f32 %v4583, 1.0
        %v4600 = vadd.f32 %v4584, 1.0
        %v4601 = vadd.f32 %v4585, 1.0
        %v4602 = vadd.f32 %v4586, 1.0
        %v4603 = vadd.f32 %v4587, 1.0
        %v4604 = vadd.f32 %v4588, 1.0
        %v4605 = vadd.f32 %v4589, 1.0
        %v4606 = vadd.f32 %v4590, 1.0
        %v4607 = vadd.f32 %v4591, 1.0
        %v4608 = vadd.f32 %v4592, 1.0
        %v4609 = vadd.f32 %v4593, 1.0
        %v4610 = vadd.f32 %v4594, 1.0
        %v4611 = vmul.f32 %v4195, %v4595
        %v4612 = vmul.f32 %v4196, %v4596
        %v4613 = vmul.f32 %v4197, %v4597
        %v4614 = vmul.f32 %v4198, %v4598
        %v4615 = vmul.f32 %v4199, %v4599
        %v4616 = vmul.f32 %v4200, %v4600
        %v4617 = vmul.f32 %v4201, %v4601
        %v4618 = vmul.f32 %v4202, %v4602
        %v4619 = vmul.f32 %v4203, %v4603
        %v4620 = vmul.f32 %v4204, %v4604
        %v4621 = vmul.f32 %v4205, %v4605
        %v4622 = vmul.f32 %v4206, %v4606
        %v4623 = vmul.f32 %v4207, %v4607
        %v4624 = vmul.f32 %v4208, %v4608
        %v4625 = vmul.f32 %v4209, %v4609
        %v4626 = vmul.f32 %v4210, %v4610
        %4627 = vst [vmem:[#allocation3] sm:$0xf] 0.0
        %4628 = vst [vmem:[#allocation3 + $0x8] sm:$0xf] 0.0
        %4629 = vst.msk [vmem:[#allocation3 + $0x10] sm:$0xf] %vm1515, 0.0
        %4630 = vst [vmem:[#allocation3 + $0x168] sm:$0xf0] 0.0
        %4631 = vst [vmem:[#allocation3 + $0x170] sm:$0xf0] 0.0
        %4632 = vst.msk [vmem:[#allocation3 + $0x178] sm:$0xf0] %vm1519, 0.0
        %v4649 = vrot.slane %v4611, 4
        %v4650 = vrot.slane %v4612, 4
        %v4651 = vsel %vm1537, %v4649, %v4650
        %v4652 = vrot.slane %v4613, 4
        %v4653 = vsel %vm1537, %v4650, %v4652
        %v4654 = vrot.slane %v4614, 4
        %v4655 = vsel %vm1537, %v4652, %v4654
        %v4656 = vrot.slane %v4615, 4
        %v4657 = vsel %vm1537, %v4654, %v4656
        %v4658 = vrot.slane %v4616, 4
        %v4659 = vsel %vm1537, %v4656, %v4658
        %v4660 = vrot.slane %v4617, 4
        %v4661 = vsel %vm1537, %v4658, %v4660
        %v4662 = vrot.slane %v4618, 4
        %v4663 = vsel %vm1537, %v4660, %v4662
        %v4664 = vrot.slane %v4619, 4
        %v4665 = vsel %vm1537, %v4662, %v4664
        %v4666 = vrot.slane %v4620, 4
        %v4667 = vsel %vm1537, %v4664, %v4666
        %v4668 = vrot.slane %v4621, 4
        %v4669 = vsel %vm1537, %v4666, %v4668
        %v4670 = vrot.slane %v4622, 4
        %v4671 = vsel %vm1537, %v4668, %v4670
        %v4672 = vrot.slane %v4623, 4
        %v4673 = vsel %vm1537, %v4670, %v4672
        %v4674 = vrot.slane %v4624, 4
        %v4675 = vsel %vm1537, %v4672, %v4674
        %v4676 = vrot.slane %v4625, 4
        %v4677 = vsel %vm1537, %v4674, %v4676
        %v4678 = vrot.slane %v4626, 4
        %v4679 = vsel %vm1537, %v4676, %v4678
        %4696 = vst.msk [vmem:[#allocation3] sm:$0xf0] %vm1519, %v4649
        %4697 = vst.msk [vmem:[#allocation3 + $0x18] sm:$0xff] %vm887, %v4651
        %4698 = vst.msk [vmem:[#allocation3 + $0x30] sm:$0xff] %vm887, %v4653
        %4699 = vst.msk [vmem:[#allocation3 + $0x48] sm:$0xff] %vm887, %v4655
        %4700 = vst.msk [vmem:[#allocation3 + $0x60] sm:$0xff] %vm887, %v4657
        %4701 = vst.msk [vmem:[#allocation3 + $0x78] sm:$0xff] %vm887, %v4659
        %4702 = vst.msk [vmem:[#allocation3 + $0x90] sm:$0xff] %vm887, %v4661
        %4703 = vst.msk [vmem:[#allocation3 + $0xa8] sm:$0xff] %vm887, %v4663
        %4704 = vst.msk [vmem:[#allocation3 + $0xc0] sm:$0xff] %vm887, %v4665
        %4705 = vst.msk [vmem:[#allocation3 + $0xd8] sm:$0xff] %vm887, %v4667
        %4706 = vst.msk [vmem:[#allocation3 + $0xf0] sm:$0xff] %vm887, %v4669
        %4707 = vst.msk [vmem:[#allocation3 + $0x108] sm:$0xff] %vm887, %v4671
        %4708 = vst.msk [vmem:[#allocation3 + $0x120] sm:$0xff] %vm887, %v4673
        %4709 = vst.msk [vmem:[#allocation3 + $0x138] sm:$0xff] %vm887, %v4675
        %4710 = vst.msk [vmem:[#allocation3 + $0x150] sm:$0xff] %vm887, %v4677
        %4711 = vst.msk [vmem:[#allocation3 + $0x168] sm:$0xff] %vm887, %v4679
        %v4712 = vrot.slane %v4611, 5
        %v4713 = vrot.slane %v4612, 5
        %v4714 = vsel %vm1601, %v4712, %v4713
        %v4715 = vrot.slane %v4613, 5
        %v4716 = vsel %vm1601, %v4713, %v4715
        %v4717 = vrot.slane %v4614, 5
        %v4718 = vsel %vm1601, %v4715, %v4717
        %v4719 = vrot.slane %v4615, 5
        %v4720 = vsel %vm1601, %v4717, %v4719
        %v4721 = vrot.slane %v4616, 5
        %v4722 = vsel %vm1601, %v4719, %v4721
        %v4723 = vrot.slane %v4617, 5
        %v4724 = vsel %vm1601, %v4721, %v4723
        %v4725 = vrot.slane %v4618, 5
        %v4726 = vsel %vm1601, %v4723, %v4725
        %v4727 = vrot.slane %v4619, 5
        %v4728 = vsel %vm1601, %v4725, %v4727
        %v4729 = vrot.slane %v4620, 5
        %v4730 = vsel %vm1601, %v4727, %v4729
        %v4731 = vrot.slane %v4621, 5
        %v4732 = vsel %vm1601, %v4729, %v4731
        %v4733 = vrot.slane %v4622, 5
        %v4734 = vsel %vm1601, %v4731, %v4733
        %v4735 = vrot.slane %v4623, 5
        %v4736 = vsel %vm1601, %v4733, %v4735
        %v4737 = vrot.slane %v4624, 5
        %v4738 = vsel %vm1601, %v4735, %v4737
        %v4739 = vrot.slane %v4625, 5
        %v4740 = vsel %vm1601, %v4737, %v4739
        %v4741 = vrot.slane %v4626, 5
        %v4742 = vsel %vm1601, %v4739, %v4741
        %4743 = vrot.lane.b32.xlu0 %v4712, 32
        %v4744 = vpop.permute.xlu0 %4743
        %4745 = vrot.lane.b32.xlu0 %v4714, 32
        %v4746 = vpop.permute.xlu0 %4745
        %4747 = vrot.lane.b32.xlu0 %v4716, 32
        %v4748 = vpop.permute.xlu0 %4747
        %4749 = vrot.lane.b32.xlu0 %v4718, 32
        %v4750 = vpop.permute.xlu0 %4749
        %4751 = vrot.lane.b32.xlu0 %v4720, 32
        %v4752 = vpop.permute.xlu0 %4751
        %4753 = vrot.lane.b32.xlu0 %v4722, 32
        %v4754 = vpop.permute.xlu0 %4753
        %4755 = vrot.lane.b32.xlu0 %v4724, 32
        %v4756 = vpop.permute.xlu0 %4755
        %4757 = vrot.lane.b32.xlu0 %v4726, 32
        %v4758 = vpop.permute.xlu0 %4757
        %4759 = vrot.lane.b32.xlu0 %v4728, 32
        %v4760 = vpop.permute.xlu0 %4759
        %4761 = vrot.lane.b32.xlu0 %v4730, 32
        %v4762 = vpop.permute.xlu0 %4761
        %4763 = vrot.lane.b32.xlu0 %v4732, 32
        %v4764 = vpop.permute.xlu0 %4763
        %4765 = vrot.lane.b32.xlu0 %v4734, 32
        %v4766 = vpop.permute.xlu0 %4765
        %4767 = vrot.lane.b32.xlu0 %v4736, 32
        %v4768 = vpop.permute.xlu0 %4767
        %4769 = vrot.lane.b32.xlu0 %v4738, 32
        %v4770 = vpop.permute.xlu0 %4769
        %4771 = vrot.lane.b32.xlu0 %v4740, 32
        %v4772 = vpop.permute.xlu0 %4771
        %4773 = vrot.lane.b32.xlu0 %v4742, 32
        %v4774 = vpop.permute.xlu0 %4773
        %4791 = vst.msk [vmem:[#allocation3] sm:$0xf8] %vm1681, %v4744
        %4792 = vst.msk [vmem:[#allocation3 + $0x18] sm:$0xff] %vm1683, %v4746
        %4793 = vst.msk [vmem:[#allocation3 + $0x30] sm:$0xff] %vm1683, %v4748
        %4794 = vst.msk [vmem:[#allocation3 + $0x48] sm:$0xff] %vm1683, %v4750
        %4795 = vst.msk [vmem:[#allocation3 + $0x60] sm:$0xff] %vm1683, %v4752
        %4796 = vst.msk [vmem:[#allocation3 + $0x78] sm:$0xff] %vm1683, %v4754
        %4797 = vst.msk [vmem:[#allocation3 + $0x90] sm:$0xff] %vm1683, %v4756
        %4798 = vst.msk [vmem:[#allocation3 + $0xa8] sm:$0xff] %vm1683, %v4758
        %4799 = vst.msk [vmem:[#allocation3 + $0xc0] sm:$0xff] %vm1683, %v4760
        %4800 = vst.msk [vmem:[#allocation3 + $0xd8] sm:$0xff] %vm1683, %v4762
        %4801 = vst.msk [vmem:[#allocation3 + $0xf0] sm:$0xff] %vm1683, %v4764
        %4802 = vst.msk [vmem:[#allocation3 + $0x108] sm:$0xff] %vm1683, %v4766
        %4803 = vst.msk [vmem:[#allocation3 + $0x120] sm:$0xff] %vm1683, %v4768
        %4804 = vst.msk [vmem:[#allocation3 + $0x138] sm:$0xff] %vm1683, %v4770
        %4805 = vst.msk [vmem:[#allocation3 + $0x150] sm:$0xff] %vm1683, %v4772
        %4806 = vst.msk [vmem:[#allocation3 + $0x168] sm:$0xff] %vm1683, %v4774
        %v4807 = vrot.slane %v4611, 6
        %v4808 = vrot.slane %v4612, 6
        %v4809 = vsel %vm1699, %v4807, %v4808
        %v4810 = vrot.slane %v4613, 6
        %v4811 = vsel %vm1699, %v4808, %v4810
        %v4812 = vrot.slane %v4614, 6
        %v4813 = vsel %vm1699, %v4810, %v4812
        %v4814 = vrot.slane %v4615, 6
        %v4815 = vsel %vm1699, %v4812, %v4814
        %v4816 = vrot.slane %v4616, 6
        %v4817 = vsel %vm1699, %v4814, %v4816
        %v4818 = vrot.slane %v4617, 6
        %v4819 = vsel %vm1699, %v4816, %v4818
        %v4820 = vrot.slane %v4618, 6
        %v4821 = vsel %vm1699, %v4818, %v4820
        %v4822 = vrot.slane %v4619, 6
        %v4823 = vsel %vm1699, %v4820, %v4822
        %v4824 = vrot.slane %v4620, 6
        %v4825 = vsel %vm1699, %v4822, %v4824
        %v4826 = vrot.slane %v4621, 6
        %v4827 = vsel %vm1699, %v4824, %v4826
        %v4828 = vrot.slane %v4622, 6
        %v4829 = vsel %vm1699, %v4826, %v4828
        %v4830 = vrot.slane %v4623, 6
        %v4831 = vsel %vm1699, %v4828, %v4830
        %v4832 = vrot.slane %v4624, 6
        %v4833 = vsel %vm1699, %v4830, %v4832
        %v4834 = vrot.slane %v4625, 6
        %v4835 = vsel %vm1699, %v4832, %v4834
        %v4836 = vrot.slane %v4626, 6
        %v4837 = vsel %vm1699, %v4834, %v4836
        %4838 = vrot.lane.b32.xlu0 %v4807, 64
        %v4839 = vpop.permute.xlu0 %4838
        %4840 = vrot.lane.b32.xlu0 %v4809, 64
        %v4841 = vpop.permute.xlu0 %4840
        %4842 = vrot.lane.b32.xlu0 %v4811, 64
        %v4843 = vpop.permute.xlu0 %4842
        %4844 = vrot.lane.b32.xlu0 %v4813, 64
        %v4845 = vpop.permute.xlu0 %4844
        %4846 = vrot.lane.b32.xlu0 %v4815, 64
        %v4847 = vpop.permute.xlu0 %4846
        %4848 = vrot.lane.b32.xlu0 %v4817, 64
        %v4849 = vpop.permute.xlu0 %4848
        %4850 = vrot.lane.b32.xlu0 %v4819, 64
        %v4851 = vpop.permute.xlu0 %4850
        %4852 = vrot.lane.b32.xlu0 %v4821, 64
        %v4853 = vpop.permute.xlu0 %4852
        %4854 = vrot.lane.b32.xlu0 %v4823, 64
        %v4855 = vpop.permute.xlu0 %4854
        %4856 = vrot.lane.b32.xlu0 %v4825, 64
        %v4857 = vpop.permute.xlu0 %4856
        %4858 = vrot.lane.b32.xlu0 %v4827, 64
        %v4859 = vpop.permute.xlu0 %4858
        %4860 = vrot.lane.b32.xlu0 %v4829, 64
        %v4861 = vpop.permute.xlu0 %4860
        %4862 = vrot.lane.b32.xlu0 %v4831, 64
        %v4863 = vpop.permute.xlu0 %4862
        %4864 = vrot.lane.b32.xlu0 %v4833, 64
        %v4865 = vpop.permute.xlu0 %4864
        %4866 = vrot.lane.b32.xlu0 %v4835, 64
        %v4867 = vpop.permute.xlu0 %4866
        %4868 = vrot.lane.b32.xlu0 %v4837, 64
        %v4869 = vpop.permute.xlu0 %4868
        %4886 = vst.msk [vmem:[#allocation3] sm:$0xfc] %vm1779, %v4839
        %4887 = vst.msk [vmem:[#allocation3 + $0x18] sm:$0xff] %vm1781, %v4841
        %4888 = vst.msk [vmem:[#allocation3 + $0x30] sm:$0xff] %vm1781, %v4843
        %4889 = vst.msk [vmem:[#allocation3 + $0x48] sm:$0xff] %vm1781, %v4845
        %4890 = vst.msk [vmem:[#allocation3 + $0x60] sm:$0xff] %vm1781, %v4847
        %4891 = vst.msk [vmem:[#allocation3 + $0x78] sm:$0xff] %vm1781, %v4849
        %4892 = vst.msk [vmem:[#allocation3 + $0x90] sm:$0xff] %vm1781, %v4851
        %4893 = vst.msk [vmem:[#allocation3 + $0xa8] sm:$0xff] %vm1781, %v4853
        %4894 = vst.msk [vmem:[#allocation3 + $0xc0] sm:$0xff] %vm1781, %v4855
        %4895 = vst.msk [vmem:[#allocation3 + $0xd8] sm:$0xff] %vm1781, %v4857
        %4896 = vst.msk [vmem:[#allocation3 + $0xf0] sm:$0xff] %vm1781, %v4859
        %4897 = vst.msk [vmem:[#allocation3 + $0x108] sm:$0xff] %vm1781, %v4861
        %4898 = vst.msk [vmem:[#allocation3 + $0x120] sm:$0xff] %vm1781, %v4863
        %4899 = vst.msk [vmem:[#allocation3 + $0x138] sm:$0xff] %vm1781, %v4865
        %4900 = vst.msk [vmem:[#allocation3 + $0x150] sm:$0xff] %vm1781, %v4867
        %4901 = vst.msk [vmem:[#allocation3 + $0x168] sm:$0xff] %vm1781, %v4869
        %v4902 = vrot.slane %v4611, 7
        %v4903 = vrot.slane %v4612, 7
        %v4904 = vsel %vm1797, %v4902, %v4903
        %v4905 = vrot.slane %v4613, 7
        %v4906 = vsel %vm1797, %v4903, %v4905
        %v4907 = vrot.slane %v4614, 7
        %v4908 = vsel %vm1797, %v4905, %v4907
        %v4909 = vrot.slane %v4615, 7
        %v4910 = vsel %vm1797, %v4907, %v4909
        %v4911 = vrot.slane %v4616, 7
        %v4912 = vsel %vm1797, %v4909, %v4911
        %v4913 = vrot.slane %v4617, 7
        %v4914 = vsel %vm1797, %v4911, %v4913
        %v4915 = vrot.slane %v4618, 7
        %v4916 = vsel %vm1797, %v4913, %v4915
        %v4917 = vrot.slane %v4619, 7
        %v4918 = vsel %vm1797, %v4915, %v4917
        %v4919 = vrot.slane %v4620, 7
        %v4920 = vsel %vm1797, %v4917, %v4919
        %v4921 = vrot.slane %v4621, 7
        %v4922 = vsel %vm1797, %v4919, %v4921
        %v4923 = vrot.slane %v4622, 7
        %v4924 = vsel %vm1797, %v4921, %v4923
        %v4925 = vrot.slane %v4623, 7
        %v4926 = vsel %vm1797, %v4923, %v4925
        %v4927 = vrot.slane %v4624, 7
        %v4928 = vsel %vm1797, %v4925, %v4927
        %v4929 = vrot.slane %v4625, 7
        %v4930 = vsel %vm1797, %v4927, %v4929
        %v4931 = vrot.slane %v4626, 7
        %v4932 = vsel %vm1797, %v4929, %v4931
        %4933 = vrot.lane.b32.xlu0 %v4902, 96
        %v4934 = vpop.permute.xlu0 %4933
        %4935 = vrot.lane.b32.xlu0 %v4904, 96
        %v4936 = vpop.permute.xlu0 %4935
        %4937 = vrot.lane.b32.xlu0 %v4906, 96
        %v4938 = vpop.permute.xlu0 %4937
        %4939 = vrot.lane.b32.xlu0 %v4908, 96
        %v4940 = vpop.permute.xlu0 %4939
        %4941 = vrot.lane.b32.xlu0 %v4910, 96
        %v4942 = vpop.permute.xlu0 %4941
        %4943 = vrot.lane.b32.xlu0 %v4912, 96
        %v4944 = vpop.permute.xlu0 %4943
        %4945 = vrot.lane.b32.xlu0 %v4914, 96
        %v4946 = vpop.permute.xlu0 %4945
        %4947 = vrot.lane.b32.xlu0 %v4916, 96
        %v4948 = vpop.permute.xlu0 %4947
        %4949 = vrot.lane.b32.xlu0 %v4918, 96
        %v4950 = vpop.permute.xlu0 %4949
        %4951 = vrot.lane.b32.xlu0 %v4920, 96
        %v4952 = vpop.permute.xlu0 %4951
        %4953 = vrot.lane.b32.xlu0 %v4922, 96
        %v4954 = vpop.permute.xlu0 %4953
        %4955 = vrot.lane.b32.xlu0 %v4924, 96
        %v4956 = vpop.permute.xlu0 %4955
        %4957 = vrot.lane.b32.xlu0 %v4926, 96
        %v4958 = vpop.permute.xlu0 %4957
        %4959 = vrot.lane.b32.xlu0 %v4928, 96
        %v4960 = vpop.permute.xlu0 %4959
        %4961 = vrot.lane.b32.xlu0 %v4930, 96
        %v4962 = vpop.permute.xlu0 %4961
        %4963 = vrot.lane.b32.xlu0 %v4932, 96
        %v4964 = vpop.permute.xlu0 %4963
        %4981 = vst.msk [vmem:[#allocation3] sm:$0xfe] %vm1877, %v4934
        %4982 = vst.msk [vmem:[#allocation3 + $0x18] sm:$0xff] %vm1879, %v4936
        %4983 = vst.msk [vmem:[#allocation3 + $0x30] sm:$0xff] %vm1879, %v4938
        %4984 = vst.msk [vmem:[#allocation3 + $0x48] sm:$0xff] %vm1879, %v4940
        %4985 = vst.msk [vmem:[#allocation3 + $0x60] sm:$0xff] %vm1879, %v4942
        %4986 = vst.msk [vmem:[#allocation3 + $0x78] sm:$0xff] %vm1879, %v4944
        %4987 = vst.msk [vmem:[#allocation3 + $0x90] sm:$0xff] %vm1879, %v4946
        %4988 = vst.msk [vmem:[#allocation3 + $0xa8] sm:$0xff] %vm1879, %v4948
        %4989 = vst.msk [vmem:[#allocation3 + $0xc0] sm:$0xff] %vm1879, %v4950
        %4990 = vst.msk [vmem:[#allocation3 + $0xd8] sm:$0xff] %vm1879, %v4952
        %4991 = vst.msk [vmem:[#allocation3 + $0xf0] sm:$0xff] %vm1879, %v4954
        %4992 = vst.msk [vmem:[#allocation3 + $0x108] sm:$0xff] %vm1879, %v4956
        %4993 = vst.msk [vmem:[#allocation3 + $0x120] sm:$0xff] %vm1879, %v4958
        %4994 = vst.msk [vmem:[#allocation3 + $0x138] sm:$0xff] %vm1879, %v4960
        %4995 = vst.msk [vmem:[#allocation3 + $0x150] sm:$0xff] %vm1879, %v4962
        %4996 = vst.msk [vmem:[#allocation3 + $0x168] sm:$0xff] %vm1879, %v4964
        %4997 = vst.msk [vmem:[#allocation3 + $0x8] sm:$0xff] %vm887, %v4611
        %4998 = vst.msk [vmem:[#allocation3 + $0x20] sm:$0xff] %vm887, %v4612
        %4999 = vst.msk [vmem:[#allocation3 + $0x38] sm:$0xff] %vm887, %v4613
        %5000 = vst.msk [vmem:[#allocation3 + $0x50] sm:$0xff] %vm887, %v4614
        %5001 = vst.msk [vmem:[#allocation3 + $0x68] sm:$0xff] %vm887, %v4615
        %5002 = vst.msk [vmem:[#allocation3 + $0x80] sm:$0xff] %vm887, %v4616
        %5003 = vst.msk [vmem:[#allocation3 + $0x98] sm:$0xff] %vm887, %v4617
        %5004 = vst.msk [vmem:[#allocation3 + $0xb0] sm:$0xff] %vm887, %v4618
        %5005 = vst.msk [vmem:[#allocation3 + $0xc8] sm:$0xff] %vm887, %v4619
        %5006 = vst.msk [vmem:[#allocation3 + $0xe0] sm:$0xff] %vm887, %v4620
        %5007 = vst.msk [vmem:[#allocation3 + $0xf8] sm:$0xff] %vm887, %v4621
        %5008 = vst.msk [vmem:[#allocation3 + $0x110] sm:$0xff] %vm887, %v4622
        %5009 = vst.msk [vmem:[#allocation3 + $0x128] sm:$0xff] %vm887, %v4623
        %5010 = vst.msk [vmem:[#allocation3 + $0x140] sm:$0xff] %vm887, %v4624
        %5011 = vst.msk [vmem:[#allocation3 + $0x158] sm:$0xff] %vm887, %v4625
        %5012 = vst.msk [vmem:[#allocation3 + $0x170] sm:$0xff] %vm887, %v4626
        %v5013 = vrot.slane %v4611, 1
        %v5014 = vrot.slane %v4612, 1
        %v5015 = vsel %vm1911, %v5013, %v5014
        %v5016 = vrot.slane %v4613, 1
        %v5017 = vsel %vm1911, %v5014, %v5016
        %v5018 = vrot.slane %v4614, 1
        %v5019 = vsel %vm1911, %v5016, %v5018
        %v5020 = vrot.slane %v4615, 1
        %v5021 = vsel %vm1911, %v5018, %v5020
        %v5022 = vrot.slane %v4616, 1
        %v5023 = vsel %vm1911, %v5020, %v5022
        %v5024 = vrot.slane %v4617, 1
        %v5025 = vsel %vm1911, %v5022, %v5024
        %v5026 = vrot.slane %v4618, 1
        %v5027 = vsel %vm1911, %v5024, %v5026
        %v5028 = vrot.slane %v4619, 1
        %v5029 = vsel %vm1911, %v5026, %v5028
        %v5030 = vrot.slane %v4620, 1
        %v5031 = vsel %vm1911, %v5028, %v5030
        %v5032 = vrot.slane %v4621, 1
        %v5033 = vsel %vm1911, %v5030, %v5032
        %v5034 = vrot.slane %v4622, 1
        %v5035 = vsel %vm1911, %v5032, %v5034
        %v5036 = vrot.slane %v4623, 1
        %v5037 = vsel %vm1911, %v5034, %v5036
        %v5038 = vrot.slane %v4624, 1
        %v5039 = vsel %vm1911, %v5036, %v5038
        %v5040 = vrot.slane %v4625, 1
        %v5041 = vsel %vm1911, %v5038, %v5040
        %v5042 = vrot.slane %v4626, 1
        %v5043 = vsel %vm1911, %v5040, %v5042
        %5044 = vrot.lane.b32.xlu0 %v5015, 32
        %v5045 = vpop.permute.xlu0 %5044
        %5046 = vrot.lane.b32.xlu0 %v5017, 32
        %v5047 = vpop.permute.xlu0 %5046
        %5048 = vrot.lane.b32.xlu0 %v5019, 32
        %v5049 = vpop.permute.xlu0 %5048
        %5050 = vrot.lane.b32.xlu0 %v5021, 32
        %v5051 = vpop.permute.xlu0 %5050
        %5052 = vrot.lane.b32.xlu0 %v5023, 32
        %v5053 = vpop.permute.xlu0 %5052
        %5054 = vrot.lane.b32.xlu0 %v5025, 32
        %v5055 = vpop.permute.xlu0 %5054
        %5056 = vrot.lane.b32.xlu0 %v5027, 32
        %v5057 = vpop.permute.xlu0 %5056
        %5058 = vrot.lane.b32.xlu0 %v5029, 32
        %v5059 = vpop.permute.xlu0 %5058
        %5060 = vrot.lane.b32.xlu0 %v5031, 32
        %v5061 = vpop.permute.xlu0 %5060
        %5062 = vrot.lane.b32.xlu0 %v5033, 32
        %v5063 = vpop.permute.xlu0 %5062
        %5064 = vrot.lane.b32.xlu0 %v5035, 32
        %v5065 = vpop.permute.xlu0 %5064
        %5066 = vrot.lane.b32.xlu0 %v5037, 32
        %v5067 = vpop.permute.xlu0 %5066
        %5068 = vrot.lane.b32.xlu0 %v5039, 32
        %v5069 = vpop.permute.xlu0 %5068
        %5070 = vrot.lane.b32.xlu0 %v5041, 32
        %v5071 = vpop.permute.xlu0 %5070
        %5072 = vrot.lane.b32.xlu0 %v5043, 32
        %v5073 = vpop.permute.xlu0 %5072
        %5074 = vrot.lane.b32.xlu0 %v5042, 32
        %v5075 = vpop.permute.xlu0 %5074
        %5092 = vst.msk [vmem:[#allocation3 + $0x8] sm:$0xff] %vm1683, %v5045
        %5093 = vst.msk [vmem:[#allocation3 + $0x20] sm:$0xff] %vm1683, %v5047
        %5094 = vst.msk [vmem:[#allocation3 + $0x38] sm:$0xff] %vm1683, %v5049
        %5095 = vst.msk [vmem:[#allocation3 + $0x50] sm:$0xff] %vm1683, %v5051
        %5096 = vst.msk [vmem:[#allocation3 + $0x68] sm:$0xff] %vm1683, %v5053
        %5097 = vst.msk [vmem:[#allocation3 + $0x80] sm:$0xff] %vm1683, %v5055
        %5098 = vst.msk [vmem:[#allocation3 + $0x98] sm:$0xff] %vm1683, %v5057
        %5099 = vst.msk [vmem:[#allocation3 + $0xb0] sm:$0xff] %vm1683, %v5059
        %5100 = vst.msk [vmem:[#allocation3 + $0xc8] sm:$0xff] %vm1683, %v5061
        %5101 = vst.msk [vmem:[#allocation3 + $0xe0] sm:$0xff] %vm1683, %v5063
        %5102 = vst.msk [vmem:[#allocation3 + $0xf8] sm:$0xff] %vm1683, %v5065
        %5103 = vst.msk [vmem:[#allocation3 + $0x110] sm:$0xff] %vm1683, %v5067
        %5104 = vst.msk [vmem:[#allocation3 + $0x128] sm:$0xff] %vm1683, %v5069
        %5105 = vst.msk [vmem:[#allocation3 + $0x140] sm:$0xff] %vm1683, %v5071
        %5106 = vst.msk [vmem:[#allocation3 + $0x158] sm:$0xff] %vm1683, %v5073
        %5107 = vst.msk [vmem:[#allocation3 + $0x170] sm:$0x7f] %vm2006, %v5075
        %v5108 = vrot.slane %v4611, 2
        %v5109 = vrot.slane %v4612, 2
        %v5110 = vsel %vm2008, %v5108, %v5109
        %v5111 = vrot.slane %v4613, 2
        %v5112 = vsel %vm2008, %v5109, %v5111
        %v5113 = vrot.slane %v4614, 2
        %v5114 = vsel %vm2008, %v5111, %v5113
        %v5115 = vrot.slane %v4615, 2
        %v5116 = vsel %vm2008, %v5113, %v5115
        %v5117 = vrot.slane %v4616, 2
        %v5118 = vsel %vm2008, %v5115, %v5117
        %v5119 = vrot.slane %v4617, 2
        %v5120 = vsel %vm2008, %v5117, %v5119
        %v5121 = vrot.slane %v4618, 2
        %v5122 = vsel %vm2008, %v5119, %v5121
        %v5123 = vrot.slane %v4619, 2
        %v5124 = vsel %vm2008, %v5121, %v5123
        %v5125 = vrot.slane %v4620, 2
        %v5126 = vsel %vm2008, %v5123, %v5125
        %v5127 = vrot.slane %v4621, 2
        %v5128 = vsel %vm2008, %v5125, %v5127
        %v5129 = vrot.slane %v4622, 2
        %v5130 = vsel %vm2008, %v5127, %v5129
        %v5131 = vrot.slane %v4623, 2
        %v5132 = vsel %vm2008, %v5129, %v5131
        %v5133 = vrot.slane %v4624, 2
        %v5134 = vsel %vm2008, %v5131, %v5133
        %v5135 = vrot.slane %v4625, 2
        %v5136 = vsel %vm2008, %v5133, %v5135
        %v5137 = vrot.slane %v4626, 2
        %v5138 = vsel %vm2008, %v5135, %v5137
        %5139 = vrot.lane.b32.xlu0 %v5110, 64
        %v5140 = vpop.permute.xlu0 %5139
        %5141 = vrot.lane.b32.xlu0 %v5112, 64
        %v5142 = vpop.permute.xlu0 %5141
        %5143 = vrot.lane.b32.xlu0 %v5114, 64
        %v5144 = vpop.permute.xlu0 %5143
        %5145 = vrot.lane.b32.xlu0 %v5116, 64
        %v5146 = vpop.permute.xlu0 %5145
        %5147 = vrot.lane.b32.xlu0 %v5118, 64
        %v5148 = vpop.permute.xlu0 %5147
        %5149 = vrot.lane.b32.xlu0 %v5120, 64
        %v5150 = vpop.permute.xlu0 %5149
        %5151 = vrot.lane.b32.xlu0 %v5122, 64
        %v5152 = vpop.permute.xlu0 %5151
        %5153 = vrot.lane.b32.xlu0 %v5124, 64
        %v5154 = vpop.permute.xlu0 %5153
        %5155 = vrot.lane.b32.xlu0 %v5126, 64
        %v5156 = vpop.permute.xlu0 %5155
        %5157 = vrot.lane.b32.xlu0 %v5128, 64
        %v5158 = vpop.permute.xlu0 %5157
        %5159 = vrot.lane.b32.xlu0 %v5130, 64
        %v5160 = vpop.permute.xlu0 %5159
        %5161 = vrot.lane.b32.xlu0 %v5132, 64
        %v5162 = vpop.permute.xlu0 %5161
        %5163 = vrot.lane.b32.xlu0 %v5134, 64
        %v5164 = vpop.permute.xlu0 %5163
        %5165 = vrot.lane.b32.xlu0 %v5136, 64
        %v5166 = vpop.permute.xlu0 %5165
        %5167 = vrot.lane.b32.xlu0 %v5138, 64
        %v5168 = vpop.permute.xlu0 %5167
        %5169 = vrot.lane.b32.xlu0 %v5137, 64
        %v5170 = vpop.permute.xlu0 %5169
        %5187 = vst.msk [vmem:[#allocation3 + $0x8] sm:$0xff] %vm1781, %v5140
        %5188 = vst.msk [vmem:[#allocation3 + $0x20] sm:$0xff] %vm1781, %v5142
        %5189 = vst.msk [vmem:[#allocation3 + $0x38] sm:$0xff] %vm1781, %v5144
        %5190 = vst.msk [vmem:[#allocation3 + $0x50] sm:$0xff] %vm1781, %v5146
        %5191 = vst.msk [vmem:[#allocation3 + $0x68] sm:$0xff] %vm1781, %v5148
        %5192 = vst.msk [vmem:[#allocation3 + $0x80] sm:$0xff] %vm1781, %v5150
        %5193 = vst.msk [vmem:[#allocation3 + $0x98] sm:$0xff] %vm1781, %v5152
        %5194 = vst.msk [vmem:[#allocation3 + $0xb0] sm:$0xff] %vm1781, %v5154
        %5195 = vst.msk [vmem:[#allocation3 + $0xc8] sm:$0xff] %vm1781, %v5156
        %5196 = vst.msk [vmem:[#allocation3 + $0xe0] sm:$0xff] %vm1781, %v5158
        %5197 = vst.msk [vmem:[#allocation3 + $0xf8] sm:$0xff] %vm1781, %v5160
        %5198 = vst.msk [vmem:[#allocation3 + $0x110] sm:$0xff] %vm1781, %v5162
        %5199 = vst.msk [vmem:[#allocation3 + $0x128] sm:$0xff] %vm1781, %v5164
        %5200 = vst.msk [vmem:[#allocation3 + $0x140] sm:$0xff] %vm1781, %v5166
        %5201 = vst.msk [vmem:[#allocation3 + $0x158] sm:$0xff] %vm1781, %v5168
        %5202 = vst.msk [vmem:[#allocation3 + $0x170] sm:$0x3f] %vm2103, %v5170
        %v5203 = vrot.slane %v4611, 3
        %v5204 = vrot.slane %v4612, 3
        %v5205 = vsel %vm2105, %v5203, %v5204
        %v5206 = vrot.slane %v4613, 3
        %v5207 = vsel %vm2105, %v5204, %v5206
        %v5208 = vrot.slane %v4614, 3
        %v5209 = vsel %vm2105, %v5206, %v5208
        %v5210 = vrot.slane %v4615, 3
        %v5211 = vsel %vm2105, %v5208, %v5210
        %v5212 = vrot.slane %v4616, 3
        %v5213 = vsel %vm2105, %v5210, %v5212
        %v5214 = vrot.slane %v4617, 3
        %v5215 = vsel %vm2105, %v5212, %v5214
        %v5216 = vrot.slane %v4618, 3
        %v5217 = vsel %vm2105, %v5214, %v5216
        %v5218 = vrot.slane %v4619, 3
        %v5219 = vsel %vm2105, %v5216, %v5218
        %v5220 = vrot.slane %v4620, 3
        %v5221 = vsel %vm2105, %v5218, %v5220
        %v5222 = vrot.slane %v4621, 3
        %v5223 = vsel %vm2105, %v5220, %v5222
        %v5224 = vrot.slane %v4622, 3
        %v5225 = vsel %vm2105, %v5222, %v5224
        %v5226 = vrot.slane %v4623, 3
        %v5227 = vsel %vm2105, %v5224, %v5226
        %v5228 = vrot.slane %v4624, 3
        %v5229 = vsel %vm2105, %v5226, %v5228
        %v5230 = vrot.slane %v4625, 3
        %v5231 = vsel %vm2105, %v5228, %v5230
        %v5232 = vrot.slane %v4626, 3
        %v5233 = vsel %vm2105, %v5230, %v5232
        %5234 = vrot.lane.b32.xlu0 %v5205, 96
        %v5235 = vpop.permute.xlu0 %5234
        %5236 = vrot.lane.b32.xlu0 %v5207, 96
        %v5237 = vpop.permute.xlu0 %5236
        %5238 = vrot.lane.b32.xlu0 %v5209, 96
        %v5239 = vpop.permute.xlu0 %5238
        %5240 = vrot.lane.b32.xlu0 %v5211, 96
        %v5241 = vpop.permute.xlu0 %5240
        %5242 = vrot.lane.b32.xlu0 %v5213, 96
        %v5243 = vpop.permute.xlu0 %5242
        %5244 = vrot.lane.b32.xlu0 %v5215, 96
        %v5245 = vpop.permute.xlu0 %5244
        %5246 = vrot.lane.b32.xlu0 %v5217, 96
        %v5247 = vpop.permute.xlu0 %5246
        %5248 = vrot.lane.b32.xlu0 %v5219, 96
        %v5249 = vpop.permute.xlu0 %5248
        %5250 = vrot.lane.b32.xlu0 %v5221, 96
        %v5251 = vpop.permute.xlu0 %5250
        %5252 = vrot.lane.b32.xlu0 %v5223, 96
        %v5253 = vpop.permute.xlu0 %5252
        %5254 = vrot.lane.b32.xlu0 %v5225, 96
        %v5255 = vpop.permute.xlu0 %5254
        %5256 = vrot.lane.b32.xlu0 %v5227, 96
        %v5257 = vpop.permute.xlu0 %5256
        %5258 = vrot.lane.b32.xlu0 %v5229, 96
        %v5259 = vpop.permute.xlu0 %5258
        %5260 = vrot.lane.b32.xlu0 %v5231, 96
        %v5261 = vpop.permute.xlu0 %5260
        %5262 = vrot.lane.b32.xlu0 %v5233, 96
        %v5263 = vpop.permute.xlu0 %5262
        %5264 = vrot.lane.b32.xlu0 %v5232, 96
        %v5265 = vpop.permute.xlu0 %5264
        %5282 = vst.msk [vmem:[#allocation3 + $0x8] sm:$0xff] %vm1879, %v5235
        %5283 = vst.msk [vmem:[#allocation3 + $0x20] sm:$0xff] %vm1879, %v5237
        %5284 = vst.msk [vmem:[#allocation3 + $0x38] sm:$0xff] %vm1879, %v5239
        %5285 = vst.msk [vmem:[#allocation3 + $0x50] sm:$0xff] %vm1879, %v5241
        %5286 = vst.msk [vmem:[#allocation3 + $0x68] sm:$0xff] %vm1879, %v5243
        %5287 = vst.msk [vmem:[#allocation3 + $0x80] sm:$0xff] %vm1879, %v5245
        %5288 = vst.msk [vmem:[#allocation3 + $0x98] sm:$0xff] %vm1879, %v5247
        %5289 = vst.msk [vmem:[#allocation3 + $0xb0] sm:$0xff] %vm1879, %v5249
        %5290 = vst.msk [vmem:[#allocation3 + $0xc8] sm:$0xff] %vm1879, %v5251
        %5291 = vst.msk [vmem:[#allocation3 + $0xe0] sm:$0xff] %vm1879, %v5253
        %5292 = vst.msk [vmem:[#allocation3 + $0xf8] sm:$0xff] %vm1879, %v5255
        %5293 = vst.msk [vmem:[#allocation3 + $0x110] sm:$0xff] %vm1879, %v5257
        %5294 = vst.msk [vmem:[#allocation3 + $0x128] sm:$0xff] %vm1879, %v5259
        %5295 = vst.msk [vmem:[#allocation3 + $0x140] sm:$0xff] %vm1879, %v5261
        %5296 = vst.msk [vmem:[#allocation3 + $0x158] sm:$0xff] %vm1879, %v5263
        %5297 = vst.msk [vmem:[#allocation3 + $0x170] sm:$0x1f] %vm2200, %v5265
        %5299 = vst.msk [vmem:[#allocation3 + $0x10] sm:$0xff] %vm887, %v4651
        %5300 = vst.msk [vmem:[#allocation3 + $0x28] sm:$0xff] %vm887, %v4653
        %5301 = vst.msk [vmem:[#allocation3 + $0x40] sm:$0xff] %vm887, %v4655
        %5302 = vst.msk [vmem:[#allocation3 + $0x58] sm:$0xff] %vm887, %v4657
        %5303 = vst.msk [vmem:[#allocation3 + $0x70] sm:$0xff] %vm887, %v4659
        %5304 = vst.msk [vmem:[#allocation3 + $0x88] sm:$0xff] %vm887, %v4661
        %5305 = vst.msk [vmem:[#allocation3 + $0xa0] sm:$0xff] %vm887, %v4663
        %5306 = vst.msk [vmem:[#allocation3 + $0xb8] sm:$0xff] %vm887, %v4665
        %5307 = vst.msk [vmem:[#allocation3 + $0xd0] sm:$0xff] %vm887, %v4667
        %5308 = vst.msk [vmem:[#allocation3 + $0xe8] sm:$0xff] %vm887, %v4669
        %5309 = vst.msk [vmem:[#allocation3 + $0x100] sm:$0xff] %vm887, %v4671
        %5310 = vst.msk [vmem:[#allocation3 + $0x118] sm:$0xff] %vm887, %v4673
        %5311 = vst.msk [vmem:[#allocation3 + $0x130] sm:$0xff] %vm887, %v4675
        %5312 = vst.msk [vmem:[#allocation3 + $0x148] sm:$0xff] %vm887, %v4677
        %5313 = vst.msk [vmem:[#allocation3 + $0x160] sm:$0xff] %vm887, %v4679
        %5314 = vst.msk [vmem:[#allocation3 + $0x178] sm:$0xf] %vm1515, %v4678
        %v5315 = vld [vmem:[#allocation3] sm:$0xff]
        %v5316 = vld [vmem:[#allocation3 + $0x8] sm:$0xff]
        %v5317 = vld [vmem:[#allocation3 + $0x10] sm:$0xff]
        %v5318 = vld [vmem:[#allocation3 + $0x18] sm:$0xff]
        %v5319 = vld [vmem:[#allocation3 + $0x20] sm:$0xff]
        %v5320 = vld [vmem:[#allocation3 + $0x28] sm:$0xff]
        %v5321 = vld [vmem:[#allocation3 + $0x30] sm:$0xff]
        %v5322 = vld [vmem:[#allocation3 + $0x38] sm:$0xff]
        %v5323 = vld [vmem:[#allocation3 + $0x40] sm:$0xff]
        %v5324 = vld [vmem:[#allocation3 + $0x48] sm:$0xff]
        %v5325 = vld [vmem:[#allocation3 + $0x50] sm:$0xff]
        %v5326 = vld [vmem:[#allocation3 + $0x58] sm:$0xff]
        %v5327 = vld [vmem:[#allocation3 + $0x60] sm:$0xff]
        %v5328 = vld [vmem:[#allocation3 + $0x68] sm:$0xff]
        %v5329 = vld [vmem:[#allocation3 + $0x70] sm:$0xff]
        %v5330 = vld [vmem:[#allocation3 + $0x78] sm:$0xff]
        %v5331 = vld [vmem:[#allocation3 + $0x80] sm:$0xff]
        %v5332 = vld [vmem:[#allocation3 + $0x88] sm:$0xff]
        %v5333 = vld [vmem:[#allocation3 + $0x90] sm:$0xff]
        %v5334 = vld [vmem:[#allocation3 + $0x98] sm:$0xff]
        %v5335 = vld [vmem:[#allocation3 + $0xa0] sm:$0xff]
        %v5336 = vld [vmem:[#allocation3 + $0xa8] sm:$0xff]
        %v5337 = vld [vmem:[#allocation3 + $0xb0] sm:$0xff]
        %v5338 = vld [vmem:[#allocation3 + $0xb8] sm:$0xff]
        %v5339 = vld [vmem:[#allocation3 + $0xc0] sm:$0xff]
        %v5340 = vld [vmem:[#allocation3 + $0xc8] sm:$0xff]
        %v5341 = vld [vmem:[#allocation3 + $0xd0] sm:$0xff]
        %v5342 = vld [vmem:[#allocation3 + $0xd8] sm:$0xff]
        %v5343 = vld [vmem:[#allocation3 + $0xe0] sm:$0xff]
        %v5344 = vld [vmem:[#allocation3 + $0xe8] sm:$0xff]
        %v5345 = vld [vmem:[#allocation3 + $0xf0] sm:$0xff]
        %v5346 = vld [vmem:[#allocation3 + $0xf8] sm:$0xff]
        %v5347 = vld [vmem:[#allocation3 + $0x100] sm:$0xff]
        %v5348 = vld [vmem:[#allocation3 + $0x108] sm:$0xff]
        %v5349 = vld [vmem:[#allocation3 + $0x110] sm:$0xff]
        %v5350 = vld [vmem:[#allocation3 + $0x118] sm:$0xff]
        %v5351 = vld [vmem:[#allocation3 + $0x120] sm:$0xff]
        %v5352 = vld [vmem:[#allocation3 + $0x128] sm:$0xff]
        %v5353 = vld [vmem:[#allocation3 + $0x130] sm:$0xff]
        %v5354 = vld [vmem:[#allocation3 + $0x138] sm:$0xff]
        %v5355 = vld [vmem:[#allocation3 + $0x140] sm:$0xff]
        %v5356 = vld [vmem:[#allocation3 + $0x148] sm:$0xff]
        %v5357 = vld [vmem:[#allocation3 + $0x150] sm:$0xff]
        %v5358 = vld [vmem:[#allocation3 + $0x158] sm:$0xff]
        %v5359 = vld [vmem:[#allocation3 + $0x160] sm:$0xff]
        %v5360 = vld [vmem:[#allocation3 + $0x168] sm:$0xff]
        %v5361 = vld [vmem:[#allocation3 + $0x170] sm:$0xff]
        %v5362 = vld [vmem:[#allocation3 + $0x178] sm:$0xff]
        %s5363 = scalar_lea.vmem %s1, 1152
        %v5364 = vld [vmem:[%s5363] sm:$0xff]
        %v5365 = vld [vmem:[%s5363 + $0x8] sm:$0xff]
        %v5366 = vld [vmem:[%s5363 + $0x10] sm:$0xff]
        %v5367 = vld [vmem:[%s5363 + $0x18] sm:$0xff]
        %v5368 = vld [vmem:[%s5363 + $0x20] sm:$0xff]
        %v5369 = vld [vmem:[%s5363 + $0x28] sm:$0xff]
        %v5370 = vld [vmem:[%s5363 + $0x30] sm:$0xff]
        %v5371 = vld [vmem:[%s5363 + $0x38] sm:$0xff]
        %v5372 = vld [vmem:[%s5363 + $0x40] sm:$0xff]
        %v5373 = vld [vmem:[%s5363 + $0x48] sm:$0xff]
        %v5374 = vld [vmem:[%s5363 + $0x50] sm:$0xff]
        %v5375 = vld [vmem:[%s5363 + $0x58] sm:$0xff]
        %v5376 = vld [vmem:[%s5363 + $0x60] sm:$0xff]
        %v5377 = vld [vmem:[%s5363 + $0x68] sm:$0xff]
        %v5378 = vld [vmem:[%s5363 + $0x70] sm:$0xff]
        %v5379 = vld [vmem:[%s5363 + $0x78] sm:$0xff]
        %v5380 = vld [vmem:[%s5363 + $0x80] sm:$0xff]
        %v5381 = vld [vmem:[%s5363 + $0x88] sm:$0xff]
        %v5382 = vld [vmem:[%s5363 + $0x90] sm:$0xff]
        %v5383 = vld [vmem:[%s5363 + $0x98] sm:$0xff]
        %v5384 = vld [vmem:[%s5363 + $0xa0] sm:$0xff]
        %v5385 = vld [vmem:[%s5363 + $0xa8] sm:$0xff]
        %v5386 = vld [vmem:[%s5363 + $0xb0] sm:$0xff]
        %v5387 = vld [vmem:[%s5363 + $0xb8] sm:$0xff]
        %v5388 = vld [vmem:[%s5363 + $0xc0] sm:$0xff]
        %v5389 = vld [vmem:[%s5363 + $0xc8] sm:$0xff]
        %v5390 = vld [vmem:[%s5363 + $0xd0] sm:$0xff]
        %v5391 = vld [vmem:[%s5363 + $0xd8] sm:$0xff]
        %v5392 = vld [vmem:[%s5363 + $0xe0] sm:$0xff]
        %v5393 = vld [vmem:[%s5363 + $0xe8] sm:$0xff]
        %v5394 = vld [vmem:[%s5363 + $0xf0] sm:$0xff]
        %v5395 = vld [vmem:[%s5363 + $0xf8] sm:$0xff]
        %v5396 = vld [vmem:[%s5363 + $0x100] sm:$0xff]
        %v5397 = vld [vmem:[%s5363 + $0x108] sm:$0xff]
        %v5398 = vld [vmem:[%s5363 + $0x110] sm:$0xff]
        %v5399 = vld [vmem:[%s5363 + $0x118] sm:$0xff]
        %v5400 = vld [vmem:[%s2 + $0x4] sm:$0x1]
        %v5401 = vlaneseq
        %v5402 = vshrl.u32 %v5401, 7
        %v5403 = vsub.s32 0, %v5402
        %v5404 = vrot.slane %v5400, %v5403
        %v5406 = vsel %vm887, %v5317, 0
        %v5409 = vsel %vm887, %v5320, 0
        %v5412 = vsel %vm887, %v5323, 0
        %v5415 = vsel %vm887, %v5326, 0
        %v5418 = vsel %vm887, %v5329, 0
        %v5421 = vsel %vm887, %v5332, 0
        %v5424 = vsel %vm887, %v5335, 0
        %v5427 = vsel %vm887, %v5338, 0
        %v5430 = vsel %vm887, %v5341, 0
        %v5433 = vsel %vm887, %v5344, 0
        %v5436 = vsel %vm887, %v5347, 0
        %v5439 = vsel %vm887, %v5350, 0
        %v5442 = vsel %vm887, %v5353, 0
        %v5445 = vsel %vm887, %v5356, 0
        %v5448 = vsel %vm887, %v5359, 0
        %v5451 = vsel %vm887, %v5362, 0
        %5453 = vmatprep.subr.mxu0 0.0
        %5454 = vmatpush1.msra.mxu0 %v5364
        %5455 = vmatprep.subr.mxu0 0.0
        %5456 = vmatpush1.msra.mxu0 %v5365
        %5457 = vmatprep.subr.mxu0 0.0
        %5458 = vmatpush1.msra.mxu0 %v5366
        %5459 = vmatprep.subr.mxu0 0.0
        %5460 = vmatpush1.msra.mxu0 %v5367
        %5461 = vmatprep.subr.mxu0 0.0
        %5462 = vmatpush1.msra.mxu0 %v5368
        %5463 = vmatprep.subr.mxu0 0.0
        %5464 = vmatpush1.msra.mxu0 %v5369
        %5465 = vmatprep.subr.mxu0 0.0
        %5466 = vmatpush1.msra.mxu0 %v5370
        %5467 = vmatprep.subr.mxu0 0.0
        %5468 = vmatpush1.msra.mxu0 %v5371
        %5469 = vmatprep.subr.mxu0 0.0
        %5470 = vmatpush1.msra.mxu0 %v5372
        %5471 = vmatprep.subr.mxu0 0.0
        %5472 = vmatpush1.msra.mxu0 %v5373
        %5473 = vmatprep.subr.mxu0 0.0
        %5474 = vmatpush1.msra.mxu0 %v5374
        %5475 = vmatprep.subr.mxu0 0.0
        %5476 = vmatpush1.msra.mxu0 %v5375
        %5477 = vmatprep.subr.mxu0 0.0
        %5478 = vmatpush1.msra.mxu0 %v5376
        %5479 = vmatprep.subr.mxu0 0.0
        %5480 = vmatpush1.msra.mxu0 %v5377
        %5481 = vmatprep.subr.mxu0 0.0
        %5482 = vmatpush1.msra.mxu0 %v5378
        %5483 = vmatprep.subr.mxu0 0.0
        %5484 = vmatpush1.msra.mxu0 %v5379
        %5485 = vmatprep.subr.mxu0 0.0
        %5486 = vmatpush1.msra.mxu0 %v5380
        %5487 = vmatprep.subr.mxu0 0.0
        %5488 = vmatpush1.msra.mxu0 %v5381
        %5489 = vmatprep.subr.mxu0 0.0
        %5490 = vmatpush1.msra.mxu0 %v5382
        %5491 = vmatprep.subr.mxu0 0.0
        %5492 = vmatpush1.msra.mxu0 %v5383
        %5493 = vmatprep.subr.mxu0 0.0
        %5494 = vmatpush1.msra.mxu0 %v5384
        %5495 = vmatprep.subr.mxu0 0.0
        %5496 = vmatpush1.msra.mxu0 %v5385
        %5497 = vmatprep.subr.mxu0 0.0
        %5498 = vmatpush1.msra.mxu0 %v5386
        %5499 = vmatprep.subr.mxu0 0.0
        %5500 = vmatpush1.msra.mxu0 %v5387
        %5501 = vmatprep.subr.mxu0 0.0
        %5502 = vmatpush1.msra.mxu0 %v5388
        %5503 = vmatprep.subr.mxu0 0.0
        %5504 = vmatpush1.msra.mxu0 %v5389
        %5505 = vmatprep.subr.mxu0 0.0
        %5506 = vmatpush1.msra.mxu0 %v5390
        %5507 = vmatprep.subr.mxu0 0.0
        %5508 = vmatpush1.msra.mxu0 %v5391
        %5509 = vmatprep.subr.mxu0 0.0
        %5510 = vmatpush1.msra.mxu0 %v5392
        %5511 = vmatprep.subr.mxu0 0.0
        %5512 = vmatpush1.msra.mxu0 %v5393
        %5513 = vmatprep.subr.mxu0 0.0
        %5514 = vmatpush1.msra.mxu0 %v5394
        %5515 = vmatprep.subr.mxu0 0.0
        %5516 = vmatpush1.msra.mxu0 %v5395
        %5517 = vmatprep.mubr.f32.mxu0 %v5316
        %5518 = vmatmul.mubr.f32.gmra.mrb[0].mxu0 %v5315
        %v5519 = vpop.f32.mrb[0].mxu0
        %v5520 = vadd.f32 %v5404, %v5519
        %v5521 = vpop.f32.mrb[0].mxu0
        %5522 = vmatprep.mubr.f32.mxu0 %v5319
        %5523 = vmatmul.mubr.f32.gmra.mrb[0].mxu0 %v5318
        %v5524 = vpop.f32.mrb[0].mxu0
        %v5525 = vadd.f32 %v5404, %v5524
        %v5526 = vpop.f32.mrb[0].mxu0
        %5527 = vmatprep.mubr.f32.mxu0 %v5322
        %5528 = vmatmul.mubr.f32.gmra.mrb[0].mxu0 %v5321
        %v5529 = vpop.f32.mrb[0].mxu0
        %v5530 = vadd.f32 %v5404, %v5529
        %v5531 = vpop.f32.mrb[0].mxu0
        %5532 = vmatprep.mubr.f32.mxu0 %v5325
        %5533 = vmatmul.mubr.f32.gmra.mrb[0].mxu0 %v5324
        %v5534 = vpop.f32.mrb[0].mxu0
        %v5535 = vadd.f32 %v5404, %v5534
        %v5536 = vpop.f32.mrb[0].mxu0
        %5537 = vmatprep.mubr.f32.mxu0 %v5328
        %5538 = vmatmul.mubr.f32.gmra.mrb[0].mxu0 %v5327
        %v5539 = vpop.f32.mrb[0].mxu0
        %v5540 = vadd.f32 %v5404, %v5539
        %v5541 = vpop.f32.mrb[0].mxu0
        %5542 = vmatprep.mubr.f32.mxu0 %v5331
        %5543 = vmatmul.mubr.f32.gmra.mrb[0].mxu0 %v5330
        %v5544 = vpop.f32.mrb[0].mxu0
        %v5545 = vadd.f32 %v5404, %v5544
        %v5546 = vpop.f32.mrb[0].mxu0
        %5547 = vmatprep.mubr.f32.mxu0 %v5334
        %5548 = vmatmul.mubr.f32.gmra.mrb[0].mxu0 %v5333
        %v5549 = vpop.f32.mrb[0].mxu0
        %v5550 = vadd.f32 %v5404, %v5549
        %v5551 = vpop.f32.mrb[0].mxu0
        %5552 = vmatprep.mubr.f32.mxu0 %v5337
        %5553 = vmatmul.mubr.f32.gmra.mrb[0].mxu0 %v5336
        %v5554 = vpop.f32.mrb[0].mxu0
        %v5555 = vadd.f32 %v5404, %v5554
        %v5556 = vpop.f32.mrb[0].mxu0
        %5557 = vmatprep.mubr.f32.mxu0 %v5340
        %5558 = vmatmul.mubr.f32.gmra.mrb[0].mxu0 %v5339
        %v5559 = vpop.f32.mrb[0].mxu0
        %v5560 = vadd.f32 %v5404, %v5559
        %v5561 = vpop.f32.mrb[0].mxu0
        %5562 = vmatprep.mubr.f32.mxu0 %v5343
        %5563 = vmatmul.mubr.f32.gmra.mrb[0].mxu0 %v5342
        %v5564 = vpop.f32.mrb[0].mxu0
        %v5565 = vadd.f32 %v5404, %v5564
        %v5566 = vpop.f32.mrb[0].mxu0
        %5567 = vmatprep.mubr.f32.mxu0 %v5346
        %5568 = vmatmul.mubr.f32.gmra.mrb[0].mxu0 %v5345
        %v5569 = vpop.f32.mrb[0].mxu0
        %v5570 = vadd.f32 %v5404, %v5569
        %v5571 = vpop.f32.mrb[0].mxu0
        %5572 = vmatprep.mubr.f32.mxu0 %v5349
        %5573 = vmatmul.mubr.f32.gmra.mrb[0].mxu0 %v5348
        %v5574 = vpop.f32.mrb[0].mxu0
        %v5575 = vadd.f32 %v5404, %v5574
        %v5576 = vpop.f32.mrb[0].mxu0
        %5577 = vmatprep.mubr.f32.mxu0 %v5352
        %5578 = vmatmul.mubr.f32.gmra.mrb[0].mxu0 %v5351
        %v5579 = vpop.f32.mrb[0].mxu0
        %v5580 = vadd.f32 %v5404, %v5579
        %v5581 = vpop.f32.mrb[0].mxu0
        %5582 = vmatprep.mubr.f32.mxu0 %v5355
        %5583 = vmatmul.mubr.f32.gmra.mrb[0].mxu0 %v5354
        %v5584 = vpop.f32.mrb[0].mxu0
        %v5585 = vadd.f32 %v5404, %v5584
        %v5586 = vpop.f32.mrb[0].mxu0
        %5587 = vmatprep.mubr.f32.mxu0 %v5358
        %5588 = vmatmul.mubr.f32.gmra.mrb[0].mxu0 %v5357
        %v5589 = vpop.f32.mrb[0].mxu0
        %v5590 = vadd.f32 %v5404, %v5589
        %v5591 = vpop.f32.mrb[0].mxu0
        %5592 = vmatprep.mubr.f32.mxu0 %v5361
        %5593 = vmatmul.mubr.f32.gmra.mrb[0].mxu0 %v5360
        %v5594 = vpop.f32.mrb[0].mxu0
        %v5595 = vadd.f32 %v5404, %v5594
        %v5596 = vpop.f32.mrb[0].mxu0
        %5597 = vdwg.mxu0
        %5598 = vmatprep.subr.mxu0 0.0
        %5599 = vmatpush1.msra.mxu0 %v5396
        %5600 = vmatprep.subr.mxu0 0.0
        %5601 = vmatpush1.msra.mxu0 %v5397
        %5602 = vmatprep.subr.mxu0 0.0
        %5603 = vmatpush1.msra.mxu0 %v5398
        %5604 = vmatprep.subr.mxu0 0.0
        %5605 = vmatpush1.msra.mxu0 %v5399
        %5606 = vmatprep.subr.mxu0 0.0
        %5607 = vmatpush1.msra.mxu0 0.0
        %5608 = vmatprep.subr.mxu0 0.0
        %5609 = vmatpush1.msra.mxu0 0.0
        %5610 = vmatprep.subr.mxu0 0.0
        %5611 = vmatpush1.msra.mxu0 0.0
        %5612 = vmatprep.subr.mxu0 0.0
        %5613 = vmatpush1.msra.mxu0 0.0
        %5614 = vmatprep.subr.mxu0 0.0
        %5615 = vmatpush1.msra.mxu0 0.0
        %5616 = vmatprep.subr.mxu0 0.0
        %5617 = vmatpush1.msra.mxu0 0.0
        %5618 = vmatprep.subr.mxu0 0.0
        %5619 = vmatpush1.msra.mxu0 0.0
        %5620 = vmatprep.subr.mxu0 0.0
        %5621 = vmatpush1.msra.mxu0 0.0
        %5622 = vmatprep.subr.mxu0 0.0
        %5623 = vmatpush1.msra.mxu0 0.0
        %5624 = vmatprep.subr.mxu0 0.0
        %5625 = vmatpush1.msra.mxu0 0.0
        %5626 = vmatprep.subr.mxu0 0.0
        %5627 = vmatpush1.msra.mxu0 0.0
        %5628 = vmatprep.subr.mxu0 0.0
        %5629 = vmatpush1.msra.mxu0 0.0
        %5630 = vmatprep.subr.mxu0 0.0
        %5631 = vmatpush1.msra.mxu0 0.0
        %5632 = vmatprep.subr.mxu0 0.0
        %5633 = vmatpush1.msra.mxu0 0.0
        %5634 = vmatprep.subr.mxu0 0.0
        %5635 = vmatpush1.msra.mxu0 0.0
        %5636 = vmatprep.subr.mxu0 0.0
        %5637 = vmatpush1.msra.mxu0 0.0
        %5638 = vmatprep.subr.mxu0 0.0
        %5639 = vmatpush1.msra.mxu0 0.0
        %5640 = vmatprep.subr.mxu0 0.0
        %5641 = vmatpush1.msra.mxu0 0.0
        %5642 = vmatprep.subr.mxu0 0.0
        %5643 = vmatpush1.msra.mxu0 0.0
        %5644 = vmatprep.subr.mxu0 0.0
        %5645 = vmatpush1.msra.mxu0 0.0
        %5646 = vmatprep.subr.mxu0 0.0
        %5647 = vmatpush1.msra.mxu0 0.0
        %5648 = vmatprep.subr.mxu0 0.0
        %5649 = vmatpush1.msra.mxu0 0.0
        %5650 = vmatprep.subr.mxu0 0.0
        %5651 = vmatpush1.msra.mxu0 0.0
        %5652 = vmatprep.subr.mxu0 0.0
        %5653 = vmatpush1.msra.mxu0 0.0
        %5654 = vmatprep.subr.mxu0 0.0
        %5655 = vmatpush1.msra.mxu0 0.0
        %5656 = vmatprep.subr.mxu0 0.0
        %5657 = vmatpush1.msra.mxu0 0.0
        %5658 = vmatprep.subr.mxu0 0.0
        %5659 = vmatpush1.msra.mxu0 0.0
        %5660 = vmatprep.subr.mxu0 0.0
        %5661 = vmatpush1.msra.mxu0 0.0
        %5662 = vmatprep.mubr.f32.mxu0 0.0
        %5663 = vmatmul.mubr.f32.gmra.mrb[0].mxu0 %v5406
        %v5664 = vpop.f32.mrb[0].mxu0
        %v5665 = vadd.f32 %v5520, %v5664
        %v5666 = vpop.f32.mrb[0].mxu0
        %5667 = vmatprep.mubr.f32.mxu0 0.0
        %5668 = vmatmul.mubr.f32.gmra.mrb[0].mxu0 %v5409
        %v5669 = vpop.f32.mrb[0].mxu0
        %v5670 = vadd.f32 %v5525, %v5669
        %v5671 = vpop.f32.mrb[0].mxu0
        %5672 = vmatprep.mubr.f32.mxu0 0.0
        %5673 = vmatmul.mubr.f32.gmra.mrb[0].mxu0 %v5412
        %v5674 = vpop.f32.mrb[0].mxu0
        %v5675 = vadd.f32 %v5530, %v5674
        %v5676 = vpop.f32.mrb[0].mxu0
        %5677 = vmatprep.mubr.f32.mxu0 0.0
        %5678 = vmatmul.mubr.f32.gmra.mrb[0].mxu0 %v5415
        %v5679 = vpop.f32.mrb[0].mxu0
        %v5680 = vadd.f32 %v5535, %v5679
        %v5681 = vpop.f32.mrb[0].mxu0
        %5682 = vmatprep.mubr.f32.mxu0 0.0
        %5683 = vmatmul.mubr.f32.gmra.mrb[0].mxu0 %v5418
        %v5684 = vpop.f32.mrb[0].mxu0
        %v5685 = vadd.f32 %v5540, %v5684
        %v5686 = vpop.f32.mrb[0].mxu0
        %5687 = vmatprep.mubr.f32.mxu0 0.0
        %5688 = vmatmul.mubr.f32.gmra.mrb[0].mxu0 %v5421
        %v5689 = vpop.f32.mrb[0].mxu0
        %v5690 = vadd.f32 %v5545, %v5689
        %v5691 = vpop.f32.mrb[0].mxu0
        %5692 = vmatprep.mubr.f32.mxu0 0.0
        %5693 = vmatmul.mubr.f32.gmra.mrb[0].mxu0 %v5424
        %v5694 = vpop.f32.mrb[0].mxu0
        %v5695 = vadd.f32 %v5550, %v5694
        %v5696 = vpop.f32.mrb[0].mxu0
        %5697 = vmatprep.mubr.f32.mxu0 0.0
        %5698 = vmatmul.mubr.f32.gmra.mrb[0].mxu0 %v5427
        %v5699 = vpop.f32.mrb[0].mxu0
        %v5700 = vadd.f32 %v5555, %v5699
        %v5701 = vpop.f32.mrb[0].mxu0
        %5702 = vmatprep.mubr.f32.mxu0 0.0
        %5703 = vmatmul.mubr.f32.gmra.mrb[0].mxu0 %v5430
        %v5704 = vpop.f32.mrb[0].mxu0
        %v5705 = vadd.f32 %v5560, %v5704
        %v5706 = vpop.f32.mrb[0].mxu0
        %5707 = vmatprep.mubr.f32.mxu0 0.0
        %5708 = vmatmul.mubr.f32.gmra.mrb[0].mxu0 %v5433
        %v5709 = vpop.f32.mrb[0].mxu0
        %v5710 = vadd.f32 %v5565, %v5709
        %v5711 = vpop.f32.mrb[0].mxu0
        %5712 = vmatprep.mubr.f32.mxu0 0.0
        %5713 = vmatmul.mubr.f32.gmra.mrb[0].mxu0 %v5436
        %v5714 = vpop.f32.mrb[0].mxu0
        %v5715 = vadd.f32 %v5570, %v5714
        %v5716 = vpop.f32.mrb[0].mxu0
        %5717 = vmatprep.mubr.f32.mxu0 0.0
        %5718 = vmatmul.mubr.f32.gmra.mrb[0].mxu0 %v5439
        %v5719 = vpop.f32.mrb[0].mxu0
        %v5720 = vadd.f32 %v5575, %v5719
        %v5721 = vpop.f32.mrb[0].mxu0
        %5722 = vmatprep.mubr.f32.mxu0 0.0
        %5723 = vmatmul.mubr.f32.gmra.mrb[0].mxu0 %v5442
        %v5724 = vpop.f32.mrb[0].mxu0
        %v5725 = vadd.f32 %v5580, %v5724
        %v5726 = vpop.f32.mrb[0].mxu0
        %5727 = vmatprep.mubr.f32.mxu0 0.0
        %5728 = vmatmul.mubr.f32.gmra.mrb[0].mxu0 %v5445
        %v5729 = vpop.f32.mrb[0].mxu0
        %v5730 = vadd.f32 %v5585, %v5729
        %v5731 = vpop.f32.mrb[0].mxu0
        %5732 = vmatprep.mubr.f32.mxu0 0.0
        %5733 = vmatmul.mubr.f32.gmra.mrb[0].mxu0 %v5448
        %v5734 = vpop.f32.mrb[0].mxu0
        %v5735 = vadd.f32 %v5590, %v5734
        %v5736 = vpop.f32.mrb[0].mxu0
        %5737 = vmatprep.mubr.f32.mxu0 0.0
        %5738 = vmatmul.mubr.f32.gmra.mrb[0].mxu0 %v5451
        %v5739 = vpop.f32.mrb[0].mxu0
        %v5740 = vadd.f32 %v5595, %v5739
        %v5741 = vpop.f32.mrb[0].mxu0
        %5742 = vdwg.mxu0
        %v5743 = vmul.f32 %v5665, 0.5
        %v5744 = vmul.f32 %v5670, 0.5
        %v5745 = vmul.f32 %v5675, 0.5
        %v5746 = vmul.f32 %v5680, 0.5
        %v5747 = vmul.f32 %v5685, 0.5
        %v5748 = vmul.f32 %v5690, 0.5
        %v5749 = vmul.f32 %v5695, 0.5
        %v5750 = vmul.f32 %v5700, 0.5
        %v5751 = vmul.f32 %v5705, 0.5
        %v5752 = vmul.f32 %v5710, 0.5
        %v5753 = vmul.f32 %v5715, 0.5
        %v5754 = vmul.f32 %v5720, 0.5
        %v5755 = vmul.f32 %v5725, 0.5
        %v5756 = vmul.f32 %v5730, 0.5
        %v5757 = vmul.f32 %v5735, 0.5
        %v5758 = vmul.f32 %v5740, 0.5
        %v5759 = vmul.f32 %v5665, 0.70710677
        %v5760 = vmul.f32 %v5670, 0.70710677
        %v5761 = vmul.f32 %v5675, 0.70710677
        %v5762 = vmul.f32 %v5680, 0.70710677
        %v5763 = vmul.f32 %v5685, 0.70710677
        %v5764 = vmul.f32 %v5690, 0.70710677
        %v5765 = vmul.f32 %v5695, 0.70710677
        %v5766 = vmul.f32 %v5700, 0.70710677
        %v5767 = vmul.f32 %v5705, 0.70710677
        %v5768 = vmul.f32 %v5710, 0.70710677
        %v5769 = vmul.f32 %v5715, 0.70710677
        %v5770 = vmul.f32 %v5720, 0.70710677
        %v5771 = vmul.f32 %v5725, 0.70710677
        %v5772 = vmul.f32 %v5730, 0.70710677
        %v5773 = vmul.f32 %v5735, 0.70710677
        %v5774 = vmul.f32 %v5740, 0.70710677
        %v5775 = vand.u32 2147483647, %v5759
        %v5776 = vand.u32 2147483647, %v5760
        %v5777 = vand.u32 2147483647, %v5761
        %v5778 = vand.u32 2147483647, %v5762
        %v5779 = vand.u32 2147483647, %v5763
        %v5780 = vand.u32 2147483647, %v5764
        %v5781 = vand.u32 2147483647, %v5765
        %v5782 = vand.u32 2147483647, %v5766
        %v5783 = vand.u32 2147483647, %v5767
        %v5784 = vand.u32 2147483647, %v5768
        %v5785 = vand.u32 2147483647, %v5769
        %v5786 = vand.u32 2147483647, %v5770
        %v5787 = vand.u32 2147483647, %v5771
        %v5788 = vand.u32 2147483647, %v5772
        %v5789 = vand.u32 2147483647, %v5773
        %v5790 = vand.u32 2147483647, %v5774
        %v5791 = vmul.f32 %v5775, 0.3275911
        %v5792 = vmul.f32 %v5776, 0.3275911
        %v5793 = vmul.f32 %v5777, 0.3275911
        %v5794 = vmul.f32 %v5778, 0.3275911
        %v5795 = vmul.f32 %v5779, 0.3275911
        %v5796 = vmul.f32 %v5780, 0.3275911
        %v5797 = vmul.f32 %v5781, 0.3275911
        %v5798 = vmul.f32 %v5782, 0.3275911
        %v5799 = vmul.f32 %v5783, 0.3275911
        %v5800 = vmul.f32 %v5784, 0.3275911
        %v5801 = vmul.f32 %v5785, 0.3275911
        %v5802 = vmul.f32 %v5786, 0.3275911
        %v5803 = vmul.f32 %v5787, 0.3275911
        %v5804 = vmul.f32 %v5788, 0.3275911
        %v5805 = vmul.f32 %v5789, 0.3275911
        %v5806 = vmul.f32 %v5790, 0.3275911
        %v5807 = vadd.f32 %v5791, 1.0
        %v5808 = vadd.f32 %v5792, 1.0
        %v5809 = vadd.f32 %v5793, 1.0
        %v5810 = vadd.f32 %v5794, 1.0
        %v5811 = vadd.f32 %v5795, 1.0
        %v5812 = vadd.f32 %v5796, 1.0
        %v5813 = vadd.f32 %v5797, 1.0
        %v5814 = vadd.f32 %v5798, 1.0
        %v5815 = vadd.f32 %v5799, 1.0
        %v5816 = vadd.f32 %v5800, 1.0
        %v5817 = vadd.f32 %v5801, 1.0
        %v5818 = vadd.f32 %v5802, 1.0
        %v5819 = vadd.f32 %v5803, 1.0
        %v5820 = vadd.f32 %v5804, 1.0
        %v5821 = vadd.f32 %v5805, 1.0
        %v5822 = vadd.f32 %v5806, 1.0
        %v5823 = vrcp.pop %v5807
        %v5824 = vmul.f32 1.0, %v5823
        %v5825 = vrcp.pop %v5808
        %v5826 = vmul.f32 1.0, %v5825
        %v5827 = vrcp.pop %v5809
        %v5828 = vmul.f32 1.0, %v5827
        %v5829 = vrcp.pop %v5810
        %v5830 = vmul.f32 1.0, %v5829
        %v5831 = vrcp.pop %v5811
        %v5832 = vmul.f32 1.0, %v5831
        %v5833 = vrcp.pop %v5812
        %v5834 = vmul.f32 1.0, %v5833
        %v5835 = vrcp.pop %v5813
        %v5836 = vmul.f32 1.0, %v5835
        %v5837 = vrcp.pop %v5814
        %v5838 = vmul.f32 1.0, %v5837
        %v5839 = vrcp.pop %v5815
        %v5840 = vmul.f32 1.0, %v5839
        %v5841 = vrcp.pop %v5816
        %v5842 = vmul.f32 1.0, %v5841
        %v5843 = vrcp.pop %v5817
        %v5844 = vmul.f32 1.0, %v5843
        %v5845 = vrcp.pop %v5818
        %v5846 = vmul.f32 1.0, %v5845
        %v5847 = vrcp.pop %v5819
        %v5848 = vmul.f32 1.0, %v5847
        %v5849 = vrcp.pop %v5820
        %v5850 = vmul.f32 1.0, %v5849
        %v5851 = vrcp.pop %v5821
        %v5852 = vmul.f32 1.0, %v5851
        %v5853 = vrcp.pop %v5822
        %v5854 = vmul.f32 1.0, %v5853
        %v5855 = vmul.f32 %v5824, 1.0614054
        %v5856 = vmul.f32 %v5826, 1.0614054
        %v5857 = vmul.f32 %v5828, 1.0614054
        %v5858 = vmul.f32 %v5830, 1.0614054
        %v5859 = vmul.f32 %v5832, 1.0614054
        %v5860 = vmul.f32 %v5834, 1.0614054
        %v5861 = vmul.f32 %v5836, 1.0614054
        %v5862 = vmul.f32 %v5838, 1.0614054
        %v5863 = vmul.f32 %v5840, 1.0614054
        %v5864 = vmul.f32 %v5842, 1.0614054
        %v5865 = vmul.f32 %v5844, 1.0614054
        %v5866 = vmul.f32 %v5846, 1.0614054
        %v5867 = vmul.f32 %v5848, 1.0614054
        %v5868 = vmul.f32 %v5850, 1.0614054
        %v5869 = vmul.f32 %v5852, 1.0614054
        %v5870 = vmul.f32 %v5854, 1.0614054
        %v5871 = vadd.f32 %v5855, -1.4531521
        %v5872 = vadd.f32 %v5856, -1.4531521
        %v5873 = vadd.f32 %v5857, -1.4531521
        %v5874 = vadd.f32 %v5858, -1.4531521
        %v5875 = vadd.f32 %v5859, -1.4531521
        %v5876 = vadd.f32 %v5860, -1.4531521
        %v5877 = vadd.f32 %v5861, -1.4531521
        %v5878 = vadd.f32 %v5862, -1.4531521
        %v5879 = vadd.f32 %v5863, -1.4531521
        %v5880 = vadd.f32 %v5864, -1.4531521
        %v5881 = vadd.f32 %v5865, -1.4531521
        %v5882 = vadd.f32 %v5866, -1.4531521
        %v5883 = vadd.f32 %v5867, -1.4531521
        %v5884 = vadd.f32 %v5868, -1.4531521
        %v5885 = vadd.f32 %v5869, -1.4531521
        %v5886 = vadd.f32 %v5870, -1.4531521
        %v5887 = vmul.f32 %v5871, %v5824
        %v5888 = vmul.f32 %v5872, %v5826
        %v5889 = vmul.f32 %v5873, %v5828
        %v5890 = vmul.f32 %v5874, %v5830
        %v5891 = vmul.f32 %v5875, %v5832
        %v5892 = vmul.f32 %v5876, %v5834
        %v5893 = vmul.f32 %v5877, %v5836
        %v5894 = vmul.f32 %v5878, %v5838
        %v5895 = vmul.f32 %v5879, %v5840
        %v5896 = vmul.f32 %v5880, %v5842
        %v5897 = vmul.f32 %v5881, %v5844
        %v5898 = vmul.f32 %v5882, %v5846
        %v5899 = vmul.f32 %v5883, %v5848
        %v5900 = vmul.f32 %v5884, %v5850
        %v5901 = vmul.f32 %v5885, %v5852
        %v5902 = vmul.f32 %v5886, %v5854
        %v5903 = vadd.f32 %v5887, 1.4214138
        %v5904 = vadd.f32 %v5888, 1.4214138
        %v5905 = vadd.f32 %v5889, 1.4214138
        %v5906 = vadd.f32 %v5890, 1.4214138
        %v5907 = vadd.f32 %v5891, 1.4214138
        %v5908 = vadd.f32 %v5892, 1.4214138
        %v5909 = vadd.f32 %v5893, 1.4214138
        %v5910 = vadd.f32 %v5894, 1.4214138
        %v5911 = vadd.f32 %v5895, 1.4214138
        %v5912 = vadd.f32 %v5896, 1.4214138
        %v5913 = vadd.f32 %v5897, 1.4214138
        %v5914 = vadd.f32 %v5898, 1.4214138
        %v5915 = vadd.f32 %v5899, 1.4214138
        %v5916 = vadd.f32 %v5900, 1.4214138
        %v5917 = vadd.f32 %v5901, 1.4214138
        %v5918 = vadd.f32 %v5902, 1.4214138
        %v5919 = vmul.f32 %v5903, %v5824
        %v5920 = vmul.f32 %v5904, %v5826
        %v5921 = vmul.f32 %v5905, %v5828
        %v5922 = vmul.f32 %v5906, %v5830
        %v5923 = vmul.f32 %v5907, %v5832
        %v5924 = vmul.f32 %v5908, %v5834
        %v5925 = vmul.f32 %v5909, %v5836
        %v5926 = vmul.f32 %v5910, %v5838
        %v5927 = vmul.f32 %v5911, %v5840
        %v5928 = vmul.f32 %v5912, %v5842
        %v5929 = vmul.f32 %v5913, %v5844
        %v5930 = vmul.f32 %v5914, %v5846
        %v5931 = vmul.f32 %v5915, %v5848
        %v5932 = vmul.f32 %v5916, %v5850
        %v5933 = vmul.f32 %v5917, %v5852
        %v5934 = vmul.f32 %v5918, %v5854
        %v5935 = vadd.f32 %v5919, -0.28449672
        %v5936 = vadd.f32 %v5920, -0.28449672
        %v5937 = vadd.f32 %v5921, -0.28449672
        %v5938 = vadd.f32 %v5922, -0.28449672
        %v5939 = vadd.f32 %v5923, -0.28449672
        %v5940 = vadd.f32 %v5924, -0.28449672
        %v5941 = vadd.f32 %v5925, -0.28449672
        %v5942 = vadd.f32 %v5926, -0.28449672
        %v5943 = vadd.f32 %v5927, -0.28449672
        %v5944 = vadd.f32 %v5928, -0.28449672
        %v5945 = vadd.f32 %v5929, -0.28449672
        %v5946 = vadd.f32 %v5930, -0.28449672
        %v5947 = vadd.f32 %v5931, -0.28449672
        %v5948 = vadd.f32 %v5932, -0.28449672
        %v5949 = vadd.f32 %v5933, -0.28449672
        %v5950 = vadd.f32 %v5934, -0.28449672
        %v5951 = vmul.f32 %v5935, %v5824
        %v5952 = vmul.f32 %v5936, %v5826
        %v5953 = vmul.f32 %v5937, %v5828
        %v5954 = vmul.f32 %v5938, %v5830
        %v5955 = vmul.f32 %v5939, %v5832
        %v5956 = vmul.f32 %v5940, %v5834
        %v5957 = vmul.f32 %v5941, %v5836
        %v5958 = vmul.f32 %v5942, %v5838
        %v5959 = vmul.f32 %v5943, %v5840
        %v5960 = vmul.f32 %v5944, %v5842
        %v5961 = vmul.f32 %v5945, %v5844
        %v5962 = vmul.f32 %v5946, %v5846
        %v5963 = vmul.f32 %v5947, %v5848
        %v5964 = vmul.f32 %v5948, %v5850
        %v5965 = vmul.f32 %v5949, %v5852
        %v5966 = vmul.f32 %v5950, %v5854
        %v5967 = vadd.f32 %v5951, 0.2548296
        %v5968 = vadd.f32 %v5952, 0.2548296
        %v5969 = vadd.f32 %v5953, 0.2548296
        %v5970 = vadd.f32 %v5954, 0.2548296
        %v5971 = vadd.f32 %v5955, 0.2548296
        %v5972 = vadd.f32 %v5956, 0.2548296
        %v5973 = vadd.f32 %v5957, 0.2548296
        %v5974 = vadd.f32 %v5958, 0.2548296
        %v5975 = vadd.f32 %v5959, 0.2548296
        %v5976 = vadd.f32 %v5960, 0.2548296
        %v5977 = vadd.f32 %v5961, 0.2548296
        %v5978 = vadd.f32 %v5962, 0.2548296
        %v5979 = vadd.f32 %v5963, 0.2548296
        %v5980 = vadd.f32 %v5964, 0.2548296
        %v5981 = vadd.f32 %v5965, 0.2548296
        %v5982 = vadd.f32 %v5966, 0.2548296
        %v5983 = vmul.f32 %v5967, %v5824
        %v5984 = vmul.f32 %v5968, %v5826
        %v5985 = vmul.f32 %v5969, %v5828
        %v5986 = vmul.f32 %v5970, %v5830
        %v5987 = vmul.f32 %v5971, %v5832
        %v5988 = vmul.f32 %v5972, %v5834
        %v5989 = vmul.f32 %v5973, %v5836
        %v5990 = vmul.f32 %v5974, %v5838
        %v5991 = vmul.f32 %v5975, %v5840
        %v5992 = vmul.f32 %v5976, %v5842
        %v5993 = vmul.f32 %v5977, %v5844
        %v5994 = vmul.f32 %v5978, %v5846
        %v5995 = vmul.f32 %v5979, %v5848
        %v5996 = vmul.f32 %v5980, %v5850
        %v5997 = vmul.f32 %v5981, %v5852
        %v5998 = vmul.f32 %v5982, %v5854
        %v5999 = vsub.f32 0.0, %v5775
        %v6000 = vsub.f32 0.0, %v5776
        %v6001 = vsub.f32 0.0, %v5777
        %v6002 = vsub.f32 0.0, %v5778
        %v6003 = vsub.f32 0.0, %v5779
        %v6004 = vsub.f32 0.0, %v5780
        %v6005 = vsub.f32 0.0, %v5781
        %v6006 = vsub.f32 0.0, %v5782
        %v6007 = vsub.f32 0.0, %v5783
        %v6008 = vsub.f32 0.0, %v5784
        %v6009 = vsub.f32 0.0, %v5785
        %v6010 = vsub.f32 0.0, %v5786
        %v6011 = vsub.f32 0.0, %v5787
        %v6012 = vsub.f32 0.0, %v5788
        %v6013 = vsub.f32 0.0, %v5789
        %v6014 = vsub.f32 0.0, %v5790
        %v6015 = vmul.f32 %v5999, %v5775
        %v6016 = vmul.f32 %v6000, %v5776
        %v6017 = vmul.f32 %v6001, %v5777
        %v6018 = vmul.f32 %v6002, %v5778
        %v6019 = vmul.f32 %v6003, %v5779
        %v6020 = vmul.f32 %v6004, %v5780
        %v6021 = vmul.f32 %v6005, %v5781
        %v6022 = vmul.f32 %v6006, %v5782
        %v6023 = vmul.f32 %v6007, %v5783
        %v6024 = vmul.f32 %v6008, %v5784
        %v6025 = vmul.f32 %v6009, %v5785
        %v6026 = vmul.f32 %v6010, %v5786
        %v6027 = vmul.f32 %v6011, %v5787
        %v6028 = vmul.f32 %v6012, %v5788
        %v6029 = vmul.f32 %v6013, %v5789
        %v6030 = vmul.f32 %v6014, %v5790
        %v6031 = vmul.f32 %v6015, 1.442695
        %v6032 = vpow.pop %v6031
        %v6033 = vmul.f32 %v6016, 1.442695
        %v6034 = vpow.pop %v6033
        %v6035 = vmul.f32 %v6017, 1.442695
        %v6036 = vpow.pop %v6035
        %v6037 = vmul.f32 %v6018, 1.442695
        %v6038 = vpow.pop %v6037
        %v6039 = vmul.f32 %v6019, 1.442695
        %v6040 = vpow.pop %v6039
        %v6041 = vmul.f32 %v6020, 1.442695
        %v6042 = vpow.pop %v6041
        %v6043 = vmul.f32 %v6021, 1.442695
        %v6044 = vpow.pop %v6043
        %v6045 = vmul.f32 %v6022, 1.442695
        %v6046 = vpow.pop %v6045
        %v6047 = vmul.f32 %v6023, 1.442695
        %v6048 = vpow.pop %v6047
        %v6049 = vmul.f32 %v6024, 1.442695
        %v6050 = vpow.pop %v6049
        %v6051 = vmul.f32 %v6025, 1.442695
        %v6052 = vpow.pop %v6051
        %v6053 = vmul.f32 %v6026, 1.442695
        %v6054 = vpow.pop %v6053
        %v6055 = vmul.f32 %v6027, 1.442695
        %v6056 = vpow.pop %v6055
        %v6057 = vmul.f32 %v6028, 1.442695
        %v6058 = vpow.pop %v6057
        %v6059 = vmul.f32 %v6029, 1.442695
        %v6060 = vpow.pop %v6059
        %v6061 = vmul.f32 %v6030, 1.442695
        %v6062 = vpow.pop %v6061
        %v6063 = vmul.f32 %v5983, %v6032
        %v6064 = vmul.f32 %v5984, %v6034
        %v6065 = vmul.f32 %v5985, %v6036
        %v6066 = vmul.f32 %v5986, %v6038
        %v6067 = vmul.f32 %v5987, %v6040
        %v6068 = vmul.f32 %v5988, %v6042
        %v6069 = vmul.f32 %v5989, %v6044
        %v6070 = vmul.f32 %v5990, %v6046
        %v6071 = vmul.f32 %v5991, %v6048
        %v6072 = vmul.f32 %v5992, %v6050
        %v6073 = vmul.f32 %v5993, %v6052
        %v6074 = vmul.f32 %v5994, %v6054
        %v6075 = vmul.f32 %v5995, %v6056
        %v6076 = vmul.f32 %v5996, %v6058
        %v6077 = vmul.f32 %v5997, %v6060
        %v6078 = vmul.f32 %v5998, %v6062
        %v6079 = vsub.f32 1.0, %v6063
        %v6080 = vsub.f32 1.0, %v6064
        %v6081 = vsub.f32 1.0, %v6065
        %v6082 = vsub.f32 1.0, %v6066
        %v6083 = vsub.f32 1.0, %v6067
        %v6084 = vsub.f32 1.0, %v6068
        %v6085 = vsub.f32 1.0, %v6069
        %v6086 = vsub.f32 1.0, %v6070
        %v6087 = vsub.f32 1.0, %v6071
        %v6088 = vsub.f32 1.0, %v6072
        %v6089 = vsub.f32 1.0, %v6073
        %v6090 = vsub.f32 1.0, %v6074
        %v6091 = vsub.f32 1.0, %v6075
        %v6092 = vsub.f32 1.0, %v6076
        %v6093 = vsub.f32 1.0, %v6077
        %v6094 = vsub.f32 1.0, %v6078
        %vm6095 = vcmp.lt.f32.partialorder %v5759, 0.0
        %vm6096 = vcmp.lt.f32.partialorder %v5760, 0.0
        %vm6097 = vcmp.lt.f32.partialorder %v5761, 0.0
        %vm6098 = vcmp.lt.f32.partialorder %v5762, 0.0
        %vm6099 = vcmp.lt.f32.partialorder %v5763, 0.0
        %vm6100 = vcmp.lt.f32.partialorder %v5764, 0.0
        %vm6101 = vcmp.lt.f32.partialorder %v5765, 0.0
        %vm6102 = vcmp.lt.f32.partialorder %v5766, 0.0
        %vm6103 = vcmp.lt.f32.partialorder %v5767, 0.0
        %vm6104 = vcmp.lt.f32.partialorder %v5768, 0.0
        %vm6105 = vcmp.lt.f32.partialorder %v5769, 0.0
        %vm6106 = vcmp.lt.f32.partialorder %v5770, 0.0
        %vm6107 = vcmp.lt.f32.partialorder %v5771, 0.0
        %vm6108 = vcmp.lt.f32.partialorder %v5772, 0.0
        %vm6109 = vcmp.lt.f32.partialorder %v5773, 0.0
        %vm6110 = vcmp.lt.f32.partialorder %v5774, 0.0
        %v6111 = vsub.f32 0.0, %v6079
        %v6112 = vsub.f32 0.0, %v6080
        %v6113 = vsub.f32 0.0, %v6081
        %v6114 = vsub.f32 0.0, %v6082
        %v6115 = vsub.f32 0.0, %v6083
        %v6116 = vsub.f32 0.0, %v6084
        %v6117 = vsub.f32 0.0, %v6085
        %v6118 = vsub.f32 0.0, %v6086
        %v6119 = vsub.f32 0.0, %v6087
        %v6120 = vsub.f32 0.0, %v6088
        %v6121 = vsub.f32 0.0, %v6089
        %v6122 = vsub.f32 0.0, %v6090
        %v6123 = vsub.f32 0.0, %v6091
        %v6124 = vsub.f32 0.0, %v6092
        %v6125 = vsub.f32 0.0, %v6093
        %v6126 = vsub.f32 0.0, %v6094
        %v6127 = vsel %vm6095, %v6111, %v6079
        %v6128 = vsel %vm6096, %v6112, %v6080
        %v6129 = vsel %vm6097, %v6113, %v6081
        %v6130 = vsel %vm6098, %v6114, %v6082
        %v6131 = vsel %vm6099, %v6115, %v6083
        %v6132 = vsel %vm6100, %v6116, %v6084
        %v6133 = vsel %vm6101, %v6117, %v6085
        %v6134 = vsel %vm6102, %v6118, %v6086
        %v6135 = vsel %vm6103, %v6119, %v6087
        %v6136 = vsel %vm6104, %v6120, %v6088
        %v6137 = vsel %vm6105, %v6121, %v6089
        %v6138 = vsel %vm6106, %v6122, %v6090
        %v6139 = vsel %vm6107, %v6123, %v6091
        %v6140 = vsel %vm6108, %v6124, %v6092
        %v6141 = vsel %vm6109, %v6125, %v6093
        %v6142 = vsel %vm6110, %v6126, %v6094
        %v6143 = vadd.f32 %v6127, 1.0
        %v6144 = vadd.f32 %v6128, 1.0
        %v6145 = vadd.f32 %v6129, 1.0
        %v6146 = vadd.f32 %v6130, 1.0
        %v6147 = vadd.f32 %v6131, 1.0
        %v6148 = vadd.f32 %v6132, 1.0
        %v6149 = vadd.f32 %v6133, 1.0
        %v6150 = vadd.f32 %v6134, 1.0
        %v6151 = vadd.f32 %v6135, 1.0
        %v6152 = vadd.f32 %v6136, 1.0
        %v6153 = vadd.f32 %v6137, 1.0
        %v6154 = vadd.f32 %v6138, 1.0
        %v6155 = vadd.f32 %v6139, 1.0
        %v6156 = vadd.f32 %v6140, 1.0
        %v6157 = vadd.f32 %v6141, 1.0
        %v6158 = vadd.f32 %v6142, 1.0
        %v6159 = vmul.f32 %v5743, %v6143
        %v6160 = vmul.f32 %v5744, %v6144
        %v6161 = vmul.f32 %v5745, %v6145
        %v6162 = vmul.f32 %v5746, %v6146
        %v6163 = vmul.f32 %v5747, %v6147
        %v6164 = vmul.f32 %v5748, %v6148
        %v6165 = vmul.f32 %v5749, %v6149
        %v6166 = vmul.f32 %v5750, %v6150
        %v6167 = vmul.f32 %v5751, %v6151
        %v6168 = vmul.f32 %v5752, %v6152
        %v6169 = vmul.f32 %v5753, %v6153
        %v6170 = vmul.f32 %v5754, %v6154
        %v6171 = vmul.f32 %v5755, %v6155
        %v6172 = vmul.f32 %v5756, %v6156
        %v6173 = vmul.f32 %v5757, %v6157
        %v6174 = vmul.f32 %v5758, %v6158
        %vm6175 = vcmask 256000
        %6176 = vst.msk [vmem:[#allocation2] sm:$0x7] %vm6175, 0.0
        %6177 = vst.msk [vmem:[#allocation2 + $0x3] sm:$0xff] %vm887, %v6159
        %6178 = vst.msk [vmem:[#allocation2 + $0xb] sm:$0xff] %vm887, %v6160
        %6179 = vst.msk [vmem:[#allocation2 + $0x13] sm:$0xff] %vm887, %v6161
        %6180 = vst.msk [vmem:[#allocation2 + $0x1b] sm:$0xff] %vm887, %v6162
        %6181 = vst.msk [vmem:[#allocation2 + $0x23] sm:$0xff] %vm887, %v6163
        %6182 = vst.msk [vmem:[#allocation2 + $0x2b] sm:$0xff] %vm887, %v6164
        %6183 = vst.msk [vmem:[#allocation2 + $0x33] sm:$0xff] %vm887, %v6165
        %6184 = vst.msk [vmem:[#allocation2 + $0x3b] sm:$0xff] %vm887, %v6166
        %6185 = vst.msk [vmem:[#allocation2 + $0x43] sm:$0xff] %vm887, %v6167
        %6186 = vst.msk [vmem:[#allocation2 + $0x4b] sm:$0xff] %vm887, %v6168
        %6187 = vst.msk [vmem:[#allocation2 + $0x53] sm:$0xff] %vm887, %v6169
        %6188 = vst.msk [vmem:[#allocation2 + $0x5b] sm:$0xff] %vm887, %v6170
        %6189 = vst.msk [vmem:[#allocation2 + $0x63] sm:$0xff] %vm887, %v6171
        %6190 = vst.msk [vmem:[#allocation2 + $0x6b] sm:$0xff] %vm887, %v6172
        %6191 = vst.msk [vmem:[#allocation2 + $0x73] sm:$0xff] %vm887, %v6173
        %6192 = vst.msk [vmem:[#allocation2 + $0x7b] sm:$0xff] %vm887, %v6174
        %6193 = vst.msk [vmem:[#allocation2 + $0x83] sm:$0x7] %vm6175, 0.0
        %v6194 = vld [vmem:[#allocation2] ss:$2 sm:$0xff]
        %s6195 = scalar_lea.vmem [#allocation2], 16
        %v6196 = vld [vmem:[%s6195] ss:$2 sm:$0xff]
        %s6197 = scalar_lea.vmem [#allocation2], 32
        %v6198 = vld [vmem:[%s6197] ss:$2 sm:$0xff]
        %s6199 = scalar_lea.vmem [#allocation2], 48
        %v6200 = vld [vmem:[%s6199] ss:$2 sm:$0xff]
        %s6201 = scalar_lea.vmem [#allocation2], 64
        %v6202 = vld [vmem:[%s6201] ss:$2 sm:$0xff]
        %s6203 = scalar_lea.vmem [#allocation2], 80
        %v6204 = vld [vmem:[%s6203] ss:$2 sm:$0xff]
        %s6205 = scalar_lea.vmem [#allocation2], 96
        %v6206 = vld [vmem:[%s6205] ss:$2 sm:$0xff]
        %s6207 = scalar_lea.vmem [#allocation2], 112
        %v6208 = vld [vmem:[%s6207] ss:$2 sm:$0xff]
        %6209 = vst.msk [vmem:[#allocation3] sm:$0xff] %vm887, %v6194
        %6210 = vst.msk [vmem:[#allocation3 + $0x18] sm:$0xff] %vm887, %v6196
        %6211 = vst.msk [vmem:[#allocation3 + $0x30] sm:$0xff] %vm887, %v6198
        %6212 = vst.msk [vmem:[#allocation3 + $0x48] sm:$0xff] %vm887, %v6200
        %6213 = vst.msk [vmem:[#allocation3 + $0x60] sm:$0xff] %vm887, %v6202
        %6214 = vst.msk [vmem:[#allocation3 + $0x78] sm:$0xff] %vm887, %v6204
        %6215 = vst.msk [vmem:[#allocation3 + $0x90] sm:$0xff] %vm887, %v6206
        %6216 = vst.msk [vmem:[#allocation3 + $0xa8] sm:$0xff] %vm887, %v6208
        %s6217 = scalar_lea.vmem [#allocation2], 1
        %v6218 = vld [vmem:[%s6217] ss:$2 sm:$0xff]
        %s6219 = scalar_lea.vmem [#allocation2], 17
        %v6220 = vld [vmem:[%s6219] ss:$2 sm:$0xff]
        %s6221 = scalar_lea.vmem [#allocation2], 33
        %v6222 = vld [vmem:[%s6221] ss:$2 sm:$0xff]
        %s6223 = scalar_lea.vmem [#allocation2], 49
        %v6224 = vld [vmem:[%s6223] ss:$2 sm:$0xff]
        %s6225 = scalar_lea.vmem [#allocation2], 65
        %v6226 = vld [vmem:[%s6225] ss:$2 sm:$0xff]
        %s6227 = scalar_lea.vmem [#allocation2], 81
        %v6228 = vld [vmem:[%s6227] ss:$2 sm:$0xff]
        %s6229 = scalar_lea.vmem [#allocation2], 97
        %v6230 = vld [vmem:[%s6229] ss:$2 sm:$0xff]
        %s6231 = scalar_lea.vmem [#allocation2], 113
        %v6232 = vld [vmem:[%s6231] ss:$2 sm:$0xff]
        %6241 = vrot.lane.b32.xlu0 %v6218, 32
        %v6242 = vpop.permute.xlu0 %6241
        %6243 = vrot.lane.b32.xlu0 %v6220, 32
        %v6244 = vpop.permute.xlu0 %6243
        %6245 = vrot.lane.b32.xlu0 %v6222, 32
        %v6246 = vpop.permute.xlu0 %6245
        %6247 = vrot.lane.b32.xlu0 %v6224, 32
        %v6248 = vpop.permute.xlu0 %6247
        %6249 = vrot.lane.b32.xlu0 %v6226, 32
        %v6250 = vpop.permute.xlu0 %6249
        %6251 = vrot.lane.b32.xlu0 %v6228, 32
        %v6252 = vpop.permute.xlu0 %6251
        %6253 = vrot.lane.b32.xlu0 %v6230, 32
        %v6254 = vpop.permute.xlu0 %6253
        %6255 = vrot.lane.b32.xlu0 %v6232, 32
        %v6256 = vpop.permute.xlu0 %6255
        %6265 = vst.msk [vmem:[#allocation3] sm:$0xff] %vm1683, %v6242
        %6266 = vst.msk [vmem:[#allocation3 + $0x18] sm:$0xff] %vm1683, %v6244
        %6267 = vst.msk [vmem:[#allocation3 + $0x30] sm:$0xff] %vm1683, %v6246
        %6268 = vst.msk [vmem:[#allocation3 + $0x48] sm:$0xff] %vm1683, %v6248
        %6269 = vst.msk [vmem:[#allocation3 + $0x60] sm:$0xff] %vm1683, %v6250
        %6270 = vst.msk [vmem:[#allocation3 + $0x78] sm:$0xff] %vm1683, %v6252
        %6271 = vst.msk [vmem:[#allocation3 + $0x90] sm:$0xff] %vm1683, %v6254
        %6272 = vst.msk [vmem:[#allocation3 + $0xa8] sm:$0xff] %vm1683, %v6256
        %s6273 = scalar_lea.vmem [#allocation2], 2
        %v6274 = vld [vmem:[%s6273] ss:$2 sm:$0xff]
        %s6275 = scalar_lea.vmem [#allocation2], 18
        %v6276 = vld [vmem:[%s6275] ss:$2 sm:$0xff]
        %s6277 = scalar_lea.vmem [#allocation2], 34
        %v6278 = vld [vmem:[%s6277] ss:$2 sm:$0xff]
        %s6279 = scalar_lea.vmem [#allocation2], 50
        %v6280 = vld [vmem:[%s6279] ss:$2 sm:$0xff]
        %s6281 = scalar_lea.vmem [#allocation2], 66
        %v6282 = vld [vmem:[%s6281] ss:$2 sm:$0xff]
        %s6283 = scalar_lea.vmem [#allocation2], 82
        %v6284 = vld [vmem:[%s6283] ss:$2 sm:$0xff]
        %s6285 = scalar_lea.vmem [#allocation2], 98
        %v6286 = vld [vmem:[%s6285] ss:$2 sm:$0xff]
        %s6287 = scalar_lea.vmem [#allocation2], 114
        %v6288 = vld [vmem:[%s6287] ss:$2 sm:$0xff]
        %6297 = vrot.lane.b32.xlu0 %v6274, 64
        %v6298 = vpop.permute.xlu0 %6297
        %6299 = vrot.lane.b32.xlu0 %v6276, 64
        %v6300 = vpop.permute.xlu0 %6299
        %6301 = vrot.lane.b32.xlu0 %v6278, 64
        %v6302 = vpop.permute.xlu0 %6301
        %6303 = vrot.lane.b32.xlu0 %v6280, 64
        %v6304 = vpop.permute.xlu0 %6303
        %6305 = vrot.lane.b32.xlu0 %v6282, 64
        %v6306 = vpop.permute.xlu0 %6305
        %6307 = vrot.lane.b32.xlu0 %v6284, 64
        %v6308 = vpop.permute.xlu0 %6307
        %6309 = vrot.lane.b32.xlu0 %v6286, 64
        %v6310 = vpop.permute.xlu0 %6309
        %6311 = vrot.lane.b32.xlu0 %v6288, 64
        %v6312 = vpop.permute.xlu0 %6311
        %6321 = vst.msk [vmem:[#allocation3] sm:$0xff] %vm1781, %v6298
        %6322 = vst.msk [vmem:[#allocation3 + $0x18] sm:$0xff] %vm1781, %v6300
        %6323 = vst.msk [vmem:[#allocation3 + $0x30] sm:$0xff] %vm1781, %v6302
        %6324 = vst.msk [vmem:[#allocation3 + $0x48] sm:$0xff] %vm1781, %v6304
        %6325 = vst.msk [vmem:[#allocation3 + $0x60] sm:$0xff] %vm1781, %v6306
        %6326 = vst.msk [vmem:[#allocation3 + $0x78] sm:$0xff] %vm1781, %v6308
        %6327 = vst.msk [vmem:[#allocation3 + $0x90] sm:$0xff] %vm1781, %v6310
        %6328 = vst.msk [vmem:[#allocation3 + $0xa8] sm:$0xff] %vm1781, %v6312
        %s6329 = scalar_lea.vmem [#allocation2], 3
        %v6330 = vld [vmem:[%s6329] ss:$2 sm:$0xff]
        %s6331 = scalar_lea.vmem [#allocation2], 19
        %v6332 = vld [vmem:[%s6331] ss:$2 sm:$0xff]
        %s6333 = scalar_lea.vmem [#allocation2], 35
        %v6334 = vld [vmem:[%s6333] ss:$2 sm:$0xff]
        %s6335 = scalar_lea.vmem [#allocation2], 51
        %v6336 = vld [vmem:[%s6335] ss:$2 sm:$0xff]
        %s6337 = scalar_lea.vmem [#allocation2], 67
        %v6338 = vld [vmem:[%s6337] ss:$2 sm:$0xff]
        %s6339 = scalar_lea.vmem [#allocation2], 83
        %v6340 = vld [vmem:[%s6339] ss:$2 sm:$0xff]
        %s6341 = scalar_lea.vmem [#allocation2], 99
        %v6342 = vld [vmem:[%s6341] ss:$2 sm:$0xff]
        %s6343 = scalar_lea.vmem [#allocation2], 115
        %v6344 = vld [vmem:[%s6343] ss:$2 sm:$0xff]
        %6353 = vrot.lane.b32.xlu0 %v6330, 96
        %v6354 = vpop.permute.xlu0 %6353
        %6355 = vrot.lane.b32.xlu0 %v6332, 96
        %v6356 = vpop.permute.xlu0 %6355
        %6357 = vrot.lane.b32.xlu0 %v6334, 96
        %v6358 = vpop.permute.xlu0 %6357
        %6359 = vrot.lane.b32.xlu0 %v6336, 96
        %v6360 = vpop.permute.xlu0 %6359
        %6361 = vrot.lane.b32.xlu0 %v6338, 96
        %v6362 = vpop.permute.xlu0 %6361
        %6363 = vrot.lane.b32.xlu0 %v6340, 96
        %v6364 = vpop.permute.xlu0 %6363
        %6365 = vrot.lane.b32.xlu0 %v6342, 96
        %v6366 = vpop.permute.xlu0 %6365
        %6367 = vrot.lane.b32.xlu0 %v6344, 96
        %v6368 = vpop.permute.xlu0 %6367
        %6377 = vst.msk [vmem:[#allocation3] sm:$0xff] %vm1879, %v6354
        %6378 = vst.msk [vmem:[#allocation3 + $0x18] sm:$0xff] %vm1879, %v6356
        %6379 = vst.msk [vmem:[#allocation3 + $0x30] sm:$0xff] %vm1879, %v6358
        %6380 = vst.msk [vmem:[#allocation3 + $0x48] sm:$0xff] %vm1879, %v6360
        %6381 = vst.msk [vmem:[#allocation3 + $0x60] sm:$0xff] %vm1879, %v6362
        %6382 = vst.msk [vmem:[#allocation3 + $0x78] sm:$0xff] %vm1879, %v6364
        %6383 = vst.msk [vmem:[#allocation3 + $0x90] sm:$0xff] %vm1879, %v6366
        %6384 = vst.msk [vmem:[#allocation3 + $0xa8] sm:$0xff] %vm1879, %v6368
        %s6385 = scalar_lea.vmem [#allocation2], 4
        %v6386 = vld [vmem:[%s6385] ss:$2 sm:$0xff]
        %s6387 = scalar_lea.vmem [#allocation2], 20
        %v6388 = vld [vmem:[%s6387] ss:$2 sm:$0xff]
        %s6389 = scalar_lea.vmem [#allocation2], 36
        %v6390 = vld [vmem:[%s6389] ss:$2 sm:$0xff]
        %s6391 = scalar_lea.vmem [#allocation2], 52
        %v6392 = vld [vmem:[%s6391] ss:$2 sm:$0xff]
        %s6393 = scalar_lea.vmem [#allocation2], 68
        %v6394 = vld [vmem:[%s6393] ss:$2 sm:$0xff]
        %s6395 = scalar_lea.vmem [#allocation2], 84
        %v6396 = vld [vmem:[%s6395] ss:$2 sm:$0xff]
        %s6397 = scalar_lea.vmem [#allocation2], 100
        %v6398 = vld [vmem:[%s6397] ss:$2 sm:$0xff]
        %s6399 = scalar_lea.vmem [#allocation2], 116
        %v6400 = vld [vmem:[%s6399] ss:$2 sm:$0xff]
        %6401 = vst.msk [vmem:[#allocation3 + $0x8] sm:$0xff] %vm887, %v6386
        %6402 = vst.msk [vmem:[#allocation3 + $0x20] sm:$0xff] %vm887, %v6388
        %6403 = vst.msk [vmem:[#allocation3 + $0x38] sm:$0xff] %vm887, %v6390
        %6404 = vst.msk [vmem:[#allocation3 + $0x50] sm:$0xff] %vm887, %v6392
        %6405 = vst.msk [vmem:[#allocation3 + $0x68] sm:$0xff] %vm887, %v6394
        %6406 = vst.msk [vmem:[#allocation3 + $0x80] sm:$0xff] %vm887, %v6396
        %6407 = vst.msk [vmem:[#allocation3 + $0x98] sm:$0xff] %vm887, %v6398
        %6408 = vst.msk [vmem:[#allocation3 + $0xb0] sm:$0xff] %vm887, %v6400
        %s6409 = scalar_lea.vmem [#allocation2], 5
        %v6410 = vld [vmem:[%s6409] ss:$2 sm:$0xff]
        %s6411 = scalar_lea.vmem [#allocation2], 21
        %v6412 = vld [vmem:[%s6411] ss:$2 sm:$0xff]
        %s6413 = scalar_lea.vmem [#allocation2], 37
        %v6414 = vld [vmem:[%s6413] ss:$2 sm:$0xff]
        %s6415 = scalar_lea.vmem [#allocation2], 53
        %v6416 = vld [vmem:[%s6415] ss:$2 sm:$0xff]
        %s6417 = scalar_lea.vmem [#allocation2], 69
        %v6418 = vld [vmem:[%s6417] ss:$2 sm:$0xff]
        %s6419 = scalar_lea.vmem [#allocation2], 85
        %v6420 = vld [vmem:[%s6419] ss:$2 sm:$0xff]
        %s6421 = scalar_lea.vmem [#allocation2], 101
        %v6422 = vld [vmem:[%s6421] ss:$2 sm:$0xff]
        %s6423 = scalar_lea.vmem [#allocation2], 117
        %v6424 = vld [vmem:[%s6423] ss:$2 sm:$0xff]
        %6433 = vrot.lane.b32.xlu0 %v6410, 32
        %v6434 = vpop.permute.xlu0 %6433
        %6435 = vrot.lane.b32.xlu0 %v6412, 32
        %v6436 = vpop.permute.xlu0 %6435
        %6437 = vrot.lane.b32.xlu0 %v6414, 32
        %v6438 = vpop.permute.xlu0 %6437
        %6439 = vrot.lane.b32.xlu0 %v6416, 32
        %v6440 = vpop.permute.xlu0 %6439
        %6441 = vrot.lane.b32.xlu0 %v6418, 32
        %v6442 = vpop.permute.xlu0 %6441
        %6443 = vrot.lane.b32.xlu0 %v6420, 32
        %v6444 = vpop.permute.xlu0 %6443
        %6445 = vrot.lane.b32.xlu0 %v6422, 32
        %v6446 = vpop.permute.xlu0 %6445
        %6447 = vrot.lane.b32.xlu0 %v6424, 32
        %v6448 = vpop.permute.xlu0 %6447
        %6457 = vst.msk [vmem:[#allocation3 + $0x8] sm:$0xff] %vm1683, %v6434
        %6458 = vst.msk [vmem:[#allocation3 + $0x20] sm:$0xff] %vm1683, %v6436
        %6459 = vst.msk [vmem:[#allocation3 + $0x38] sm:$0xff] %vm1683, %v6438
        %6460 = vst.msk [vmem:[#allocation3 + $0x50] sm:$0xff] %vm1683, %v6440
        %6461 = vst.msk [vmem:[#allocation3 + $0x68] sm:$0xff] %vm1683, %v6442
        %6462 = vst.msk [vmem:[#allocation3 + $0x80] sm:$0xff] %vm1683, %v6444
        %6463 = vst.msk [vmem:[#allocation3 + $0x98] sm:$0xff] %vm1683, %v6446
        %6464 = vst.msk [vmem:[#allocation3 + $0xb0] sm:$0xff] %vm1683, %v6448
        %s6465 = scalar_lea.vmem [#allocation2], 6
        %v6466 = vld [vmem:[%s6465] ss:$2 sm:$0xff]
        %s6467 = scalar_lea.vmem [#allocation2], 22
        %v6468 = vld [vmem:[%s6467] ss:$2 sm:$0xff]
        %s6469 = scalar_lea.vmem [#allocation2], 38
        %v6470 = vld [vmem:[%s6469] ss:$2 sm:$0xff]
        %s6471 = scalar_lea.vmem [#allocation2], 54
        %v6472 = vld [vmem:[%s6471] ss:$2 sm:$0xff]
        %s6473 = scalar_lea.vmem [#allocation2], 70
        %v6474 = vld [vmem:[%s6473] ss:$2 sm:$0xff]
        %s6475 = scalar_lea.vmem [#allocation2], 86
        %v6476 = vld [vmem:[%s6475] ss:$2 sm:$0xff]
        %s6477 = scalar_lea.vmem [#allocation2], 102
        %v6478 = vld [vmem:[%s6477] ss:$2 sm:$0xff]
        %s6479 = scalar_lea.vmem [#allocation2], 118
        %v6480 = vld [vmem:[%s6479] ss:$2 sm:$0xff]
        %6489 = vrot.lane.b32.xlu0 %v6466, 64
        %v6490 = vpop.permute.xlu0 %6489
        %6491 = vrot.lane.b32.xlu0 %v6468, 64
        %v6492 = vpop.permute.xlu0 %6491
        %6493 = vrot.lane.b32.xlu0 %v6470, 64
        %v6494 = vpop.permute.xlu0 %6493
        %6495 = vrot.lane.b32.xlu0 %v6472, 64
        %v6496 = vpop.permute.xlu0 %6495
        %6497 = vrot.lane.b32.xlu0 %v6474, 64
        %v6498 = vpop.permute.xlu0 %6497
        %6499 = vrot.lane.b32.xlu0 %v6476, 64
        %v6500 = vpop.permute.xlu0 %6499
        %6501 = vrot.lane.b32.xlu0 %v6478, 64
        %v6502 = vpop.permute.xlu0 %6501
        %6503 = vrot.lane.b32.xlu0 %v6480, 64
        %v6504 = vpop.permute.xlu0 %6503
        %6513 = vst.msk [vmem:[#allocation3 + $0x8] sm:$0xff] %vm1781, %v6490
        %6514 = vst.msk [vmem:[#allocation3 + $0x20] sm:$0xff] %vm1781, %v6492
        %6515 = vst.msk [vmem:[#allocation3 + $0x38] sm:$0xff] %vm1781, %v6494
        %6516 = vst.msk [vmem:[#allocation3 + $0x50] sm:$0xff] %vm1781, %v6496
        %6517 = vst.msk [vmem:[#allocation3 + $0x68] sm:$0xff] %vm1781, %v6498
        %6518 = vst.msk [vmem:[#allocation3 + $0x80] sm:$0xff] %vm1781, %v6500
        %6519 = vst.msk [vmem:[#allocation3 + $0x98] sm:$0xff] %vm1781, %v6502
        %6520 = vst.msk [vmem:[#allocation3 + $0xb0] sm:$0xff] %vm1781, %v6504
        %s6521 = scalar_lea.vmem [#allocation2], 7
        %v6522 = vld [vmem:[%s6521] ss:$2 sm:$0xff]
        %s6523 = scalar_lea.vmem [#allocation2], 23
        %v6524 = vld [vmem:[%s6523] ss:$2 sm:$0xff]
        %s6525 = scalar_lea.vmem [#allocation2], 39
        %v6526 = vld [vmem:[%s6525] ss:$2 sm:$0xff]
        %s6527 = scalar_lea.vmem [#allocation2], 55
        %v6528 = vld [vmem:[%s6527] ss:$2 sm:$0xff]
        %s6529 = scalar_lea.vmem [#allocation2], 71
        %v6530 = vld [vmem:[%s6529] ss:$2 sm:$0xff]
        %s6531 = scalar_lea.vmem [#allocation2], 87
        %v6532 = vld [vmem:[%s6531] ss:$2 sm:$0xff]
        %s6533 = scalar_lea.vmem [#allocation2], 103
        %v6534 = vld [vmem:[%s6533] ss:$2 sm:$0xff]
        %s6535 = scalar_lea.vmem [#allocation2], 119
        %v6536 = vld [vmem:[%s6535] ss:$2 sm:$0xff]
        %6545 = vrot.lane.b32.xlu0 %v6522, 96
        %v6546 = vpop.permute.xlu0 %6545
        %6547 = vrot.lane.b32.xlu0 %v6524, 96
        %v6548 = vpop.permute.xlu0 %6547
        %6549 = vrot.lane.b32.xlu0 %v6526, 96
        %v6550 = vpop.permute.xlu0 %6549
        %6551 = vrot.lane.b32.xlu0 %v6528, 96
        %v6552 = vpop.permute.xlu0 %6551
        %6553 = vrot.lane.b32.xlu0 %v6530, 96
        %v6554 = vpop.permute.xlu0 %6553
        %6555 = vrot.lane.b32.xlu0 %v6532, 96
        %v6556 = vpop.permute.xlu0 %6555
        %6557 = vrot.lane.b32.xlu0 %v6534, 96
        %v6558 = vpop.permute.xlu0 %6557
        %6559 = vrot.lane.b32.xlu0 %v6536, 96
        %v6560 = vpop.permute.xlu0 %6559
        %6569 = vst.msk [vmem:[#allocation3 + $0x8] sm:$0xff] %vm1879, %v6546
        %6570 = vst.msk [vmem:[#allocation3 + $0x20] sm:$0xff] %vm1879, %v6548
        %6571 = vst.msk [vmem:[#allocation3 + $0x38] sm:$0xff] %vm1879, %v6550
        %6572 = vst.msk [vmem:[#allocation3 + $0x50] sm:$0xff] %vm1879, %v6552
        %6573 = vst.msk [vmem:[#allocation3 + $0x68] sm:$0xff] %vm1879, %v6554
        %6574 = vst.msk [vmem:[#allocation3 + $0x80] sm:$0xff] %vm1879, %v6556
        %6575 = vst.msk [vmem:[#allocation3 + $0x98] sm:$0xff] %vm1879, %v6558
        %6576 = vst.msk [vmem:[#allocation3 + $0xb0] sm:$0xff] %vm1879, %v6560
        %v6577 = vld [vmem:[#allocation3] sm:$0xff]
        %v6578 = vld [vmem:[#allocation3 + $0x8] sm:$0xff]
        %v6579 = vld [vmem:[#allocation3 + $0x18] sm:$0xff]
        %v6580 = vld [vmem:[#allocation3 + $0x20] sm:$0xff]
        %v6581 = vld [vmem:[#allocation3 + $0x30] sm:$0xff]
        %v6582 = vld [vmem:[#allocation3 + $0x38] sm:$0xff]
        %v6583 = vld [vmem:[#allocation3 + $0x48] sm:$0xff]
        %v6584 = vld [vmem:[#allocation3 + $0x50] sm:$0xff]
        %v6585 = vld [vmem:[#allocation3 + $0x60] sm:$0xff]
        %v6586 = vld [vmem:[#allocation3 + $0x68] sm:$0xff]
        %v6587 = vld [vmem:[#allocation3 + $0x78] sm:$0xff]
        %v6588 = vld [vmem:[#allocation3 + $0x80] sm:$0xff]
        %v6589 = vld [vmem:[#allocation3 + $0x90] sm:$0xff]
        %v6590 = vld [vmem:[#allocation3 + $0x98] sm:$0xff]
        %v6591 = vld [vmem:[#allocation3 + $0xa8] sm:$0xff]
        %v6592 = vld [vmem:[#allocation3 + $0xb0] sm:$0xff]
        %s6593 = scalar_lea.vmem %s1, 1440
        %v6594 = vld [vmem:[%s6593] sm:$0xff]
        %v6595 = vld [vmem:[%s6593 + $0x8] sm:$0xff]
        %v6596 = vld [vmem:[%s6593 + $0x10] sm:$0xff]
        %v6597 = vld [vmem:[%s6593 + $0x18] sm:$0xff]
        %v6598 = vld [vmem:[%s6593 + $0x20] sm:$0xff]
        %v6599 = vld [vmem:[%s6593 + $0x28] sm:$0xff]
        %v6600 = vld [vmem:[%s6593 + $0x30] sm:$0xff]
        %v6601 = vld [vmem:[%s6593 + $0x38] sm:$0xff]
        %v6602 = vld [vmem:[%s6593 + $0x40] sm:$0xff]
        %v6603 = vld [vmem:[%s6593 + $0x48] sm:$0xff]
        %v6604 = vld [vmem:[%s6593 + $0x50] sm:$0xff]
        %v6605 = vld [vmem:[%s6593 + $0x58] sm:$0xff]
        %v6606 = vld [vmem:[%s6593 + $0x60] sm:$0xff]
        %v6607 = vld [vmem:[%s6593 + $0x68] sm:$0xff]
        %v6608 = vld [vmem:[%s6593 + $0x70] sm:$0xff]
        %v6609 = vld [vmem:[%s6593 + $0x78] sm:$0xff]
        %v6610 = vld [vmem:[%s6593 + $0x80] sm:$0xff]
        %v6611 = vld [vmem:[%s6593 + $0x88] sm:$0xff]
        %v6612 = vld [vmem:[%s6593 + $0x90] sm:$0xff]
        %v6613 = vld [vmem:[%s6593 + $0x98] sm:$0xff]
        %v6614 = vld [vmem:[%s6593 + $0xa0] sm:$0xff]
        %v6615 = vld [vmem:[%s6593 + $0xa8] sm:$0xff]
        %v6616 = vld [vmem:[%s6593 + $0xb0] sm:$0xff]
        %v6617 = vld [vmem:[%s6593 + $0xb8] sm:$0xff]
        %v6618 = vld [vmem:[%s6593 + $0xc0] sm:$0xff]
        %v6619 = vld [vmem:[%s6593 + $0xc8] sm:$0xff]
        %v6620 = vld [vmem:[%s6593 + $0xd0] sm:$0xff]
        %v6621 = vld [vmem:[%s6593 + $0xd8] sm:$0xff]
        %v6622 = vld [vmem:[%s6593 + $0xe0] sm:$0xff]
        %v6623 = vld [vmem:[%s6593 + $0xe8] sm:$0xff]
        %v6624 = vld [vmem:[%s6593 + $0xf0] sm:$0xff]
        %v6625 = vld [vmem:[%s6593 + $0xf8] sm:$0xff]
        %v6626 = vld [vmem:[%s2 + $0x5] sm:$0x1]
        %v6627 = vlaneseq
        %v6628 = vshrl.u32 %v6627, 7
        %v6629 = vsub.s32 0, %v6628
        %v6630 = vrot.slane %v6626, %v6629
        %6631 = vmatprep.subr.mxu0 0.0
        %6632 = vmatpush1.msra.mxu0 %v6594
        %6633 = vmatprep.subr.mxu0 0.0
        %6634 = vmatpush1.msra.mxu0 %v6595
        %6635 = vmatprep.subr.mxu0 0.0
        %6636 = vmatpush1.msra.mxu0 %v6596
        %6637 = vmatprep.subr.mxu0 0.0
        %6638 = vmatpush1.msra.mxu0 %v6597
        %6639 = vmatprep.subr.mxu0 0.0
        %6640 = vmatpush1.msra.mxu0 %v6598
        %6641 = vmatprep.subr.mxu0 0.0
        %6642 = vmatpush1.msra.mxu0 %v6599
        %6643 = vmatprep.subr.mxu0 0.0
        %6644 = vmatpush1.msra.mxu0 %v6600
        %6645 = vmatprep.subr.mxu0 0.0
        %6646 = vmatpush1.msra.mxu0 %v6601
        %6647 = vmatprep.subr.mxu0 0.0
        %6648 = vmatpush1.msra.mxu0 %v6602
        %6649 = vmatprep.subr.mxu0 0.0
        %6650 = vmatpush1.msra.mxu0 %v6603
        %6651 = vmatprep.subr.mxu0 0.0
        %6652 = vmatpush1.msra.mxu0 %v6604
        %6653 = vmatprep.subr.mxu0 0.0
        %6654 = vmatpush1.msra.mxu0 %v6605
        %6655 = vmatprep.subr.mxu0 0.0
        %6656 = vmatpush1.msra.mxu0 %v6606
        %6657 = vmatprep.subr.mxu0 0.0
        %6658 = vmatpush1.msra.mxu0 %v6607
        %6659 = vmatprep.subr.mxu0 0.0
        %6660 = vmatpush1.msra.mxu0 %v6608
        %6661 = vmatprep.subr.mxu0 0.0
        %6662 = vmatpush1.msra.mxu0 %v6609
        %6663 = vmatprep.subr.mxu0 0.0
        %6664 = vmatpush1.msra.mxu0 %v6610
        %6665 = vmatprep.subr.mxu0 0.0
        %6666 = vmatpush1.msra.mxu0 %v6611
        %6667 = vmatprep.subr.mxu0 0.0
        %6668 = vmatpush1.msra.mxu0 %v6612
        %6669 = vmatprep.subr.mxu0 0.0
        %6670 = vmatpush1.msra.mxu0 %v6613
        %6671 = vmatprep.subr.mxu0 0.0
        %6672 = vmatpush1.msra.mxu0 %v6614
        %6673 = vmatprep.subr.mxu0 0.0
        %6674 = vmatpush1.msra.mxu0 %v6615
        %6675 = vmatprep.subr.mxu0 0.0
        %6676 = vmatpush1.msra.mxu0 %v6616
        %6677 = vmatprep.subr.mxu0 0.0
        %6678 = vmatpush1.msra.mxu0 %v6617
        %6679 = vmatprep.subr.mxu0 0.0
        %6680 = vmatpush1.msra.mxu0 %v6618
        %6681 = vmatprep.subr.mxu0 0.0
        %6682 = vmatpush1.msra.mxu0 %v6619
        %6683 = vmatprep.subr.mxu0 0.0
        %6684 = vmatpush1.msra.mxu0 %v6620
        %6685 = vmatprep.subr.mxu0 0.0
        %6686 = vmatpush1.msra.mxu0 %v6621
        %6687 = vmatprep.subr.mxu0 0.0
        %6688 = vmatpush1.msra.mxu0 %v6622
        %6689 = vmatprep.subr.mxu0 0.0
        %6690 = vmatpush1.msra.mxu0 %v6623
        %6691 = vmatprep.subr.mxu0 0.0
        %6692 = vmatpush1.msra.mxu0 %v6624
        %6693 = vmatprep.subr.mxu0 0.0
        %6694 = vmatpush1.msra.mxu0 %v6625
        %6695 = vmatprep.mubr.f32.mxu0 %v6578
        %6696 = vmatmul.mubr.f32.gmra.mrb[0].mxu0 %v6577
        %v6697 = vpop.f32.mrb[0].mxu0
        %v6698 = vadd.f32 %v6630, %v6697
        %v6699 = vpop.f32.mrb[0].mxu0
        %6700 = vmatprep.mubr.f32.mxu0 %v6580
        %6701 = vmatmul.mubr.f32.gmra.mrb[0].mxu0 %v6579
        %v6702 = vpop.f32.mrb[0].mxu0
        %v6703 = vadd.f32 %v6630, %v6702
        %v6704 = vpop.f32.mrb[0].mxu0
        %6705 = vmatprep.mubr.f32.mxu0 %v6582
        %6706 = vmatmul.mubr.f32.gmra.mrb[0].mxu0 %v6581
        %v6707 = vpop.f32.mrb[0].mxu0
        %v6708 = vadd.f32 %v6630, %v6707
        %v6709 = vpop.f32.mrb[0].mxu0
        %6710 = vmatprep.mubr.f32.mxu0 %v6584
        %6711 = vmatmul.mubr.f32.gmra.mrb[0].mxu0 %v6583
        %v6712 = vpop.f32.mrb[0].mxu0
        %v6713 = vadd.f32 %v6630, %v6712
        %v6714 = vpop.f32.mrb[0].mxu0
        %6715 = vmatprep.mubr.f32.mxu0 %v6586
        %6716 = vmatmul.mubr.f32.gmra.mrb[0].mxu0 %v6585
        %v6717 = vpop.f32.mrb[0].mxu0
        %v6718 = vadd.f32 %v6630, %v6717
        %v6719 = vpop.f32.mrb[0].mxu0
        %6720 = vmatprep.mubr.f32.mxu0 %v6588
        %6721 = vmatmul.mubr.f32.gmra.mrb[0].mxu0 %v6587
        %v6722 = vpop.f32.mrb[0].mxu0
        %v6723 = vadd.f32 %v6630, %v6722
        %v6724 = vpop.f32.mrb[0].mxu0
        %6725 = vmatprep.mubr.f32.mxu0 %v6590
        %6726 = vmatmul.mubr.f32.gmra.mrb[0].mxu0 %v6589
        %v6727 = vpop.f32.mrb[0].mxu0
        %v6728 = vadd.f32 %v6630, %v6727
        %v6729 = vpop.f32.mrb[0].mxu0
        %6730 = vmatprep.mubr.f32.mxu0 %v6592
        %6731 = vmatmul.mubr.f32.gmra.mrb[0].mxu0 %v6591
        %v6732 = vpop.f32.mrb[0].mxu0
        %v6733 = vadd.f32 %v6630, %v6732
        %v6734 = vpop.f32.mrb[0].mxu0
        %6735 = vdwg.mxu0
        %v6736 = vmul.f32 %v6698, 0.5
        %v6737 = vmul.f32 %v6703, 0.5
        %v6738 = vmul.f32 %v6708, 0.5
        %v6739 = vmul.f32 %v6713, 0.5
        %v6740 = vmul.f32 %v6718, 0.5
        %v6741 = vmul.f32 %v6723, 0.5
        %v6742 = vmul.f32 %v6728, 0.5
        %v6743 = vmul.f32 %v6733, 0.5
        %v6744 = vmul.f32 %v6698, 0.70710677
        %v6745 = vmul.f32 %v6703, 0.70710677
        %v6746 = vmul.f32 %v6708, 0.70710677
        %v6747 = vmul.f32 %v6713, 0.70710677
        %v6748 = vmul.f32 %v6718, 0.70710677
        %v6749 = vmul.f32 %v6723, 0.70710677
        %v6750 = vmul.f32 %v6728, 0.70710677
        %v6751 = vmul.f32 %v6733, 0.70710677
        %v6752 = vand.u32 2147483647, %v6744
        %v6753 = vand.u32 2147483647, %v6745
        %v6754 = vand.u32 2147483647, %v6746
        %v6755 = vand.u32 2147483647, %v6747
        %v6756 = vand.u32 2147483647, %v6748
        %v6757 = vand.u32 2147483647, %v6749
        %v6758 = vand.u32 2147483647, %v6750
        %v6759 = vand.u32 2147483647, %v6751
        %v6760 = vmul.f32 %v6752, 0.3275911
        %v6761 = vmul.f32 %v6753, 0.3275911
        %v6762 = vmul.f32 %v6754, 0.3275911
        %v6763 = vmul.f32 %v6755, 0.3275911
        %v6764 = vmul.f32 %v6756, 0.3275911
        %v6765 = vmul.f32 %v6757, 0.3275911
        %v6766 = vmul.f32 %v6758, 0.3275911
        %v6767 = vmul.f32 %v6759, 0.3275911
        %v6768 = vadd.f32 %v6760, 1.0
        %v6769 = vadd.f32 %v6761, 1.0
        %v6770 = vadd.f32 %v6762, 1.0
        %v6771 = vadd.f32 %v6763, 1.0
        %v6772 = vadd.f32 %v6764, 1.0
        %v6773 = vadd.f32 %v6765, 1.0
        %v6774 = vadd.f32 %v6766, 1.0
        %v6775 = vadd.f32 %v6767, 1.0
        %v6776 = vrcp.pop %v6768
        %v6777 = vmul.f32 1.0, %v6776
        %v6778 = vrcp.pop %v6769
        %v6779 = vmul.f32 1.0, %v6778
        %v6780 = vrcp.pop %v6770
        %v6781 = vmul.f32 1.0, %v6780
        %v6782 = vrcp.pop %v6771
        %v6783 = vmul.f32 1.0, %v6782
        %v6784 = vrcp.pop %v6772
        %v6785 = vmul.f32 1.0, %v6784
        %v6786 = vrcp.pop %v6773
        %v6787 = vmul.f32 1.0, %v6786
        %v6788 = vrcp.pop %v6774
        %v6789 = vmul.f32 1.0, %v6788
        %v6790 = vrcp.pop %v6775
        %v6791 = vmul.f32 1.0, %v6790
        %v6792 = vmul.f32 %v6777, 1.0614054
        %v6793 = vmul.f32 %v6779, 1.0614054
        %v6794 = vmul.f32 %v6781, 1.0614054
        %v6795 = vmul.f32 %v6783, 1.0614054
        %v6796 = vmul.f32 %v6785, 1.0614054
        %v6797 = vmul.f32 %v6787, 1.0614054
        %v6798 = vmul.f32 %v6789, 1.0614054
        %v6799 = vmul.f32 %v6791, 1.0614054
        %v6800 = vadd.f32 %v6792, -1.4531521
        %v6801 = vadd.f32 %v6793, -1.4531521
        %v6802 = vadd.f32 %v6794, -1.4531521
        %v6803 = vadd.f32 %v6795, -1.4531521
        %v6804 = vadd.f32 %v6796, -1.4531521
        %v6805 = vadd.f32 %v6797, -1.4531521
        %v6806 = vadd.f32 %v6798, -1.4531521
        %v6807 = vadd.f32 %v6799, -1.4531521
        %v6808 = vmul.f32 %v6800, %v6777
        %v6809 = vmul.f32 %v6801, %v6779
        %v6810 = vmul.f32 %v6802, %v6781
        %v6811 = vmul.f32 %v6803, %v6783
        %v6812 = vmul.f32 %v6804, %v6785
        %v6813 = vmul.f32 %v6805, %v6787
        %v6814 = vmul.f32 %v6806, %v6789
        %v6815 = vmul.f32 %v6807, %v6791
        %v6816 = vadd.f32 %v6808, 1.4214138
        %v6817 = vadd.f32 %v6809, 1.4214138
        %v6818 = vadd.f32 %v6810, 1.4214138
        %v6819 = vadd.f32 %v6811, 1.4214138
        %v6820 = vadd.f32 %v6812, 1.4214138
        %v6821 = vadd.f32 %v6813, 1.4214138
        %v6822 = vadd.f32 %v6814, 1.4214138
        %v6823 = vadd.f32 %v6815, 1.4214138
        %v6824 = vmul.f32 %v6816, %v6777
        %v6825 = vmul.f32 %v6817, %v6779
        %v6826 = vmul.f32 %v6818, %v6781
        %v6827 = vmul.f32 %v6819, %v6783
        %v6828 = vmul.f32 %v6820, %v6785
        %v6829 = vmul.f32 %v6821, %v6787
        %v6830 = vmul.f32 %v6822, %v6789
        %v6831 = vmul.f32 %v6823, %v6791
        %v6832 = vadd.f32 %v6824, -0.28449672
        %v6833 = vadd.f32 %v6825, -0.28449672
        %v6834 = vadd.f32 %v6826, -0.28449672
        %v6835 = vadd.f32 %v6827, -0.28449672
        %v6836 = vadd.f32 %v6828, -0.28449672
        %v6837 = vadd.f32 %v6829, -0.28449672
        %v6838 = vadd.f32 %v6830, -0.28449672
        %v6839 = vadd.f32 %v6831, -0.28449672
        %v6840 = vmul.f32 %v6832, %v6777
        %v6841 = vmul.f32 %v6833, %v6779
        %v6842 = vmul.f32 %v6834, %v6781
        %v6843 = vmul.f32 %v6835, %v6783
        %v6844 = vmul.f32 %v6836, %v6785
        %v6845 = vmul.f32 %v6837, %v6787
        %v6846 = vmul.f32 %v6838, %v6789
        %v6847 = vmul.f32 %v6839, %v6791
        %v6848 = vadd.f32 %v6840, 0.2548296
        %v6849 = vadd.f32 %v6841, 0.2548296
        %v6850 = vadd.f32 %v6842, 0.2548296
        %v6851 = vadd.f32 %v6843, 0.2548296
        %v6852 = vadd.f32 %v6844, 0.2548296
        %v6853 = vadd.f32 %v6845, 0.2548296
        %v6854 = vadd.f32 %v6846, 0.2548296
        %v6855 = vadd.f32 %v6847, 0.2548296
        %v6856 = vmul.f32 %v6848, %v6777
        %v6857 = vmul.f32 %v6849, %v6779
        %v6858 = vmul.f32 %v6850, %v6781
        %v6859 = vmul.f32 %v6851, %v6783
        %v6860 = vmul.f32 %v6852, %v6785
        %v6861 = vmul.f32 %v6853, %v6787
        %v6862 = vmul.f32 %v6854, %v6789
        %v6863 = vmul.f32 %v6855, %v6791
        %v6864 = vsub.f32 0.0, %v6752
        %v6865 = vsub.f32 0.0, %v6753
        %v6866 = vsub.f32 0.0, %v6754
        %v6867 = vsub.f32 0.0, %v6755
        %v6868 = vsub.f32 0.0, %v6756
        %v6869 = vsub.f32 0.0, %v6757
        %v6870 = vsub.f32 0.0, %v6758
        %v6871 = vsub.f32 0.0, %v6759
        %v6872 = vmul.f32 %v6864, %v6752
        %v6873 = vmul.f32 %v6865, %v6753
        %v6874 = vmul.f32 %v6866, %v6754
        %v6875 = vmul.f32 %v6867, %v6755
        %v6876 = vmul.f32 %v6868, %v6756
        %v6877 = vmul.f32 %v6869, %v6757
        %v6878 = vmul.f32 %v6870, %v6758
        %v6879 = vmul.f32 %v6871, %v6759
        %v6880 = vmul.f32 %v6872, 1.442695
        %v6881 = vpow.pop %v6880
        %v6882 = vmul.f32 %v6873, 1.442695
        %v6883 = vpow.pop %v6882
        %v6884 = vmul.f32 %v6874, 1.442695
        %v6885 = vpow.pop %v6884
        %v6886 = vmul.f32 %v6875, 1.442695
        %v6887 = vpow.pop %v6886
        %v6888 = vmul.f32 %v6876, 1.442695
        %v6889 = vpow.pop %v6888
        %v6890 = vmul.f32 %v6877, 1.442695
        %v6891 = vpow.pop %v6890
        %v6892 = vmul.f32 %v6878, 1.442695
        %v6893 = vpow.pop %v6892
        %v6894 = vmul.f32 %v6879, 1.442695
        %v6895 = vpow.pop %v6894
        %v6896 = vmul.f32 %v6856, %v6881
        %v6897 = vmul.f32 %v6857, %v6883
        %v6898 = vmul.f32 %v6858, %v6885
        %v6899 = vmul.f32 %v6859, %v6887
        %v6900 = vmul.f32 %v6860, %v6889
        %v6901 = vmul.f32 %v6861, %v6891
        %v6902 = vmul.f32 %v6862, %v6893
        %v6903 = vmul.f32 %v6863, %v6895
        %v6904 = vsub.f32 1.0, %v6896
        %v6905 = vsub.f32 1.0, %v6897
        %v6906 = vsub.f32 1.0, %v6898
        %v6907 = vsub.f32 1.0, %v6899
        %v6908 = vsub.f32 1.0, %v6900
        %v6909 = vsub.f32 1.0, %v6901
        %v6910 = vsub.f32 1.0, %v6902
        %v6911 = vsub.f32 1.0, %v6903
        %vm6912 = vcmp.lt.f32.partialorder %v6744, 0.0
        %vm6913 = vcmp.lt.f32.partialorder %v6745, 0.0
        %vm6914 = vcmp.lt.f32.partialorder %v6746, 0.0
        %vm6915 = vcmp.lt.f32.partialorder %v6747, 0.0
        %vm6916 = vcmp.lt.f32.partialorder %v6748, 0.0
        %vm6917 = vcmp.lt.f32.partialorder %v6749, 0.0
        %vm6918 = vcmp.lt.f32.partialorder %v6750, 0.0
        %vm6919 = vcmp.lt.f32.partialorder %v6751, 0.0
        %v6920 = vsub.f32 0.0, %v6904
        %v6921 = vsub.f32 0.0, %v6905
        %v6922 = vsub.f32 0.0, %v6906
        %v6923 = vsub.f32 0.0, %v6907
        %v6924 = vsub.f32 0.0, %v6908
        %v6925 = vsub.f32 0.0, %v6909
        %v6926 = vsub.f32 0.0, %v6910
        %v6927 = vsub.f32 0.0, %v6911
        %v6928 = vsel %vm6912, %v6920, %v6904
        %v6929 = vsel %vm6913, %v6921, %v6905
        %v6930 = vsel %vm6914, %v6922, %v6906
        %v6931 = vsel %vm6915, %v6923, %v6907
        %v6932 = vsel %vm6916, %v6924, %v6908
        %v6933 = vsel %vm6917, %v6925, %v6909
        %v6934 = vsel %vm6918, %v6926, %v6910
        %v6935 = vsel %vm6919, %v6927, %v6911
        %v6936 = vadd.f32 %v6928, 1.0
        %v6937 = vadd.f32 %v6929, 1.0
        %v6938 = vadd.f32 %v6930, 1.0
        %v6939 = vadd.f32 %v6931, 1.0
        %v6940 = vadd.f32 %v6932, 1.0
        %v6941 = vadd.f32 %v6933, 1.0
        %v6942 = vadd.f32 %v6934, 1.0
        %v6943 = vadd.f32 %v6935, 1.0
        %v6944 = vmul.f32 %v6736, %v6936
        %v6945 = vmul.f32 %v6737, %v6937
        %v6946 = vmul.f32 %v6738, %v6938
        %v6947 = vmul.f32 %v6739, %v6939
        %v6948 = vmul.f32 %v6740, %v6940
        %v6949 = vmul.f32 %v6741, %v6941
        %v6950 = vmul.f32 %v6742, %v6942
        %v6951 = vmul.f32 %v6743, %v6943
        %6952 = vst.msk [vmem:[#allocation2] sm:$0x7] %vm6175, 0.0
        %6953 = vst.msk [vmem:[#allocation2 + $0x3] sm:$0xff] %vm887, %v6944
        %6954 = vst.msk [vmem:[#allocation2 + $0xb] sm:$0xff] %vm887, %v6945
        %6955 = vst.msk [vmem:[#allocation2 + $0x13] sm:$0xff] %vm887, %v6946
        %6956 = vst.msk [vmem:[#allocation2 + $0x1b] sm:$0xff] %vm887, %v6947
        %6957 = vst.msk [vmem:[#allocation2 + $0x23] sm:$0xff] %vm887, %v6948
        %6958 = vst.msk [vmem:[#allocation2 + $0x2b] sm:$0xff] %vm887, %v6949
        %6959 = vst.msk [vmem:[#allocation2 + $0x33] sm:$0xff] %vm887, %v6950
        %6960 = vst.msk [vmem:[#allocation2 + $0x3b] sm:$0xff] %vm887, %v6951
        %6961 = vst.msk [vmem:[#allocation2 + $0x43] sm:$0x7] %vm6175, 0.0
        %v6962 = vld [vmem:[#allocation2] ss:$2 sm:$0xff]
        %v6963 = vld [vmem:[%s6195] ss:$2 sm:$0xff]
        %v6964 = vld [vmem:[%s6197] ss:$2 sm:$0xff]
        %v6965 = vld [vmem:[%s6199] ss:$2 sm:$0xff]
        %6966 = vst.msk [vmem:[#allocation3] sm:$0xff] %vm887, %v6962
        %6967 = vst.msk [vmem:[#allocation3 + $0x18] sm:$0xff] %vm887, %v6963
        %6968 = vst.msk [vmem:[#allocation3 + $0x30] sm:$0xff] %vm887, %v6964
        %6969 = vst.msk [vmem:[#allocation3 + $0x48] sm:$0xff] %vm887, %v6965
        %v6970 = vld [vmem:[%s6217] ss:$2 sm:$0xff]
        %v6971 = vld [vmem:[%s6219] ss:$2 sm:$0xff]
        %v6972 = vld [vmem:[%s6221] ss:$2 sm:$0xff]
        %v6973 = vld [vmem:[%s6223] ss:$2 sm:$0xff]
        %6978 = vrot.lane.b32.xlu0 %v6970, 32
        %v6979 = vpop.permute.xlu0 %6978
        %6980 = vrot.lane.b32.xlu0 %v6971, 32
        %v6981 = vpop.permute.xlu0 %6980
        %6982 = vrot.lane.b32.xlu0 %v6972, 32
        %v6983 = vpop.permute.xlu0 %6982
        %6984 = vrot.lane.b32.xlu0 %v6973, 32
        %v6985 = vpop.permute.xlu0 %6984
        %6990 = vst.msk [vmem:[#allocation3] sm:$0xff] %vm1683, %v6979
        %6991 = vst.msk [vmem:[#allocation3 + $0x18] sm:$0xff] %vm1683, %v6981
        %6992 = vst.msk [vmem:[#allocation3 + $0x30] sm:$0xff] %vm1683, %v6983
        %6993 = vst.msk [vmem:[#allocation3 + $0x48] sm:$0xff] %vm1683, %v6985
        %v6994 = vld [vmem:[%s6273] ss:$2 sm:$0xff]
        %v6995 = vld [vmem:[%s6275] ss:$2 sm:$0xff]
        %v6996 = vld [vmem:[%s6277] ss:$2 sm:$0xff]
        %v6997 = vld [vmem:[%s6279] ss:$2 sm:$0xff]
        %7002 = vrot.lane.b32.xlu0 %v6994, 64
        %v7003 = vpop.permute.xlu0 %7002
        %7004 = vrot.lane.b32.xlu0 %v6995, 64
        %v7005 = vpop.permute.xlu0 %7004
        %7006 = vrot.lane.b32.xlu0 %v6996, 64
        %v7007 = vpop.permute.xlu0 %7006
        %7008 = vrot.lane.b32.xlu0 %v6997, 64
        %v7009 = vpop.permute.xlu0 %7008
        %7014 = vst.msk [vmem:[#allocation3] sm:$0xff] %vm1781, %v7003
        %7015 = vst.msk [vmem:[#allocation3 + $0x18] sm:$0xff] %vm1781, %v7005
        %7016 = vst.msk [vmem:[#allocation3 + $0x30] sm:$0xff] %vm1781, %v7007
        %7017 = vst.msk [vmem:[#allocation3 + $0x48] sm:$0xff] %vm1781, %v7009
        %v7018 = vld [vmem:[%s6329] ss:$2 sm:$0xff]
        %v7019 = vld [vmem:[%s6331] ss:$2 sm:$0xff]
        %v7020 = vld [vmem:[%s6333] ss:$2 sm:$0xff]
        %v7021 = vld [vmem:[%s6335] ss:$2 sm:$0xff]
        %7026 = vrot.lane.b32.xlu0 %v7018, 96
        %v7027 = vpop.permute.xlu0 %7026
        %7028 = vrot.lane.b32.xlu0 %v7019, 96
        %v7029 = vpop.permute.xlu0 %7028
        %7030 = vrot.lane.b32.xlu0 %v7020, 96
        %v7031 = vpop.permute.xlu0 %7030
        %7032 = vrot.lane.b32.xlu0 %v7021, 96
        %v7033 = vpop.permute.xlu0 %7032
        %7038 = vst.msk [vmem:[#allocation3] sm:$0xff] %vm1879, %v7027
        %7039 = vst.msk [vmem:[#allocation3 + $0x18] sm:$0xff] %vm1879, %v7029
        %7040 = vst.msk [vmem:[#allocation3 + $0x30] sm:$0xff] %vm1879, %v7031
        %7041 = vst.msk [vmem:[#allocation3 + $0x48] sm:$0xff] %vm1879, %v7033
        %v7042 = vld [vmem:[%s6385] ss:$2 sm:$0xff]
        %v7043 = vld [vmem:[%s6387] ss:$2 sm:$0xff]
        %v7044 = vld [vmem:[%s6389] ss:$2 sm:$0xff]
        %v7045 = vld [vmem:[%s6391] ss:$2 sm:$0xff]
        %7046 = vst.msk [vmem:[#allocation3 + $0x8] sm:$0xff] %vm887, %v7042
        %7047 = vst.msk [vmem:[#allocation3 + $0x20] sm:$0xff] %vm887, %v7043
        %7048 = vst.msk [vmem:[#allocation3 + $0x38] sm:$0xff] %vm887, %v7044
        %7049 = vst.msk [vmem:[#allocation3 + $0x50] sm:$0xff] %vm887, %v7045
        %v7050 = vld [vmem:[%s6409] ss:$2 sm:$0xff]
        %v7051 = vld [vmem:[%s6411] ss:$2 sm:$0xff]
        %v7052 = vld [vmem:[%s6413] ss:$2 sm:$0xff]
        %v7053 = vld [vmem:[%s6415] ss:$2 sm:$0xff]
        %7058 = vrot.lane.b32.xlu0 %v7050, 32
        %v7059 = vpop.permute.xlu0 %7058
        %7060 = vrot.lane.b32.xlu0 %v7051, 32
        %v7061 = vpop.permute.xlu0 %7060
        %7062 = vrot.lane.b32.xlu0 %v7052, 32
        %v7063 = vpop.permute.xlu0 %7062
        %7064 = vrot.lane.b32.xlu0 %v7053, 32
        %v7065 = vpop.permute.xlu0 %7064
        %7070 = vst.msk [vmem:[#allocation3 + $0x8] sm:$0xff] %vm1683, %v7059
        %7071 = vst.msk [vmem:[#allocation3 + $0x20] sm:$0xff] %vm1683, %v7061
        %7072 = vst.msk [vmem:[#allocation3 + $0x38] sm:$0xff] %vm1683, %v7063
        %7073 = vst.msk [vmem:[#allocation3 + $0x50] sm:$0xff] %vm1683, %v7065
        %v7074 = vld [vmem:[%s6465] ss:$2 sm:$0xff]
        %v7075 = vld [vmem:[%s6467] ss:$2 sm:$0xff]
        %v7076 = vld [vmem:[%s6469] ss:$2 sm:$0xff]
        %v7077 = vld [vmem:[%s6471] ss:$2 sm:$0xff]
        %7082 = vrot.lane.b32.xlu0 %v7074, 64
        %v7083 = vpop.permute.xlu0 %7082
        %7084 = vrot.lane.b32.xlu0 %v7075, 64
        %v7085 = vpop.permute.xlu0 %7084
        %7086 = vrot.lane.b32.xlu0 %v7076, 64
        %v7087 = vpop.permute.xlu0 %7086
        %7088 = vrot.lane.b32.xlu0 %v7077, 64
        %v7089 = vpop.permute.xlu0 %7088
        %7094 = vst.msk [vmem:[#allocation3 + $0x8] sm:$0xff] %vm1781, %v7083
        %7095 = vst.msk [vmem:[#allocation3 + $0x20] sm:$0xff] %vm1781, %v7085
        %7096 = vst.msk [vmem:[#allocation3 + $0x38] sm:$0xff] %vm1781, %v7087
        %7097 = vst.msk [vmem:[#allocation3 + $0x50] sm:$0xff] %vm1781, %v7089
        %v7098 = vld [vmem:[%s6521] ss:$2 sm:$0xff]
        %v7099 = vld [vmem:[%s6523] ss:$2 sm:$0xff]
        %v7100 = vld [vmem:[%s6525] ss:$2 sm:$0xff]
        %v7101 = vld [vmem:[%s6527] ss:$2 sm:$0xff]
        %7106 = vrot.lane.b32.xlu0 %v7098, 96
        %v7107 = vpop.permute.xlu0 %7106
        %7108 = vrot.lane.b32.xlu0 %v7099, 96
        %v7109 = vpop.permute.xlu0 %7108
        %7110 = vrot.lane.b32.xlu0 %v7100, 96
        %v7111 = vpop.permute.xlu0 %7110
        %7112 = vrot.lane.b32.xlu0 %v7101, 96
        %v7113 = vpop.permute.xlu0 %7112
        %7118 = vst.msk [vmem:[#allocation3 + $0x8] sm:$0xff] %vm1879, %v7107
        %7119 = vst.msk [vmem:[#allocation3 + $0x20] sm:$0xff] %vm1879, %v7109
        %7120 = vst.msk [vmem:[#allocation3 + $0x38] sm:$0xff] %vm1879, %v7111
        %7121 = vst.msk [vmem:[#allocation3 + $0x50] sm:$0xff] %vm1879, %v7113
        %v7122 = vld [vmem:[#allocation3] sm:$0xff]
        %v7123 = vld [vmem:[#allocation3 + $0x8] sm:$0xff]
        %v7124 = vld [vmem:[#allocation3 + $0x18] sm:$0xff]
        %v7125 = vld [vmem:[#allocation3 + $0x20] sm:$0xff]
        %v7126 = vld [vmem:[#allocation3 + $0x30] sm:$0xff]
        %v7127 = vld [vmem:[#allocation3 + $0x38] sm:$0xff]
        %v7128 = vld [vmem:[#allocation3 + $0x48] sm:$0xff]
        %v7129 = vld [vmem:[#allocation3 + $0x50] sm:$0xff]
        %s7130 = scalar_lea.vmem %s1, 1728
        %v7131 = vld [vmem:[%s7130] sm:$0xff]
        %v7132 = vld [vmem:[%s7130 + $0x8] sm:$0xff]
        %v7133 = vld [vmem:[%s7130 + $0x10] sm:$0xff]
        %v7134 = vld [vmem:[%s7130 + $0x18] sm:$0xff]
        %v7135 = vld [vmem:[%s7130 + $0x20] sm:$0xff]
        %v7136 = vld [vmem:[%s7130 + $0x28] sm:$0xff]
        %v7137 = vld [vmem:[%s7130 + $0x30] sm:$0xff]
        %v7138 = vld [vmem:[%s7130 + $0x38] sm:$0xff]
        %v7139 = vld [vmem:[%s7130 + $0x40] sm:$0xff]
        %v7140 = vld [vmem:[%s7130 + $0x48] sm:$0xff]
        %v7141 = vld [vmem:[%s7130 + $0x50] sm:$0xff]
        %v7142 = vld [vmem:[%s7130 + $0x58] sm:$0xff]
        %v7143 = vld [vmem:[%s7130 + $0x60] sm:$0xff]
        %v7144 = vld [vmem:[%s7130 + $0x68] sm:$0xff]
        %v7145 = vld [vmem:[%s7130 + $0x70] sm:$0xff]
        %v7146 = vld [vmem:[%s7130 + $0x78] sm:$0xff]
        %v7147 = vld [vmem:[%s7130 + $0x80] sm:$0xff]
        %v7148 = vld [vmem:[%s7130 + $0x88] sm:$0xff]
        %v7149 = vld [vmem:[%s7130 + $0x90] sm:$0xff]
        %v7150 = vld [vmem:[%s7130 + $0x98] sm:$0xff]
        %v7151 = vld [vmem:[%s7130 + $0xa0] sm:$0xff]
        %v7152 = vld [vmem:[%s7130 + $0xa8] sm:$0xff]
        %v7153 = vld [vmem:[%s7130 + $0xb0] sm:$0xff]
        %v7154 = vld [vmem:[%s7130 + $0xb8] sm:$0xff]
        %v7155 = vld [vmem:[%s7130 + $0xc0] sm:$0xff]
        %v7156 = vld [vmem:[%s7130 + $0xc8] sm:$0xff]
        %v7157 = vld [vmem:[%s7130 + $0xd0] sm:$0xff]
        %v7158 = vld [vmem:[%s7130 + $0xd8] sm:$0xff]
        %v7159 = vld [vmem:[%s7130 + $0xe0] sm:$0xff]
        %v7160 = vld [vmem:[%s7130 + $0xe8] sm:$0xff]
        %v7161 = vld [vmem:[%s7130 + $0xf0] sm:$0xff]
        %v7162 = vld [vmem:[%s7130 + $0xf8] sm:$0xff]
        %v7163 = vld [vmem:[%s2 + $0x6] sm:$0x1]
        %v7164 = vlaneseq
        %v7165 = vshrl.u32 %v7164, 7
        %v7166 = vsub.s32 0, %v7165
        %v7167 = vrot.slane %v7163, %v7166
        %7168 = vmatprep.subr.mxu0 0.0
        %7169 = vmatpush1.msra.mxu0 %v7131
        %7170 = vmatprep.subr.mxu0 0.0
        %7171 = vmatpush1.msra.mxu0 %v7132
        %7172 = vmatprep.subr.mxu0 0.0
        %7173 = vmatpush1.msra.mxu0 %v7133
        %7174 = vmatprep.subr.mxu0 0.0
        %7175 = vmatpush1.msra.mxu0 %v7134
        %7176 = vmatprep.subr.mxu0 0.0
        %7177 = vmatpush1.msra.mxu0 %v7135
        %7178 = vmatprep.subr.mxu0 0.0
        %7179 = vmatpush1.msra.mxu0 %v7136
        %7180 = vmatprep.subr.mxu0 0.0
        %7181 = vmatpush1.msra.mxu0 %v7137
        %7182 = vmatprep.subr.mxu0 0.0
        %7183 = vmatpush1.msra.mxu0 %v7138
        %7184 = vmatprep.subr.mxu0 0.0
        %7185 = vmatpush1.msra.mxu0 %v7139
        %7186 = vmatprep.subr.mxu0 0.0
        %7187 = vmatpush1.msra.mxu0 %v7140
        %7188 = vmatprep.subr.mxu0 0.0
        %7189 = vmatpush1.msra.mxu0 %v7141
        %7190 = vmatprep.subr.mxu0 0.0
        %7191 = vmatpush1.msra.mxu0 %v7142
        %7192 = vmatprep.subr.mxu0 0.0
        %7193 = vmatpush1.msra.mxu0 %v7143
        %7194 = vmatprep.subr.mxu0 0.0
        %7195 = vmatpush1.msra.mxu0 %v7144
        %7196 = vmatprep.subr.mxu0 0.0
        %7197 = vmatpush1.msra.mxu0 %v7145
        %7198 = vmatprep.subr.mxu0 0.0
        %7199 = vmatpush1.msra.mxu0 %v7146
        %7200 = vmatprep.subr.mxu0 0.0
        %7201 = vmatpush1.msra.mxu0 %v7147
        %7202 = vmatprep.subr.mxu0 0.0
        %7203 = vmatpush1.msra.mxu0 %v7148
        %7204 = vmatprep.subr.mxu0 0.0
        %7205 = vmatpush1.msra.mxu0 %v7149
        %7206 = vmatprep.subr.mxu0 0.0
        %7207 = vmatpush1.msra.mxu0 %v7150
        %7208 = vmatprep.subr.mxu0 0.0
        %7209 = vmatpush1.msra.mxu0 %v7151
        %7210 = vmatprep.subr.mxu0 0.0
        %7211 = vmatpush1.msra.mxu0 %v7152
        %7212 = vmatprep.subr.mxu0 0.0
        %7213 = vmatpush1.msra.mxu0 %v7153
        %7214 = vmatprep.subr.mxu0 0.0
        %7215 = vmatpush1.msra.mxu0 %v7154
        %7216 = vmatprep.subr.mxu0 0.0
        %7217 = vmatpush1.msra.mxu0 %v7155
        %7218 = vmatprep.subr.mxu0 0.0
        %7219 = vmatpush1.msra.mxu0 %v7156
        %7220 = vmatprep.subr.mxu0 0.0
        %7221 = vmatpush1.msra.mxu0 %v7157
        %7222 = vmatprep.subr.mxu0 0.0
        %7223 = vmatpush1.msra.mxu0 %v7158
        %7224 = vmatprep.subr.mxu0 0.0
        %7225 = vmatpush1.msra.mxu0 %v7159
        %7226 = vmatprep.subr.mxu0 0.0
        %7227 = vmatpush1.msra.mxu0 %v7160
        %7228 = vmatprep.subr.mxu0 0.0
        %7229 = vmatpush1.msra.mxu0 %v7161
        %7230 = vmatprep.subr.mxu0 0.0
        %7231 = vmatpush1.msra.mxu0 %v7162
        %7232 = vmatprep.mubr.f32.mxu0 %v7123
        %7233 = vmatmul.mubr.f32.gmra.mrb[0].mxu0 %v7122
        %v7234 = vpop.f32.mrb[0].mxu0
        %v7235 = vadd.f32 %v7167, %v7234
        %v7236 = vpop.f32.mrb[0].mxu0
        %7237 = vmatprep.mubr.f32.mxu0 %v7125
        %7238 = vmatmul.mubr.f32.gmra.mrb[0].mxu0 %v7124
        %v7239 = vpop.f32.mrb[0].mxu0
        %v7240 = vadd.f32 %v7167, %v7239
        %v7241 = vpop.f32.mrb[0].mxu0
        %7242 = vmatprep.mubr.f32.mxu0 %v7127
        %7243 = vmatmul.mubr.f32.gmra.mrb[0].mxu0 %v7126
        %v7244 = vpop.f32.mrb[0].mxu0
        %v7245 = vadd.f32 %v7167, %v7244
        %v7246 = vpop.f32.mrb[0].mxu0
        %7247 = vmatprep.mubr.f32.mxu0 %v7129
        %7248 = vmatmul.mubr.f32.gmra.mrb[0].mxu0 %v7128
        %v7249 = vpop.f32.mrb[0].mxu0
        %v7250 = vadd.f32 %v7167, %v7249
        %v7251 = vpop.f32.mrb[0].mxu0
        %7252 = vdwg.mxu0
        %v7253 = vmul.f32 %v7235, 0.5
        %v7254 = vmul.f32 %v7240, 0.5
        %v7255 = vmul.f32 %v7245, 0.5
        %v7256 = vmul.f32 %v7250, 0.5
        %v7257 = vmul.f32 %v7235, 0.70710677
        %v7258 = vmul.f32 %v7240, 0.70710677
        %v7259 = vmul.f32 %v7245, 0.70710677
        %v7260 = vmul.f32 %v7250, 0.70710677
        %v7261 = vand.u32 2147483647, %v7257
        %v7262 = vand.u32 2147483647, %v7258
        %v7263 = vand.u32 2147483647, %v7259
        %v7264 = vand.u32 2147483647, %v7260
        %v7265 = vmul.f32 %v7261, 0.3275911
        %v7266 = vmul.f32 %v7262, 0.3275911
        %v7267 = vmul.f32 %v7263, 0.3275911
        %v7268 = vmul.f32 %v7264, 0.3275911
        %v7269 = vadd.f32 %v7265, 1.0
        %v7270 = vadd.f32 %v7266, 1.0
        %v7271 = vadd.f32 %v7267, 1.0
        %v7272 = vadd.f32 %v7268, 1.0
        %v7273 = vrcp.pop %v7269
        %v7274 = vmul.f32 1.0, %v7273
        %v7275 = vrcp.pop %v7270
        %v7276 = vmul.f32 1.0, %v7275
        %v7277 = vrcp.pop %v7271
        %v7278 = vmul.f32 1.0, %v7277
        %v7279 = vrcp.pop %v7272
        %v7280 = vmul.f32 1.0, %v7279
        %v7281 = vmul.f32 %v7274, 1.0614054
        %v7282 = vmul.f32 %v7276, 1.0614054
        %v7283 = vmul.f32 %v7278, 1.0614054
        %v7284 = vmul.f32 %v7280, 1.0614054
        %v7285 = vadd.f32 %v7281, -1.4531521
        %v7286 = vadd.f32 %v7282, -1.4531521
        %v7287 = vadd.f32 %v7283, -1.4531521
        %v7288 = vadd.f32 %v7284, -1.4531521
        %v7289 = vmul.f32 %v7285, %v7274
        %v7290 = vmul.f32 %v7286, %v7276
        %v7291 = vmul.f32 %v7287, %v7278
        %v7292 = vmul.f32 %v7288, %v7280
        %v7293 = vadd.f32 %v7289, 1.4214138
        %v7294 = vadd.f32 %v7290, 1.4214138
        %v7295 = vadd.f32 %v7291, 1.4214138
        %v7296 = vadd.f32 %v7292, 1.4214138
        %v7297 = vmul.f32 %v7293, %v7274
        %v7298 = vmul.f32 %v7294, %v7276
        %v7299 = vmul.f32 %v7295, %v7278
        %v7300 = vmul.f32 %v7296, %v7280
        %v7301 = vadd.f32 %v7297, -0.28449672
        %v7302 = vadd.f32 %v7298, -0.28449672
        %v7303 = vadd.f32 %v7299, -0.28449672
        %v7304 = vadd.f32 %v7300, -0.28449672
        %v7305 = vmul.f32 %v7301, %v7274
        %v7306 = vmul.f32 %v7302, %v7276
        %v7307 = vmul.f32 %v7303, %v7278
        %v7308 = vmul.f32 %v7304, %v7280
        %v7309 = vadd.f32 %v7305, 0.2548296
        %v7310 = vadd.f32 %v7306, 0.2548296
        %v7311 = vadd.f32 %v7307, 0.2548296
        %v7312 = vadd.f32 %v7308, 0.2548296
        %v7313 = vmul.f32 %v7309, %v7274
        %v7314 = vmul.f32 %v7310, %v7276
        %v7315 = vmul.f32 %v7311, %v7278
        %v7316 = vmul.f32 %v7312, %v7280
        %v7317 = vsub.f32 0.0, %v7261
        %v7318 = vsub.f32 0.0, %v7262
        %v7319 = vsub.f32 0.0, %v7263
        %v7320 = vsub.f32 0.0, %v7264
        %v7321 = vmul.f32 %v7317, %v7261
        %v7322 = vmul.f32 %v7318, %v7262
        %v7323 = vmul.f32 %v7319, %v7263
        %v7324 = vmul.f32 %v7320, %v7264
        %v7325 = vmul.f32 %v7321, 1.442695
        %v7326 = vpow.pop %v7325
        %v7327 = vmul.f32 %v7322, 1.442695
        %v7328 = vpow.pop %v7327
        %v7329 = vmul.f32 %v7323, 1.442695
        %v7330 = vpow.pop %v7329
        %v7331 = vmul.f32 %v7324, 1.442695
        %v7332 = vpow.pop %v7331
        %v7333 = vmul.f32 %v7313, %v7326
        %v7334 = vmul.f32 %v7314, %v7328
        %v7335 = vmul.f32 %v7315, %v7330
        %v7336 = vmul.f32 %v7316, %v7332
        %v7337 = vsub.f32 1.0, %v7333
        %v7338 = vsub.f32 1.0, %v7334
        %v7339 = vsub.f32 1.0, %v7335
        %v7340 = vsub.f32 1.0, %v7336
        %vm7341 = vcmp.lt.f32.partialorder %v7257, 0.0
        %vm7342 = vcmp.lt.f32.partialorder %v7258, 0.0
        %vm7343 = vcmp.lt.f32.partialorder %v7259, 0.0
        %vm7344 = vcmp.lt.f32.partialorder %v7260, 0.0
        %v7345 = vsub.f32 0.0, %v7337
        %v7346 = vsub.f32 0.0, %v7338
        %v7347 = vsub.f32 0.0, %v7339
        %v7348 = vsub.f32 0.0, %v7340
        %v7349 = vsel %vm7341, %v7345, %v7337
        %v7350 = vsel %vm7342, %v7346, %v7338
        %v7351 = vsel %vm7343, %v7347, %v7339
        %v7352 = vsel %vm7344, %v7348, %v7340
        %v7353 = vadd.f32 %v7349, 1.0
        %v7354 = vadd.f32 %v7350, 1.0
        %v7355 = vadd.f32 %v7351, 1.0
        %v7356 = vadd.f32 %v7352, 1.0
        %v7357 = vmul.f32 %v7253, %v7353
        %v7358 = vmul.f32 %v7254, %v7354
        %v7359 = vmul.f32 %v7255, %v7355
        %v7360 = vmul.f32 %v7256, %v7356
        %7361 = vst.msk [vmem:[#allocation2] sm:$0x7] %vm6175, 0.0
        %7362 = vst.msk [vmem:[#allocation2 + $0x3] sm:$0xff] %vm887, %v7357
        %7363 = vst.msk [vmem:[#allocation2 + $0xb] sm:$0xff] %vm887, %v7358
        %7364 = vst.msk [vmem:[#allocation2 + $0x13] sm:$0xff] %vm887, %v7359
        %7365 = vst.msk [vmem:[#allocation2 + $0x1b] sm:$0xff] %vm887, %v7360
        %7366 = vst.msk [vmem:[#allocation2 + $0x23] sm:$0x7] %vm6175, 0.0
        %v7367 = vld [vmem:[#allocation2] ss:$2 sm:$0xff]
        %v7368 = vld [vmem:[%s6195] ss:$2 sm:$0xff]
        %7369 = vst.msk [vmem:[#allocation3] sm:$0xff] %vm887, %v7367
        %7370 = vst.msk [vmem:[#allocation3 + $0x18] sm:$0xff] %vm887, %v7368
        %v7371 = vld [vmem:[%s6217] ss:$2 sm:$0xff]
        %v7372 = vld [vmem:[%s6219] ss:$2 sm:$0xff]
        %7375 = vrot.lane.b32.xlu0 %v7371, 32
        %v7376 = vpop.permute.xlu0 %7375
        %7377 = vrot.lane.b32.xlu0 %v7372, 32
        %v7378 = vpop.permute.xlu0 %7377
        %7381 = vst.msk [vmem:[#allocation3] sm:$0xff] %vm1683, %v7376
        %7382 = vst.msk [vmem:[#allocation3 + $0x18] sm:$0xff] %vm1683, %v7378
        %v7383 = vld [vmem:[%s6273] ss:$2 sm:$0xff]
        %v7384 = vld [vmem:[%s6275] ss:$2 sm:$0xff]
        %7387 = vrot.lane.b32.xlu0 %v7383, 64
        %v7388 = vpop.permute.xlu0 %7387
        %7389 = vrot.lane.b32.xlu0 %v7384, 64
        %v7390 = vpop.permute.xlu0 %7389
        %7393 = vst.msk [vmem:[#allocation3] sm:$0xff] %vm1781, %v7388
        %7394 = vst.msk [vmem:[#allocation3 + $0x18] sm:$0xff] %vm1781, %v7390
        %v7395 = vld [vmem:[%s6329] ss:$2 sm:$0xff]
        %v7396 = vld [vmem:[%s6331] ss:$2 sm:$0xff]
        %7399 = vrot.lane.b32.xlu0 %v7395, 96
        %v7400 = vpop.permute.xlu0 %7399
        %7401 = vrot.lane.b32.xlu0 %v7396, 96
        %v7402 = vpop.permute.xlu0 %7401
        %7405 = vst.msk [vmem:[#allocation3] sm:$0xff] %vm1879, %v7400
        %7406 = vst.msk [vmem:[#allocation3 + $0x18] sm:$0xff] %vm1879, %v7402
        %v7407 = vld [vmem:[%s6385] ss:$2 sm:$0xff]
        %v7408 = vld [vmem:[%s6387] ss:$2 sm:$0xff]
        %7409 = vst.msk [vmem:[#allocation3 + $0x8] sm:$0xff] %vm887, %v7407
        %7410 = vst.msk [vmem:[#allocation3 + $0x20] sm:$0xff] %vm887, %v7408
        %v7411 = vld [vmem:[%s6409] ss:$2 sm:$0xff]
        %v7412 = vld [vmem:[%s6411] ss:$2 sm:$0xff]
        %7415 = vrot.lane.b32.xlu0 %v7411, 32
        %v7416 = vpop.permute.xlu0 %7415
        %7417 = vrot.lane.b32.xlu0 %v7412, 32
        %v7418 = vpop.permute.xlu0 %7417
        %7421 = vst.msk [vmem:[#allocation3 + $0x8] sm:$0xff] %vm1683, %v7416
        %7422 = vst.msk [vmem:[#allocation3 + $0x20] sm:$0xff] %vm1683, %v7418
        %v7423 = vld [vmem:[%s6465] ss:$2 sm:$0xff]
        %v7424 = vld [vmem:[%s6467] ss:$2 sm:$0xff]
        %7427 = vrot.lane.b32.xlu0 %v7423, 64
        %v7428 = vpop.permute.xlu0 %7427
        %7429 = vrot.lane.b32.xlu0 %v7424, 64
        %v7430 = vpop.permute.xlu0 %7429
        %7433 = vst.msk [vmem:[#allocation3 + $0x8] sm:$0xff] %vm1781, %v7428
        %7434 = vst.msk [vmem:[#allocation3 + $0x20] sm:$0xff] %vm1781, %v7430
        %v7435 = vld [vmem:[%s6521] ss:$2 sm:$0xff]
        %v7436 = vld [vmem:[%s6523] ss:$2 sm:$0xff]
        %7439 = vrot.lane.b32.xlu0 %v7435, 96
        %v7440 = vpop.permute.xlu0 %7439
        %7441 = vrot.lane.b32.xlu0 %v7436, 96
        %v7442 = vpop.permute.xlu0 %7441
        %7445 = vst.msk [vmem:[#allocation3 + $0x8] sm:$0xff] %vm1879, %v7440
        %7446 = vst.msk [vmem:[#allocation3 + $0x20] sm:$0xff] %vm1879, %v7442
        %v7447 = vld [vmem:[#allocation3] sm:$0xff]
        %v7448 = vld [vmem:[#allocation3 + $0x8] sm:$0xff]
        %v7449 = vld [vmem:[#allocation3 + $0x18] sm:$0xff]
        %v7450 = vld [vmem:[#allocation3 + $0x20] sm:$0xff]
        %s7451 = scalar_lea.vmem %s1, 2016
        %v7452 = vld [vmem:[%s7451] sm:$0xff]
        %v7453 = vld [vmem:[%s7451 + $0x8] sm:$0xff]
        %v7454 = vld [vmem:[%s7451 + $0x10] sm:$0xff]
        %v7455 = vld [vmem:[%s7451 + $0x18] sm:$0xff]
        %v7456 = vld [vmem:[%s7451 + $0x20] sm:$0xff]
        %v7457 = vld [vmem:[%s7451 + $0x28] sm:$0xff]
        %v7458 = vld [vmem:[%s7451 + $0x30] sm:$0xff]
        %v7459 = vld [vmem:[%s7451 + $0x38] sm:$0xff]
        %v7460 = vld [vmem:[%s7451 + $0x40] sm:$0xff]
        %v7461 = vld [vmem:[%s7451 + $0x48] sm:$0xff]
        %v7462 = vld [vmem:[%s7451 + $0x50] sm:$0xff]
        %v7463 = vld [vmem:[%s7451 + $0x58] sm:$0xff]
        %v7464 = vld [vmem:[%s7451 + $0x60] sm:$0xff]
        %v7465 = vld [vmem:[%s7451 + $0x68] sm:$0xff]
        %v7466 = vld [vmem:[%s7451 + $0x70] sm:$0xff]
        %v7467 = vld [vmem:[%s7451 + $0x78] sm:$0xff]
        %v7468 = vld [vmem:[%s7451 + $0x80] sm:$0xff]
        %v7469 = vld [vmem:[%s7451 + $0x88] sm:$0xff]
        %v7470 = vld [vmem:[%s7451 + $0x90] sm:$0xff]
        %v7471 = vld [vmem:[%s7451 + $0x98] sm:$0xff]
        %v7472 = vld [vmem:[%s7451 + $0xa0] sm:$0xff]
        %v7473 = vld [vmem:[%s7451 + $0xa8] sm:$0xff]
        %v7474 = vld [vmem:[%s7451 + $0xb0] sm:$0xff]
        %v7475 = vld [vmem:[%s7451 + $0xb8] sm:$0xff]
        %v7476 = vld [vmem:[%s7451 + $0xc0] sm:$0xff]
        %v7477 = vld [vmem:[%s7451 + $0xc8] sm:$0xff]
        %v7478 = vld [vmem:[%s7451 + $0xd0] sm:$0xff]
        %v7479 = vld [vmem:[%s7451 + $0xd8] sm:$0xff]
        %v7480 = vld [vmem:[%s7451 + $0xe0] sm:$0xff]
        %v7481 = vld [vmem:[%s7451 + $0xe8] sm:$0xff]
        %v7482 = vld [vmem:[%s7451 + $0xf0] sm:$0xff]
        %v7483 = vld [vmem:[%s7451 + $0xf8] sm:$0xff]
        %v7484 = vld [vmem:[%s2 + $0x7] sm:$0x1]
        %v7485 = vlaneseq
        %v7486 = vshrl.u32 %v7485, 7
        %v7487 = vsub.s32 0, %v7486
        %v7488 = vrot.slane %v7484, %v7487
        %7489 = vmatprep.subr.mxu0 0.0
        %7490 = vmatpush1.msra.mxu0 %v7452
        %7491 = vmatprep.subr.mxu0 0.0
        %7492 = vmatpush1.msra.mxu0 %v7453
        %7493 = vmatprep.subr.mxu0 0.0
        %7494 = vmatpush1.msra.mxu0 %v7454
        %7495 = vmatprep.subr.mxu0 0.0
        %7496 = vmatpush1.msra.mxu0 %v7455
        %7497 = vmatprep.subr.mxu0 0.0
        %7498 = vmatpush1.msra.mxu0 %v7456
        %7499 = vmatprep.subr.mxu0 0.0
        %7500 = vmatpush1.msra.mxu0 %v7457
        %7501 = vmatprep.subr.mxu0 0.0
        %7502 = vmatpush1.msra.mxu0 %v7458
        %7503 = vmatprep.subr.mxu0 0.0
        %7504 = vmatpush1.msra.mxu0 %v7459
        %7505 = vmatprep.subr.mxu0 0.0
        %7506 = vmatpush1.msra.mxu0 %v7460
        %7507 = vmatprep.subr.mxu0 0.0
        %7508 = vmatpush1.msra.mxu0 %v7461
        %7509 = vmatprep.subr.mxu0 0.0
        %7510 = vmatpush1.msra.mxu0 %v7462
        %7511 = vmatprep.subr.mxu0 0.0
        %7512 = vmatpush1.msra.mxu0 %v7463
        %7513 = vmatprep.subr.mxu0 0.0
        %7514 = vmatpush1.msra.mxu0 %v7464
        %7515 = vmatprep.subr.mxu0 0.0
        %7516 = vmatpush1.msra.mxu0 %v7465
        %7517 = vmatprep.subr.mxu0 0.0
        %7518 = vmatpush1.msra.mxu0 %v7466
        %7519 = vmatprep.subr.mxu0 0.0
        %7520 = vmatpush1.msra.mxu0 %v7467
        %7521 = vmatprep.subr.mxu0 0.0
        %7522 = vmatpush1.msra.mxu0 %v7468
        %7523 = vmatprep.subr.mxu0 0.0
        %7524 = vmatpush1.msra.mxu0 %v7469
        %7525 = vmatprep.subr.mxu0 0.0
        %7526 = vmatpush1.msra.mxu0 %v7470
        %7527 = vmatprep.subr.mxu0 0.0
        %7528 = vmatpush1.msra.mxu0 %v7471
        %7529 = vmatprep.subr.mxu0 0.0
        %7530 = vmatpush1.msra.mxu0 %v7472
        %7531 = vmatprep.subr.mxu0 0.0
        %7532 = vmatpush1.msra.mxu0 %v7473
        %7533 = vmatprep.subr.mxu0 0.0
        %7534 = vmatpush1.msra.mxu0 %v7474
        %7535 = vmatprep.subr.mxu0 0.0
        %7536 = vmatpush1.msra.mxu0 %v7475
        %7537 = vmatprep.subr.mxu0 0.0
        %7538 = vmatpush1.msra.mxu0 %v7476
        %7539 = vmatprep.subr.mxu0 0.0
        %7540 = vmatpush1.msra.mxu0 %v7477
        %7541 = vmatprep.subr.mxu0 0.0
        %7542 = vmatpush1.msra.mxu0 %v7478
        %7543 = vmatprep.subr.mxu0 0.0
        %7544 = vmatpush1.msra.mxu0 %v7479
        %7545 = vmatprep.subr.mxu0 0.0
        %7546 = vmatpush1.msra.mxu0 %v7480
        %7547 = vmatprep.subr.mxu0 0.0
        %7548 = vmatpush1.msra.mxu0 %v7481
        %7549 = vmatprep.subr.mxu0 0.0
        %7550 = vmatpush1.msra.mxu0 %v7482
        %7551 = vmatprep.subr.mxu0 0.0
        %7552 = vmatpush1.msra.mxu0 %v7483
        %7553 = vmatprep.mubr.f32.mxu0 %v7448
        %7554 = vmatmul.mubr.f32.gmra.mrb[0].mxu0 %v7447
        %v7555 = vpop.f32.mrb[0].mxu0
        %v7556 = vadd.f32 %v7488, %v7555
        %v7557 = vpop.f32.mrb[0].mxu0
        %7558 = vmatprep.mubr.f32.mxu0 %v7450
        %7559 = vmatmul.mubr.f32.gmra.mrb[0].mxu0 %v7449
        %v7560 = vpop.f32.mrb[0].mxu0
        %v7561 = vadd.f32 %v7488, %v7560
        %v7562 = vpop.f32.mrb[0].mxu0
        %7563 = vdwg.mxu0
        %v7564 = vmul.f32 %v7556, 0.5
        %v7565 = vmul.f32 %v7561, 0.5
        %v7566 = vmul.f32 %v7556, 0.70710677
        %v7567 = vmul.f32 %v7561, 0.70710677
        %v7568 = vand.u32 2147483647, %v7566
        %v7569 = vand.u32 2147483647, %v7567
        %v7570 = vmul.f32 %v7568, 0.3275911
        %v7571 = vmul.f32 %v7569, 0.3275911
        %v7572 = vadd.f32 %v7570, 1.0
        %v7573 = vadd.f32 %v7571, 1.0
        %v7574 = vrcp.pop %v7572
        %v7575 = vmul.f32 1.0, %v7574
        %v7576 = vrcp.pop %v7573
        %v7577 = vmul.f32 1.0, %v7576
        %v7578 = vmul.f32 %v7575, 1.0614054
        %v7579 = vmul.f32 %v7577, 1.0614054
        %v7580 = vadd.f32 %v7578, -1.4531521
        %v7581 = vadd.f32 %v7579, -1.4531521
        %v7582 = vmul.f32 %v7580, %v7575
        %v7583 = vmul.f32 %v7581, %v7577
        %v7584 = vadd.f32 %v7582, 1.4214138
        %v7585 = vadd.f32 %v7583, 1.4214138
        %v7586 = vmul.f32 %v7584, %v7575
        %v7587 = vmul.f32 %v7585, %v7577
        %v7588 = vadd.f32 %v7586, -0.28449672
        %v7589 = vadd.f32 %v7587, -0.28449672
        %v7590 = vmul.f32 %v7588, %v7575
        %v7591 = vmul.f32 %v7589, %v7577
        %v7592 = vadd.f32 %v7590, 0.2548296
        %v7593 = vadd.f32 %v7591, 0.2548296
        %v7594 = vmul.f32 %v7592, %v7575
        %v7595 = vmul.f32 %v7593, %v7577
        %v7596 = vsub.f32 0.0, %v7568
        %v7597 = vsub.f32 0.0, %v7569
        %v7598 = vmul.f32 %v7596, %v7568
        %v7599 = vmul.f32 %v7597, %v7569
        %v7600 = vmul.f32 %v7598, 1.442695
        %v7601 = vpow.pop %v7600
        %v7602 = vmul.f32 %v7599, 1.442695
        %v7603 = vpow.pop %v7602
        %v7604 = vmul.f32 %v7594, %v7601
        %v7605 = vmul.f32 %v7595, %v7603
        %v7606 = vsub.f32 1.0, %v7604
        %v7607 = vsub.f32 1.0, %v7605
        %vm7608 = vcmp.lt.f32.partialorder %v7566, 0.0
        %vm7609 = vcmp.lt.f32.partialorder %v7567, 0.0
        %v7610 = vsub.f32 0.0, %v7606
        %v7611 = vsub.f32 0.0, %v7607
        %v7612 = vsel %vm7608, %v7610, %v7606
        %v7613 = vsel %vm7609, %v7611, %v7607
        %v7614 = vadd.f32 %v7612, 1.0
        %v7615 = vadd.f32 %v7613, 1.0
        %v7616 = vmul.f32 %v7564, %v7614
        %v7617 = vmul.f32 %v7565, %v7615
        %7618 = vst.msk [vmem:[#allocation2] sm:$0x7] %vm6175, 0.0
        %7619 = vst.msk [vmem:[#allocation2 + $0x3] sm:$0xff] %vm887, %v7616
        %7620 = vst.msk [vmem:[#allocation2 + $0xb] sm:$0xff] %vm887, %v7617
        %7621 = vst.msk [vmem:[#allocation2 + $0x13] sm:$0x7] %vm6175, 0.0
        %v7622 = vld [vmem:[#allocation2] ss:$2 sm:$0xff]
        %7623 = vst.msk [vmem:[#allocation3] sm:$0xff] %vm887, %v7622
        %v7624 = vld [vmem:[%s6217] ss:$2 sm:$0xff]
        %7626 = vrot.lane.b32.xlu0 %v7624, 32
        %v7627 = vpop.permute.xlu0 %7626
        %7629 = vst.msk [vmem:[#allocation3] sm:$0xff] %vm1683, %v7627
        %v7630 = vld [vmem:[%s6273] ss:$2 sm:$0xff]
        %7632 = vrot.lane.b32.xlu0 %v7630, 64
        %v7633 = vpop.permute.xlu0 %7632
        %7635 = vst.msk [vmem:[#allocation3] sm:$0xff] %vm1781, %v7633
        %v7636 = vld [vmem:[%s6329] ss:$2 sm:$0xff]
        %7638 = vrot.lane.b32.xlu0 %v7636, 96
        %v7639 = vpop.permute.xlu0 %7638
        %7641 = vst.msk [vmem:[#allocation3] sm:$0xff] %vm1879, %v7639
        %v7642 = vld [vmem:[%s6385] ss:$2 sm:$0xff]
        %7643 = vst.msk [vmem:[#allocation3 + $0x8] sm:$0xff] %vm887, %v7642
        %v7644 = vld [vmem:[%s6409] ss:$2 sm:$0xff]
        %7646 = vrot.lane.b32.xlu0 %v7644, 32
        %v7647 = vpop.permute.xlu0 %7646
        %7649 = vst.msk [vmem:[#allocation3 + $0x8] sm:$0xff] %vm1683, %v7647
        %v7650 = vld [vmem:[%s6465] ss:$2 sm:$0xff]
        %7652 = vrot.lane.b32.xlu0 %v7650, 64
        %v7653 = vpop.permute.xlu0 %7652
        %7655 = vst.msk [vmem:[#allocation3 + $0x8] sm:$0xff] %vm1781, %v7653
        %v7656 = vld [vmem:[%s6521] ss:$2 sm:$0xff]
        %7658 = vrot.lane.b32.xlu0 %v7656, 96
        %v7659 = vpop.permute.xlu0 %7658
        %7661 = vst.msk [vmem:[#allocation3 + $0x8] sm:$0xff] %vm1879, %v7659
        %v7662 = vld [vmem:[%s3] sm:$0xff]
        %v7663 = vld [vmem:[%s3 + $0x8] sm:$0xff]
        %v7664 = vld [vmem:[%s3 + $0x10] sm:$0xff]
        %v7665 = vld [vmem:[%s3 + $0x18] sm:$0xff]
        %v7666 = vld [vmem:[%s3 + $0x20] sm:$0xff]
        %v7667 = vld [vmem:[%s3 + $0x28] sm:$0xff]
        %v7668 = vld [vmem:[%s3 + $0x30] sm:$0xff]
        %v7669 = vld [vmem:[%s3 + $0x38] sm:$0xff]
        %v7670 = vld [vmem:[#allocation3] sm:$0xff]
        %v7671 = vld [vmem:[#allocation3 + $0x8] sm:$0xff]
        %v7672 = vld [vmem:[%s4] sm:$0xff]
        %v7673 = vld [vmem:[%s4 + $0x8] sm:$0xff]
        %v7674 = vld [vmem:[%s4 + $0x10] sm:$0xff]
        %v7675 = vld [vmem:[%s4 + $0x18] sm:$0xff]
        %7677 = vset.pattern.permute.xlu0 0
        %7678 = vperm.xlu0 %7677, %v7672
        %v7679 = vpop.permute.xlu0 %7678
        %7682 = vset.pattern.permute.xlu0 0
        %7683 = vperm.xlu0 %7682, %v7673
        %v7684 = vpop.permute.xlu0 %7683
        %7687 = vset.pattern.permute.xlu0 0
        %7688 = vperm.xlu0 %7687, %v7674
        %v7689 = vpop.permute.xlu0 %7688
        %7692 = vset.pattern.permute.xlu0 0
        %7693 = vperm.xlu0 %7692, %v7675
        %v7694 = vpop.permute.xlu0 %7693
        %7696 = vmatprep.subr.mxu0 %v7671
        %7697 = vmatpush1.xpose.msra.mxu0 %v7670
        %7698 = vmatprep.subr.mxu0 0.0
        %7699 = vmatpush1.xpose.msra.mxu0 0.0
        %7700 = vmatprep.subr.mxu0 0.0
        %7701 = vmatpush1.xpose.msra.mxu0 0.0
        %7702 = vmatprep.subr.mxu0 0.0
        %7703 = vmatpush1.xpose.msra.mxu0 0.0
        %7704 = vmatprep.subr.mxu0 0.0
        %7705 = vmatpush1.xpose.msra.mxu0 0.0
        %7706 = vmatprep.subr.mxu0 0.0
        %7707 = vmatpush1.xpose.msra.mxu0 0.0
        %7708 = vmatprep.subr.mxu0 0.0
        %7709 = vmatpush1.xpose.msra.mxu0 0.0
        %7710 = vmatprep.subr.mxu0 0.0
        %7711 = vmatpush1.xpose.msra.mxu0 0.0
        %7712 = vmatprep.subr.mxu0 0.0
        %7713 = vmatpush1.xpose.msra.mxu0 0.0
        %7714 = vmatprep.subr.mxu0 0.0
        %7715 = vmatpush1.xpose.msra.mxu0 0.0
        %7716 = vmatprep.subr.mxu0 0.0
        %7717 = vmatpush1.xpose.msra.mxu0 0.0
        %7718 = vmatprep.subr.mxu0 0.0
        %7719 = vmatpush1.xpose.msra.mxu0 0.0
        %7720 = vmatprep.subr.mxu0 0.0
        %7721 = vmatpush1.xpose.msra.mxu0 0.0
        %7722 = vmatprep.subr.mxu0 0.0
        %7723 = vmatpush1.xpose.msra.mxu0 0.0
        %7724 = vmatprep.subr.mxu0 0.0
        %7725 = vmatpush1.xpose.msra.mxu0 0.0
        %7726 = vmatprep.subr.mxu0 0.0
        %7727 = vmatpush1.xpose.msra.mxu0 0.0
        %7728 = vmatprep.subr.mxu0 0.0
        %7729 = vmatpush1.xpose.msra.mxu0 0.0
        %7730 = vmatprep.subr.mxu0 0.0
        %7731 = vmatpush1.xpose.msra.mxu0 0.0
        %7732 = vmatprep.subr.mxu0 0.0
        %7733 = vmatpush1.xpose.msra.mxu0 0.0
        %7734 = vmatprep.subr.mxu0 0.0
        %7735 = vmatpush1.xpose.msra.mxu0 0.0
        %7736 = vmatprep.subr.mxu0 0.0
        %7737 = vmatpush1.xpose.msra.mxu0 0.0
        %7738 = vmatprep.subr.mxu0 0.0
        %7739 = vmatpush1.xpose.msra.mxu0 0.0
        %7740 = vmatprep.subr.mxu0 0.0
        %7741 = vmatpush1.xpose.msra.mxu0 0.0
        %7742 = vmatprep.subr.mxu0 0.0
        %7743 = vmatpush1.xpose.msra.mxu0 0.0
        %7744 = vmatprep.subr.mxu0 0.0
        %7745 = vmatpush1.xpose.msra.mxu0 0.0
        %7746 = vmatprep.subr.mxu0 0.0
        %7747 = vmatpush1.xpose.msra.mxu0 0.0
        %7748 = vmatprep.subr.mxu0 0.0
        %7749 = vmatpush1.xpose.msra.mxu0 0.0
        %7750 = vmatprep.subr.mxu0 0.0
        %7751 = vmatpush1.xpose.msra.mxu0 0.0
        %7752 = vmatprep.subr.mxu0 0.0
        %7753 = vmatpush1.xpose.msra.mxu0 0.0
        %7754 = vmatprep.subr.mxu0 0.0
        %7755 = vmatpush1.xpose.msra.mxu0 0.0
        %7756 = vmatprep.subr.mxu0 0.0
        %7757 = vmatpush1.xpose.msra.mxu0 0.0
        %7758 = vmatprep.subr.mxu0 0.0
        %7759 = vmatpush1.xpose.msra.mxu0 0.0
        %7760 = vmatprep.mubr.f32.mxu0 %v7663
        %7761 = vmatmul.mubr.f32.gmra.mrb[0].mxu0 %v7662
        %v7762 = vpop.f32.mrb[0].mxu0
        %v7763 = vadd.f32 %v7679, %v7762
        %v7764 = vpop.f32.mrb[0].mxu0
        %7765 = vmatprep.mubr.f32.mxu0 %v7665
        %7766 = vmatmul.mubr.f32.gmra.mrb[0].mxu0 %v7664
        %v7767 = vpop.f32.mrb[0].mxu0
        %v7768 = vadd.f32 %v7684, %v7767
        %v7769 = vpop.f32.mrb[0].mxu0
        %7770 = vmatprep.mubr.f32.mxu0 %v7667
        %7771 = vmatmul.mubr.f32.gmra.mrb[0].mxu0 %v7666
        %v7772 = vpop.f32.mrb[0].mxu0
        %v7773 = vadd.f32 %v7689, %v7772
        %v7774 = vpop.f32.mrb[0].mxu0
        %7775 = vmatprep.mubr.f32.mxu0 %v7669
        %7776 = vmatmul.mubr.f32.gmra.mrb[0].mxu0 %v7668
        %v7777 = vpop.f32.mrb[0].mxu0
        %v7778 = vadd.f32 %v7694, %v7777
        %v7779 = vpop.f32.mrb[0].mxu0
        %7780 = vdwg.mxu0
        %v7781 = vmul.f32 %v7763, 0.5
        %v7782 = vmul.f32 %v7768, 0.5
        %v7783 = vmul.f32 %v7773, 0.5
        %v7784 = vmul.f32 %v7778, 0.5
        %v7785 = vmul.f32 %v7763, 0.70710677
        %v7786 = vmul.f32 %v7768, 0.70710677
        %v7787 = vmul.f32 %v7773, 0.70710677
        %v7788 = vmul.f32 %v7778, 0.70710677
        %v7789 = vand.u32 2147483647, %v7785
        %v7790 = vand.u32 2147483647, %v7786
        %v7791 = vand.u32 2147483647, %v7787
        %v7792 = vand.u32 2147483647, %v7788
        %v7793 = vmul.f32 %v7789, 0.3275911
        %v7794 = vmul.f32 %v7790, 0.3275911
        %v7795 = vmul.f32 %v7791, 0.3275911
        %v7796 = vmul.f32 %v7792, 0.3275911
        %v7797 = vadd.f32 %v7793, 1.0
        %v7798 = vadd.f32 %v7794, 1.0
        %v7799 = vadd.f32 %v7795, 1.0
        %v7800 = vadd.f32 %v7796, 1.0
        %v7801 = vrcp.pop %v7797
        %v7802 = vmul.f32 1.0, %v7801
        %v7803 = vrcp.pop %v7798
        %v7804 = vmul.f32 1.0, %v7803
        %v7805 = vrcp.pop %v7799
        %v7806 = vmul.f32 1.0, %v7805
        %v7807 = vrcp.pop %v7800
        %v7808 = vmul.f32 1.0, %v7807
        %v7809 = vmul.f32 %v7802, 1.0614054
        %v7810 = vmul.f32 %v7804, 1.0614054
        %v7811 = vmul.f32 %v7806, 1.0614054
        %v7812 = vmul.f32 %v7808, 1.0614054
        %v7813 = vadd.f32 %v7809, -1.4531521
        %v7814 = vadd.f32 %v7810, -1.4531521
        %v7815 = vadd.f32 %v7811, -1.4531521
        %v7816 = vadd.f32 %v7812, -1.4531521
        %v7817 = vmul.f32 %v7813, %v7802
        %v7818 = vmul.f32 %v7814, %v7804
        %v7819 = vmul.f32 %v7815, %v7806
        %v7820 = vmul.f32 %v7816, %v7808
        %v7821 = vadd.f32 %v7817, 1.4214138
        %v7822 = vadd.f32 %v7818, 1.4214138
        %v7823 = vadd.f32 %v7819, 1.4214138
        %v7824 = vadd.f32 %v7820, 1.4214138
        %v7825 = vmul.f32 %v7821, %v7802
        %v7826 = vmul.f32 %v7822, %v7804
        %v7827 = vmul.f32 %v7823, %v7806
        %v7828 = vmul.f32 %v7824, %v7808
        %v7829 = vadd.f32 %v7825, -0.28449672
        %v7830 = vadd.f32 %v7826, -0.28449672
        %v7831 = vadd.f32 %v7827, -0.28449672
        %v7832 = vadd.f32 %v7828, -0.28449672
        %v7833 = vmul.f32 %v7829, %v7802
        %v7834 = vmul.f32 %v7830, %v7804
        %v7835 = vmul.f32 %v7831, %v7806
        %v7836 = vmul.f32 %v7832, %v7808
        %v7837 = vadd.f32 %v7833, 0.2548296
        %v7838 = vadd.f32 %v7834, 0.2548296
        %v7839 = vadd.f32 %v7835, 0.2548296
        %v7840 = vadd.f32 %v7836, 0.2548296
        %v7841 = vmul.f32 %v7837, %v7802
        %v7842 = vmul.f32 %v7838, %v7804
        %v7843 = vmul.f32 %v7839, %v7806
        %v7844 = vmul.f32 %v7840, %v7808
        %v7845 = vsub.f32 0.0, %v7789
        %v7846 = vsub.f32 0.0, %v7790
        %v7847 = vsub.f32 0.0, %v7791
        %v7848 = vsub.f32 0.0, %v7792
        %v7849 = vmul.f32 %v7845, %v7789
        %v7850 = vmul.f32 %v7846, %v7790
        %v7851 = vmul.f32 %v7847, %v7791
        %v7852 = vmul.f32 %v7848, %v7792
        %v7853 = vmul.f32 %v7849, 1.442695
        %v7854 = vpow.pop %v7853
        %v7855 = vmul.f32 %v7850, 1.442695
        %v7856 = vpow.pop %v7855
        %v7857 = vmul.f32 %v7851, 1.442695
        %v7858 = vpow.pop %v7857
        %v7859 = vmul.f32 %v7852, 1.442695
        %v7860 = vpow.pop %v7859
        %v7861 = vmul.f32 %v7841, %v7854
        %v7862 = vmul.f32 %v7842, %v7856
        %v7863 = vmul.f32 %v7843, %v7858
        %v7864 = vmul.f32 %v7844, %v7860
        %v7865 = vsub.f32 1.0, %v7861
        %v7866 = vsub.f32 1.0, %v7862
        %v7867 = vsub.f32 1.0, %v7863
        %v7868 = vsub.f32 1.0, %v7864
        %vm7869 = vcmp.lt.f32.partialorder %v7785, 0.0
        %vm7870 = vcmp.lt.f32.partialorder %v7786, 0.0
        %vm7871 = vcmp.lt.f32.partialorder %v7787, 0.0
        %vm7872 = vcmp.lt.f32.partialorder %v7788, 0.0
        %v7873 = vsub.f32 0.0, %v7865
        %v7874 = vsub.f32 0.0, %v7866
        %v7875 = vsub.f32 0.0, %v7867
        %v7876 = vsub.f32 0.0, %v7868
        %v7877 = vsel %vm7869, %v7873, %v7865
        %v7878 = vsel %vm7870, %v7874, %v7866
        %v7879 = vsel %vm7871, %v7875, %v7867
        %v7880 = vsel %vm7872, %v7876, %v7868
        %v7881 = vadd.f32 %v7877, 1.0
        %v7882 = vadd.f32 %v7878, 1.0
        %v7883 = vadd.f32 %v7879, 1.0
        %v7884 = vadd.f32 %v7880, 1.0
        %v7885 = vmul.f32 %v7781, %v7881
        %v7886 = vmul.f32 %v7782, %v7882
        %v7887 = vmul.f32 %v7783, %v7883
        %v7888 = vmul.f32 %v7784, %v7884
        %7889 = vst.msk [vmem:[%s224] sm:$0xff] %vm251, %v7885
        %7890 = vst.msk [vmem:[%s224 + $0x8] sm:$0xff] %vm251, %v7886
        %7891 = vst.msk [vmem:[%s224 + $0x10] sm:$0xff] %vm251, %v7887
        %7892 = vst.msk [vmem:[%s224 + $0x18] sm:$0xff] %vm251, %v7888
      $region44: #{tpu_custom_call.1} parent=39 // pred_fallthru
        _
      %p7893 = scmp.ge.s32.totalorder %s16, 2
      // Predicated region
      $region45: #{tpu_custom_call.1} parent=39 // pred_check
        %p7894 = pneg %p7893
      $region46: #{tpu_custom_call.1} parent=39 // pred_check_branch
        %7896 = sbr.rel (%p7894) target = $region48
      $region47: #{tpu_custom_call.1} parent=39 // pred_region
        %vm7897 = vcmask 64512
        %7898 = vst.msk [vmem:[%s224] sm:$0xff] %vm7897, 0.0
        %7899 = vst.msk [vmem:[%s224 + $0x8] sm:$0xff] %vm7897, 0.0
        %7900 = vst.msk [vmem:[%s224 + $0x10] sm:$0xff] %vm7897, 0.0
        %7901 = vst.msk [vmem:[%s224 + $0x18] sm:$0xff] %vm7897, 0.0
      $region48: #{tpu_custom_call.1} parent=39 // pred_fallthru
        _
      %p7902 = scmp.lt.s32.totalorder %s16, 7
      %s7903 = scalar_select %p7902, %s16, 7
      %s7904 = smul.addr %s7903, 4
      %s7905 = smul.addr %s7904, 8
      %s7906 = scalar_lea.vmem %s5, %s7905
      // Predicated region
      $region49: #{tpu_custom_call.1} parent=39 // pred_check
        %p7907 = pneg %p144
      $region50: #{tpu_custom_call.1} parent=39 // pred_check_branch
        %7909 = sbr.rel (%p7907) target = $region52
      $region51: #{tpu_custom_call.1} parent=39 // pred_region
        _
      $region52: #{tpu_custom_call.1} parent=39 // pred_fallthru
        _
    $region40: #{tpu_custom_call.1} parent=5 // pred_fallthru
      _
    %p7910 = scmp.le.s32.totalorder 2, %s11
    // Predicated region
    $region53: #{tpu_custom_call.1} parent=5 // pred_check
      %p7911 = pneg %p7910
    $region54: #{tpu_custom_call.1} parent=5 // pred_check_branch
      %7913 = sbr.rel (%p7911) target = $region56
    $region55: #{tpu_custom_call.1} parent=5 // pred_region
      %s7914 = ssub.s32 %s11, 2
      // Predicated region
      $region57: #{tpu_custom_call.1} parent=55 // pred_check
        %p7915 = pneg %p150
      $region58: #{tpu_custom_call.1} parent=55 // pred_check_branch
        %7917 = sbr.rel (%p7915) target = $region60
      $region59: #{tpu_custom_call.1} parent=55 // pred_region
        %p7918 = scmp.lt.s32.totalorder %s17, 7
        %s7919 = scalar_select %p7918, %s17, 7
        %s7920 = smul.addr %s7919, 4
        %s7921 = smul.addr %s7920, 8
        %s7922 = scalar_lea.vmem %s5, %s7921
      $region60: #{tpu_custom_call.1} parent=55 // pred_fallthru
        _
    $region56: #{tpu_custom_call.1} parent=5 // pred_fallthru
      _
  $region6: #{tpu_custom_call.1} parent=0 // loop_footer
    %s15 = sadd.s32 1, %s11
  $region7: #{tpu_custom_call.1} parent=0 // loop_footer_branch
    %10 = sbr.rel target = $region3
  $region8: #{tpu_custom_call.1} parent=0 // loop_exit
    _

</llo_original>
